<compile_context>
chip_gen: v6e
topology: v6e:2x2x1
jax: 0.10.0
libtpu: 0.0.40
codegen_flags: <defaults>
</compile_context>

<pallas_src>
import functools

import jax
import jax.numpy as jnp
import numpy as np
from jax import lax
from jax.experimental import pallas as pl
from jax.experimental.pallas import tpu as pltpu

# ----------------------------- model dims -----------------------------------
B, S, H = 2, 8, 32          # batch, seq, hidden
NH, DH = 4, 8               # heads, head dim
DFF = 64                    # feed-forward dim
VOCAB = 64
N_LAYERS = 2
EPS = 1e-6


# ----------------------------- fused kernel ---------------------------------
def fused_t5_classifier_kernel(ids_ref, mask_ref, embed_ref,
                               ln1_ref, wq_ref, wk_ref, wv_ref, wo_ref,
                               ln2_ref, w1_ref, w2_ref,
                               lnf_ref, hw_ref, hb_ref,
                               o_ref, x_scratch, *, n_layers, nh):
    """Whole forward for the full batch, fully resident in VMEM/SMEM.

    Shapes:
      ids_ref  (B, S) i32 SMEM    mask_ref (B, S) i32 VMEM
      embed_ref(V, H)             ln1/ln2  (L, H)          lnf_ref (1, H)
      wq/wk/wv (L, NH, H, DH)     wo_ref   (L, NH, DH, H)
      w1_ref   (L, H, DFF)        w2_ref   (L, DFF, H)
      hw_ref   (1, H)             hb_ref   (1, 1)          o_ref   (B, 1)
      x_scratch(B*S, H) f32 VMEM scratch (embedding gather target)
    """
    bsz, seq = ids_ref.shape
    _, hidden = embed_ref.shape
    dh = hidden // nh

    # ---- fused embedding gather: dynamic first-axis row loads ---------------
    for i in range(bsz * seq):                       # static unroll (B*S = 16)
        b, t = divmod(i, seq)
        tok = ids_ref[b, t]                          # scalar from SMEM
        x_scratch[pl.ds(i, 1), :] = embed_ref[pl.ds(tok, 1), :]
    x = x_scratch[...].reshape(bsz, seq, hidden)     # leading-dim split: cheap

    # ---- additive attention-mask bias: computed & broadcast ONCE ------------
    mask = mask_ref[...].astype(jnp.float32)         # (B, S), 1 = keep
    bias = jnp.broadcast_to(((1.0 - mask) * (-1e9))[:, None, :],
                            (bsz, seq, seq))         # (B, S, S), hoisted

    for layer in range(n_layers):                    # static unroll (L = 2)
        # ---- self-attention sub-block (pre-RMSNorm, T5: no score scaling) ---
        var = jnp.mean(x * x, axis=-1, keepdims=True)
        h = x * lax.rsqrt(var + EPS) * ln1_ref[layer]
        h2d = h.reshape(bsz * seq, hidden)           # (B*S, H)

        y = x                                        # residual accumulator
        for hd in range(nh):                         # static unroll (NH = 4)
            # head-major weights: leading-dim indexing only, no lane slicing
            qh = jnp.dot(h2d, wq_ref[layer, hd],
                         preferred_element_type=jnp.float32).reshape(bsz, seq, dh)
            kh = jnp.dot(h2d, wk_ref[layer, hd],
                         preferred_element_type=jnp.float32).reshape(bsz, seq, dh)
            vh = jnp.dot(h2d, wv_ref[layer, hd],
                         preferred_element_type=jnp.float32).reshape(bsz, seq, dh)

            s = jnp.einsum("bqd,bkd->bqk", qh, kh,
                           preferred_element_type=jnp.float32) + bias   # (B,S,S)
            m = jnp.max(s, axis=-1, keepdims=True)
            p = jnp.exp(s - m)
            p = p / jnp.sum(p, axis=-1, keepdims=True)
            ctx = jnp.einsum("bqk,bkd->bqd", p, vh,
                             preferred_element_type=jnp.float32)        # (B,S,DH)

            # accumulate the output projection per head: no concat needed
            y = y + jnp.dot(ctx.reshape(bsz * seq, dh), wo_ref[layer, hd],
                            preferred_element_type=jnp.float32
                            ).reshape(bsz, seq, hidden)
        x = y

        # ---- feed-forward sub-block ----------------------------------------
        var2 = jnp.mean(x * x, axis=-1, keepdims=True)
        h2 = (x * lax.rsqrt(var2 + EPS) * ln2_ref[layer]).reshape(bsz * seq, hidden)
        f = jnp.maximum(
            jnp.dot(h2, w1_ref[layer], preferred_element_type=jnp.float32), 0.0)
        x = x + jnp.dot(f, w2_ref[layer],
                        preferred_element_type=jnp.float32).reshape(bsz, seq, hidden)

    # ---- final RMSNorm -> mean-pool over seq -> Linear(H,1) -> Sigmoid ------
    # NOTE: matches the PyTorch module: .mean(dim=1) includes padded positions.
    varf = jnp.mean(x * x, axis=-1, keepdims=True)
    hf = x * lax.rsqrt(varf + EPS) * lnf_ref[0]
    pooled = jnp.mean(hf, axis=1)                    # (B, H)
    # N=1 "matmul" done as a VPU reduction instead of an MXU push.
    logits = jnp.sum(pooled * hw_ref[0], axis=-1, keepdims=True) + hb_ref[...]
    o_ref[...] = 1.0 / (1.0 + jnp.exp(-logits))      # sigmoid


# ----------------------------- wrapper ---------------------------------------
def prepare_params(params):
    """One-time layout plumbing (outside the forward path): head-major Q/K/V/O
    projection weights so the kernel never slices lanes or concatenates."""
    L = params["wq"].shape[0]
    p = dict(params)
    p["wq"] = params["wq"].reshape(L, H, NH, DH).transpose(0, 2, 1, 3)  # (L,NH,H,DH)
    p["wk"] = params["wk"].reshape(L, H, NH, DH).transpose(0, 2, 1, 3)
    p["wv"] = params["wv"].reshape(L, H, NH, DH).transpose(0, 2, 1, 3)
    p["wo"] = params["wo"].reshape(L, NH, DH, H)                        # (L,NH,DH,H)
    return p


@jax.jit
def forward(kparams, input_ids, attention_mask):
    bsz, seq = input_ids.shape
    L = kparams["wq"].shape[0]
    vmem = pl.BlockSpec(memory_space=pltpu.MemorySpace.VMEM)
    smem = pl.BlockSpec(memory_space=pltpu.MemorySpace.SMEM)

    # Single pallas_call, no grid: whole arrays resident in VMEM; ids in SMEM.
    return pl.pallas_call(
        functools.partial(fused_t5_classifier_kernel, n_layers=L, nh=NH),
        out_shape=jax.ShapeDtypeStruct((bsz, 1), jnp.float32),
        in_specs=[smem] + [vmem] * 13,
        out_specs=vmem,
        scratch_shapes=[pltpu.VMEM((bsz * seq, H), jnp.float32)],
    )(input_ids.astype(jnp.int32), attention_mask.astype(jnp.int32),
      kparams["embed"],
      kparams["ln1"], kparams["wq"], kparams["wk"], kparams["wv"], kparams["wo"],
      kparams["ln2"], kparams["w1"], kparams["w2"],
      kparams["lnf"], kparams["head_w"], kparams["head_b"])


# ----------------------------- pure-JAX reference ----------------------------
def _rms(x, g):
    return x * lax.rsqrt(jnp.mean(x * x, axis=-1, keepdims=True) + EPS) * g


def reference(params, input_ids, attention_mask):
    x = jnp.take(params["embed"], input_ids, axis=0).astype(jnp.float32)
    mask_f = attention_mask.astype(jnp.float32)
    bias = (1.0 - mask_f) * (-1e9)                   # (B, S)
    bq, sq = input_ids.shape
    for l in range(N_LAYERS):
        h = _rms(x, params["ln1"][l])
        q, k, v = h @ params["wq"][l], h @ params["wk"][l], h @ params["wv"][l]
        qh = q.reshape(bq, sq, NH, DH).transpose(0, 2, 1, 3)
        kh = k.reshape(bq, sq, NH, DH).transpose(0, 2, 1, 3)
        vh = v.reshape(bq, sq, NH, DH).transpose(0, 2, 1, 3)
        s = jnp.einsum("bhqd,bhkd->bhqk", qh, kh) + bias[:, None, None, :]
        p = jax.nn.softmax(s, axis=-1)
        a = jnp.einsum("bhqk,bhkd->bhqd", p, vh).transpose(0, 2, 1, 3)
        x = x + a.reshape(bq, sq, H) @ params["wo"][l]
        h2 = _rms(x, params["ln2"][l])
        x = x + jnp.maximum(h2 @ params["w1"][l], 0.0) @ params["w2"][l]
    hf = _rms(x, params["lnf"][0])
    pooled = jnp.mean(hf, axis=1)                    # (B, H)
    logits = pooled @ params["head_w"].T + params["head_b"]
    return jax.nn.sigmoid(logits)


# ----------------------------- params ----------------------------------------
def init_params(key):
    ks = iter(jax.random.split(key, 8 * N_LAYERS + 8))
    scale = 0.05

    def w(shape):
        return (scale * jax.random.normal(next(ks), shape)).astype(jnp.float32)

    def g(shape):  # RMSNorm gains near 1
        return (1.0 + 0.1 * jax.random.normal(next(ks), shape)).astype(jnp.float32)

    return dict(
        embed=w((VOCAB, H)),
        ln1=g((N_LAYERS, H)),
        wq=w((N_LAYERS, H, H)),
        wk=w((N_LAYERS, H, H)),
        wv=w((N_LAYERS, H, H)),
        wo=w((N_LAYERS, H, H)),
        ln2=g((N_LAYERS, H)),
        w1=w((N_LAYERS, H, DFF)),
        w2=w((N_LAYERS, DFF, H)),
        lnf=g((1, H)),
        head_w=w((1, H)),                    # nn.Linear(hidden_size, 1).weight
        head_b=jnp.zeros((1, 1), jnp.float32),
    )


# ----------------------------- main ------------------------------------------
if __name__ == "__main__":
    key = jax.random.PRNGKey(0)
    kp, kid = jax.random.split(key)
    params = init_params(kp)
    kparams = prepare_params(params)             # one-time layout plumbing

    input_ids = jax.random.randint(kid, (B, S), 0, VOCAB, dtype=jnp.int32)
    attention_mask = jnp.array(
        [[1, 1, 1, 1, 1, 1, 1, 1],
         [1, 1, 1, 1, 1, 0, 0, 0]], dtype=jnp.int32)

    probs = jax.block_until_ready(forward(kparams, input_ids, attention_mask))

    ref = jax.block_until_ready(reference(params, input_ids, attention_mask))
    np.testing.assert_allclose(np.asarray(probs), np.asarray(ref),
                               rtol=1e-3, atol=1e-4)
    assert probs.shape == (B, 1)
    print("KERNEL_OK")
</pallas_src>

<mosaic_0001>
module attributes {stable_mosaic.version = 11 : i64} {
  func.func @fused_t5_classifier_kernel(%arg0: memref<2x8xi32, #tpu.memory_space<smem>>, %arg1: memref<2x8xi32, #tpu.memory_space<vmem>>, %arg2: memref<64x32xf32, #tpu.memory_space<vmem>>, %arg3: memref<2x32xf32, #tpu.memory_space<vmem>>, %arg4: memref<2x4x32x8xf32, #tpu.memory_space<vmem>>, %arg5: memref<2x4x32x8xf32, #tpu.memory_space<vmem>>, %arg6: memref<2x4x32x8xf32, #tpu.memory_space<vmem>>, %arg7: memref<2x4x8x32xf32, #tpu.memory_space<vmem>>, %arg8: memref<2x32xf32, #tpu.memory_space<vmem>>, %arg9: memref<2x32x64xf32, #tpu.memory_space<vmem>>, %arg10: memref<2x64x32xf32, #tpu.memory_space<vmem>>, %arg11: memref<1x32xf32, #tpu.memory_space<vmem>>, %arg12: memref<1x32xf32, #tpu.memory_space<vmem>>, %arg13: memref<1x1xf32, #tpu.memory_space<vmem>>, %arg14: memref<2x1xf32, #tpu.memory_space<vmem>>, %arg15: memref<16x32xf32, #tpu.memory_space<vmem>>) attributes {dimension_semantics = [], scalar_prefetch = 0 : i64, scratch_operands = 1 : i64, tpu.core_type = #tpu.core_type<tc>} {
    %c0 = arith.constant 0 : index
    %c0_0 = arith.constant 0 : index
    %0 = memref.load %arg0[%c0, %c0_0] : memref<2x8xi32, #tpu.memory_space<smem>>
    %1 = arith.index_cast %0 : i32 to index
    %c0_1 = arith.constant 0 : index
    %2 = vector.load %arg2[%1, %c0_1] : memref<64x32xf32, #tpu.memory_space<vmem>>, vector<1x32xf32>
    %c0_2 = arith.constant 0 : index
    %c0_3 = arith.constant 0 : index
    %3 = vector.load %arg15[%c0_2, %c0_3] : memref<16x32xf32, #tpu.memory_space<vmem>>, vector<1x32xf32>
    tpu.vector_store %arg15[%c0_2, %c0_3], %2 {strides = array<i32>} : memref<16x32xf32, #tpu.memory_space<vmem>>, vector<1x32xf32>,
    %c0_4 = arith.constant 0 : index
    %c1 = arith.constant 1 : index
    %4 = memref.load %arg0[%c0_4, %c1] : memref<2x8xi32, #tpu.memory_space<smem>>
    %5 = arith.index_cast %4 : i32 to index
    %c0_5 = arith.constant 0 : index
    %6 = vector.load %arg2[%5, %c0_5] : memref<64x32xf32, #tpu.memory_space<vmem>>, vector<1x32xf32>
    %c1_6 = arith.constant 1 : index
    %c0_7 = arith.constant 0 : index
    %7 = vector.load %arg15[%c1_6, %c0_7] : memref<16x32xf32, #tpu.memory_space<vmem>>, vector<1x32xf32>
    tpu.vector_store %arg15[%c1_6, %c0_7], %6 {strides = array<i32>} : memref<16x32xf32, #tpu.memory_space<vmem>>, vector<1x32xf32>,
    %c0_8 = arith.constant 0 : index
    %c2 = arith.constant 2 : index
    %8 = memref.load %arg0[%c0_8, %c2] : memref<2x8xi32, #tpu.memory_space<smem>>
    %9 = arith.index_cast %8 : i32 to index
    %c0_9 = arith.constant 0 : index
    %10 = vector.load %arg2[%9, %c0_9] : memref<64x32xf32, #tpu.memory_space<vmem>>, vector<1x32xf32>
    %c2_10 = arith.constant 2 : index
    %c0_11 = arith.constant 0 : index
    %11 = vector.load %arg15[%c2_10, %c0_11] : memref<16x32xf32, #tpu.memory_space<vmem>>, vector<1x32xf32>
    tpu.vector_store %arg15[%c2_10, %c0_11], %10 {strides = array<i32>} : memref<16x32xf32, #tpu.memory_space<vmem>>, vector<1x32xf32>,
    %c0_12 = arith.constant 0 : index
    %c3 = arith.constant 3 : index
    %12 = memref.load %arg0[%c0_12, %c3] : memref<2x8xi32, #tpu.memory_space<smem>>
    %13 = arith.index_cast %12 : i32 to index
    %c0_13 = arith.constant 0 : index
    %14 = vector.load %arg2[%13, %c0_13] : memref<64x32xf32, #tpu.memory_space<vmem>>, vector<1x32xf32>
    %c3_14 = arith.constant 3 : index
    %c0_15 = arith.constant 0 : index
    %15 = vector.load %arg15[%c3_14, %c0_15] : memref<16x32xf32, #tpu.memory_space<vmem>>, vector<1x32xf32>
    tpu.vector_store %arg15[%c3_14, %c0_15], %14 {strides = array<i32>} : memref<16x32xf32, #tpu.memory_space<vmem>>, vector<1x32xf32>,
    %c0_16 = arith.constant 0 : index
    %c4 = arith.constant 4 : index
    %16 = memref.load %arg0[%c0_16, %c4] : memref<2x8xi32, #tpu.memory_space<smem>>
    %17 = arith.index_cast %16 : i32 to index
    %c0_17 = arith.constant 0 : index
    %18 = vector.load %arg2[%17, %c0_17] : memref<64x32xf32, #tpu.memory_space<vmem>>, vector<1x32xf32>
    %c4_18 = arith.constant 4 : index
    %c0_19 = arith.constant 0 : index
    %19 = vector.load %arg15[%c4_18, %c0_19] : memref<16x32xf32, #tpu.memory_space<vmem>>, vector<1x32xf32>
    tpu.vector_store %arg15[%c4_18, %c0_19], %18 {strides = array<i32>} : memref<16x32xf32, #tpu.memory_space<vmem>>, vector<1x32xf32>,
    %c0_20 = arith.constant 0 : index
    %c5 = arith.constant 5 : index
    %20 = memref.load %arg0[%c0_20, %c5] : memref<2x8xi32, #tpu.memory_space<smem>>
    %21 = arith.index_cast %20 : i32 to index
    %c0_21 = arith.constant 0 : index
    %22 = vector.load %arg2[%21, %c0_21] : memref<64x32xf32, #tpu.memory_space<vmem>>, vector<1x32xf32>
    %c5_22 = arith.constant 5 : index
    %c0_23 = arith.constant 0 : index
    %23 = vector.load %arg15[%c5_22, %c0_23] : memref<16x32xf32, #tpu.memory_space<vmem>>, vector<1x32xf32>
    tpu.vector_store %arg15[%c5_22, %c0_23], %22 {strides = array<i32>} : memref<16x32xf32, #tpu.memory_space<vmem>>, vector<1x32xf32>,
    %c0_24 = arith.constant 0 : index
    %c6 = arith.constant 6 : index
    %24 = memref.load %arg0[%c0_24, %c6] : memref<2x8xi32, #tpu.memory_space<smem>>
    %25 = arith.index_cast %24 : i32 to index
    %c0_25 = arith.constant 0 : index
    %26 = vector.load %arg2[%25, %c0_25] : memref<64x32xf32, #tpu.memory_space<vmem>>, vector<1x32xf32>
    %c6_26 = arith.constant 6 : index
    %c0_27 = arith.constant 0 : index
    %27 = vector.load %arg15[%c6_26, %c0_27] : memref<16x32xf32, #tpu.memory_space<vmem>>, vector<1x32xf32>
    tpu.vector_store %arg15[%c6_26, %c0_27], %26 {strides = array<i32>} : memref<16x32xf32, #tpu.memory_space<vmem>>, vector<1x32xf32>,
    %c0_28 = arith.constant 0 : index
    %c7 = arith.constant 7 : index
    %28 = memref.load %arg0[%c0_28, %c7] : memref<2x8xi32, #tpu.memory_space<smem>>
    %29 = arith.index_cast %28 : i32 to index
    %c0_29 = arith.constant 0 : index
    %30 = vector.load %arg2[%29, %c0_29] : memref<64x32xf32, #tpu.memory_space<vmem>>, vector<1x32xf32>
    %c7_30 = arith.constant 7 : index
    %c0_31 = arith.constant 0 : index
    %31 = vector.load %arg15[%c7_30, %c0_31] : memref<16x32xf32, #tpu.memory_space<vmem>>, vector<1x32xf32>
    tpu.vector_store %arg15[%c7_30, %c0_31], %30 {strides = array<i32>} : memref<16x32xf32, #tpu.memory_space<vmem>>, vector<1x32xf32>,
    %c1_32 = arith.constant 1 : index
    %c0_33 = arith.constant 0 : index
    %32 = memref.load %arg0[%c1_32, %c0_33] : memref<2x8xi32, #tpu.memory_space<smem>>
    %33 = arith.index_cast %32 : i32 to index
    %c0_34 = arith.constant 0 : index
    %34 = vector.load %arg2[%33, %c0_34] : memref<64x32xf32, #tpu.memory_space<vmem>>, vector<1x32xf32>
    %c8 = arith.constant 8 : index
    %c0_35 = arith.constant 0 : index
    %35 = vector.load %arg15[%c8, %c0_35] : memref<16x32xf32, #tpu.memory_space<vmem>>, vector<1x32xf32>
    tpu.vector_store %arg15[%c8, %c0_35], %34 {strides = array<i32>} : memref<16x32xf32, #tpu.memory_space<vmem>>, vector<1x32xf32>,
    %c1_36 = arith.constant 1 : index
    %c1_37 = arith.constant 1 : index
    %36 = memref.load %arg0[%c1_36, %c1_37] : memref<2x8xi32, #tpu.memory_space<smem>>
    %37 = arith.index_cast %36 : i32 to index
    %c0_38 = arith.constant 0 : index
    %38 = vector.load %arg2[%37, %c0_38] : memref<64x32xf32, #tpu.memory_space<vmem>>, vector<1x32xf32>
    %c9 = arith.constant 9 : index
    %c0_39 = arith.constant 0 : index
    %39 = vector.load %arg15[%c9, %c0_39] : memref<16x32xf32, #tpu.memory_space<vmem>>, vector<1x32xf32>
    tpu.vector_store %arg15[%c9, %c0_39], %38 {strides = array<i32>} : memref<16x32xf32, #tpu.memory_space<vmem>>, vector<1x32xf32>,
    %c1_40 = arith.constant 1 : index
    %c2_41 = arith.constant 2 : index
    %40 = memref.load %arg0[%c1_40, %c2_41] : memref<2x8xi32, #tpu.memory_space<smem>>
    %41 = arith.index_cast %40 : i32 to index
    %c0_42 = arith.constant 0 : index
    %42 = vector.load %arg2[%41, %c0_42] : memref<64x32xf32, #tpu.memory_space<vmem>>, vector<1x32xf32>
    %c10 = arith.constant 10 : index
    %c0_43 = arith.constant 0 : index
    %43 = vector.load %arg15[%c10, %c0_43] : memref<16x32xf32, #tpu.memory_space<vmem>>, vector<1x32xf32>
    tpu.vector_store %arg15[%c10, %c0_43], %42 {strides = array<i32>} : memref<16x32xf32, #tpu.memory_space<vmem>>, vector<1x32xf32>,
    %c1_44 = arith.constant 1 : index
    %c3_45 = arith.constant 3 : index
    %44 = memref.load %arg0[%c1_44, %c3_45] : memref<2x8xi32, #tpu.memory_space<smem>>
    %45 = arith.index_cast %44 : i32 to index
    %c0_46 = arith.constant 0 : index
    %46 = vector.load %arg2[%45, %c0_46] : memref<64x32xf32, #tpu.memory_space<vmem>>, vector<1x32xf32>
    %c11 = arith.constant 11 : index
    %c0_47 = arith.constant 0 : index
    %47 = vector.load %arg15[%c11, %c0_47] : memref<16x32xf32, #tpu.memory_space<vmem>>, vector<1x32xf32>
    tpu.vector_store %arg15[%c11, %c0_47], %46 {strides = array<i32>} : memref<16x32xf32, #tpu.memory_space<vmem>>, vector<1x32xf32>,
    %c1_48 = arith.constant 1 : index
    %c4_49 = arith.constant 4 : index
    %48 = memref.load %arg0[%c1_48, %c4_49] : memref<2x8xi32, #tpu.memory_space<smem>>
    %49 = arith.index_cast %48 : i32 to index
    %c0_50 = arith.constant 0 : index
    %50 = vector.load %arg2[%49, %c0_50] : memref<64x32xf32, #tpu.memory_space<vmem>>, vector<1x32xf32>
    %c12 = arith.constant 12 : index
    %c0_51 = arith.constant 0 : index
    %51 = vector.load %arg15[%c12, %c0_51] : memref<16x32xf32, #tpu.memory_space<vmem>>, vector<1x32xf32>
    tpu.vector_store %arg15[%c12, %c0_51], %50 {strides = array<i32>} : memref<16x32xf32, #tpu.memory_space<vmem>>, vector<1x32xf32>,
    %c1_52 = arith.constant 1 : index
    %c5_53 = arith.constant 5 : index
    %52 = memref.load %arg0[%c1_52, %c5_53] : memref<2x8xi32, #tpu.memory_space<smem>>
    %53 = arith.index_cast %52 : i32 to index
    %c0_54 = arith.constant 0 : index
    %54 = vector.load %arg2[%53, %c0_54] : memref<64x32xf32, #tpu.memory_space<vmem>>, vector<1x32xf32>
    %c13 = arith.constant 13 : index
    %c0_55 = arith.constant 0 : index
    %55 = vector.load %arg15[%c13, %c0_55] : memref<16x32xf32, #tpu.memory_space<vmem>>, vector<1x32xf32>
    tpu.vector_store %arg15[%c13, %c0_55], %54 {strides = array<i32>} : memref<16x32xf32, #tpu.memory_space<vmem>>, vector<1x32xf32>,
    %c1_56 = arith.constant 1 : index
    %c6_57 = arith.constant 6 : index
    %56 = memref.load %arg0[%c1_56, %c6_57] : memref<2x8xi32, #tpu.memory_space<smem>>
    %57 = arith.index_cast %56 : i32 to index
    %c0_58 = arith.constant 0 : index
    %58 = vector.load %arg2[%57, %c0_58] : memref<64x32xf32, #tpu.memory_space<vmem>>, vector<1x32xf32>
    %c14 = arith.constant 14 : index
    %c0_59 = arith.constant 0 : index
    %59 = vector.load %arg15[%c14, %c0_59] : memref<16x32xf32, #tpu.memory_space<vmem>>, vector<1x32xf32>
    tpu.vector_store %arg15[%c14, %c0_59], %58 {strides = array<i32>} : memref<16x32xf32, #tpu.memory_space<vmem>>, vector<1x32xf32>,
    %c1_60 = arith.constant 1 : index
    %c7_61 = arith.constant 7 : index
    %60 = memref.load %arg0[%c1_60, %c7_61] : memref<2x8xi32, #tpu.memory_space<smem>>
    %61 = arith.index_cast %60 : i32 to index
    %c0_62 = arith.constant 0 : index
    %62 = vector.load %arg2[%61, %c0_62] : memref<64x32xf32, #tpu.memory_space<vmem>>, vector<1x32xf32>
    %c15 = arith.constant 15 : index
    %c0_63 = arith.constant 0 : index
    %63 = vector.load %arg15[%c15, %c0_63] : memref<16x32xf32, #tpu.memory_space<vmem>>, vector<1x32xf32>
    tpu.vector_store %arg15[%c15, %c0_63], %62 {strides = array<i32>} : memref<16x32xf32, #tpu.memory_space<vmem>>, vector<1x32xf32>,
    %c0_64 = arith.constant 0 : index
    %c0_65 = arith.constant 0 : index
    %64 = vector.load %arg15[%c0_64, %c0_65] : memref<16x32xf32, #tpu.memory_space<vmem>>, vector<16x32xf32>
    %65 = vector.shape_cast %64 : vector<16x32xf32> to vector<2x8x32xf32>
    %c0_66 = arith.constant 0 : index
    %c0_67 = arith.constant 0 : index
    %66 = vector.load %arg1[%c0_66, %c0_67] : memref<2x8xi32, #tpu.memory_space<vmem>>, vector<2x8xi32>
    %67 = arith.sitofp %66 : vector<2x8xi32> to vector<2x8xf32>
    %cst = arith.constant 1.000000e+00 : f32
    %68 = vector.broadcast %cst : f32 to vector<2x8xf32>
    %69 = arith.subf %68, %67 : vector<2x8xf32>
    %cst_68 = arith.constant -1.000000e+09 : f32
    %70 = vector.broadcast %cst_68 : f32 to vector<2x8xf32>
    %71 = arith.mulf %69, %70 : vector<2x8xf32>
    %72 = vector.shape_cast %71 : vector<2x8xf32> to vector<2x1x8xf32>
    %73 = vector.shape_cast %72 : vector<2x1x8xf32> to vector<2x1x8xf32>
    %74 = vector.broadcast %73 : vector<2x1x8xf32> to vector<2x8x8xf32>
    %75 = arith.mulf %65, %65 : vector<2x8x32xf32>
    %cst_69 = arith.constant dense<0.000000e+00> : vector<2x8xf32>
    %76 = vector.multi_reduction <add>, %75, %cst_69 [2] : vector<2x8x32xf32> to vector<2x8xf32>
    %77 = vector.shape_cast %76 : vector<2x8xf32> to vector<2x8x1xf32>
    %cst_70 = arith.constant 3.200000e+01 : f32
    %78 = vector.broadcast %cst_70 : f32 to vector<2x8x1xf32>
    %79 = arith.divf %77, %78 : vector<2x8x1xf32>
    %cst_71 = arith.constant 9.99999997E-7 : f32
    %80 = vector.broadcast %cst_71 : f32 to vector<2x8x1xf32>
    %81 = arith.addf %79, %80 : vector<2x8x1xf32>
    %82 = math.rsqrt %81 : vector<2x8x1xf32>
    %83 = vector.broadcast %82 : vector<2x8x1xf32> to vector<2x8x32xf32>
    %84 = arith.mulf %65, %83 : vector<2x8x32xf32>
    %c0_72 = arith.constant 0 : index
    %c0_73 = arith.constant 0 : index
    %85 = vector.load %arg3[%c0_72, %c0_73] : memref<2x32xf32, #tpu.memory_space<vmem>>, vector<1x32xf32>
    %86 = vector.shape_cast %85 : vector<1x32xf32> to vector<32xf32>
    %87 = vector.shape_cast %86 : vector<32xf32> to vector<1x1x32xf32>
    %88 = vector.broadcast %87 : vector<1x1x32xf32> to vector<2x8x32xf32>
    %89 = arith.mulf %84, %88 : vector<2x8x32xf32>
    %90 = vector.shape_cast %89 : vector<2x8x32xf32> to vector<16x32xf32>
    %c0_74 = arith.constant 0 : index
    %c0_75 = arith.constant 0 : index
    %c0_76 = arith.constant 0 : index
    %c0_77 = arith.constant 0 : index
    %91 = vector.load %arg4[%c0_74, %c0_75, %c0_76, %c0_77] : memref<2x4x32x8xf32, #tpu.memory_space<vmem>>, vector<1x1x32x8xf32>
    %92 = vector.shape_cast %91 : vector<1x1x32x8xf32> to vector<32x8xf32>
    %cst_78 = arith.constant dense<0.000000e+00> : vector<16x8xf32>
    %93 = tpu.matmul %90, %92, %cst_78 {dimension_numbers = #tpu.dot_dimension_numbers<[1], [0], [0], [1], [0, 0, 1, 1], [], []>} : vector<16x32xf32>, vector<32x8xf32>, vector<16x8xf32> -> vector<16x8xf32>
    %94 = vector.shape_cast %93 : vector<16x8xf32> to vector<2x8x8xf32>
    %c0_79 = arith.constant 0 : index
    %c0_80 = arith.constant 0 : index
    %c0_81 = arith.constant 0 : index
    %c0_82 = arith.constant 0 : index
    %95 = vector.load %arg5[%c0_79, %c0_80, %c0_81, %c0_82] : memref<2x4x32x8xf32, #tpu.memory_space<vmem>>, vector<1x1x32x8xf32>
    %96 = vector.shape_cast %95 : vector<1x1x32x8xf32> to vector<32x8xf32>
    %cst_83 = arith.constant dense<0.000000e+00> : vector<16x8xf32>
    %97 = tpu.matmul %90, %96, %cst_83 {dimension_numbers = #tpu.dot_dimension_numbers<[1], [0], [0], [1], [0, 0, 1, 1], [], []>} : vector<16x32xf32>, vector<32x8xf32>, vector<16x8xf32> -> vector<16x8xf32>
    %98 = vector.shape_cast %97 : vector<16x8xf32> to vector<2x8x8xf32>
    %c0_84 = arith.constant 0 : index
    %c0_85 = arith.constant 0 : index
    %c0_86 = arith.constant 0 : index
    %c0_87 = arith.constant 0 : index
    %99 = vector.load %arg6[%c0_84, %c0_85, %c0_86, %c0_87] : memref<2x4x32x8xf32, #tpu.memory_space<vmem>>, vector<1x1x32x8xf32>
    %100 = vector.shape_cast %99 : vector<1x1x32x8xf32> to vector<32x8xf32>
    %cst_88 = arith.constant dense<0.000000e+00> : vector<16x8xf32>
    %101 = tpu.matmul %90, %100, %cst_88 {dimension_numbers = #tpu.dot_dimension_numbers<[1], [0], [0], [1], [0, 0, 1, 1], [], []>} : vector<16x32xf32>, vector<32x8xf32>, vector<16x8xf32> -> vector<16x8xf32>
    %102 = vector.shape_cast %101 : vector<16x8xf32> to vector<2x8x8xf32>
    "tpu.trace_start"() <{level = 10 : i32, message = "bqd,bkd->bqk"}> : () -> ()
    %cst_89 = arith.constant dense<0.000000e+00> : vector<2x8x8xf32>
    %103 = tpu.matmul %94, %98, %cst_89 {dimension_numbers = #tpu.dot_dimension_numbers<[2], [2], [1], [1], [0, 0, 0, 1, 1, 1], [0], [0]>} : vector<2x8x8xf32>, vector<2x8x8xf32>, vector<2x8x8xf32> -> vector<2x8x8xf32>
    "tpu.trace_stop"() : () -> ()
    %104 = arith.addf %103, %74 : vector<2x8x8xf32>
    %cst_90 = arith.constant dense<0xFF800000> : vector<2x8xf32>
    %105 = vector.multi_reduction <maximumf>, %104, %cst_90 [2] : vector<2x8x8xf32> to vector<2x8xf32>
    %106 = vector.shape_cast %105 : vector<2x8xf32> to vector<2x8x1xf32>
    %107 = vector.broadcast %106 : vector<2x8x1xf32> to vector<2x8x8xf32>
    %108 = arith.subf %104, %107 : vector<2x8x8xf32>
    %109 = math.exp %108 : vector<2x8x8xf32>
    %cst_91 = arith.constant dense<0.000000e+00> : vector<2x8xf32>
    %110 = vector.multi_reduction <add>, %109, %cst_91 [2] : vector<2x8x8xf32> to vector<2x8xf32>
    %111 = vector.shape_cast %110 : vector<2x8xf32> to vector<2x8x1xf32>
    %112 = vector.broadcast %111 : vector<2x8x1xf32> to vector<2x8x8xf32>
    %113 = arith.divf %109, %112 : vector<2x8x8xf32>
    "tpu.trace_start"() <{level = 10 : i32, message = "bqk,bkd->bqd"}> : () -> ()
    %cst_92 = arith.constant dense<0.000000e+00> : vector<2x8x8xf32>
    %114 = tpu.matmul %113, %102, %cst_92 {dimension_numbers = #tpu.dot_dimension_numbers<[2], [1], [1], [2], [0, 0, 0, 1, 1, 2], [0], [0]>} : vector<2x8x8xf32>, vector<2x8x8xf32>, vector<2x8x8xf32> -> vector<2x8x8xf32>
    "tpu.trace_stop"() : () -> ()
    %115 = vector.shape_cast %114 : vector<2x8x8xf32> to vector<16x8xf32>
    %c0_93 = arith.constant 0 : index
    %c0_94 = arith.constant 0 : index
    %c0_95 = arith.constant 0 : index
    %c0_96 = arith.constant 0 : index
    %116 = vector.load %arg7[%c0_93, %c0_94, %c0_95, %c0_96] : memref<2x4x8x32xf32, #tpu.memory_space<vmem>>, vector<1x1x8x32xf32>
    %117 = vector.shape_cast %116 : vector<1x1x8x32xf32> to vector<8x32xf32>
    %cst_97 = arith.constant dense<0.000000e+00> : vector<16x32xf32>
    %118 = tpu.matmul %115, %117, %cst_97 {dimension_numbers = #tpu.dot_dimension_numbers<[1], [0], [0], [1], [0, 0, 1, 1], [], []>} : vector<16x8xf32>, vector<8x32xf32>, vector<16x32xf32> -> vector<16x32xf32>
    %119 = vector.shape_cast %118 : vector<16x32xf32> to vector<2x8x32xf32>
    %120 = arith.addf %65, %119 : vector<2x8x32xf32>
    %c0_98 = arith.constant 0 : index
    %c1_99 = arith.constant 1 : index
    %c0_100 = arith.constant 0 : index
    %c0_101 = arith.constant 0 : index
    %121 = vector.load %arg4[%c0_98, %c1_99, %c0_100, %c0_101] : memref<2x4x32x8xf32, #tpu.memory_space<vmem>>, vector<1x1x32x8xf32>
    %122 = vector.shape_cast %121 : vector<1x1x32x8xf32> to vector<32x8xf32>
    %cst_102 = arith.constant dense<0.000000e+00> : vector<16x8xf32>
    %123 = tpu.matmul %90, %122, %cst_102 {dimension_numbers = #tpu.dot_dimension_numbers<[1], [0], [0], [1], [0, 0, 1, 1], [], []>} : vector<16x32xf32>, vector<32x8xf32>, vector<16x8xf32> -> vector<16x8xf32>
    %124 = vector.shape_cast %123 : vector<16x8xf32> to vector<2x8x8xf32>
    %c0_103 = arith.constant 0 : index
    %c1_104 = arith.constant 1 : index
    %c0_105 = arith.constant 0 : index
    %c0_106 = arith.constant 0 : index
    %125 = vector.load %arg5[%c0_103, %c1_104, %c0_105, %c0_106] : memref<2x4x32x8xf32, #tpu.memory_space<vmem>>, vector<1x1x32x8xf32>
    %126 = vector.shape_cast %125 : vector<1x1x32x8xf32> to vector<32x8xf32>
    %cst_107 = arith.constant dense<0.000000e+00> : vector<16x8xf32>
    %127 = tpu.matmul %90, %126, %cst_107 {dimension_numbers = #tpu.dot_dimension_numbers<[1], [0], [0], [1], [0, 0, 1, 1], [], []>} : vector<16x32xf32>, vector<32x8xf32>, vector<16x8xf32> -> vector<16x8xf32>
    %128 = vector.shape_cast %127 : vector<16x8xf32> to vector<2x8x8xf32>
    %c0_108 = arith.constant 0 : index
    %c1_109 = arith.constant 1 : index
    %c0_110 = arith.constant 0 : index
    %c0_111 = arith.constant 0 : index
    %129 = vector.load %arg6[%c0_108, %c1_109, %c0_110, %c0_111] : memref<2x4x32x8xf32, #tpu.memory_space<vmem>>, vector<1x1x32x8xf32>
    %130 = vector.shape_cast %129 : vector<1x1x32x8xf32> to vector<32x8xf32>
    %cst_112 = arith.constant dense<0.000000e+00> : vector<16x8xf32>
    %131 = tpu.matmul %90, %130, %cst_112 {dimension_numbers = #tpu.dot_dimension_numbers<[1], [0], [0], [1], [0, 0, 1, 1], [], []>} : vector<16x32xf32>, vector<32x8xf32>, vector<16x8xf32> -> vector<16x8xf32>
    %132 = vector.shape_cast %131 : vector<16x8xf32> to vector<2x8x8xf32>
    "tpu.trace_start"() <{level = 10 : i32, message = "bqd,bkd->bqk"}> : () -> ()
    %cst_113 = arith.constant dense<0.000000e+00> : vector<2x8x8xf32>
    %133 = tpu.matmul %124, %128, %cst_113 {dimension_numbers = #tpu.dot_dimension_numbers<[2], [2], [1], [1], [0, 0, 0, 1, 1, 1], [0], [0]>} : vector<2x8x8xf32>, vector<2x8x8xf32>, vector<2x8x8xf32> -> vector<2x8x8xf32>
    "tpu.trace_stop"() : () -> ()
    %134 = arith.addf %133, %74 : vector<2x8x8xf32>
    %cst_114 = arith.constant dense<0xFF800000> : vector<2x8xf32>
    %135 = vector.multi_reduction <maximumf>, %134, %cst_114 [2] : vector<2x8x8xf32> to vector<2x8xf32>
    %136 = vector.shape_cast %135 : vector<2x8xf32> to vector<2x8x1xf32>
    %137 = vector.broadcast %136 : vector<2x8x1xf32> to vector<2x8x8xf32>
    %138 = arith.subf %134, %137 : vector<2x8x8xf32>
    %139 = math.exp %138 : vector<2x8x8xf32>
    %cst_115 = arith.constant dense<0.000000e+00> : vector<2x8xf32>
    %140 = vector.multi_reduction <add>, %139, %cst_115 [2] : vector<2x8x8xf32> to vector<2x8xf32>
    %141 = vector.shape_cast %140 : vector<2x8xf32> to vector<2x8x1xf32>
    %142 = vector.broadcast %141 : vector<2x8x1xf32> to vector<2x8x8xf32>
    %143 = arith.divf %139, %142 : vector<2x8x8xf32>
    "tpu.trace_start"() <{level = 10 : i32, message = "bqk,bkd->bqd"}> : () -> ()
    %cst_116 = arith.constant dense<0.000000e+00> : vector<2x8x8xf32>
    %144 = tpu.matmul %143, %132, %cst_116 {dimension_numbers = #tpu.dot_dimension_numbers<[2], [1], [1], [2], [0, 0, 0, 1, 1, 2], [0], [0]>} : vector<2x8x8xf32>, vector<2x8x8xf32>, vector<2x8x8xf32> -> vector<2x8x8xf32>
    "tpu.trace_stop"() : () -> ()
    %145 = vector.shape_cast %144 : vector<2x8x8xf32> to vector<16x8xf32>
    %c0_117 = arith.constant 0 : index
    %c1_118 = arith.constant 1 : index
    %c0_119 = arith.constant 0 : index
    %c0_120 = arith.constant 0 : index
    %146 = vector.load %arg7[%c0_117, %c1_118, %c0_119, %c0_120] : memref<2x4x8x32xf32, #tpu.memory_space<vmem>>, vector<1x1x8x32xf32>
    %147 = vector.shape_cast %146 : vector<1x1x8x32xf32> to vector<8x32xf32>
    %cst_121 = arith.constant dense<0.000000e+00> : vector<16x32xf32>
    %148 = tpu.matmul %145, %147, %cst_121 {dimension_numbers = #tpu.dot_dimension_numbers<[1], [0], [0], [1], [0, 0, 1, 1], [], []>} : vector<16x8xf32>, vector<8x32xf32>, vector<16x32xf32> -> vector<16x32xf32>
    %149 = vector.shape_cast %148 : vector<16x32xf32> to vector<2x8x32xf32>
    %150 = arith.addf %120, %149 : vector<2x8x32xf32>
    %c0_122 = arith.constant 0 : index
    %c2_123 = arith.constant 2 : index
    %c0_124 = arith.constant 0 : index
    %c0_125 = arith.constant 0 : index
    %151 = vector.load %arg4[%c0_122, %c2_123, %c0_124, %c0_125] : memref<2x4x32x8xf32, #tpu.memory_space<vmem>>, vector<1x1x32x8xf32>
    %152 = vector.shape_cast %151 : vector<1x1x32x8xf32> to vector<32x8xf32>
    %cst_126 = arith.constant dense<0.000000e+00> : vector<16x8xf32>
    %153 = tpu.matmul %90, %152, %cst_126 {dimension_numbers = #tpu.dot_dimension_numbers<[1], [0], [0], [1], [0, 0, 1, 1], [], []>} : vector<16x32xf32>, vector<32x8xf32>, vector<16x8xf32> -> vector<16x8xf32>
    %154 = vector.shape_cast %153 : vector<16x8xf32> to vector<2x8x8xf32>
    %c0_127 = arith.constant 0 : index
    %c2_128 = arith.constant 2 : index
    %c0_129 = arith.constant 0 : index
    %c0_130 = arith.constant 0 : index
    %155 = vector.load %arg5[%c0_127, %c2_128, %c0_129, %c0_130] : memref<2x4x32x8xf32, #tpu.memory_space<vmem>>, vector<1x1x32x8xf32>
    %156 = vector.shape_cast %155 : vector<1x1x32x8xf32> to vector<32x8xf32>
    %cst_131 = arith.constant dense<0.000000e+00> : vector<16x8xf32>
    %157 = tpu.matmul %90, %156, %cst_131 {dimension_numbers = #tpu.dot_dimension_numbers<[1], [0], [0], [1], [0, 0, 1, 1], [], []>} : vector<16x32xf32>, vector<32x8xf32>, vector<16x8xf32> -> vector<16x8xf32>
    %158 = vector.shape_cast %157 : vector<16x8xf32> to vector<2x8x8xf32>
    %c0_132 = arith.constant 0 : index
    %c2_133 = arith.constant 2 : index
    %c0_134 = arith.constant 0 : index
    %c0_135 = arith.constant 0 : index
    %159 = vector.load %arg6[%c0_132, %c2_133, %c0_134, %c0_135] : memref<2x4x32x8xf32, #tpu.memory_space<vmem>>, vector<1x1x32x8xf32>
    %160 = vector.shape_cast %159 : vector<1x1x32x8xf32> to vector<32x8xf32>
    %cst_136 = arith.constant dense<0.000000e+00> : vector<16x8xf32>
    %161 = tpu.matmul %90, %160, %cst_136 {dimension_numbers = #tpu.dot_dimension_numbers<[1], [0], [0], [1], [0, 0, 1, 1], [], []>} : vector<16x32xf32>, vector<32x8xf32>, vector<16x8xf32> -> vector<16x8xf32>
    %162 = vector.shape_cast %161 : vector<16x8xf32> to vector<2x8x8xf32>
    "tpu.trace_start"() <{level = 10 : i32, message = "bqd,bkd->bqk"}> : () -> ()
    %cst_137 = arith.constant dense<0.000000e+00> : vector<2x8x8xf32>
    %163 = tpu.matmul %154, %158, %cst_137 {dimension_numbers = #tpu.dot_dimension_numbers<[2], [2], [1], [1], [0, 0, 0, 1, 1, 1], [0], [0]>} : vector<2x8x8xf32>, vector<2x8x8xf32>, vector<2x8x8xf32> -> vector<2x8x8xf32>
    "tpu.trace_stop"() : () -> ()
    %164 = arith.addf %163, %74 : vector<2x8x8xf32>
    %cst_138 = arith.constant dense<0xFF800000> : vector<2x8xf32>
    %165 = vector.multi_reduction <maximumf>, %164, %cst_138 [2] : vector<2x8x8xf32> to vector<2x8xf32>
    %166 = vector.shape_cast %165 : vector<2x8xf32> to vector<2x8x1xf32>
    %167 = vector.broadcast %166 : vector<2x8x1xf32> to vector<2x8x8xf32>
    %168 = arith.subf %164, %167 : vector<2x8x8xf32>
    %169 = math.exp %168 : vector<2x8x8xf32>
    %cst_139 = arith.constant dense<0.000000e+00> : vector<2x8xf32>
    %170 = vector.multi_reduction <add>, %169, %cst_139 [2] : vector<2x8x8xf32> to vector<2x8xf32>
    %171 = vector.shape_cast %170 : vector<2x8xf32> to vector<2x8x1xf32>
    %172 = vector.broadcast %171 : vector<2x8x1xf32> to vector<2x8x8xf32>
    %173 = arith.divf %169, %172 : vector<2x8x8xf32>
    "tpu.trace_start"() <{level = 10 : i32, message = "bqk,bkd->bqd"}> : () -> ()
    %cst_140 = arith.constant dense<0.000000e+00> : vector<2x8x8xf32>
    %174 = tpu.matmul %173, %162, %cst_140 {dimension_numbers = #tpu.dot_dimension_numbers<[2], [1], [1], [2], [0, 0, 0, 1, 1, 2], [0], [0]>} : vector<2x8x8xf32>, vector<2x8x8xf32>, vector<2x8x8xf32> -> vector<2x8x8xf32>
    "tpu.trace_stop"() : () -> ()
    %175 = vector.shape_cast %174 : vector<2x8x8xf32> to vector<16x8xf32>
    %c0_141 = arith.constant 0 : index
    %c2_142 = arith.constant 2 : index
    %c0_143 = arith.constant 0 : index
    %c0_144 = arith.constant 0 : index
    %176 = vector.load %arg7[%c0_141, %c2_142, %c0_143, %c0_144] : memref<2x4x8x32xf32, #tpu.memory_space<vmem>>, vector<1x1x8x32xf32>
    %177 = vector.shape_cast %176 : vector<1x1x8x32xf32> to vector<8x32xf32>
    %cst_145 = arith.constant dense<0.000000e+00> : vector<16x32xf32>
    %178 = tpu.matmul %175, %177, %cst_145 {dimension_numbers = #tpu.dot_dimension_numbers<[1], [0], [0], [1], [0, 0, 1, 1], [], []>} : vector<16x8xf32>, vector<8x32xf32>, vector<16x32xf32> -> vector<16x32xf32>
    %179 = vector.shape_cast %178 : vector<16x32xf32> to vector<2x8x32xf32>
    %180 = arith.addf %150, %179 : vector<2x8x32xf32>
    %c0_146 = arith.constant 0 : index
    %c3_147 = arith.constant 3 : index
    %c0_148 = arith.constant 0 : index
    %c0_149 = arith.constant 0 : index
    %181 = vector.load %arg4[%c0_146, %c3_147, %c0_148, %c0_149] : memref<2x4x32x8xf32, #tpu.memory_space<vmem>>, vector<1x1x32x8xf32>
    %182 = vector.shape_cast %181 : vector<1x1x32x8xf32> to vector<32x8xf32>
    %cst_150 = arith.constant dense<0.000000e+00> : vector<16x8xf32>
    %183 = tpu.matmul %90, %182, %cst_150 {dimension_numbers = #tpu.dot_dimension_numbers<[1], [0], [0], [1], [0, 0, 1, 1], [], []>} : vector<16x32xf32>, vector<32x8xf32>, vector<16x8xf32> -> vector<16x8xf32>
    %184 = vector.shape_cast %183 : vector<16x8xf32> to vector<2x8x8xf32>
    %c0_151 = arith.constant 0 : index
    %c3_152 = arith.constant 3 : index
    %c0_153 = arith.constant 0 : index
    %c0_154 = arith.constant 0 : index
    %185 = vector.load %arg5[%c0_151, %c3_152, %c0_153, %c0_154] : memref<2x4x32x8xf32, #tpu.memory_space<vmem>>, vector<1x1x32x8xf32>
    %186 = vector.shape_cast %185 : vector<1x1x32x8xf32> to vector<32x8xf32>
    %cst_155 = arith.constant dense<0.000000e+00> : vector<16x8xf32>
    %187 = tpu.matmul %90, %186, %cst_155 {dimension_numbers = #tpu.dot_dimension_numbers<[1], [0], [0], [1], [0, 0, 1, 1], [], []>} : vector<16x32xf32>, vector<32x8xf32>, vector<16x8xf32> -> vector<16x8xf32>
    %188 = vector.shape_cast %187 : vector<16x8xf32> to vector<2x8x8xf32>
    %c0_156 = arith.constant 0 : index
    %c3_157 = arith.constant 3 : index
    %c0_158 = arith.constant 0 : index
    %c0_159 = arith.constant 0 : index
    %189 = vector.load %arg6[%c0_156, %c3_157, %c0_158, %c0_159] : memref<2x4x32x8xf32, #tpu.memory_space<vmem>>, vector<1x1x32x8xf32>
    %190 = vector.shape_cast %189 : vector<1x1x32x8xf32> to vector<32x8xf32>
    %cst_160 = arith.constant dense<0.000000e+00> : vector<16x8xf32>
    %191 = tpu.matmul %90, %190, %cst_160 {dimension_numbers = #tpu.dot_dimension_numbers<[1], [0], [0], [1], [0, 0, 1, 1], [], []>} : vector<16x32xf32>, vector<32x8xf32>, vector<16x8xf32> -> vector<16x8xf32>
    %192 = vector.shape_cast %191 : vector<16x8xf32> to vector<2x8x8xf32>
    "tpu.trace_start"() <{level = 10 : i32, message = "bqd,bkd->bqk"}> : () -> ()
    %cst_161 = arith.constant dense<0.000000e+00> : vector<2x8x8xf32>
    %193 = tpu.matmul %184, %188, %cst_161 {dimension_numbers = #tpu.dot_dimension_numbers<[2], [2], [1], [1], [0, 0, 0, 1, 1, 1], [0], [0]>} : vector<2x8x8xf32>, vector<2x8x8xf32>, vector<2x8x8xf32> -> vector<2x8x8xf32>
    "tpu.trace_stop"() : () -> ()
    %194 = arith.addf %193, %74 : vector<2x8x8xf32>
    %cst_162 = arith.constant dense<0xFF800000> : vector<2x8xf32>
    %195 = vector.multi_reduction <maximumf>, %194, %cst_162 [2] : vector<2x8x8xf32> to vector<2x8xf32>
    %196 = vector.shape_cast %195 : vector<2x8xf32> to vector<2x8x1xf32>
    %197 = vector.broadcast %196 : vector<2x8x1xf32> to vector<2x8x8xf32>
    %198 = arith.subf %194, %197 : vector<2x8x8xf32>
    %199 = math.exp %198 : vector<2x8x8xf32>
    %cst_163 = arith.constant dense<0.000000e+00> : vector<2x8xf32>
    %200 = vector.multi_reduction <add>, %199, %cst_163 [2] : vector<2x8x8xf32> to vector<2x8xf32>
    %201 = vector.shape_cast %200 : vector<2x8xf32> to vector<2x8x1xf32>
    %202 = vector.broadcast %201 : vector<2x8x1xf32> to vector<2x8x8xf32>
    %203 = arith.divf %199, %202 : vector<2x8x8xf32>
    "tpu.trace_start"() <{level = 10 : i32, message = "bqk,bkd->bqd"}> : () -> ()
    %cst_164 = arith.constant dense<0.000000e+00> : vector<2x8x8xf32>
    %204 = tpu.matmul %203, %192, %cst_164 {dimension_numbers = #tpu.dot_dimension_numbers<[2], [1], [1], [2], [0, 0, 0, 1, 1, 2], [0], [0]>} : vector<2x8x8xf32>, vector<2x8x8xf32>, vector<2x8x8xf32> -> vector<2x8x8xf32>
    "tpu.trace_stop"() : () -> ()
    %205 = vector.shape_cast %204 : vector<2x8x8xf32> to vector<16x8xf32>
    %c0_165 = arith.constant 0 : index
    %c3_166 = arith.constant 3 : index
    %c0_167 = arith.constant 0 : index
    %c0_168 = arith.constant 0 : index
    %206 = vector.load %arg7[%c0_165, %c3_166, %c0_167, %c0_168] : memref<2x4x8x32xf32, #tpu.memory_space<vmem>>, vector<1x1x8x32xf32>
    %207 = vector.shape_cast %206 : vector<1x1x8x32xf32> to vector<8x32xf32>
    %cst_169 = arith.constant dense<0.000000e+00> : vector<16x32xf32>
    %208 = tpu.matmul %205, %207, %cst_169 {dimension_numbers = #tpu.dot_dimension_numbers<[1], [0], [0], [1], [0, 0, 1, 1], [], []>} : vector<16x8xf32>, vector<8x32xf32>, vector<16x32xf32> -> vector<16x32xf32>
    %209 = vector.shape_cast %208 : vector<16x32xf32> to vector<2x8x32xf32>
    %210 = arith.addf %180, %209 : vector<2x8x32xf32>
    %211 = arith.mulf %210, %210 : vector<2x8x32xf32>
    %cst_170 = arith.constant dense<0.000000e+00> : vector<2x8xf32>
    %212 = vector.multi_reduction <add>, %211, %cst_170 [2] : vector<2x8x32xf32> to vector<2x8xf32>
    %213 = vector.shape_cast %212 : vector<2x8xf32> to vector<2x8x1xf32>
    %cst_171 = arith.constant 3.200000e+01 : f32
    %214 = vector.broadcast %cst_171 : f32 to vector<2x8x1xf32>
    %215 = arith.divf %213, %214 : vector<2x8x1xf32>
    %cst_172 = arith.constant 9.99999997E-7 : f32
    %216 = vector.broadcast %cst_172 : f32 to vector<2x8x1xf32>
    %217 = arith.addf %215, %216 : vector<2x8x1xf32>
    %218 = math.rsqrt %217 : vector<2x8x1xf32>
    %219 = vector.broadcast %218 : vector<2x8x1xf32> to vector<2x8x32xf32>
    %220 = arith.mulf %210, %219 : vector<2x8x32xf32>
    %c0_173 = arith.constant 0 : index
    %c0_174 = arith.constant 0 : index
    %221 = vector.load %arg8[%c0_173, %c0_174] : memref<2x32xf32, #tpu.memory_space<vmem>>, vector<1x32xf32>
    %222 = vector.shape_cast %221 : vector<1x32xf32> to vector<32xf32>
    %223 = vector.shape_cast %222 : vector<32xf32> to vector<1x1x32xf32>
    %224 = vector.broadcast %223 : vector<1x1x32xf32> to vector<2x8x32xf32>
    %225 = arith.mulf %220, %224 : vector<2x8x32xf32>
    %226 = vector.shape_cast %225 : vector<2x8x32xf32> to vector<16x32xf32>
    %c0_175 = arith.constant 0 : index
    %c0_176 = arith.constant 0 : index
    %c0_177 = arith.constant 0 : index
    %227 = vector.load %arg9[%c0_175, %c0_176, %c0_177] : memref<2x32x64xf32, #tpu.memory_space<vmem>>, vector<1x32x64xf32>
    %228 = vector.shape_cast %227 : vector<1x32x64xf32> to vector<32x64xf32>
    %cst_178 = arith.constant dense<0.000000e+00> : vector<16x64xf32>
    %229 = tpu.matmul %226, %228, %cst_178 {dimension_numbers = #tpu.dot_dimension_numbers<[1], [0], [0], [1], [0, 0, 1, 1], [], []>} : vector<16x32xf32>, vector<32x64xf32>, vector<16x64xf32> -> vector<16x64xf32>
    %cst_179 = arith.constant 0.000000e+00 : f32
    %230 = vector.broadcast %cst_179 : f32 to vector<16x64xf32>
    %231 = arith.maximumf %229, %230 : vector<16x64xf32>
    %c0_180 = arith.constant 0 : index
    %c0_181 = arith.constant 0 : index
    %c0_182 = arith.constant 0 : index
    %232 = vector.load %arg10[%c0_180, %c0_181, %c0_182] : memref<2x64x32xf32, #tpu.memory_space<vmem>>, vector<1x64x32xf32>
    %233 = vector.shape_cast %232 : vector<1x64x32xf32> to vector<64x32xf32>
    %cst_183 = arith.constant dense<0.000000e+00> : vector<16x32xf32>
    %234 = tpu.matmul %231, %233, %cst_183 {dimension_numbers = #tpu.dot_dimension_numbers<[1], [0], [0], [1], [0, 0, 1, 1], [], []>} : vector<16x64xf32>, vector<64x32xf32>, vector<16x32xf32> -> vector<16x32xf32>
    %235 = vector.shape_cast %234 : vector<16x32xf32> to vector<2x8x32xf32>
    %236 = arith.addf %210, %235 : vector<2x8x32xf32>
    %237 = arith.mulf %236, %236 : vector<2x8x32xf32>
    %cst_184 = arith.constant dense<0.000000e+00> : vector<2x8xf32>
    %238 = vector.multi_reduction <add>, %237, %cst_184 [2] : vector<2x8x32xf32> to vector<2x8xf32>
    %239 = vector.shape_cast %238 : vector<2x8xf32> to vector<2x8x1xf32>
    %cst_185 = arith.constant 3.200000e+01 : f32
    %240 = vector.broadcast %cst_185 : f32 to vector<2x8x1xf32>
    %241 = arith.divf %239, %240 : vector<2x8x1xf32>
    %cst_186 = arith.constant 9.99999997E-7 : f32
    %242 = vector.broadcast %cst_186 : f32 to vector<2x8x1xf32>
    %243 = arith.addf %241, %242 : vector<2x8x1xf32>
    %244 = math.rsqrt %243 : vector<2x8x1xf32>
    %245 = vector.broadcast %244 : vector<2x8x1xf32> to vector<2x8x32xf32>
    %246 = arith.mulf %236, %245 : vector<2x8x32xf32>
    %c1_187 = arith.constant 1 : index
    %c0_188 = arith.constant 0 : index
    %247 = vector.load %arg3[%c1_187, %c0_188] : memref<2x32xf32, #tpu.memory_space<vmem>>, vector<1x32xf32>
    %248 = vector.shape_cast %247 : vector<1x32xf32> to vector<32xf32>
    %249 = vector.shape_cast %248 : vector<32xf32> to vector<1x1x32xf32>
    %250 = vector.broadcast %249 : vector<1x1x32xf32> to vector<2x8x32xf32>
    %251 = arith.mulf %246, %250 : vector<2x8x32xf32>
    %252 = vector.shape_cast %251 : vector<2x8x32xf32> to vector<16x32xf32>
    %c1_189 = arith.constant 1 : index
    %c0_190 = arith.constant 0 : index
    %c0_191 = arith.constant 0 : index
    %c0_192 = arith.constant 0 : index
    %253 = vector.load %arg4[%c1_189, %c0_190, %c0_191, %c0_192] : memref<2x4x32x8xf32, #tpu.memory_space<vmem>>, vector<1x1x32x8xf32>
    %254 = vector.shape_cast %253 : vector<1x1x32x8xf32> to vector<32x8xf32>
    %cst_193 = arith.constant dense<0.000000e+00> : vector<16x8xf32>
    %255 = tpu.matmul %252, %254, %cst_193 {dimension_numbers = #tpu.dot_dimension_numbers<[1], [0], [0], [1], [0, 0, 1, 1], [], []>} : vector<16x32xf32>, vector<32x8xf32>, vector<16x8xf32> -> vector<16x8xf32>
    %256 = vector.shape_cast %255 : vector<16x8xf32> to vector<2x8x8xf32>
    %c1_194 = arith.constant 1 : index
    %c0_195 = arith.constant 0 : index
    %c0_196 = arith.constant 0 : index
    %c0_197 = arith.constant 0 : index
    %257 = vector.load %arg5[%c1_194, %c0_195, %c0_196, %c0_197] : memref<2x4x32x8xf32, #tpu.memory_space<vmem>>, vector<1x1x32x8xf32>
    %258 = vector.shape_cast %257 : vector<1x1x32x8xf32> to vector<32x8xf32>
    %cst_198 = arith.constant dense<0.000000e+00> : vector<16x8xf32>
    %259 = tpu.matmul %252, %258, %cst_198 {dimension_numbers = #tpu.dot_dimension_numbers<[1], [0], [0], [1], [0, 0, 1, 1], [], []>} : vector<16x32xf32>, vector<32x8xf32>, vector<16x8xf32> -> vector<16x8xf32>
    %260 = vector.shape_cast %259 : vector<16x8xf32> to vector<2x8x8xf32>
    %c1_199 = arith.constant 1 : index
    %c0_200 = arith.constant 0 : index
    %c0_201 = arith.constant 0 : index
    %c0_202 = arith.constant 0 : index
    %261 = vector.load %arg6[%c1_199, %c0_200, %c0_201, %c0_202] : memref<2x4x32x8xf32, #tpu.memory_space<vmem>>, vector<1x1x32x8xf32>
    %262 = vector.shape_cast %261 : vector<1x1x32x8xf32> to vector<32x8xf32>
    %cst_203 = arith.constant dense<0.000000e+00> : vector<16x8xf32>
    %263 = tpu.matmul %252, %262, %cst_203 {dimension_numbers = #tpu.dot_dimension_numbers<[1], [0], [0], [1], [0, 0, 1, 1], [], []>} : vector<16x32xf32>, vector<32x8xf32>, vector<16x8xf32> -> vector<16x8xf32>
    %264 = vector.shape_cast %263 : vector<16x8xf32> to vector<2x8x8xf32>
    "tpu.trace_start"() <{level = 10 : i32, message = "bqd,bkd->bqk"}> : () -> ()
    %cst_204 = arith.constant dense<0.000000e+00> : vector<2x8x8xf32>
    %265 = tpu.matmul %256, %260, %cst_204 {dimension_numbers = #tpu.dot_dimension_numbers<[2], [2], [1], [1], [0, 0, 0, 1, 1, 1], [0], [0]>} : vector<2x8x8xf32>, vector<2x8x8xf32>, vector<2x8x8xf32> -> vector<2x8x8xf32>
    "tpu.trace_stop"() : () -> ()
    %266 = arith.addf %265, %74 : vector<2x8x8xf32>
    %cst_205 = arith.constant dense<0xFF800000> : vector<2x8xf32>
    %267 = vector.multi_reduction <maximumf>, %266, %cst_205 [2] : vector<2x8x8xf32> to vector<2x8xf32>
    %268 = vector.shape_cast %267 : vector<2x8xf32> to vector<2x8x1xf32>
    %269 = vector.broadcast %268 : vector<2x8x1xf32> to vector<2x8x8xf32>
    %270 = arith.subf %266, %269 : vector<2x8x8xf32>
    %271 = math.exp %270 : vector<2x8x8xf32>
    %cst_206 = arith.constant dense<0.000000e+00> : vector<2x8xf32>
    %272 = vector.multi_reduction <add>, %271, %cst_206 [2] : vector<2x8x8xf32> to vector<2x8xf32>
    %273 = vector.shape_cast %272 : vector<2x8xf32> to vector<2x8x1xf32>
    %274 = vector.broadcast %273 : vector<2x8x1xf32> to vector<2x8x8xf32>
    %275 = arith.divf %271, %274 : vector<2x8x8xf32>
    "tpu.trace_start"() <{level = 10 : i32, message = "bqk,bkd->bqd"}> : () -> ()
    %cst_207 = arith.constant dense<0.000000e+00> : vector<2x8x8xf32>
    %276 = tpu.matmul %275, %264, %cst_207 {dimension_numbers = #tpu.dot_dimension_numbers<[2], [1], [1], [2], [0, 0, 0, 1, 1, 2], [0], [0]>} : vector<2x8x8xf32>, vector<2x8x8xf32>, vector<2x8x8xf32> -> vector<2x8x8xf32>
    "tpu.trace_stop"() : () -> ()
    %277 = vector.shape_cast %276 : vector<2x8x8xf32> to vector<16x8xf32>
    %c1_208 = arith.constant 1 : index
    %c0_209 = arith.constant 0 : index
    %c0_210 = arith.constant 0 : index
    %c0_211 = arith.constant 0 : index
    %278 = vector.load %arg7[%c1_208, %c0_209, %c0_210, %c0_211] : memref<2x4x8x32xf32, #tpu.memory_space<vmem>>, vector<1x1x8x32xf32>
    %279 = vector.shape_cast %278 : vector<1x1x8x32xf32> to vector<8x32xf32>
    %cst_212 = arith.constant dense<0.000000e+00> : vector<16x32xf32>
    %280 = tpu.matmul %277, %279, %cst_212 {dimension_numbers = #tpu.dot_dimension_numbers<[1], [0], [0], [1], [0, 0, 1, 1], [], []>} : vector<16x8xf32>, vector<8x32xf32>, vector<16x32xf32> -> vector<16x32xf32>
    %281 = vector.shape_cast %280 : vector<16x32xf32> to vector<2x8x32xf32>
    %282 = arith.addf %236, %281 : vector<2x8x32xf32>
    %c1_213 = arith.constant 1 : index
    %c1_214 = arith.constant 1 : index
    %c0_215 = arith.constant 0 : index
    %c0_216 = arith.constant 0 : index
    %283 = vector.load %arg4[%c1_213, %c1_214, %c0_215, %c0_216] : memref<2x4x32x8xf32, #tpu.memory_space<vmem>>, vector<1x1x32x8xf32>
    %284 = vector.shape_cast %283 : vector<1x1x32x8xf32> to vector<32x8xf32>
    %cst_217 = arith.constant dense<0.000000e+00> : vector<16x8xf32>
    %285 = tpu.matmul %252, %284, %cst_217 {dimension_numbers = #tpu.dot_dimension_numbers<[1], [0], [0], [1], [0, 0, 1, 1], [], []>} : vector<16x32xf32>, vector<32x8xf32>, vector<16x8xf32> -> vector<16x8xf32>
    %286 = vector.shape_cast %285 : vector<16x8xf32> to vector<2x8x8xf32>
    %c1_218 = arith.constant 1 : index
    %c1_219 = arith.constant 1 : index
    %c0_220 = arith.constant 0 : index
    %c0_221 = arith.constant 0 : index
    %287 = vector.load %arg5[%c1_218, %c1_219, %c0_220, %c0_221] : memref<2x4x32x8xf32, #tpu.memory_space<vmem>>, vector<1x1x32x8xf32>
    %288 = vector.shape_cast %287 : vector<1x1x32x8xf32> to vector<32x8xf32>
    %cst_222 = arith.constant dense<0.000000e+00> : vector<16x8xf32>
    %289 = tpu.matmul %252, %288, %cst_222 {dimension_numbers = #tpu.dot_dimension_numbers<[1], [0], [0], [1], [0, 0, 1, 1], [], []>} : vector<16x32xf32>, vector<32x8xf32>, vector<16x8xf32> -> vector<16x8xf32>
    %290 = vector.shape_cast %289 : vector<16x8xf32> to vector<2x8x8xf32>
    %c1_223 = arith.constant 1 : index
    %c1_224 = arith.constant 1 : index
    %c0_225 = arith.constant 0 : index
    %c0_226 = arith.constant 0 : index
    %291 = vector.load %arg6[%c1_223, %c1_224, %c0_225, %c0_226] : memref<2x4x32x8xf32, #tpu.memory_space<vmem>>, vector<1x1x32x8xf32>
    %292 = vector.shape_cast %291 : vector<1x1x32x8xf32> to vector<32x8xf32>
    %cst_227 = arith.constant dense<0.000000e+00> : vector<16x8xf32>
    %293 = tpu.matmul %252, %292, %cst_227 {dimension_numbers = #tpu.dot_dimension_numbers<[1], [0], [0], [1], [0, 0, 1, 1], [], []>} : vector<16x32xf32>, vector<32x8xf32>, vector<16x8xf32> -> vector<16x8xf32>
    %294 = vector.shape_cast %293 : vector<16x8xf32> to vector<2x8x8xf32>
    "tpu.trace_start"() <{level = 10 : i32, message = "bqd,bkd->bqk"}> : () -> ()
    %cst_228 = arith.constant dense<0.000000e+00> : vector<2x8x8xf32>
    %295 = tpu.matmul %286, %290, %cst_228 {dimension_numbers = #tpu.dot_dimension_numbers<[2], [2], [1], [1], [0, 0, 0, 1, 1, 1], [0], [0]>} : vector<2x8x8xf32>, vector<2x8x8xf32>, vector<2x8x8xf32> -> vector<2x8x8xf32>
    "tpu.trace_stop"() : () -> ()
    %296 = arith.addf %295, %74 : vector<2x8x8xf32>
    %cst_229 = arith.constant dense<0xFF800000> : vector<2x8xf32>
    %297 = vector.multi_reduction <maximumf>, %296, %cst_229 [2] : vector<2x8x8xf32> to vector<2x8xf32>
    %298 = vector.shape_cast %297 : vector<2x8xf32> to vector<2x8x1xf32>
    %299 = vector.broadcast %298 : vector<2x8x1xf32> to vector<2x8x8xf32>
    %300 = arith.subf %296, %299 : vector<2x8x8xf32>
    %301 = math.exp %300 : vector<2x8x8xf32>
    %cst_230 = arith.constant dense<0.000000e+00> : vector<2x8xf32>
    %302 = vector.multi_reduction <add>, %301, %cst_230 [2] : vector<2x8x8xf32> to vector<2x8xf32>
    %303 = vector.shape_cast %302 : vector<2x8xf32> to vector<2x8x1xf32>
    %304 = vector.broadcast %303 : vector<2x8x1xf32> to vector<2x8x8xf32>
    %305 = arith.divf %301, %304 : vector<2x8x8xf32>
    "tpu.trace_start"() <{level = 10 : i32, message = "bqk,bkd->bqd"}> : () -> ()
    %cst_231 = arith.constant dense<0.000000e+00> : vector<2x8x8xf32>
    %306 = tpu.matmul %305, %294, %cst_231 {dimension_numbers = #tpu.dot_dimension_numbers<[2], [1], [1], [2], [0, 0, 0, 1, 1, 2], [0], [0]>} : vector<2x8x8xf32>, vector<2x8x8xf32>, vector<2x8x8xf32> -> vector<2x8x8xf32>
    "tpu.trace_stop"() : () -> ()
    %307 = vector.shape_cast %306 : vector<2x8x8xf32> to vector<16x8xf32>
    %c1_232 = arith.constant 1 : index
    %c1_233 = arith.constant 1 : index
    %c0_234 = arith.constant 0 : index
    %c0_235 = arith.constant 0 : index
    %308 = vector.load %arg7[%c1_232, %c1_233, %c0_234, %c0_235] : memref<2x4x8x32xf32, #tpu.memory_space<vmem>>, vector<1x1x8x32xf32>
    %309 = vector.shape_cast %308 : vector<1x1x8x32xf32> to vector<8x32xf32>
    %cst_236 = arith.constant dense<0.000000e+00> : vector<16x32xf32>
    %310 = tpu.matmul %307, %309, %cst_236 {dimension_numbers = #tpu.dot_dimension_numbers<[1], [0], [0], [1], [0, 0, 1, 1], [], []>} : vector<16x8xf32>, vector<8x32xf32>, vector<16x32xf32> -> vector<16x32xf32>
    %311 = vector.shape_cast %310 : vector<16x32xf32> to vector<2x8x32xf32>
    %312 = arith.addf %282, %311 : vector<2x8x32xf32>
    %c1_237 = arith.constant 1 : index
    %c2_238 = arith.constant 2 : index
    %c0_239 = arith.constant 0 : index
    %c0_240 = arith.constant 0 : index
    %313 = vector.load %arg4[%c1_237, %c2_238, %c0_239, %c0_240] : memref<2x4x32x8xf32, #tpu.memory_space<vmem>>, vector<1x1x32x8xf32>
    %314 = vector.shape_cast %313 : vector<1x1x32x8xf32> to vector<32x8xf32>
    %cst_241 = arith.constant dense<0.000000e+00> : vector<16x8xf32>
    %315 = tpu.matmul %252, %314, %cst_241 {dimension_numbers = #tpu.dot_dimension_numbers<[1], [0], [0], [1], [0, 0, 1, 1], [], []>} : vector<16x32xf32>, vector<32x8xf32>, vector<16x8xf32> -> vector<16x8xf32>
    %316 = vector.shape_cast %315 : vector<16x8xf32> to vector<2x8x8xf32>
    %c1_242 = arith.constant 1 : index
    %c2_243 = arith.constant 2 : index
    %c0_244 = arith.constant 0 : index
    %c0_245 = arith.constant 0 : index
    %317 = vector.load %arg5[%c1_242, %c2_243, %c0_244, %c0_245] : memref<2x4x32x8xf32, #tpu.memory_space<vmem>>, vector<1x1x32x8xf32>
    %318 = vector.shape_cast %317 : vector<1x1x32x8xf32> to vector<32x8xf32>
    %cst_246 = arith.constant dense<0.000000e+00> : vector<16x8xf32>
    %319 = tpu.matmul %252, %318, %cst_246 {dimension_numbers = #tpu.dot_dimension_numbers<[1], [0], [0], [1], [0, 0, 1, 1], [], []>} : vector<16x32xf32>, vector<32x8xf32>, vector<16x8xf32> -> vector<16x8xf32>
    %320 = vector.shape_cast %319 : vector<16x8xf32> to vector<2x8x8xf32>
    %c1_247 = arith.constant 1 : index
    %c2_248 = arith.constant 2 : index
    %c0_249 = arith.constant 0 : index
    %c0_250 = arith.constant 0 : index
    %321 = vector.load %arg6[%c1_247, %c2_248, %c0_249, %c0_250] : memref<2x4x32x8xf32, #tpu.memory_space<vmem>>, vector<1x1x32x8xf32>
    %322 = vector.shape_cast %321 : vector<1x1x32x8xf32> to vector<32x8xf32>
    %cst_251 = arith.constant dense<0.000000e+00> : vector<16x8xf32>
    %323 = tpu.matmul %252, %322, %cst_251 {dimension_numbers = #tpu.dot_dimension_numbers<[1], [0], [0], [1], [0, 0, 1, 1], [], []>} : vector<16x32xf32>, vector<32x8xf32>, vector<16x8xf32> -> vector<16x8xf32>
    %324 = vector.shape_cast %323 : vector<16x8xf32> to vector<2x8x8xf32>
    "tpu.trace_start"() <{level = 10 : i32, message = "bqd,bkd->bqk"}> : () -> ()
    %cst_252 = arith.constant dense<0.000000e+00> : vector<2x8x8xf32>
    %325 = tpu.matmul %316, %320, %cst_252 {dimension_numbers = #tpu.dot_dimension_numbers<[2], [2], [1], [1], [0, 0, 0, 1, 1, 1], [0], [0]>} : vector<2x8x8xf32>, vector<2x8x8xf32>, vector<2x8x8xf32> -> vector<2x8x8xf32>
    "tpu.trace_stop"() : () -> ()
    %326 = arith.addf %325, %74 : vector<2x8x8xf32>
    %cst_253 = arith.constant dense<0xFF800000> : vector<2x8xf32>
    %327 = vector.multi_reduction <maximumf>, %326, %cst_253 [2] : vector<2x8x8xf32> to vector<2x8xf32>
    %328 = vector.shape_cast %327 : vector<2x8xf32> to vector<2x8x1xf32>
    %329 = vector.broadcast %328 : vector<2x8x1xf32> to vector<2x8x8xf32>
    %330 = arith.subf %326, %329 : vector<2x8x8xf32>
    %331 = math.exp %330 : vector<2x8x8xf32>
    %cst_254 = arith.constant dense<0.000000e+00> : vector<2x8xf32>
    %332 = vector.multi_reduction <add>, %331, %cst_254 [2] : vector<2x8x8xf32> to vector<2x8xf32>
    %333 = vector.shape_cast %332 : vector<2x8xf32> to vector<2x8x1xf32>
    %334 = vector.broadcast %333 : vector<2x8x1xf32> to vector<2x8x8xf32>
    %335 = arith.divf %331, %334 : vector<2x8x8xf32>
    "tpu.trace_start"() <{level = 10 : i32, message = "bqk,bkd->bqd"}> : () -> ()
    %cst_255 = arith.constant dense<0.000000e+00> : vector<2x8x8xf32>
    %336 = tpu.matmul %335, %324, %cst_255 {dimension_numbers = #tpu.dot_dimension_numbers<[2], [1], [1], [2], [0, 0, 0, 1, 1, 2], [0], [0]>} : vector<2x8x8xf32>, vector<2x8x8xf32>, vector<2x8x8xf32> -> vector<2x8x8xf32>
    "tpu.trace_stop"() : () -> ()
    %337 = vector.shape_cast %336 : vector<2x8x8xf32> to vector<16x8xf32>
    %c1_256 = arith.constant 1 : index
    %c2_257 = arith.constant 2 : index
    %c0_258 = arith.constant 0 : index
    %c0_259 = arith.constant 0 : index
    %338 = vector.load %arg7[%c1_256, %c2_257, %c0_258, %c0_259] : memref<2x4x8x32xf32, #tpu.memory_space<vmem>>, vector<1x1x8x32xf32>
    %339 = vector.shape_cast %338 : vector<1x1x8x32xf32> to vector<8x32xf32>
    %cst_260 = arith.constant dense<0.000000e+00> : vector<16x32xf32>
    %340 = tpu.matmul %337, %339, %cst_260 {dimension_numbers = #tpu.dot_dimension_numbers<[1], [0], [0], [1], [0, 0, 1, 1], [], []>} : vector<16x8xf32>, vector<8x32xf32>, vector<16x32xf32> -> vector<16x32xf32>
    %341 = vector.shape_cast %340 : vector<16x32xf32> to vector<2x8x32xf32>
    %342 = arith.addf %312, %341 : vector<2x8x32xf32>
    %c1_261 = arith.constant 1 : index
    %c3_262 = arith.constant 3 : index
    %c0_263 = arith.constant 0 : index
    %c0_264 = arith.constant 0 : index
    %343 = vector.load %arg4[%c1_261, %c3_262, %c0_263, %c0_264] : memref<2x4x32x8xf32, #tpu.memory_space<vmem>>, vector<1x1x32x8xf32>
    %344 = vector.shape_cast %343 : vector<1x1x32x8xf32> to vector<32x8xf32>
    %cst_265 = arith.constant dense<0.000000e+00> : vector<16x8xf32>
    %345 = tpu.matmul %252, %344, %cst_265 {dimension_numbers = #tpu.dot_dimension_numbers<[1], [0], [0], [1], [0, 0, 1, 1], [], []>} : vector<16x32xf32>, vector<32x8xf32>, vector<16x8xf32> -> vector<16x8xf32>
    %346 = vector.shape_cast %345 : vector<16x8xf32> to vector<2x8x8xf32>
    %c1_266 = arith.constant 1 : index
    %c3_267 = arith.constant 3 : index
    %c0_268 = arith.constant 0 : index
    %c0_269 = arith.constant 0 : index
    %347 = vector.load %arg5[%c1_266, %c3_267, %c0_268, %c0_269] : memref<2x4x32x8xf32, #tpu.memory_space<vmem>>, vector<1x1x32x8xf32>
    %348 = vector.shape_cast %347 : vector<1x1x32x8xf32> to vector<32x8xf32>
    %cst_270 = arith.constant dense<0.000000e+00> : vector<16x8xf32>
    %349 = tpu.matmul %252, %348, %cst_270 {dimension_numbers = #tpu.dot_dimension_numbers<[1], [0], [0], [1], [0, 0, 1, 1], [], []>} : vector<16x32xf32>, vector<32x8xf32>, vector<16x8xf32> -> vector<16x8xf32>
    %350 = vector.shape_cast %349 : vector<16x8xf32> to vector<2x8x8xf32>
    %c1_271 = arith.constant 1 : index
    %c3_272 = arith.constant 3 : index
    %c0_273 = arith.constant 0 : index
    %c0_274 = arith.constant 0 : index
    %351 = vector.load %arg6[%c1_271, %c3_272, %c0_273, %c0_274] : memref<2x4x32x8xf32, #tpu.memory_space<vmem>>, vector<1x1x32x8xf32>
    %352 = vector.shape_cast %351 : vector<1x1x32x8xf32> to vector<32x8xf32>
    %cst_275 = arith.constant dense<0.000000e+00> : vector<16x8xf32>
    %353 = tpu.matmul %252, %352, %cst_275 {dimension_numbers = #tpu.dot_dimension_numbers<[1], [0], [0], [1], [0, 0, 1, 1], [], []>} : vector<16x32xf32>, vector<32x8xf32>, vector<16x8xf32> -> vector<16x8xf32>
    %354 = vector.shape_cast %353 : vector<16x8xf32> to vector<2x8x8xf32>
    "tpu.trace_start"() <{level = 10 : i32, message = "bqd,bkd->bqk"}> : () -> ()
    %cst_276 = arith.constant dense<0.000000e+00> : vector<2x8x8xf32>
    %355 = tpu.matmul %346, %350, %cst_276 {dimension_numbers = #tpu.dot_dimension_numbers<[2], [2], [1], [1], [0, 0, 0, 1, 1, 1], [0], [0]>} : vector<2x8x8xf32>, vector<2x8x8xf32>, vector<2x8x8xf32> -> vector<2x8x8xf32>
    "tpu.trace_stop"() : () -> ()
    %356 = arith.addf %355, %74 : vector<2x8x8xf32>
    %cst_277 = arith.constant dense<0xFF800000> : vector<2x8xf32>
    %357 = vector.multi_reduction <maximumf>, %356, %cst_277 [2] : vector<2x8x8xf32> to vector<2x8xf32>
    %358 = vector.shape_cast %357 : vector<2x8xf32> to vector<2x8x1xf32>
    %359 = vector.broadcast %358 : vector<2x8x1xf32> to vector<2x8x8xf32>
    %360 = arith.subf %356, %359 : vector<2x8x8xf32>
    %361 = math.exp %360 : vector<2x8x8xf32>
    %cst_278 = arith.constant dense<0.000000e+00> : vector<2x8xf32>
    %362 = vector.multi_reduction <add>, %361, %cst_278 [2] : vector<2x8x8xf32> to vector<2x8xf32>
    %363 = vector.shape_cast %362 : vector<2x8xf32> to vector<2x8x1xf32>
    %364 = vector.broadcast %363 : vector<2x8x1xf32> to vector<2x8x8xf32>
    %365 = arith.divf %361, %364 : vector<2x8x8xf32>
    "tpu.trace_start"() <{level = 10 : i32, message = "bqk,bkd->bqd"}> : () -> ()
    %cst_279 = arith.constant dense<0.000000e+00> : vector<2x8x8xf32>
    %366 = tpu.matmul %365, %354, %cst_279 {dimension_numbers = #tpu.dot_dimension_numbers<[2], [1], [1], [2], [0, 0, 0, 1, 1, 2], [0], [0]>} : vector<2x8x8xf32>, vector<2x8x8xf32>, vector<2x8x8xf32> -> vector<2x8x8xf32>
    "tpu.trace_stop"() : () -> ()
    %367 = vector.shape_cast %366 : vector<2x8x8xf32> to vector<16x8xf32>
    %c1_280 = arith.constant 1 : index
    %c3_281 = arith.constant 3 : index
    %c0_282 = arith.constant 0 : index
    %c0_283 = arith.constant 0 : index
    %368 = vector.load %arg7[%c1_280, %c3_281, %c0_282, %c0_283] : memref<2x4x8x32xf32, #tpu.memory_space<vmem>>, vector<1x1x8x32xf32>
    %369 = vector.shape_cast %368 : vector<1x1x8x32xf32> to vector<8x32xf32>
    %cst_284 = arith.constant dense<0.000000e+00> : vector<16x32xf32>
    %370 = tpu.matmul %367, %369, %cst_284 {dimension_numbers = #tpu.dot_dimension_numbers<[1], [0], [0], [1], [0, 0, 1, 1], [], []>} : vector<16x8xf32>, vector<8x32xf32>, vector<16x32xf32> -> vector<16x32xf32>
    %371 = vector.shape_cast %370 : vector<16x32xf32> to vector<2x8x32xf32>
    %372 = arith.addf %342, %371 : vector<2x8x32xf32>
    %373 = arith.mulf %372, %372 : vector<2x8x32xf32>
    %cst_285 = arith.constant dense<0.000000e+00> : vector<2x8xf32>
    %374 = vector.multi_reduction <add>, %373, %cst_285 [2] : vector<2x8x32xf32> to vector<2x8xf32>
    %375 = vector.shape_cast %374 : vector<2x8xf32> to vector<2x8x1xf32>
    %cst_286 = arith.constant 3.200000e+01 : f32
    %376 = vector.broadcast %cst_286 : f32 to vector<2x8x1xf32>
    %377 = arith.divf %375, %376 : vector<2x8x1xf32>
    %cst_287 = arith.constant 9.99999997E-7 : f32
    %378 = vector.broadcast %cst_287 : f32 to vector<2x8x1xf32>
    %379 = arith.addf %377, %378 : vector<2x8x1xf32>
    %380 = math.rsqrt %379 : vector<2x8x1xf32>
    %381 = vector.broadcast %380 : vector<2x8x1xf32> to vector<2x8x32xf32>
    %382 = arith.mulf %372, %381 : vector<2x8x32xf32>
    %c1_288 = arith.constant 1 : index
    %c0_289 = arith.constant 0 : index
    %383 = vector.load %arg8[%c1_288, %c0_289] : memref<2x32xf32, #tpu.memory_space<vmem>>, vector<1x32xf32>
    %384 = vector.shape_cast %383 : vector<1x32xf32> to vector<32xf32>
    %385 = vector.shape_cast %384 : vector<32xf32> to vector<1x1x32xf32>
    %386 = vector.broadcast %385 : vector<1x1x32xf32> to vector<2x8x32xf32>
    %387 = arith.mulf %382, %386 : vector<2x8x32xf32>
    %388 = vector.shape_cast %387 : vector<2x8x32xf32> to vector<16x32xf32>
    %c1_290 = arith.constant 1 : index
    %c0_291 = arith.constant 0 : index
    %c0_292 = arith.constant 0 : index
    %389 = vector.load %arg9[%c1_290, %c0_291, %c0_292] : memref<2x32x64xf32, #tpu.memory_space<vmem>>, vector<1x32x64xf32>
    %390 = vector.shape_cast %389 : vector<1x32x64xf32> to vector<32x64xf32>
    %cst_293 = arith.constant dense<0.000000e+00> : vector<16x64xf32>
    %391 = tpu.matmul %388, %390, %cst_293 {dimension_numbers = #tpu.dot_dimension_numbers<[1], [0], [0], [1], [0, 0, 1, 1], [], []>} : vector<16x32xf32>, vector<32x64xf32>, vector<16x64xf32> -> vector<16x64xf32>
    %cst_294 = arith.constant 0.000000e+00 : f32
    %392 = vector.broadcast %cst_294 : f32 to vector<16x64xf32>
    %393 = arith.maximumf %391, %392 : vector<16x64xf32>
    %c1_295 = arith.constant 1 : index
    %c0_296 = arith.constant 0 : index
    %c0_297 = arith.constant 0 : index
    %394 = vector.load %arg10[%c1_295, %c0_296, %c0_297] : memref<2x64x32xf32, #tpu.memory_space<vmem>>, vector<1x64x32xf32>
    %395 = vector.shape_cast %394 : vector<1x64x32xf32> to vector<64x32xf32>
    %cst_298 = arith.constant dense<0.000000e+00> : vector<16x32xf32>
    %396 = tpu.matmul %393, %395, %cst_298 {dimension_numbers = #tpu.dot_dimension_numbers<[1], [0], [0], [1], [0, 0, 1, 1], [], []>} : vector<16x64xf32>, vector<64x32xf32>, vector<16x32xf32> -> vector<16x32xf32>
    %397 = vector.shape_cast %396 : vector<16x32xf32> to vector<2x8x32xf32>
    %398 = arith.addf %372, %397 : vector<2x8x32xf32>
    %399 = arith.mulf %398, %398 : vector<2x8x32xf32>
    %cst_299 = arith.constant dense<0.000000e+00> : vector<2x8xf32>
    %400 = vector.multi_reduction <add>, %399, %cst_299 [2] : vector<2x8x32xf32> to vector<2x8xf32>
    %401 = vector.shape_cast %400 : vector<2x8xf32> to vector<2x8x1xf32>
    %cst_300 = arith.constant 3.200000e+01 : f32
    %402 = vector.broadcast %cst_300 : f32 to vector<2x8x1xf32>
    %403 = arith.divf %401, %402 : vector<2x8x1xf32>
    %cst_301 = arith.constant 9.99999997E-7 : f32
    %404 = vector.broadcast %cst_301 : f32 to vector<2x8x1xf32>
    %405 = arith.addf %403, %404 : vector<2x8x1xf32>
    %406 = math.rsqrt %405 : vector<2x8x1xf32>
    %407 = vector.broadcast %406 : vector<2x8x1xf32> to vector<2x8x32xf32>
    %408 = arith.mulf %398, %407 : vector<2x8x32xf32>
    %c0_302 = arith.constant 0 : index
    %c0_303 = arith.constant 0 : index
    %409 = vector.load %arg11[%c0_302, %c0_303] : memref<1x32xf32, #tpu.memory_space<vmem>>, vector<1x32xf32>
    %410 = vector.shape_cast %409 : vector<1x32xf32> to vector<32xf32>
    %411 = vector.shape_cast %410 : vector<32xf32> to vector<1x1x32xf32>
    %412 = vector.broadcast %411 : vector<1x1x32xf32> to vector<2x8x32xf32>
    %413 = arith.mulf %408, %412 : vector<2x8x32xf32>
    %cst_304 = arith.constant dense<0.000000e+00> : vector<2x32xf32>
    %414 = vector.multi_reduction <add>, %413, %cst_304 [1] : vector<2x8x32xf32> to vector<2x32xf32>
    %cst_305 = arith.constant 8.000000e+00 : f32
    %415 = vector.broadcast %cst_305 : f32 to vector<2x32xf32>
    %416 = arith.divf %414, %415 : vector<2x32xf32>
    %c0_306 = arith.constant 0 : index
    %c0_307 = arith.constant 0 : index
    %417 = vector.load %arg12[%c0_306, %c0_307] : memref<1x32xf32, #tpu.memory_space<vmem>>, vector<1x32xf32>
    %418 = vector.shape_cast %417 : vector<1x32xf32> to vector<32xf32>
    %419 = vector.shape_cast %418 : vector<32xf32> to vector<1x32xf32>
    %420 = vector.broadcast %419 : vector<1x32xf32> to vector<2x32xf32>
    %421 = arith.mulf %416, %420 : vector<2x32xf32>
    %cst_308 = arith.constant dense<0.000000e+00> : vector<2xf32>
    %422 = vector.multi_reduction <add>, %421, %cst_308 [1] : vector<2x32xf32> to vector<2xf32>
    %423 = vector.shape_cast %422 : vector<2xf32> to vector<2x1xf32>
    %c0_309 = arith.constant 0 : index
    %c0_310 = arith.constant 0 : index
    %424 = vector.load %arg13[%c0_309, %c0_310] : memref<1x1xf32, #tpu.memory_space<vmem>>, vector<1x1xf32>
    %425 = vector.broadcast %424 : vector<1x1xf32> to vector<2x1xf32>
    %426 = arith.addf %423, %425 : vector<2x1xf32>
    %cst_311 = arith.constant 0.000000e+00 : f32
    %427 = vector.broadcast %cst_311 : f32 to vector<2x1xf32>
    %428 = arith.subf %427, %426 : vector<2x1xf32>
    %429 = math.exp %428 : vector<2x1xf32>
    %cst_312 = arith.constant 1.000000e+00 : f32
    %430 = vector.broadcast %cst_312 : f32 to vector<2x1xf32>
    %431 = arith.addf %430, %429 : vector<2x1xf32>
    %cst_313 = arith.constant 1.000000e+00 : f32
    %432 = vector.broadcast %cst_313 : f32 to vector<2x1xf32>
    %433 = arith.divf %432, %431 : vector<2x1xf32>
    %c0_314 = arith.constant 0 : index
    %c0_315 = arith.constant 0 : index
    %434 = vector.load %arg14[%c0_314, %c0_315] : memref<2x1xf32, #tpu.memory_space<vmem>>, vector<2x1xf32>
    tpu.vector_store %arg14[%c0_314, %c0_315], %433 {strides = array<i32>} : memref<2x1xf32, #tpu.memory_space<vmem>>, vector<2x1xf32>,
    return
  }
}

</mosaic_0001>

<llo_original>
// kernel: forward.1
$region0: #{forward.1}
  #allocation0 [shape = 'u32[]', space=smem, size = 0x4, offset = 0x4, fixed_abs, tag = 'smem constant byte address 0x4 - core index']
  #allocation1 [shape = 'u32[144,128]{1,0:T(1,128)}', space=vmem, size = 0x12000, scoped, tag = 'internal scratch']
  #allocation2 [shape = 'f32[16,32]{1,0:T(8,128)}', space=vmem, size = 0x2000, scoped, tag = 'scratch operand']
  #allocation3 [shape = 'f32[1,1]{1,0:T(1,128)S(1)}', space=vmem, size = 0x200, scoped, tag = 'scoped memory for forward.1']
  %s0 = inlined_call_operand.vmem [shape: s32[2,8], index: 0, kind: input, shape index: {}]
  %s1 = inlined_call_operand.vmem [shape: s32[2,8], index: 1, kind: input, shape index: {}]
  %s2 = inlined_call_operand.vmem [shape: f32[64,32], index: 2, kind: input, shape index: {}]
  %s3 = inlined_call_operand.vmem [shape: f32[2,32], index: 3, kind: input, shape index: {}]
  %s4 = inlined_call_operand.vmem [shape: f32[2,4,32,8], index: 4, kind: input, shape index: {}]
  %s5 = inlined_call_operand.vmem [shape: f32[2,4,32,8], index: 5, kind: input, shape index: {}]
  %s6 = inlined_call_operand.vmem [shape: f32[2,4,32,8], index: 6, kind: input, shape index: {}]
  %s7 = inlined_call_operand.vmem [shape: f32[2,4,8,32], index: 7, kind: input, shape index: {}]
  %s8 = inlined_call_operand.vmem [shape: f32[2,32], index: 8, kind: input, shape index: {}]
  %s9 = inlined_call_operand.vmem [shape: f32[2,32,64], index: 9, kind: input, shape index: {}]
  %s10 = inlined_call_operand.vmem [shape: f32[2,64,32], index: 10, kind: input, shape index: {}]
  %s11 = inlined_call_operand.vmem [shape: f32[1,32], index: 11, kind: input, shape index: {}]
  %s12 = inlined_call_operand.vmem [shape: f32[1,32], index: 12, kind: input, shape index: {}]
  %s13 = inlined_call_operand.<no memory space> [shape: f32[1,1], index: 13, kind: input, shape index: {}]
  %s14 = inlined_call_operand.vmem [shape: f32[2,1], index: 14, kind: output, shape index: {}]
  %s15 = sld [smem:[#allocation0]]
  $region70: #{forward.1} parent=0
    _
  %s17 = ssub.s32 1, %s15
  %s18 = scalar_select 0, %s17, %s15
  %v19 = vstv %s13
  %20 = vst [vmem:[#allocation3] sm:$0x1] %v19
  $region1: #{forward.1} parent=0
    #allocation4 [shape = 'u8[1024]{0}', space=smem, size = 0x400, scoped, tag = 'input window, operand 0, single buffered']
    #allocation5 [shape = 's32[1]{0}', space=sflag, size = 0x4, scoped, tag = 'scoped memory for forward.1']
    %21 = vsyncpa [#allocation5], 0
    // Predicated region
    $region2: #{forward.1} parent=1 // pred_check
      _
    $region3: #{forward.1} parent=1 // pred_check_branch
      %23 = sbr.rel (0) target = $region5
    $region4: #{forward.1} parent=1 // pred_region
      %s25 = ssub.s32 32, 32
      %26 = vsyncadd [#allocation5], %s25
      %s28 = sshll.u32 %s0, 4
      %s29 = int_to_ptr.vmem [resolvable:$true] %s28
      %31 = dma.vmem_to_smem %s29, 32, [#allocation4], [#allocation5]
    $region5: #{forward.1} parent=1 // pred_fallthru
      _
    // Predicated region
    $region6: #{forward.1} parent=1 // pred_check
      _
    $region7: #{forward.1} parent=1 // pred_check_branch
      %33 = sbr.rel (0) target = $region9
    $region8: #{forward.1} parent=1 // pred_region
      _
    $region9: #{forward.1} parent=1 // pred_fallthru
      _
    // Predicated region
    $region10: #{forward.1} parent=1 // pred_check
      _
    $region11: #{forward.1} parent=1 // pred_check_branch
      %35 = sbr.rel (0) target = $region13
    $region12: #{forward.1} parent=1 // pred_region
      _
    $region13: #{forward.1} parent=1 // pred_fallthru
      _
    // Predicated region
    $region14: #{forward.1} parent=1 // pred_check
      _
    $region15: #{forward.1} parent=1 // pred_check_branch
      %37 = sbr.rel (0) target = $region17
    $region16: #{forward.1} parent=1 // pred_region
      _
    $region17: #{forward.1} parent=1 // pred_fallthru
      _
    // Predicated region
    $region18: #{forward.1} parent=1 // pred_check
      _
    $region19: #{forward.1} parent=1 // pred_check_branch
      %39 = sbr.rel (0) target = $region21
    $region20: #{forward.1} parent=1 // pred_region
      _
    $region21: #{forward.1} parent=1 // pred_fallthru
      _
    // Predicated region
    $region22: #{forward.1} parent=1 // pred_check
      _
    $region23: #{forward.1} parent=1 // pred_check_branch
      %41 = sbr.rel (0) target = $region25
    $region24: #{forward.1} parent=1 // pred_region
      _
    $region25: #{forward.1} parent=1 // pred_fallthru
      _
    // Predicated region
    $region26: #{forward.1} parent=1 // pred_check
      _
    $region27: #{forward.1} parent=1 // pred_check_branch
      %43 = sbr.rel (0) target = $region29
    $region28: #{forward.1} parent=1 // pred_region
      _
    $region29: #{forward.1} parent=1 // pred_fallthru
      _
    // Predicated region
    $region30: #{forward.1} parent=1 // pred_check
      _
    $region31: #{forward.1} parent=1 // pred_check_branch
      %45 = sbr.rel (0) target = $region33
    $region32: #{forward.1} parent=1 // pred_region
      _
    $region33: #{forward.1} parent=1 // pred_fallthru
      _
    // Predicated region
    $region34: #{forward.1} parent=1 // pred_check
      _
    $region35: #{forward.1} parent=1 // pred_check_branch
      %47 = sbr.rel (0) target = $region37
    $region36: #{forward.1} parent=1 // pred_region
      _
    $region37: #{forward.1} parent=1 // pred_fallthru
      _
    // Predicated region
    $region38: #{forward.1} parent=1 // pred_check
      _
    $region39: #{forward.1} parent=1 // pred_check_branch
      %49 = sbr.rel (0) target = $region41
    $region40: #{forward.1} parent=1 // pred_region
      _
    $region41: #{forward.1} parent=1 // pred_fallthru
      _
    // Predicated region
    $region42: #{forward.1} parent=1 // pred_check
      _
    $region43: #{forward.1} parent=1 // pred_check_branch
      %51 = sbr.rel (0) target = $region45
    $region44: #{forward.1} parent=1 // pred_region
      _
    $region45: #{forward.1} parent=1 // pred_fallthru
      _
    // Predicated region
    $region46: #{forward.1} parent=1 // pred_check
      _
    $region47: #{forward.1} parent=1 // pred_check_branch
      %53 = sbr.rel (0) target = $region49
    $region48: #{forward.1} parent=1 // pred_region
      _
    $region49: #{forward.1} parent=1 // pred_fallthru
      _
    // Predicated region
    $region50: #{forward.1} parent=1 // pred_check
      _
    $region51: #{forward.1} parent=1 // pred_check_branch
      %55 = sbr.rel (0) target = $region53
    $region52: #{forward.1} parent=1 // pred_region
      _
    $region53: #{forward.1} parent=1 // pred_fallthru
      _
    // Predicated region
    $region54: #{forward.1} parent=1 // pred_check
      _
    $region55: #{forward.1} parent=1 // pred_check_branch
      %57 = sbr.rel (0) target = $region57
    $region56: #{forward.1} parent=1 // pred_region
      _
    $region57: #{forward.1} parent=1 // pred_fallthru
      _
    // Predicated region
    $region58: #{forward.1} parent=1 // pred_check
      _
    $region59: #{forward.1} parent=1 // pred_check_branch
      %59 = sbr.rel (0) target = $region61
    $region60: #{forward.1} parent=1 // pred_region
      %60 = dma.done [#allocation5], 32
    $region61: #{forward.1} parent=1 // pred_fallthru
      _
    %61 = sfence
    %s62 = sld [smem:[#allocation4]]
    %s63 = scalar_lea.vmem %s2, %s62
    %v64 = vld [vmem:[%s63] sm:$0x1]
    %vm65 = vcmask 253952
    %66 = vst.msk [vmem:[#allocation2] sm:$0x1] %vm65, %v64
    %s67 = sld [smem:[#allocation4 + $0x1]]
    %s68 = scalar_lea.vmem %s2, %s67
    %v69 = vld [vmem:[%s68] sm:$0x1]
    %70 = vst.msk [vmem:[#allocation2 + $0x1] sm:$0x1] %vm65, %v69
    %s71 = sld [smem:[#allocation4 + $0x2]]
    %s72 = scalar_lea.vmem %s2, %s71
    %v73 = vld [vmem:[%s72] sm:$0x1]
    %74 = vst.msk [vmem:[#allocation2 + $0x2] sm:$0x1] %vm65, %v73
    %s75 = sld [smem:[#allocation4 + $0x3]]
    %s76 = scalar_lea.vmem %s2, %s75
    %v77 = vld [vmem:[%s76] sm:$0x1]
    %78 = vst.msk [vmem:[#allocation2 + $0x3] sm:$0x1] %vm65, %v77
    %s79 = sld [smem:[#allocation4 + $0x4]]
    %s80 = scalar_lea.vmem %s2, %s79
    %v81 = vld [vmem:[%s80] sm:$0x1]
    %82 = vst.msk [vmem:[#allocation2 + $0x4] sm:$0x1] %vm65, %v81
    %s83 = sld [smem:[#allocation4 + $0x5]]
    %s84 = scalar_lea.vmem %s2, %s83
    %v85 = vld [vmem:[%s84] sm:$0x1]
    %86 = vst.msk [vmem:[#allocation2 + $0x5] sm:$0x1] %vm65, %v85
    %s87 = sld [smem:[#allocation4 + $0x6]]
    %s88 = scalar_lea.vmem %s2, %s87
    %v89 = vld [vmem:[%s88] sm:$0x1]
    %90 = vst.msk [vmem:[#allocation2 + $0x6] sm:$0x1] %vm65, %v89
    %s91 = sld [smem:[#allocation4 + $0x7]]
    %s92 = scalar_lea.vmem %s2, %s91
    %v93 = vld [vmem:[%s92] sm:$0x1]
    %94 = vst.msk [vmem:[#allocation2 + $0x7] sm:$0x1] %vm65, %v93
    %s95 = sld [smem:[#allocation4 + $0x80]]
    %s96 = scalar_lea.vmem %s2, %s95
    %v97 = vld [vmem:[%s96] sm:$0x1]
    %98 = vst.msk [vmem:[#allocation2 + $0x8] sm:$0x1] %vm65, %v97
    %s99 = sld [smem:[#allocation4 + $0x81]]
    %s100 = scalar_lea.vmem %s2, %s99
    %v101 = vld [vmem:[%s100] sm:$0x1]
    %102 = vst.msk [vmem:[#allocation2 + $0x9] sm:$0x1] %vm65, %v101
    %s103 = sld [smem:[#allocation4 + $0x82]]
    %s104 = scalar_lea.vmem %s2, %s103
    %v105 = vld [vmem:[%s104] sm:$0x1]
    %106 = vst.msk [vmem:[#allocation2 + $0xa] sm:$0x1] %vm65, %v105
    %s107 = sld [smem:[#allocation4 + $0x83]]
    %s108 = scalar_lea.vmem %s2, %s107
    %v109 = vld [vmem:[%s108] sm:$0x1]
    %110 = vst.msk [vmem:[#allocation2 + $0xb] sm:$0x1] %vm65, %v109
    %s111 = sld [smem:[#allocation4 + $0x84]]
    %s112 = scalar_lea.vmem %s2, %s111
    %v113 = vld [vmem:[%s112] sm:$0x1]
    %114 = vst.msk [vmem:[#allocation2 + $0xc] sm:$0x1] %vm65, %v113
    %s115 = sld [smem:[#allocation4 + $0x85]]
    %s116 = scalar_lea.vmem %s2, %s115
    %v117 = vld [vmem:[%s116] sm:$0x1]
    %118 = vst.msk [vmem:[#allocation2 + $0xd] sm:$0x1] %vm65, %v117
    %s119 = sld [smem:[#allocation4 + $0x86]]
    %s120 = scalar_lea.vmem %s2, %s119
    %v121 = vld [vmem:[%s120] sm:$0x1]
    %122 = vst.msk [vmem:[#allocation2 + $0xe] sm:$0x1] %vm65, %v121
    %s123 = sld [smem:[#allocation4 + $0x87]]
    %s124 = scalar_lea.vmem %s2, %s123
    %v125 = vld [vmem:[%s124] sm:$0x1]
    %126 = vst.msk [vmem:[#allocation2 + $0xf] sm:$0x1] %vm65, %v125
    %v127 = vld [vmem:[#allocation2] sm:$0xff]
    %v128 = vld [vmem:[#allocation2 + $0x8] sm:$0xff]
    %v129 = vld [vmem:[%s1] sm:$0x3]
    %v130 = vcvt.s32.f32 %v129
    %v131 = vsub.f32 1.0, %v130
    %v132 = vmul.f32 %v131, -1e+09
    %v135 = vunpack.c.l.s4 1966171168
    %v136 = vunpack.c.0.s8 %v135
    %v137 = vlaneseq
    %v138 = vshrl.u32 %v137, 7
    %v139 = vsub.s32 %v136, %v138
    %v140 = vrot.slane %v132, %v139
    %v141 = vcombine.high %v140, %v140
    %v143 = vunpack.c.l.s4 1966171168
    %v144 = vunpack.c.0.s8 %v143
    %v145 = vlaneseq
    %v146 = vshrl.u32 %v145, 7
    %v147 = vsub.s32 %v144, %v146
    %v148 = vrot.slane %v140, %v147
    %v150 = vunpack.c.l.s4 1966171168
    %v151 = vunpack.c.0.s8 %v150
    %v152 = vlaneseq
    %v153 = vshrl.u32 %v152, 7
    %v154 = vsub.s32 %v151, %v153
    %v155 = vrot.slane %v141, %v154
    %v156 = vlaneseq
    %v157 = vshrl.u32 %v156, 7
    %v158 = vsub.s32 0, %v157
    %v159 = vrot.slane %v148, %v158
    %v160 = vlaneseq
    %v161 = vshrl.u32 %v160, 7
    %v162 = vsub.s32 0, %v161
    %v163 = vrot.slane %v155, %v162
    %v166 = vmul.f32 %v127, %v127
    %v167 = vmul.f32 %v128, %v128
    %vm168 = vcmask 261120
    %v169 = vsel %vm168, %v166, 0.0
    %170 = vadd.xlane.f32.xlu0 %v169
    %v171 = vpop.xlane.xlu0 %170
    %v172 = vsel %vm168, %v167, 0.0
    %173 = vadd.xlane.f32.xlu0 %v172
    %v174 = vpop.xlane.xlu0 %173
    %v175 = vrcp.pop 32.0
    %v176 = vmul.f32 %v171, %v175
    %v177 = vmul.f32 %v174, %v175
    %v178 = vadd.f32 %v176, 1e-06
    %v179 = vadd.f32 %v177, 1e-06
    %v180 = vrsqrt.pop %v178
    %v181 = vrsqrt.pop %v179
    %v182 = vmul.f32 %v127, %v180
    %v183 = vmul.f32 %v128, %v181
    %v184 = vld [vmem:[%s3] sm:$0x1]
    %v185 = vlaneseq
    %v186 = vshrl.u32 %v185, 7
    %v187 = vsub.s32 0, %v186
    %v188 = vrot.slane %v184, %v187
    %v189 = vmul.f32 %v182, %v188
    %v190 = vmul.f32 %v183, %v188
    %v191 = vld [vmem:[%s4] sm:$0xff]
    %v192 = vld [vmem:[%s4 + $0x8] sm:$0xff]
    %v193 = vld [vmem:[%s4 + $0x10] sm:$0xff]
    %v194 = vld [vmem:[%s4 + $0x18] sm:$0xff]
    %v196 = vsel %vm168, %v189, 0
    %v199 = vsel %vm168, %v190, 0
    %201 = vmatprep.subr.mxu0 0.0
    %202 = vmatpush1.msra.mxu0 0.0
    %203 = vmatprep.subr.mxu0 0.0
    %204 = vmatpush1.msra.mxu0 0.0
    %205 = vmatprep.subr.mxu0 0.0
    %206 = vmatpush1.msra.mxu0 0.0
    %207 = vmatprep.subr.mxu0 0.0
    %208 = vmatpush1.msra.mxu0 0.0
    %209 = vmatprep.subr.mxu0 0.0
    %210 = vmatpush1.msra.mxu0 0.0
    %211 = vmatprep.subr.mxu0 0.0
    %212 = vmatpush1.msra.mxu0 0.0
    %213 = vmatprep.subr.mxu0 0.0
    %214 = vmatpush1.msra.mxu0 0.0
    %215 = vmatprep.subr.mxu0 0.0
    %216 = vmatpush1.msra.mxu0 0.0
    %217 = vmatprep.subr.mxu0 0.0
    %218 = vmatpush1.msra.mxu0 0.0
    %219 = vmatprep.subr.mxu0 0.0
    %220 = vmatpush1.msra.mxu0 0.0
    %221 = vmatprep.subr.mxu0 0.0
    %222 = vmatpush1.msra.mxu0 0.0
    %223 = vmatprep.subr.mxu0 0.0
    %224 = vmatpush1.msra.mxu0 0.0
    %225 = vmatprep.subr.mxu0 0.0
    %226 = vmatpush1.msra.mxu0 %v194
    %227 = vmatprep.subr.mxu0 0.0
    %228 = vmatpush1.msra.mxu0 %v193
    %229 = vmatprep.subr.mxu0 0.0
    %230 = vmatpush1.msra.mxu0 %v192
    %231 = vmatprep.subr.mxu0 0.0
    %232 = vmatpush1.msra.mxu0 %v191
    %233 = vmatprep.subr.mxu0 0.0
    %234 = vmatpush2.msra.mxu0 0.0
    %235 = vmatprep.subr.mxu0 0.0
    %236 = vmatpush2.msra.mxu0 0.0
    %237 = vmatprep.subr.mxu0 0.0
    %238 = vmatpush2.msra.mxu0 0.0
    %239 = vmatprep.subr.mxu0 0.0
    %240 = vmatpush2.msra.mxu0 0.0
    %241 = vmatprep.subr.mxu0 0.0
    %242 = vmatpush2.msra.mxu0 0.0
    %243 = vmatprep.subr.mxu0 0.0
    %244 = vmatpush2.msra.mxu0 0.0
    %245 = vmatprep.subr.mxu0 0.0
    %246 = vmatpush2.msra.mxu0 0.0
    %247 = vmatprep.subr.mxu0 0.0
    %248 = vmatpush2.msra.mxu0 0.0
    %249 = vmatprep.subr.mxu0 0.0
    %250 = vmatpush2.msra.mxu0 0.0
    %251 = vmatprep.subr.mxu0 0.0
    %252 = vmatpush2.msra.mxu0 0.0
    %253 = vmatprep.subr.mxu0 0.0
    %254 = vmatpush2.msra.mxu0 0.0
    %255 = vmatprep.subr.mxu0 0.0
    %256 = vmatpush2.msra.mxu0 0.0
    %257 = vmatprep.subr.mxu0 0.0
    %258 = vmatpush2.msra.mxu0 0.0
    %259 = vmatprep.subr.mxu0 0.0
    %260 = vmatpush2.msra.mxu0 0.0
    %261 = vmatprep.subr.mxu0 0.0
    %262 = vmatpush2.msra.mxu0 0.0
    %263 = vmatprep.subr.mxu0 0.0
    %264 = vmatpush2.msra.mxu0 0.0
    %265 = vmatprep.mubr.f32.mxu0 0.0
    %266 = vmatmul.mubr.f32.gmra.mxu0 %v196
    %v267 = vpop.f32.mrf.mxu0
    %v268 = vadd.f32 0.0, %v267
    %v269 = vpop.f32.mrf.mxu0
    %270 = vmatprep.mubr.f32.mxu0 0.0
    %271 = vmatmul.mubr.f32.gmra.mxu0 %v199
    %v272 = vpop.f32.mrf.mxu0
    %v273 = vadd.f32 0.0, %v272
    %v274 = vpop.f32.mrf.mxu0
    %275 = vdwg.mxu0
    %v276 = vld [vmem:[%s5] sm:$0xff]
    %v277 = vld [vmem:[%s5 + $0x8] sm:$0xff]
    %v278 = vld [vmem:[%s5 + $0x10] sm:$0xff]
    %v279 = vld [vmem:[%s5 + $0x18] sm:$0xff]
    %280 = vmatprep.subr.mxu0 0.0
    %281 = vmatpush1.msra.mxu0 0.0
    %282 = vmatprep.subr.mxu0 0.0
    %283 = vmatpush1.msra.mxu0 0.0
    %284 = vmatprep.subr.mxu0 0.0
    %285 = vmatpush1.msra.mxu0 0.0
    %286 = vmatprep.subr.mxu0 0.0
    %287 = vmatpush1.msra.mxu0 0.0
    %288 = vmatprep.subr.mxu0 0.0
    %289 = vmatpush1.msra.mxu0 0.0
    %290 = vmatprep.subr.mxu0 0.0
    %291 = vmatpush1.msra.mxu0 0.0
    %292 = vmatprep.subr.mxu0 0.0
    %293 = vmatpush1.msra.mxu0 0.0
    %294 = vmatprep.subr.mxu0 0.0
    %295 = vmatpush1.msra.mxu0 0.0
    %296 = vmatprep.subr.mxu0 0.0
    %297 = vmatpush1.msra.mxu0 0.0
    %298 = vmatprep.subr.mxu0 0.0
    %299 = vmatpush1.msra.mxu0 0.0
    %300 = vmatprep.subr.mxu0 0.0
    %301 = vmatpush1.msra.mxu0 0.0
    %302 = vmatprep.subr.mxu0 0.0
    %303 = vmatpush1.msra.mxu0 0.0
    %304 = vmatprep.subr.mxu0 0.0
    %305 = vmatpush1.msra.mxu0 %v279
    %306 = vmatprep.subr.mxu0 0.0
    %307 = vmatpush1.msra.mxu0 %v278
    %308 = vmatprep.subr.mxu0 0.0
    %309 = vmatpush1.msra.mxu0 %v277
    %310 = vmatprep.subr.mxu0 0.0
    %311 = vmatpush1.msra.mxu0 %v276
    %312 = vmatprep.subr.mxu0 0.0
    %313 = vmatpush2.msra.mxu0 0.0
    %314 = vmatprep.subr.mxu0 0.0
    %315 = vmatpush2.msra.mxu0 0.0
    %316 = vmatprep.subr.mxu0 0.0
    %317 = vmatpush2.msra.mxu0 0.0
    %318 = vmatprep.subr.mxu0 0.0
    %319 = vmatpush2.msra.mxu0 0.0
    %320 = vmatprep.subr.mxu0 0.0
    %321 = vmatpush2.msra.mxu0 0.0
    %322 = vmatprep.subr.mxu0 0.0
    %323 = vmatpush2.msra.mxu0 0.0
    %324 = vmatprep.subr.mxu0 0.0
    %325 = vmatpush2.msra.mxu0 0.0
    %326 = vmatprep.subr.mxu0 0.0
    %327 = vmatpush2.msra.mxu0 0.0
    %328 = vmatprep.subr.mxu0 0.0
    %329 = vmatpush2.msra.mxu0 0.0
    %330 = vmatprep.subr.mxu0 0.0
    %331 = vmatpush2.msra.mxu0 0.0
    %332 = vmatprep.subr.mxu0 0.0
    %333 = vmatpush2.msra.mxu0 0.0
    %334 = vmatprep.subr.mxu0 0.0
    %335 = vmatpush2.msra.mxu0 0.0
    %336 = vmatprep.subr.mxu0 0.0
    %337 = vmatpush2.msra.mxu0 0.0
    %338 = vmatprep.subr.mxu0 0.0
    %339 = vmatpush2.msra.mxu0 0.0
    %340 = vmatprep.subr.mxu0 0.0
    %341 = vmatpush2.msra.mxu0 0.0
    %342 = vmatprep.subr.mxu0 0.0
    %343 = vmatpush2.msra.mxu0 0.0
    %344 = vmatprep.mubr.f32.mxu0 0.0
    %345 = vmatmul.mubr.f32.gmra.mxu0 %v196
    %v346 = vpop.f32.mrf.mxu0
    %v347 = vadd.f32 0.0, %v346
    %v348 = vpop.f32.mrf.mxu0
    %349 = vmatprep.mubr.f32.mxu0 0.0
    %350 = vmatmul.mubr.f32.gmra.mxu0 %v199
    %v351 = vpop.f32.mrf.mxu0
    %v352 = vadd.f32 0.0, %v351
    %v353 = vpop.f32.mrf.mxu0
    %354 = vdwg.mxu0
    %v355 = vld [vmem:[%s6] sm:$0xff]
    %v356 = vld [vmem:[%s6 + $0x8] sm:$0xff]
    %v357 = vld [vmem:[%s6 + $0x10] sm:$0xff]
    %v358 = vld [vmem:[%s6 + $0x18] sm:$0xff]
    %359 = vmatprep.subr.mxu0 0.0
    %360 = vmatpush1.msra.mxu0 0.0
    %361 = vmatprep.subr.mxu0 0.0
    %362 = vmatpush1.msra.mxu0 0.0
    %363 = vmatprep.subr.mxu0 0.0
    %364 = vmatpush1.msra.mxu0 0.0
    %365 = vmatprep.subr.mxu0 0.0
    %366 = vmatpush1.msra.mxu0 0.0
    %367 = vmatprep.subr.mxu0 0.0
    %368 = vmatpush1.msra.mxu0 0.0
    %369 = vmatprep.subr.mxu0 0.0
    %370 = vmatpush1.msra.mxu0 0.0
    %371 = vmatprep.subr.mxu0 0.0
    %372 = vmatpush1.msra.mxu0 0.0
    %373 = vmatprep.subr.mxu0 0.0
    %374 = vmatpush1.msra.mxu0 0.0
    %375 = vmatprep.subr.mxu0 0.0
    %376 = vmatpush1.msra.mxu0 0.0
    %377 = vmatprep.subr.mxu0 0.0
    %378 = vmatpush1.msra.mxu0 0.0
    %379 = vmatprep.subr.mxu0 0.0
    %380 = vmatpush1.msra.mxu0 0.0
    %381 = vmatprep.subr.mxu0 0.0
    %382 = vmatpush1.msra.mxu0 0.0
    %383 = vmatprep.subr.mxu0 0.0
    %384 = vmatpush1.msra.mxu0 %v358
    %385 = vmatprep.subr.mxu0 0.0
    %386 = vmatpush1.msra.mxu0 %v357
    %387 = vmatprep.subr.mxu0 0.0
    %388 = vmatpush1.msra.mxu0 %v356
    %389 = vmatprep.subr.mxu0 0.0
    %390 = vmatpush1.msra.mxu0 %v355
    %391 = vmatprep.subr.mxu0 0.0
    %392 = vmatpush2.msra.mxu0 0.0
    %393 = vmatprep.subr.mxu0 0.0
    %394 = vmatpush2.msra.mxu0 0.0
    %395 = vmatprep.subr.mxu0 0.0
    %396 = vmatpush2.msra.mxu0 0.0
    %397 = vmatprep.subr.mxu0 0.0
    %398 = vmatpush2.msra.mxu0 0.0
    %399 = vmatprep.subr.mxu0 0.0
    %400 = vmatpush2.msra.mxu0 0.0
    %401 = vmatprep.subr.mxu0 0.0
    %402 = vmatpush2.msra.mxu0 0.0
    %403 = vmatprep.subr.mxu0 0.0
    %404 = vmatpush2.msra.mxu0 0.0
    %405 = vmatprep.subr.mxu0 0.0
    %406 = vmatpush2.msra.mxu0 0.0
    %407 = vmatprep.subr.mxu0 0.0
    %408 = vmatpush2.msra.mxu0 0.0
    %409 = vmatprep.subr.mxu0 0.0
    %410 = vmatpush2.msra.mxu0 0.0
    %411 = vmatprep.subr.mxu0 0.0
    %412 = vmatpush2.msra.mxu0 0.0
    %413 = vmatprep.subr.mxu0 0.0
    %414 = vmatpush2.msra.mxu0 0.0
    %415 = vmatprep.subr.mxu0 0.0
    %416 = vmatpush2.msra.mxu0 0.0
    %417 = vmatprep.subr.mxu0 0.0
    %418 = vmatpush2.msra.mxu0 0.0
    %419 = vmatprep.subr.mxu0 0.0
    %420 = vmatpush2.msra.mxu0 0.0
    %421 = vmatprep.subr.mxu0 0.0
    %422 = vmatpush2.msra.mxu0 0.0
    %423 = vmatprep.mubr.f32.mxu0 0.0
    %424 = vmatmul.mubr.f32.gmra.mxu0 %v196
    %v425 = vpop.f32.mrf.mxu0
    %v426 = vadd.f32 0.0, %v425
    %v427 = vpop.f32.mrf.mxu0
    %428 = vmatprep.mubr.f32.mxu0 0.0
    %429 = vmatmul.mubr.f32.gmra.mxu0 %v199
    %v430 = vpop.f32.mrf.mxu0
    %v431 = vadd.f32 0.0, %v430
    %v432 = vpop.f32.mrf.mxu0
    %433 = vdwg.mxu0
    %vm434 = vcmask 64512
    %v436 = vsel %vm434, %v268, 0
    %v439 = vsel %vm434, %v347, 0
    %441 = vmatprep.subr.mxu0 0.0
    %442 = vmatpush1.xpose.msra.mxu0 0.0
    %443 = vmatprep.subr.mxu0 0.0
    %444 = vmatpush1.xpose.msra.mxu0 0.0
    %445 = vmatprep.subr.mxu0 0.0
    %446 = vmatpush1.xpose.msra.mxu0 0.0
    %447 = vmatprep.subr.mxu0 0.0
    %448 = vmatpush1.xpose.msra.mxu0 0.0
    %449 = vmatprep.subr.mxu0 0.0
    %450 = vmatpush1.xpose.msra.mxu0 0.0
    %451 = vmatprep.subr.mxu0 0.0
    %452 = vmatpush1.xpose.msra.mxu0 0.0
    %453 = vmatprep.subr.mxu0 0.0
    %454 = vmatpush1.xpose.msra.mxu0 0.0
    %455 = vmatprep.subr.mxu0 0.0
    %456 = vmatpush1.xpose.msra.mxu0 0.0
    %457 = vmatprep.subr.mxu0 0.0
    %458 = vmatpush1.xpose.msra.mxu0 0.0
    %459 = vmatprep.subr.mxu0 0.0
    %460 = vmatpush1.xpose.msra.mxu0 0.0
    %461 = vmatprep.subr.mxu0 0.0
    %462 = vmatpush1.xpose.msra.mxu0 0.0
    %463 = vmatprep.subr.mxu0 0.0
    %464 = vmatpush1.xpose.msra.mxu0 0.0
    %465 = vmatprep.subr.mxu0 0.0
    %466 = vmatpush1.xpose.msra.mxu0 0.0
    %467 = vmatprep.subr.mxu0 0.0
    %468 = vmatpush1.xpose.msra.mxu0 0.0
    %469 = vmatprep.subr.mxu0 0.0
    %470 = vmatpush1.xpose.msra.mxu0 0.0
    %471 = vmatprep.subr.mxu0 0.0
    %472 = vmatpush1.xpose.msra.mxu0 %v439
    %473 = vmatprep.subr.mxu0 0.0
    %474 = vmatpush2.xpose.msra.mxu0 0.0
    %475 = vmatprep.subr.mxu0 0.0
    %476 = vmatpush2.xpose.msra.mxu0 0.0
    %477 = vmatprep.subr.mxu0 0.0
    %478 = vmatpush2.xpose.msra.mxu0 0.0
    %479 = vmatprep.subr.mxu0 0.0
    %480 = vmatpush2.xpose.msra.mxu0 0.0
    %481 = vmatprep.subr.mxu0 0.0
    %482 = vmatpush2.xpose.msra.mxu0 0.0
    %483 = vmatprep.subr.mxu0 0.0
    %484 = vmatpush2.xpose.msra.mxu0 0.0
    %485 = vmatprep.subr.mxu0 0.0
    %486 = vmatpush2.xpose.msra.mxu0 0.0
    %487 = vmatprep.subr.mxu0 0.0
    %488 = vmatpush2.xpose.msra.mxu0 0.0
    %489 = vmatprep.subr.mxu0 0.0
    %490 = vmatpush2.xpose.msra.mxu0 0.0
    %491 = vmatprep.subr.mxu0 0.0
    %492 = vmatpush2.xpose.msra.mxu0 0.0
    %493 = vmatprep.subr.mxu0 0.0
    %494 = vmatpush2.xpose.msra.mxu0 0.0
    %495 = vmatprep.subr.mxu0 0.0
    %496 = vmatpush2.xpose.msra.mxu0 0.0
    %497 = vmatprep.subr.mxu0 0.0
    %498 = vmatpush2.xpose.msra.mxu0 0.0
    %499 = vmatprep.subr.mxu0 0.0
    %500 = vmatpush2.xpose.msra.mxu0 0.0
    %501 = vmatprep.subr.mxu0 0.0
    %502 = vmatpush2.xpose.msra.mxu0 0.0
    %503 = vmatprep.subr.mxu0 0.0
    %504 = vmatpush2.xpose.msra.mxu0 0.0
    %505 = vmatprep.mubr.f32.mxu0 0.0
    %506 = vmatmul.mubr.f32.gmra.mxu0 %v436
    %v507 = vpop.f32.mrf.mxu0
    %v508 = vadd.f32 %v159, %v507
    %v509 = vpop.f32.mrf.mxu0
    %510 = vdwg.mxu0
    %v512 = vsel %vm434, %v273, 0
    %v515 = vsel %vm434, %v352, 0
    %517 = vmatprep.subr.mxu0 0.0
    %518 = vmatpush1.xpose.msra.mxu0 0.0
    %519 = vmatprep.subr.mxu0 0.0
    %520 = vmatpush1.xpose.msra.mxu0 0.0
    %521 = vmatprep.subr.mxu0 0.0
    %522 = vmatpush1.xpose.msra.mxu0 0.0
    %523 = vmatprep.subr.mxu0 0.0
    %524 = vmatpush1.xpose.msra.mxu0 0.0
    %525 = vmatprep.subr.mxu0 0.0
    %526 = vmatpush1.xpose.msra.mxu0 0.0
    %527 = vmatprep.subr.mxu0 0.0
    %528 = vmatpush1.xpose.msra.mxu0 0.0
    %529 = vmatprep.subr.mxu0 0.0
    %530 = vmatpush1.xpose.msra.mxu0 0.0
    %531 = vmatprep.subr.mxu0 0.0
    %532 = vmatpush1.xpose.msra.mxu0 0.0
    %533 = vmatprep.subr.mxu0 0.0
    %534 = vmatpush1.xpose.msra.mxu0 0.0
    %535 = vmatprep.subr.mxu0 0.0
    %536 = vmatpush1.xpose.msra.mxu0 0.0
    %537 = vmatprep.subr.mxu0 0.0
    %538 = vmatpush1.xpose.msra.mxu0 0.0
    %539 = vmatprep.subr.mxu0 0.0
    %540 = vmatpush1.xpose.msra.mxu0 0.0
    %541 = vmatprep.subr.mxu0 0.0
    %542 = vmatpush1.xpose.msra.mxu0 0.0
    %543 = vmatprep.subr.mxu0 0.0
    %544 = vmatpush1.xpose.msra.mxu0 0.0
    %545 = vmatprep.subr.mxu0 0.0
    %546 = vmatpush1.xpose.msra.mxu0 0.0
    %547 = vmatprep.subr.mxu0 0.0
    %548 = vmatpush1.xpose.msra.mxu0 %v515
    %549 = vmatprep.subr.mxu0 0.0
    %550 = vmatpush2.xpose.msra.mxu0 0.0
    %551 = vmatprep.subr.mxu0 0.0
    %552 = vmatpush2.xpose.msra.mxu0 0.0
    %553 = vmatprep.subr.mxu0 0.0
    %554 = vmatpush2.xpose.msra.mxu0 0.0
    %555 = vmatprep.subr.mxu0 0.0
    %556 = vmatpush2.xpose.msra.mxu0 0.0
    %557 = vmatprep.subr.mxu0 0.0
    %558 = vmatpush2.xpose.msra.mxu0 0.0
    %559 = vmatprep.subr.mxu0 0.0
    %560 = vmatpush2.xpose.msra.mxu0 0.0
    %561 = vmatprep.subr.mxu0 0.0
    %562 = vmatpush2.xpose.msra.mxu0 0.0
    %563 = vmatprep.subr.mxu0 0.0
    %564 = vmatpush2.xpose.msra.mxu0 0.0
    %565 = vmatprep.subr.mxu0 0.0
    %566 = vmatpush2.xpose.msra.mxu0 0.0
    %567 = vmatprep.subr.mxu0 0.0
    %568 = vmatpush2.xpose.msra.mxu0 0.0
    %569 = vmatprep.subr.mxu0 0.0
    %570 = vmatpush2.xpose.msra.mxu0 0.0
    %571 = vmatprep.subr.mxu0 0.0
    %572 = vmatpush2.xpose.msra.mxu0 0.0
    %573 = vmatprep.subr.mxu0 0.0
    %574 = vmatpush2.xpose.msra.mxu0 0.0
    %575 = vmatprep.subr.mxu0 0.0
    %576 = vmatpush2.xpose.msra.mxu0 0.0
    %577 = vmatprep.subr.mxu0 0.0
    %578 = vmatpush2.xpose.msra.mxu0 0.0
    %579 = vmatprep.subr.mxu0 0.0
    %580 = vmatpush2.xpose.msra.mxu0 0.0
    %581 = vmatprep.mubr.f32.mxu0 0.0
    %582 = vmatmul.mubr.f32.gmra.mxu0 %v512
    %v583 = vpop.f32.mrf.mxu0
    %v584 = vadd.f32 %v163, %v583
    %v585 = vpop.f32.mrf.mxu0
    %586 = vdwg.mxu0
    %v587 = vsel %vm434, %v508, -inf
    %588 = vmax.xlane.f32.xlu0 %v587
    %v589 = vpop.xlane.xlu0 %588
    %v590 = vsel %vm434, %v584, -inf
    %591 = vmax.xlane.f32.xlu0 %v590
    %v592 = vpop.xlane.xlu0 %591
    %v593 = vsub.f32 %v508, %v589
    %v594 = vsub.f32 %v584, %v592
    %v595 = vmul.f32 %v593, 1.442695
    %v596 = vpow.pop %v595
    %v597 = vmul.f32 %v594, 1.442695
    %v598 = vpow.pop %v597
    %v599 = vsel %vm434, %v596, 0.0
    %600 = vadd.xlane.f32.xlu0 %v599
    %v601 = vpop.xlane.xlu0 %600
    %v602 = vsel %vm434, %v598, 0.0
    %603 = vadd.xlane.f32.xlu0 %v602
    %v604 = vpop.xlane.xlu0 %603
    %v605 = vrcp.pop %v601
    %v606 = vmul.f32 %v596, %v605
    %v607 = vrcp.pop %v604
    %v608 = vmul.f32 %v598, %v607
    %v610 = vsel %vm434, %v606, 0
    %612 = vmatprep.subr.mxu0 0.0
    %613 = vmatpush1.msra.mxu0 0.0
    %614 = vmatprep.subr.mxu0 0.0
    %615 = vmatpush1.msra.mxu0 0.0
    %616 = vmatprep.subr.mxu0 0.0
    %617 = vmatpush1.msra.mxu0 0.0
    %618 = vmatprep.subr.mxu0 0.0
    %619 = vmatpush1.msra.mxu0 0.0
    %620 = vmatprep.subr.mxu0 0.0
    %621 = vmatpush1.msra.mxu0 0.0
    %622 = vmatprep.subr.mxu0 0.0
    %623 = vmatpush1.msra.mxu0 0.0
    %624 = vmatprep.subr.mxu0 0.0
    %625 = vmatpush1.msra.mxu0 0.0
    %626 = vmatprep.subr.mxu0 0.0
    %627 = vmatpush1.msra.mxu0 0.0
    %628 = vmatprep.subr.mxu0 0.0
    %629 = vmatpush1.msra.mxu0 0.0
    %630 = vmatprep.subr.mxu0 0.0
    %631 = vmatpush1.msra.mxu0 0.0
    %632 = vmatprep.subr.mxu0 0.0
    %633 = vmatpush1.msra.mxu0 0.0
    %634 = vmatprep.subr.mxu0 0.0
    %635 = vmatpush1.msra.mxu0 0.0
    %636 = vmatprep.subr.mxu0 0.0
    %637 = vmatpush1.msra.mxu0 0.0
    %638 = vmatprep.subr.mxu0 0.0
    %639 = vmatpush1.msra.mxu0 0.0
    %640 = vmatprep.subr.mxu0 0.0
    %641 = vmatpush1.msra.mxu0 0.0
    %642 = vmatprep.subr.mxu0 0.0
    %643 = vmatpush1.msra.mxu0 %v426
    %644 = vmatprep.subr.mxu0 0.0
    %645 = vmatpush2.msra.mxu0 0.0
    %646 = vmatprep.subr.mxu0 0.0
    %647 = vmatpush2.msra.mxu0 0.0
    %648 = vmatprep.subr.mxu0 0.0
    %649 = vmatpush2.msra.mxu0 0.0
    %650 = vmatprep.subr.mxu0 0.0
    %651 = vmatpush2.msra.mxu0 0.0
    %652 = vmatprep.subr.mxu0 0.0
    %653 = vmatpush2.msra.mxu0 0.0
    %654 = vmatprep.subr.mxu0 0.0
    %655 = vmatpush2.msra.mxu0 0.0
    %656 = vmatprep.subr.mxu0 0.0
    %657 = vmatpush2.msra.mxu0 0.0
    %658 = vmatprep.subr.mxu0 0.0
    %659 = vmatpush2.msra.mxu0 0.0
    %660 = vmatprep.subr.mxu0 0.0
    %661 = vmatpush2.msra.mxu0 0.0
    %662 = vmatprep.subr.mxu0 0.0
    %663 = vmatpush2.msra.mxu0 0.0
    %664 = vmatprep.subr.mxu0 0.0
    %665 = vmatpush2.msra.mxu0 0.0
    %666 = vmatprep.subr.mxu0 0.0
    %667 = vmatpush2.msra.mxu0 0.0
    %668 = vmatprep.subr.mxu0 0.0
    %669 = vmatpush2.msra.mxu0 0.0
    %670 = vmatprep.subr.mxu0 0.0
    %671 = vmatpush2.msra.mxu0 0.0
    %672 = vmatprep.subr.mxu0 0.0
    %673 = vmatpush2.msra.mxu0 0.0
    %674 = vmatprep.subr.mxu0 0.0
    %675 = vmatpush2.msra.mxu0 0.0
    %676 = vmatprep.mubr.f32.mxu0 0.0
    %677 = vmatmul.mubr.f32.gmra.mxu0 %v610
    %v678 = vpop.f32.mrf.mxu0
    %v679 = vadd.f32 0.0, %v678
    %v680 = vpop.f32.mrf.mxu0
    %681 = vdwg.mxu0
    %v683 = vsel %vm434, %v608, 0
    %685 = vmatprep.subr.mxu0 0.0
    %686 = vmatpush1.msra.mxu0 0.0
    %687 = vmatprep.subr.mxu0 0.0
    %688 = vmatpush1.msra.mxu0 0.0
    %689 = vmatprep.subr.mxu0 0.0
    %690 = vmatpush1.msra.mxu0 0.0
    %691 = vmatprep.subr.mxu0 0.0
    %692 = vmatpush1.msra.mxu0 0.0
    %693 = vmatprep.subr.mxu0 0.0
    %694 = vmatpush1.msra.mxu0 0.0
    %695 = vmatprep.subr.mxu0 0.0
    %696 = vmatpush1.msra.mxu0 0.0
    %697 = vmatprep.subr.mxu0 0.0
    %698 = vmatpush1.msra.mxu0 0.0
    %699 = vmatprep.subr.mxu0 0.0
    %700 = vmatpush1.msra.mxu0 0.0
    %701 = vmatprep.subr.mxu0 0.0
    %702 = vmatpush1.msra.mxu0 0.0
    %703 = vmatprep.subr.mxu0 0.0
    %704 = vmatpush1.msra.mxu0 0.0
    %705 = vmatprep.subr.mxu0 0.0
    %706 = vmatpush1.msra.mxu0 0.0
    %707 = vmatprep.subr.mxu0 0.0
    %708 = vmatpush1.msra.mxu0 0.0
    %709 = vmatprep.subr.mxu0 0.0
    %710 = vmatpush1.msra.mxu0 0.0
    %711 = vmatprep.subr.mxu0 0.0
    %712 = vmatpush1.msra.mxu0 0.0
    %713 = vmatprep.subr.mxu0 0.0
    %714 = vmatpush1.msra.mxu0 0.0
    %715 = vmatprep.subr.mxu0 0.0
    %716 = vmatpush1.msra.mxu0 %v431
    %717 = vmatprep.subr.mxu0 0.0
    %718 = vmatpush2.msra.mxu0 0.0
    %719 = vmatprep.subr.mxu0 0.0
    %720 = vmatpush2.msra.mxu0 0.0
    %721 = vmatprep.subr.mxu0 0.0
    %722 = vmatpush2.msra.mxu0 0.0
    %723 = vmatprep.subr.mxu0 0.0
    %724 = vmatpush2.msra.mxu0 0.0
    %725 = vmatprep.subr.mxu0 0.0
    %726 = vmatpush2.msra.mxu0 0.0
    %727 = vmatprep.subr.mxu0 0.0
    %728 = vmatpush2.msra.mxu0 0.0
    %729 = vmatprep.subr.mxu0 0.0
    %730 = vmatpush2.msra.mxu0 0.0
    %731 = vmatprep.subr.mxu0 0.0
    %732 = vmatpush2.msra.mxu0 0.0
    %733 = vmatprep.subr.mxu0 0.0
    %734 = vmatpush2.msra.mxu0 0.0
    %735 = vmatprep.subr.mxu0 0.0
    %736 = vmatpush2.msra.mxu0 0.0
    %737 = vmatprep.subr.mxu0 0.0
    %738 = vmatpush2.msra.mxu0 0.0
    %739 = vmatprep.subr.mxu0 0.0
    %740 = vmatpush2.msra.mxu0 0.0
    %741 = vmatprep.subr.mxu0 0.0
    %742 = vmatpush2.msra.mxu0 0.0
    %743 = vmatprep.subr.mxu0 0.0
    %744 = vmatpush2.msra.mxu0 0.0
    %745 = vmatprep.subr.mxu0 0.0
    %746 = vmatpush2.msra.mxu0 0.0
    %747 = vmatprep.subr.mxu0 0.0
    %748 = vmatpush2.msra.mxu0 0.0
    %749 = vmatprep.mubr.f32.mxu0 0.0
    %750 = vmatmul.mubr.f32.gmra.mxu0 %v683
    %v751 = vpop.f32.mrf.mxu0
    %v752 = vadd.f32 0.0, %v751
    %v753 = vpop.f32.mrf.mxu0
    %754 = vdwg.mxu0
    %v755 = vld [vmem:[%s7] sm:$0xff]
    %v757 = vsel %vm434, %v679, 0
    %v760 = vsel %vm434, %v752, 0
    %762 = vmatprep.subr.mxu0 0.0
    %763 = vmatpush1.msra.mxu0 0.0
    %764 = vmatprep.subr.mxu0 0.0
    %765 = vmatpush1.msra.mxu0 0.0
    %766 = vmatprep.subr.mxu0 0.0
    %767 = vmatpush1.msra.mxu0 0.0
    %768 = vmatprep.subr.mxu0 0.0
    %769 = vmatpush1.msra.mxu0 0.0
    %770 = vmatprep.subr.mxu0 0.0
    %771 = vmatpush1.msra.mxu0 0.0
    %772 = vmatprep.subr.mxu0 0.0
    %773 = vmatpush1.msra.mxu0 0.0
    %774 = vmatprep.subr.mxu0 0.0
    %775 = vmatpush1.msra.mxu0 0.0
    %776 = vmatprep.subr.mxu0 0.0
    %777 = vmatpush1.msra.mxu0 0.0
    %778 = vmatprep.subr.mxu0 0.0
    %779 = vmatpush1.msra.mxu0 0.0
    %780 = vmatprep.subr.mxu0 0.0
    %781 = vmatpush1.msra.mxu0 0.0
    %782 = vmatprep.subr.mxu0 0.0
    %783 = vmatpush1.msra.mxu0 0.0
    %784 = vmatprep.subr.mxu0 0.0
    %785 = vmatpush1.msra.mxu0 0.0
    %786 = vmatprep.subr.mxu0 0.0
    %787 = vmatpush1.msra.mxu0 0.0
    %788 = vmatprep.subr.mxu0 0.0
    %789 = vmatpush1.msra.mxu0 0.0
    %790 = vmatprep.subr.mxu0 0.0
    %791 = vmatpush1.msra.mxu0 0.0
    %792 = vmatprep.subr.mxu0 0.0
    %793 = vmatpush1.msra.mxu0 %v755
    %794 = vmatprep.subr.mxu0 0.0
    %795 = vmatpush2.msra.mxu0 0.0
    %796 = vmatprep.subr.mxu0 0.0
    %797 = vmatpush2.msra.mxu0 0.0
    %798 = vmatprep.subr.mxu0 0.0
    %799 = vmatpush2.msra.mxu0 0.0
    %800 = vmatprep.subr.mxu0 0.0
    %801 = vmatpush2.msra.mxu0 0.0
    %802 = vmatprep.subr.mxu0 0.0
    %803 = vmatpush2.msra.mxu0 0.0
    %804 = vmatprep.subr.mxu0 0.0
    %805 = vmatpush2.msra.mxu0 0.0
    %806 = vmatprep.subr.mxu0 0.0
    %807 = vmatpush2.msra.mxu0 0.0
    %808 = vmatprep.subr.mxu0 0.0
    %809 = vmatpush2.msra.mxu0 0.0
    %810 = vmatprep.subr.mxu0 0.0
    %811 = vmatpush2.msra.mxu0 0.0
    %812 = vmatprep.subr.mxu0 0.0
    %813 = vmatpush2.msra.mxu0 0.0
    %814 = vmatprep.subr.mxu0 0.0
    %815 = vmatpush2.msra.mxu0 0.0
    %816 = vmatprep.subr.mxu0 0.0
    %817 = vmatpush2.msra.mxu0 0.0
    %818 = vmatprep.subr.mxu0 0.0
    %819 = vmatpush2.msra.mxu0 0.0
    %820 = vmatprep.subr.mxu0 0.0
    %821 = vmatpush2.msra.mxu0 0.0
    %822 = vmatprep.subr.mxu0 0.0
    %823 = vmatpush2.msra.mxu0 0.0
    %824 = vmatprep.subr.mxu0 0.0
    %825 = vmatpush2.msra.mxu0 0.0
    %826 = vmatprep.mubr.f32.mxu0 0.0
    %827 = vmatmul.mubr.f32.gmra.mxu0 %v757
    %v828 = vpop.f32.mrf.mxu0
    %v829 = vadd.f32 0.0, %v828
    %v830 = vpop.f32.mrf.mxu0
    %831 = vmatprep.mubr.f32.mxu0 0.0
    %832 = vmatmul.mubr.f32.gmra.mxu0 %v760
    %v833 = vpop.f32.mrf.mxu0
    %v834 = vadd.f32 0.0, %v833
    %v835 = vpop.f32.mrf.mxu0
    %836 = vdwg.mxu0
    %v837 = vadd.f32 %v127, %v829
    %v838 = vadd.f32 %v128, %v834
    %s839 = scalar_lea.vmem %s4, 32
    %v840 = vld [vmem:[%s839] sm:$0xff]
    %v841 = vld [vmem:[%s839 + $0x8] sm:$0xff]
    %v842 = vld [vmem:[%s839 + $0x10] sm:$0xff]
    %v843 = vld [vmem:[%s839 + $0x18] sm:$0xff]
    %844 = vmatprep.subr.mxu0 0.0
    %845 = vmatpush1.msra.mxu0 0.0
    %846 = vmatprep.subr.mxu0 0.0
    %847 = vmatpush1.msra.mxu0 0.0
    %848 = vmatprep.subr.mxu0 0.0
    %849 = vmatpush1.msra.mxu0 0.0
    %850 = vmatprep.subr.mxu0 0.0
    %851 = vmatpush1.msra.mxu0 0.0
    %852 = vmatprep.subr.mxu0 0.0
    %853 = vmatpush1.msra.mxu0 0.0
    %854 = vmatprep.subr.mxu0 0.0
    %855 = vmatpush1.msra.mxu0 0.0
    %856 = vmatprep.subr.mxu0 0.0
    %857 = vmatpush1.msra.mxu0 0.0
    %858 = vmatprep.subr.mxu0 0.0
    %859 = vmatpush1.msra.mxu0 0.0
    %860 = vmatprep.subr.mxu0 0.0
    %861 = vmatpush1.msra.mxu0 0.0
    %862 = vmatprep.subr.mxu0 0.0
    %863 = vmatpush1.msra.mxu0 0.0
    %864 = vmatprep.subr.mxu0 0.0
    %865 = vmatpush1.msra.mxu0 0.0
    %866 = vmatprep.subr.mxu0 0.0
    %867 = vmatpush1.msra.mxu0 0.0
    %868 = vmatprep.subr.mxu0 0.0
    %869 = vmatpush1.msra.mxu0 %v843
    %870 = vmatprep.subr.mxu0 0.0
    %871 = vmatpush1.msra.mxu0 %v842
    %872 = vmatprep.subr.mxu0 0.0
    %873 = vmatpush1.msra.mxu0 %v841
    %874 = vmatprep.subr.mxu0 0.0
    %875 = vmatpush1.msra.mxu0 %v840
    %876 = vmatprep.subr.mxu0 0.0
    %877 = vmatpush2.msra.mxu0 0.0
    %878 = vmatprep.subr.mxu0 0.0
    %879 = vmatpush2.msra.mxu0 0.0
    %880 = vmatprep.subr.mxu0 0.0
    %881 = vmatpush2.msra.mxu0 0.0
    %882 = vmatprep.subr.mxu0 0.0
    %883 = vmatpush2.msra.mxu0 0.0
    %884 = vmatprep.subr.mxu0 0.0
    %885 = vmatpush2.msra.mxu0 0.0
    %886 = vmatprep.subr.mxu0 0.0
    %887 = vmatpush2.msra.mxu0 0.0
    %888 = vmatprep.subr.mxu0 0.0
    %889 = vmatpush2.msra.mxu0 0.0
    %890 = vmatprep.subr.mxu0 0.0
    %891 = vmatpush2.msra.mxu0 0.0
    %892 = vmatprep.subr.mxu0 0.0
    %893 = vmatpush2.msra.mxu0 0.0
    %894 = vmatprep.subr.mxu0 0.0
    %895 = vmatpush2.msra.mxu0 0.0
    %896 = vmatprep.subr.mxu0 0.0
    %897 = vmatpush2.msra.mxu0 0.0
    %898 = vmatprep.subr.mxu0 0.0
    %899 = vmatpush2.msra.mxu0 0.0
    %900 = vmatprep.subr.mxu0 0.0
    %901 = vmatpush2.msra.mxu0 0.0
    %902 = vmatprep.subr.mxu0 0.0
    %903 = vmatpush2.msra.mxu0 0.0
    %904 = vmatprep.subr.mxu0 0.0
    %905 = vmatpush2.msra.mxu0 0.0
    %906 = vmatprep.subr.mxu0 0.0
    %907 = vmatpush2.msra.mxu0 0.0
    %908 = vmatprep.mubr.f32.mxu0 0.0
    %909 = vmatmul.mubr.f32.gmra.mxu0 %v196
    %v910 = vpop.f32.mrf.mxu0
    %v911 = vadd.f32 0.0, %v910
    %v912 = vpop.f32.mrf.mxu0
    %913 = vmatprep.mubr.f32.mxu0 0.0
    %914 = vmatmul.mubr.f32.gmra.mxu0 %v199
    %v915 = vpop.f32.mrf.mxu0
    %v916 = vadd.f32 0.0, %v915
    %v917 = vpop.f32.mrf.mxu0
    %918 = vdwg.mxu0
    %s919 = scalar_lea.vmem %s5, 32
    %v920 = vld [vmem:[%s919] sm:$0xff]
    %v921 = vld [vmem:[%s919 + $0x8] sm:$0xff]
    %v922 = vld [vmem:[%s919 + $0x10] sm:$0xff]
    %v923 = vld [vmem:[%s919 + $0x18] sm:$0xff]
    %924 = vmatprep.subr.mxu0 0.0
    %925 = vmatpush1.msra.mxu0 0.0
    %926 = vmatprep.subr.mxu0 0.0
    %927 = vmatpush1.msra.mxu0 0.0
    %928 = vmatprep.subr.mxu0 0.0
    %929 = vmatpush1.msra.mxu0 0.0
    %930 = vmatprep.subr.mxu0 0.0
    %931 = vmatpush1.msra.mxu0 0.0
    %932 = vmatprep.subr.mxu0 0.0
    %933 = vmatpush1.msra.mxu0 0.0
    %934 = vmatprep.subr.mxu0 0.0
    %935 = vmatpush1.msra.mxu0 0.0
    %936 = vmatprep.subr.mxu0 0.0
    %937 = vmatpush1.msra.mxu0 0.0
    %938 = vmatprep.subr.mxu0 0.0
    %939 = vmatpush1.msra.mxu0 0.0
    %940 = vmatprep.subr.mxu0 0.0
    %941 = vmatpush1.msra.mxu0 0.0
    %942 = vmatprep.subr.mxu0 0.0
    %943 = vmatpush1.msra.mxu0 0.0
    %944 = vmatprep.subr.mxu0 0.0
    %945 = vmatpush1.msra.mxu0 0.0
    %946 = vmatprep.subr.mxu0 0.0
    %947 = vmatpush1.msra.mxu0 0.0
    %948 = vmatprep.subr.mxu0 0.0
    %949 = vmatpush1.msra.mxu0 %v923
    %950 = vmatprep.subr.mxu0 0.0
    %951 = vmatpush1.msra.mxu0 %v922
    %952 = vmatprep.subr.mxu0 0.0
    %953 = vmatpush1.msra.mxu0 %v921
    %954 = vmatprep.subr.mxu0 0.0
    %955 = vmatpush1.msra.mxu0 %v920
    %956 = vmatprep.subr.mxu0 0.0
    %957 = vmatpush2.msra.mxu0 0.0
    %958 = vmatprep.subr.mxu0 0.0
    %959 = vmatpush2.msra.mxu0 0.0
    %960 = vmatprep.subr.mxu0 0.0
    %961 = vmatpush2.msra.mxu0 0.0
    %962 = vmatprep.subr.mxu0 0.0
    %963 = vmatpush2.msra.mxu0 0.0
    %964 = vmatprep.subr.mxu0 0.0
    %965 = vmatpush2.msra.mxu0 0.0
    %966 = vmatprep.subr.mxu0 0.0
    %967 = vmatpush2.msra.mxu0 0.0
    %968 = vmatprep.subr.mxu0 0.0
    %969 = vmatpush2.msra.mxu0 0.0
    %970 = vmatprep.subr.mxu0 0.0
    %971 = vmatpush2.msra.mxu0 0.0
    %972 = vmatprep.subr.mxu0 0.0
    %973 = vmatpush2.msra.mxu0 0.0
    %974 = vmatprep.subr.mxu0 0.0
    %975 = vmatpush2.msra.mxu0 0.0
    %976 = vmatprep.subr.mxu0 0.0
    %977 = vmatpush2.msra.mxu0 0.0
    %978 = vmatprep.subr.mxu0 0.0
    %979 = vmatpush2.msra.mxu0 0.0
    %980 = vmatprep.subr.mxu0 0.0
    %981 = vmatpush2.msra.mxu0 0.0
    %982 = vmatprep.subr.mxu0 0.0
    %983 = vmatpush2.msra.mxu0 0.0
    %984 = vmatprep.subr.mxu0 0.0
    %985 = vmatpush2.msra.mxu0 0.0
    %986 = vmatprep.subr.mxu0 0.0
    %987 = vmatpush2.msra.mxu0 0.0
    %988 = vmatprep.mubr.f32.mxu0 0.0
    %989 = vmatmul.mubr.f32.gmra.mxu0 %v196
    %v990 = vpop.f32.mrf.mxu0
    %v991 = vadd.f32 0.0, %v990
    %v992 = vpop.f32.mrf.mxu0
    %993 = vmatprep.mubr.f32.mxu0 0.0
    %994 = vmatmul.mubr.f32.gmra.mxu0 %v199
    %v995 = vpop.f32.mrf.mxu0
    %v996 = vadd.f32 0.0, %v995
    %v997 = vpop.f32.mrf.mxu0
    %998 = vdwg.mxu0
    %s999 = scalar_lea.vmem %s6, 32
    %v1000 = vld [vmem:[%s999] sm:$0xff]
    %v1001 = vld [vmem:[%s999 + $0x8] sm:$0xff]
    %v1002 = vld [vmem:[%s999 + $0x10] sm:$0xff]
    %v1003 = vld [vmem:[%s999 + $0x18] sm:$0xff]
    %1004 = vmatprep.subr.mxu0 0.0
    %1005 = vmatpush1.msra.mxu0 0.0
    %1006 = vmatprep.subr.mxu0 0.0
    %1007 = vmatpush1.msra.mxu0 0.0
    %1008 = vmatprep.subr.mxu0 0.0
    %1009 = vmatpush1.msra.mxu0 0.0
    %1010 = vmatprep.subr.mxu0 0.0
    %1011 = vmatpush1.msra.mxu0 0.0
    %1012 = vmatprep.subr.mxu0 0.0
    %1013 = vmatpush1.msra.mxu0 0.0
    %1014 = vmatprep.subr.mxu0 0.0
    %1015 = vmatpush1.msra.mxu0 0.0
    %1016 = vmatprep.subr.mxu0 0.0
    %1017 = vmatpush1.msra.mxu0 0.0
    %1018 = vmatprep.subr.mxu0 0.0
    %1019 = vmatpush1.msra.mxu0 0.0
    %1020 = vmatprep.subr.mxu0 0.0
    %1021 = vmatpush1.msra.mxu0 0.0
    %1022 = vmatprep.subr.mxu0 0.0
    %1023 = vmatpush1.msra.mxu0 0.0
    %1024 = vmatprep.subr.mxu0 0.0
    %1025 = vmatpush1.msra.mxu0 0.0
    %1026 = vmatprep.subr.mxu0 0.0
    %1027 = vmatpush1.msra.mxu0 0.0
    %1028 = vmatprep.subr.mxu0 0.0
    %1029 = vmatpush1.msra.mxu0 %v1003
    %1030 = vmatprep.subr.mxu0 0.0
    %1031 = vmatpush1.msra.mxu0 %v1002
    %1032 = vmatprep.subr.mxu0 0.0
    %1033 = vmatpush1.msra.mxu0 %v1001
    %1034 = vmatprep.subr.mxu0 0.0
    %1035 = vmatpush1.msra.mxu0 %v1000
    %1036 = vmatprep.subr.mxu0 0.0
    %1037 = vmatpush2.msra.mxu0 0.0
    %1038 = vmatprep.subr.mxu0 0.0
    %1039 = vmatpush2.msra.mxu0 0.0
    %1040 = vmatprep.subr.mxu0 0.0
    %1041 = vmatpush2.msra.mxu0 0.0
    %1042 = vmatprep.subr.mxu0 0.0
    %1043 = vmatpush2.msra.mxu0 0.0
    %1044 = vmatprep.subr.mxu0 0.0
    %1045 = vmatpush2.msra.mxu0 0.0
    %1046 = vmatprep.subr.mxu0 0.0
    %1047 = vmatpush2.msra.mxu0 0.0
    %1048 = vmatprep.subr.mxu0 0.0
    %1049 = vmatpush2.msra.mxu0 0.0
    %1050 = vmatprep.subr.mxu0 0.0
    %1051 = vmatpush2.msra.mxu0 0.0
    %1052 = vmatprep.subr.mxu0 0.0
    %1053 = vmatpush2.msra.mxu0 0.0
    %1054 = vmatprep.subr.mxu0 0.0
    %1055 = vmatpush2.msra.mxu0 0.0
    %1056 = vmatprep.subr.mxu0 0.0
    %1057 = vmatpush2.msra.mxu0 0.0
    %1058 = vmatprep.subr.mxu0 0.0
    %1059 = vmatpush2.msra.mxu0 0.0
    %1060 = vmatprep.subr.mxu0 0.0
    %1061 = vmatpush2.msra.mxu0 0.0
    %1062 = vmatprep.subr.mxu0 0.0
    %1063 = vmatpush2.msra.mxu0 0.0
    %1064 = vmatprep.subr.mxu0 0.0
    %1065 = vmatpush2.msra.mxu0 0.0
    %1066 = vmatprep.subr.mxu0 0.0
    %1067 = vmatpush2.msra.mxu0 0.0
    %1068 = vmatprep.mubr.f32.mxu0 0.0
    %1069 = vmatmul.mubr.f32.gmra.mxu0 %v196
    %v1070 = vpop.f32.mrf.mxu0
    %v1071 = vadd.f32 0.0, %v1070
    %v1072 = vpop.f32.mrf.mxu0
    %1073 = vmatprep.mubr.f32.mxu0 0.0
    %1074 = vmatmul.mubr.f32.gmra.mxu0 %v199
    %v1075 = vpop.f32.mrf.mxu0
    %v1076 = vadd.f32 0.0, %v1075
    %v1077 = vpop.f32.mrf.mxu0
    %1078 = vdwg.mxu0
    %v1080 = vsel %vm434, %v911, 0
    %v1083 = vsel %vm434, %v991, 0
    %1085 = vmatprep.subr.mxu0 0.0
    %1086 = vmatpush1.xpose.msra.mxu0 0.0
    %1087 = vmatprep.subr.mxu0 0.0
    %1088 = vmatpush1.xpose.msra.mxu0 0.0
    %1089 = vmatprep.subr.mxu0 0.0
    %1090 = vmatpush1.xpose.msra.mxu0 0.0
    %1091 = vmatprep.subr.mxu0 0.0
    %1092 = vmatpush1.xpose.msra.mxu0 0.0
    %1093 = vmatprep.subr.mxu0 0.0
    %1094 = vmatpush1.xpose.msra.mxu0 0.0
    %1095 = vmatprep.subr.mxu0 0.0
    %1096 = vmatpush1.xpose.msra.mxu0 0.0
    %1097 = vmatprep.subr.mxu0 0.0
    %1098 = vmatpush1.xpose.msra.mxu0 0.0
    %1099 = vmatprep.subr.mxu0 0.0
    %1100 = vmatpush1.xpose.msra.mxu0 0.0
    %1101 = vmatprep.subr.mxu0 0.0
    %1102 = vmatpush1.xpose.msra.mxu0 0.0
    %1103 = vmatprep.subr.mxu0 0.0
    %1104 = vmatpush1.xpose.msra.mxu0 0.0
    %1105 = vmatprep.subr.mxu0 0.0
    %1106 = vmatpush1.xpose.msra.mxu0 0.0
    %1107 = vmatprep.subr.mxu0 0.0
    %1108 = vmatpush1.xpose.msra.mxu0 0.0
    %1109 = vmatprep.subr.mxu0 0.0
    %1110 = vmatpush1.xpose.msra.mxu0 0.0
    %1111 = vmatprep.subr.mxu0 0.0
    %1112 = vmatpush1.xpose.msra.mxu0 0.0
    %1113 = vmatprep.subr.mxu0 0.0
    %1114 = vmatpush1.xpose.msra.mxu0 0.0
    %1115 = vmatprep.subr.mxu0 0.0
    %1116 = vmatpush1.xpose.msra.mxu0 %v1083
    %1117 = vmatprep.subr.mxu0 0.0
    %1118 = vmatpush2.xpose.msra.mxu0 0.0
    %1119 = vmatprep.subr.mxu0 0.0
    %1120 = vmatpush2.xpose.msra.mxu0 0.0
    %1121 = vmatprep.subr.mxu0 0.0
    %1122 = vmatpush2.xpose.msra.mxu0 0.0
    %1123 = vmatprep.subr.mxu0 0.0
    %1124 = vmatpush2.xpose.msra.mxu0 0.0
    %1125 = vmatprep.subr.mxu0 0.0
    %1126 = vmatpush2.xpose.msra.mxu0 0.0
    %1127 = vmatprep.subr.mxu0 0.0
    %1128 = vmatpush2.xpose.msra.mxu0 0.0
    %1129 = vmatprep.subr.mxu0 0.0
    %1130 = vmatpush2.xpose.msra.mxu0 0.0
    %1131 = vmatprep.subr.mxu0 0.0
    %1132 = vmatpush2.xpose.msra.mxu0 0.0
    %1133 = vmatprep.subr.mxu0 0.0
    %1134 = vmatpush2.xpose.msra.mxu0 0.0
    %1135 = vmatprep.subr.mxu0 0.0
    %1136 = vmatpush2.xpose.msra.mxu0 0.0
    %1137 = vmatprep.subr.mxu0 0.0
    %1138 = vmatpush2.xpose.msra.mxu0 0.0
    %1139 = vmatprep.subr.mxu0 0.0
    %1140 = vmatpush2.xpose.msra.mxu0 0.0
    %1141 = vmatprep.subr.mxu0 0.0
    %1142 = vmatpush2.xpose.msra.mxu0 0.0
    %1143 = vmatprep.subr.mxu0 0.0
    %1144 = vmatpush2.xpose.msra.mxu0 0.0
    %1145 = vmatprep.subr.mxu0 0.0
    %1146 = vmatpush2.xpose.msra.mxu0 0.0
    %1147 = vmatprep.subr.mxu0 0.0
    %1148 = vmatpush2.xpose.msra.mxu0 0.0
    %1149 = vmatprep.mubr.f32.mxu0 0.0
    %1150 = vmatmul.mubr.f32.gmra.mxu0 %v1080
    %v1151 = vpop.f32.mrf.mxu0
    %v1152 = vadd.f32 %v159, %v1151
    %v1153 = vpop.f32.mrf.mxu0
    %1154 = vdwg.mxu0
    %v1156 = vsel %vm434, %v916, 0
    %v1159 = vsel %vm434, %v996, 0
    %1161 = vmatprep.subr.mxu0 0.0
    %1162 = vmatpush1.xpose.msra.mxu0 0.0
    %1163 = vmatprep.subr.mxu0 0.0
    %1164 = vmatpush1.xpose.msra.mxu0 0.0
    %1165 = vmatprep.subr.mxu0 0.0
    %1166 = vmatpush1.xpose.msra.mxu0 0.0
    %1167 = vmatprep.subr.mxu0 0.0
    %1168 = vmatpush1.xpose.msra.mxu0 0.0
    %1169 = vmatprep.subr.mxu0 0.0
    %1170 = vmatpush1.xpose.msra.mxu0 0.0
    %1171 = vmatprep.subr.mxu0 0.0
    %1172 = vmatpush1.xpose.msra.mxu0 0.0
    %1173 = vmatprep.subr.mxu0 0.0
    %1174 = vmatpush1.xpose.msra.mxu0 0.0
    %1175 = vmatprep.subr.mxu0 0.0
    %1176 = vmatpush1.xpose.msra.mxu0 0.0
    %1177 = vmatprep.subr.mxu0 0.0
    %1178 = vmatpush1.xpose.msra.mxu0 0.0
    %1179 = vmatprep.subr.mxu0 0.0
    %1180 = vmatpush1.xpose.msra.mxu0 0.0
    %1181 = vmatprep.subr.mxu0 0.0
    %1182 = vmatpush1.xpose.msra.mxu0 0.0
    %1183 = vmatprep.subr.mxu0 0.0
    %1184 = vmatpush1.xpose.msra.mxu0 0.0
    %1185 = vmatprep.subr.mxu0 0.0
    %1186 = vmatpush1.xpose.msra.mxu0 0.0
    %1187 = vmatprep.subr.mxu0 0.0
    %1188 = vmatpush1.xpose.msra.mxu0 0.0
    %1189 = vmatprep.subr.mxu0 0.0
    %1190 = vmatpush1.xpose.msra.mxu0 0.0
    %1191 = vmatprep.subr.mxu0 0.0
    %1192 = vmatpush1.xpose.msra.mxu0 %v1159
    %1193 = vmatprep.subr.mxu0 0.0
    %1194 = vmatpush2.xpose.msra.mxu0 0.0
    %1195 = vmatprep.subr.mxu0 0.0
    %1196 = vmatpush2.xpose.msra.mxu0 0.0
    %1197 = vmatprep.subr.mxu0 0.0
    %1198 = vmatpush2.xpose.msra.mxu0 0.0
    %1199 = vmatprep.subr.mxu0 0.0
    %1200 = vmatpush2.xpose.msra.mxu0 0.0
    %1201 = vmatprep.subr.mxu0 0.0
    %1202 = vmatpush2.xpose.msra.mxu0 0.0
    %1203 = vmatprep.subr.mxu0 0.0
    %1204 = vmatpush2.xpose.msra.mxu0 0.0
    %1205 = vmatprep.subr.mxu0 0.0
    %1206 = vmatpush2.xpose.msra.mxu0 0.0
    %1207 = vmatprep.subr.mxu0 0.0
    %1208 = vmatpush2.xpose.msra.mxu0 0.0
    %1209 = vmatprep.subr.mxu0 0.0
    %1210 = vmatpush2.xpose.msra.mxu0 0.0
    %1211 = vmatprep.subr.mxu0 0.0
    %1212 = vmatpush2.xpose.msra.mxu0 0.0
    %1213 = vmatprep.subr.mxu0 0.0
    %1214 = vmatpush2.xpose.msra.mxu0 0.0
    %1215 = vmatprep.subr.mxu0 0.0
    %1216 = vmatpush2.xpose.msra.mxu0 0.0
    %1217 = vmatprep.subr.mxu0 0.0
    %1218 = vmatpush2.xpose.msra.mxu0 0.0
    %1219 = vmatprep.subr.mxu0 0.0
    %1220 = vmatpush2.xpose.msra.mxu0 0.0
    %1221 = vmatprep.subr.mxu0 0.0
    %1222 = vmatpush2.xpose.msra.mxu0 0.0
    %1223 = vmatprep.subr.mxu0 0.0
    %1224 = vmatpush2.xpose.msra.mxu0 0.0
    %1225 = vmatprep.mubr.f32.mxu0 0.0
    %1226 = vmatmul.mubr.f32.gmra.mxu0 %v1156
    %v1227 = vpop.f32.mrf.mxu0
    %v1228 = vadd.f32 %v163, %v1227
    %v1229 = vpop.f32.mrf.mxu0
    %1230 = vdwg.mxu0
    %v1231 = vsel %vm434, %v1152, -inf
    %1232 = vmax.xlane.f32.xlu0 %v1231
    %v1233 = vpop.xlane.xlu0 %1232
    %v1234 = vsel %vm434, %v1228, -inf
    %1235 = vmax.xlane.f32.xlu0 %v1234
    %v1236 = vpop.xlane.xlu0 %1235
    %v1237 = vsub.f32 %v1152, %v1233
    %v1238 = vsub.f32 %v1228, %v1236
    %v1239 = vmul.f32 %v1237, 1.442695
    %v1240 = vpow.pop %v1239
    %v1241 = vmul.f32 %v1238, 1.442695
    %v1242 = vpow.pop %v1241
    %v1243 = vsel %vm434, %v1240, 0.0
    %1244 = vadd.xlane.f32.xlu0 %v1243
    %v1245 = vpop.xlane.xlu0 %1244
    %v1246 = vsel %vm434, %v1242, 0.0
    %1247 = vadd.xlane.f32.xlu0 %v1246
    %v1248 = vpop.xlane.xlu0 %1247
    %v1249 = vrcp.pop %v1245
    %v1250 = vmul.f32 %v1240, %v1249
    %v1251 = vrcp.pop %v1248
    %v1252 = vmul.f32 %v1242, %v1251
    %v1254 = vsel %vm434, %v1250, 0
    %1256 = vmatprep.subr.mxu0 0.0
    %1257 = vmatpush1.msra.mxu0 0.0
    %1258 = vmatprep.subr.mxu0 0.0
    %1259 = vmatpush1.msra.mxu0 0.0
    %1260 = vmatprep.subr.mxu0 0.0
    %1261 = vmatpush1.msra.mxu0 0.0
    %1262 = vmatprep.subr.mxu0 0.0
    %1263 = vmatpush1.msra.mxu0 0.0
    %1264 = vmatprep.subr.mxu0 0.0
    %1265 = vmatpush1.msra.mxu0 0.0
    %1266 = vmatprep.subr.mxu0 0.0
    %1267 = vmatpush1.msra.mxu0 0.0
    %1268 = vmatprep.subr.mxu0 0.0
    %1269 = vmatpush1.msra.mxu0 0.0
    %1270 = vmatprep.subr.mxu0 0.0
    %1271 = vmatpush1.msra.mxu0 0.0
    %1272 = vmatprep.subr.mxu0 0.0
    %1273 = vmatpush1.msra.mxu0 0.0
    %1274 = vmatprep.subr.mxu0 0.0
    %1275 = vmatpush1.msra.mxu0 0.0
    %1276 = vmatprep.subr.mxu0 0.0
    %1277 = vmatpush1.msra.mxu0 0.0
    %1278 = vmatprep.subr.mxu0 0.0
    %1279 = vmatpush1.msra.mxu0 0.0
    %1280 = vmatprep.subr.mxu0 0.0
    %1281 = vmatpush1.msra.mxu0 0.0
    %1282 = vmatprep.subr.mxu0 0.0
    %1283 = vmatpush1.msra.mxu0 0.0
    %1284 = vmatprep.subr.mxu0 0.0
    %1285 = vmatpush1.msra.mxu0 0.0
    %1286 = vmatprep.subr.mxu0 0.0
    %1287 = vmatpush1.msra.mxu0 %v1071
    %1288 = vmatprep.subr.mxu0 0.0
    %1289 = vmatpush2.msra.mxu0 0.0
    %1290 = vmatprep.subr.mxu0 0.0
    %1291 = vmatpush2.msra.mxu0 0.0
    %1292 = vmatprep.subr.mxu0 0.0
    %1293 = vmatpush2.msra.mxu0 0.0
    %1294 = vmatprep.subr.mxu0 0.0
    %1295 = vmatpush2.msra.mxu0 0.0
    %1296 = vmatprep.subr.mxu0 0.0
    %1297 = vmatpush2.msra.mxu0 0.0
    %1298 = vmatprep.subr.mxu0 0.0
    %1299 = vmatpush2.msra.mxu0 0.0
    %1300 = vmatprep.subr.mxu0 0.0
    %1301 = vmatpush2.msra.mxu0 0.0
    %1302 = vmatprep.subr.mxu0 0.0
    %1303 = vmatpush2.msra.mxu0 0.0
    %1304 = vmatprep.subr.mxu0 0.0
    %1305 = vmatpush2.msra.mxu0 0.0
    %1306 = vmatprep.subr.mxu0 0.0
    %1307 = vmatpush2.msra.mxu0 0.0
    %1308 = vmatprep.subr.mxu0 0.0
    %1309 = vmatpush2.msra.mxu0 0.0
    %1310 = vmatprep.subr.mxu0 0.0
    %1311 = vmatpush2.msra.mxu0 0.0
    %1312 = vmatprep.subr.mxu0 0.0
    %1313 = vmatpush2.msra.mxu0 0.0
    %1314 = vmatprep.subr.mxu0 0.0
    %1315 = vmatpush2.msra.mxu0 0.0
    %1316 = vmatprep.subr.mxu0 0.0
    %1317 = vmatpush2.msra.mxu0 0.0
    %1318 = vmatprep.subr.mxu0 0.0
    %1319 = vmatpush2.msra.mxu0 0.0
    %1320 = vmatprep.mubr.f32.mxu0 0.0
    %1321 = vmatmul.mubr.f32.gmra.mxu0 %v1254
    %v1322 = vpop.f32.mrf.mxu0
    %v1323 = vadd.f32 0.0, %v1322
    %v1324 = vpop.f32.mrf.mxu0
    %1325 = vdwg.mxu0
    %v1327 = vsel %vm434, %v1252, 0
    %1329 = vmatprep.subr.mxu0 0.0
    %1330 = vmatpush1.msra.mxu0 0.0
    %1331 = vmatprep.subr.mxu0 0.0
    %1332 = vmatpush1.msra.mxu0 0.0
    %1333 = vmatprep.subr.mxu0 0.0
    %1334 = vmatpush1.msra.mxu0 0.0
    %1335 = vmatprep.subr.mxu0 0.0
    %1336 = vmatpush1.msra.mxu0 0.0
    %1337 = vmatprep.subr.mxu0 0.0
    %1338 = vmatpush1.msra.mxu0 0.0
    %1339 = vmatprep.subr.mxu0 0.0
    %1340 = vmatpush1.msra.mxu0 0.0
    %1341 = vmatprep.subr.mxu0 0.0
    %1342 = vmatpush1.msra.mxu0 0.0
    %1343 = vmatprep.subr.mxu0 0.0
    %1344 = vmatpush1.msra.mxu0 0.0
    %1345 = vmatprep.subr.mxu0 0.0
    %1346 = vmatpush1.msra.mxu0 0.0
    %1347 = vmatprep.subr.mxu0 0.0
    %1348 = vmatpush1.msra.mxu0 0.0
    %1349 = vmatprep.subr.mxu0 0.0
    %1350 = vmatpush1.msra.mxu0 0.0
    %1351 = vmatprep.subr.mxu0 0.0
    %1352 = vmatpush1.msra.mxu0 0.0
    %1353 = vmatprep.subr.mxu0 0.0
    %1354 = vmatpush1.msra.mxu0 0.0
    %1355 = vmatprep.subr.mxu0 0.0
    %1356 = vmatpush1.msra.mxu0 0.0
    %1357 = vmatprep.subr.mxu0 0.0
    %1358 = vmatpush1.msra.mxu0 0.0
    %1359 = vmatprep.subr.mxu0 0.0
    %1360 = vmatpush1.msra.mxu0 %v1076
    %1361 = vmatprep.subr.mxu0 0.0
    %1362 = vmatpush2.msra.mxu0 0.0
    %1363 = vmatprep.subr.mxu0 0.0
    %1364 = vmatpush2.msra.mxu0 0.0
    %1365 = vmatprep.subr.mxu0 0.0
    %1366 = vmatpush2.msra.mxu0 0.0
    %1367 = vmatprep.subr.mxu0 0.0
    %1368 = vmatpush2.msra.mxu0 0.0
    %1369 = vmatprep.subr.mxu0 0.0
    %1370 = vmatpush2.msra.mxu0 0.0
    %1371 = vmatprep.subr.mxu0 0.0
    %1372 = vmatpush2.msra.mxu0 0.0
    %1373 = vmatprep.subr.mxu0 0.0
    %1374 = vmatpush2.msra.mxu0 0.0
    %1375 = vmatprep.subr.mxu0 0.0
    %1376 = vmatpush2.msra.mxu0 0.0
    %1377 = vmatprep.subr.mxu0 0.0
    %1378 = vmatpush2.msra.mxu0 0.0
    %1379 = vmatprep.subr.mxu0 0.0
    %1380 = vmatpush2.msra.mxu0 0.0
    %1381 = vmatprep.subr.mxu0 0.0
    %1382 = vmatpush2.msra.mxu0 0.0
    %1383 = vmatprep.subr.mxu0 0.0
    %1384 = vmatpush2.msra.mxu0 0.0
    %1385 = vmatprep.subr.mxu0 0.0
    %1386 = vmatpush2.msra.mxu0 0.0
    %1387 = vmatprep.subr.mxu0 0.0
    %1388 = vmatpush2.msra.mxu0 0.0
    %1389 = vmatprep.subr.mxu0 0.0
    %1390 = vmatpush2.msra.mxu0 0.0
    %1391 = vmatprep.subr.mxu0 0.0
    %1392 = vmatpush2.msra.mxu0 0.0
    %1393 = vmatprep.mubr.f32.mxu0 0.0
    %1394 = vmatmul.mubr.f32.gmra.mxu0 %v1327
    %v1395 = vpop.f32.mrf.mxu0
    %v1396 = vadd.f32 0.0, %v1395
    %v1397 = vpop.f32.mrf.mxu0
    %1398 = vdwg.mxu0
    %s1399 = scalar_lea.vmem %s7, 8
    %v1400 = vld [vmem:[%s1399] sm:$0xff]
    %v1402 = vsel %vm434, %v1323, 0
    %v1405 = vsel %vm434, %v1396, 0
    %1407 = vmatprep.subr.mxu0 0.0
    %1408 = vmatpush1.msra.mxu0 0.0
    %1409 = vmatprep.subr.mxu0 0.0
    %1410 = vmatpush1.msra.mxu0 0.0
    %1411 = vmatprep.subr.mxu0 0.0
    %1412 = vmatpush1.msra.mxu0 0.0
    %1413 = vmatprep.subr.mxu0 0.0
    %1414 = vmatpush1.msra.mxu0 0.0
    %1415 = vmatprep.subr.mxu0 0.0
    %1416 = vmatpush1.msra.mxu0 0.0
    %1417 = vmatprep.subr.mxu0 0.0
    %1418 = vmatpush1.msra.mxu0 0.0
    %1419 = vmatprep.subr.mxu0 0.0
    %1420 = vmatpush1.msra.mxu0 0.0
    %1421 = vmatprep.subr.mxu0 0.0
    %1422 = vmatpush1.msra.mxu0 0.0
    %1423 = vmatprep.subr.mxu0 0.0
    %1424 = vmatpush1.msra.mxu0 0.0
    %1425 = vmatprep.subr.mxu0 0.0
    %1426 = vmatpush1.msra.mxu0 0.0
    %1427 = vmatprep.subr.mxu0 0.0
    %1428 = vmatpush1.msra.mxu0 0.0
    %1429 = vmatprep.subr.mxu0 0.0
    %1430 = vmatpush1.msra.mxu0 0.0
    %1431 = vmatprep.subr.mxu0 0.0
    %1432 = vmatpush1.msra.mxu0 0.0
    %1433 = vmatprep.subr.mxu0 0.0
    %1434 = vmatpush1.msra.mxu0 0.0
    %1435 = vmatprep.subr.mxu0 0.0
    %1436 = vmatpush1.msra.mxu0 0.0
    %1437 = vmatprep.subr.mxu0 0.0
    %1438 = vmatpush1.msra.mxu0 %v1400
    %1439 = vmatprep.subr.mxu0 0.0
    %1440 = vmatpush2.msra.mxu0 0.0
    %1441 = vmatprep.subr.mxu0 0.0
    %1442 = vmatpush2.msra.mxu0 0.0
    %1443 = vmatprep.subr.mxu0 0.0
    %1444 = vmatpush2.msra.mxu0 0.0
    %1445 = vmatprep.subr.mxu0 0.0
    %1446 = vmatpush2.msra.mxu0 0.0
    %1447 = vmatprep.subr.mxu0 0.0
    %1448 = vmatpush2.msra.mxu0 0.0
    %1449 = vmatprep.subr.mxu0 0.0
    %1450 = vmatpush2.msra.mxu0 0.0
    %1451 = vmatprep.subr.mxu0 0.0
    %1452 = vmatpush2.msra.mxu0 0.0
    %1453 = vmatprep.subr.mxu0 0.0
    %1454 = vmatpush2.msra.mxu0 0.0
    %1455 = vmatprep.subr.mxu0 0.0
    %1456 = vmatpush2.msra.mxu0 0.0
    %1457 = vmatprep.subr.mxu0 0.0
    %1458 = vmatpush2.msra.mxu0 0.0
    %1459 = vmatprep.subr.mxu0 0.0
    %1460 = vmatpush2.msra.mxu0 0.0
    %1461 = vmatprep.subr.mxu0 0.0
    %1462 = vmatpush2.msra.mxu0 0.0
    %1463 = vmatprep.subr.mxu0 0.0
    %1464 = vmatpush2.msra.mxu0 0.0
    %1465 = vmatprep.subr.mxu0 0.0
    %1466 = vmatpush2.msra.mxu0 0.0
    %1467 = vmatprep.subr.mxu0 0.0
    %1468 = vmatpush2.msra.mxu0 0.0
    %1469 = vmatprep.subr.mxu0 0.0
    %1470 = vmatpush2.msra.mxu0 0.0
    %1471 = vmatprep.mubr.f32.mxu0 0.0
    %1472 = vmatmul.mubr.f32.gmra.mxu0 %v1402
    %v1473 = vpop.f32.mrf.mxu0
    %v1474 = vadd.f32 0.0, %v1473
    %v1475 = vpop.f32.mrf.mxu0
    %1476 = vmatprep.mubr.f32.mxu0 0.0
    %1477 = vmatmul.mubr.f32.gmra.mxu0 %v1405
    %v1478 = vpop.f32.mrf.mxu0
    %v1479 = vadd.f32 0.0, %v1478
    %v1480 = vpop.f32.mrf.mxu0
    %1481 = vdwg.mxu0
    %v1482 = vadd.f32 %v837, %v1474
    %v1483 = vadd.f32 %v838, %v1479
    %s1484 = scalar_lea.vmem %s4, 64
    %v1485 = vld [vmem:[%s1484] sm:$0xff]
    %v1486 = vld [vmem:[%s1484 + $0x8] sm:$0xff]
    %v1487 = vld [vmem:[%s1484 + $0x10] sm:$0xff]
    %v1488 = vld [vmem:[%s1484 + $0x18] sm:$0xff]
    %1489 = vmatprep.subr.mxu0 0.0
    %1490 = vmatpush1.msra.mxu0 0.0
    %1491 = vmatprep.subr.mxu0 0.0
    %1492 = vmatpush1.msra.mxu0 0.0
    %1493 = vmatprep.subr.mxu0 0.0
    %1494 = vmatpush1.msra.mxu0 0.0
    %1495 = vmatprep.subr.mxu0 0.0
    %1496 = vmatpush1.msra.mxu0 0.0
    %1497 = vmatprep.subr.mxu0 0.0
    %1498 = vmatpush1.msra.mxu0 0.0
    %1499 = vmatprep.subr.mxu0 0.0
    %1500 = vmatpush1.msra.mxu0 0.0
    %1501 = vmatprep.subr.mxu0 0.0
    %1502 = vmatpush1.msra.mxu0 0.0
    %1503 = vmatprep.subr.mxu0 0.0
    %1504 = vmatpush1.msra.mxu0 0.0
    %1505 = vmatprep.subr.mxu0 0.0
    %1506 = vmatpush1.msra.mxu0 0.0
    %1507 = vmatprep.subr.mxu0 0.0
    %1508 = vmatpush1.msra.mxu0 0.0
    %1509 = vmatprep.subr.mxu0 0.0
    %1510 = vmatpush1.msra.mxu0 0.0
    %1511 = vmatprep.subr.mxu0 0.0
    %1512 = vmatpush1.msra.mxu0 0.0
    %1513 = vmatprep.subr.mxu0 0.0
    %1514 = vmatpush1.msra.mxu0 %v1488
    %1515 = vmatprep.subr.mxu0 0.0
    %1516 = vmatpush1.msra.mxu0 %v1487
    %1517 = vmatprep.subr.mxu0 0.0
    %1518 = vmatpush1.msra.mxu0 %v1486
    %1519 = vmatprep.subr.mxu0 0.0
    %1520 = vmatpush1.msra.mxu0 %v1485
    %1521 = vmatprep.subr.mxu0 0.0
    %1522 = vmatpush2.msra.mxu0 0.0
    %1523 = vmatprep.subr.mxu0 0.0
    %1524 = vmatpush2.msra.mxu0 0.0
    %1525 = vmatprep.subr.mxu0 0.0
    %1526 = vmatpush2.msra.mxu0 0.0
    %1527 = vmatprep.subr.mxu0 0.0
    %1528 = vmatpush2.msra.mxu0 0.0
    %1529 = vmatprep.subr.mxu0 0.0
    %1530 = vmatpush2.msra.mxu0 0.0
    %1531 = vmatprep.subr.mxu0 0.0
    %1532 = vmatpush2.msra.mxu0 0.0
    %1533 = vmatprep.subr.mxu0 0.0
    %1534 = vmatpush2.msra.mxu0 0.0
    %1535 = vmatprep.subr.mxu0 0.0
    %1536 = vmatpush2.msra.mxu0 0.0
    %1537 = vmatprep.subr.mxu0 0.0
    %1538 = vmatpush2.msra.mxu0 0.0
    %1539 = vmatprep.subr.mxu0 0.0
    %1540 = vmatpush2.msra.mxu0 0.0
    %1541 = vmatprep.subr.mxu0 0.0
    %1542 = vmatpush2.msra.mxu0 0.0
    %1543 = vmatprep.subr.mxu0 0.0
    %1544 = vmatpush2.msra.mxu0 0.0
    %1545 = vmatprep.subr.mxu0 0.0
    %1546 = vmatpush2.msra.mxu0 0.0
    %1547 = vmatprep.subr.mxu0 0.0
    %1548 = vmatpush2.msra.mxu0 0.0
    %1549 = vmatprep.subr.mxu0 0.0
    %1550 = vmatpush2.msra.mxu0 0.0
    %1551 = vmatprep.subr.mxu0 0.0
    %1552 = vmatpush2.msra.mxu0 0.0
    %1553 = vmatprep.mubr.f32.mxu0 0.0
    %1554 = vmatmul.mubr.f32.gmra.mxu0 %v196
    %v1555 = vpop.f32.mrf.mxu0
    %v1556 = vadd.f32 0.0, %v1555
    %v1557 = vpop.f32.mrf.mxu0
    %1558 = vmatprep.mubr.f32.mxu0 0.0
    %1559 = vmatmul.mubr.f32.gmra.mxu0 %v199
    %v1560 = vpop.f32.mrf.mxu0
    %v1561 = vadd.f32 0.0, %v1560
    %v1562 = vpop.f32.mrf.mxu0
    %1563 = vdwg.mxu0
    %s1564 = scalar_lea.vmem %s5, 64
    %v1565 = vld [vmem:[%s1564] sm:$0xff]
    %v1566 = vld [vmem:[%s1564 + $0x8] sm:$0xff]
    %v1567 = vld [vmem:[%s1564 + $0x10] sm:$0xff]
    %v1568 = vld [vmem:[%s1564 + $0x18] sm:$0xff]
    %1569 = vmatprep.subr.mxu0 0.0
    %1570 = vmatpush1.msra.mxu0 0.0
    %1571 = vmatprep.subr.mxu0 0.0
    %1572 = vmatpush1.msra.mxu0 0.0
    %1573 = vmatprep.subr.mxu0 0.0
    %1574 = vmatpush1.msra.mxu0 0.0
    %1575 = vmatprep.subr.mxu0 0.0
    %1576 = vmatpush1.msra.mxu0 0.0
    %1577 = vmatprep.subr.mxu0 0.0
    %1578 = vmatpush1.msra.mxu0 0.0
    %1579 = vmatprep.subr.mxu0 0.0
    %1580 = vmatpush1.msra.mxu0 0.0
    %1581 = vmatprep.subr.mxu0 0.0
    %1582 = vmatpush1.msra.mxu0 0.0
    %1583 = vmatprep.subr.mxu0 0.0
    %1584 = vmatpush1.msra.mxu0 0.0
    %1585 = vmatprep.subr.mxu0 0.0
    %1586 = vmatpush1.msra.mxu0 0.0
    %1587 = vmatprep.subr.mxu0 0.0
    %1588 = vmatpush1.msra.mxu0 0.0
    %1589 = vmatprep.subr.mxu0 0.0
    %1590 = vmatpush1.msra.mxu0 0.0
    %1591 = vmatprep.subr.mxu0 0.0
    %1592 = vmatpush1.msra.mxu0 0.0
    %1593 = vmatprep.subr.mxu0 0.0
    %1594 = vmatpush1.msra.mxu0 %v1568
    %1595 = vmatprep.subr.mxu0 0.0
    %1596 = vmatpush1.msra.mxu0 %v1567
    %1597 = vmatprep.subr.mxu0 0.0
    %1598 = vmatpush1.msra.mxu0 %v1566
    %1599 = vmatprep.subr.mxu0 0.0
    %1600 = vmatpush1.msra.mxu0 %v1565
    %1601 = vmatprep.subr.mxu0 0.0
    %1602 = vmatpush2.msra.mxu0 0.0
    %1603 = vmatprep.subr.mxu0 0.0
    %1604 = vmatpush2.msra.mxu0 0.0
    %1605 = vmatprep.subr.mxu0 0.0
    %1606 = vmatpush2.msra.mxu0 0.0
    %1607 = vmatprep.subr.mxu0 0.0
    %1608 = vmatpush2.msra.mxu0 0.0
    %1609 = vmatprep.subr.mxu0 0.0
    %1610 = vmatpush2.msra.mxu0 0.0
    %1611 = vmatprep.subr.mxu0 0.0
    %1612 = vmatpush2.msra.mxu0 0.0
    %1613 = vmatprep.subr.mxu0 0.0
    %1614 = vmatpush2.msra.mxu0 0.0
    %1615 = vmatprep.subr.mxu0 0.0
    %1616 = vmatpush2.msra.mxu0 0.0
    %1617 = vmatprep.subr.mxu0 0.0
    %1618 = vmatpush2.msra.mxu0 0.0
    %1619 = vmatprep.subr.mxu0 0.0
    %1620 = vmatpush2.msra.mxu0 0.0
    %1621 = vmatprep.subr.mxu0 0.0
    %1622 = vmatpush2.msra.mxu0 0.0
    %1623 = vmatprep.subr.mxu0 0.0
    %1624 = vmatpush2.msra.mxu0 0.0
    %1625 = vmatprep.subr.mxu0 0.0
    %1626 = vmatpush2.msra.mxu0 0.0
    %1627 = vmatprep.subr.mxu0 0.0
    %1628 = vmatpush2.msra.mxu0 0.0
    %1629 = vmatprep.subr.mxu0 0.0
    %1630 = vmatpush2.msra.mxu0 0.0
    %1631 = vmatprep.subr.mxu0 0.0
    %1632 = vmatpush2.msra.mxu0 0.0
    %1633 = vmatprep.mubr.f32.mxu0 0.0
    %1634 = vmatmul.mubr.f32.gmra.mxu0 %v196
    %v1635 = vpop.f32.mrf.mxu0
    %v1636 = vadd.f32 0.0, %v1635
    %v1637 = vpop.f32.mrf.mxu0
    %1638 = vmatprep.mubr.f32.mxu0 0.0
    %1639 = vmatmul.mubr.f32.gmra.mxu0 %v199
    %v1640 = vpop.f32.mrf.mxu0
    %v1641 = vadd.f32 0.0, %v1640
    %v1642 = vpop.f32.mrf.mxu0
    %1643 = vdwg.mxu0
    %s1644 = scalar_lea.vmem %s6, 64
    %v1645 = vld [vmem:[%s1644] sm:$0xff]
    %v1646 = vld [vmem:[%s1644 + $0x8] sm:$0xff]
    %v1647 = vld [vmem:[%s1644 + $0x10] sm:$0xff]
    %v1648 = vld [vmem:[%s1644 + $0x18] sm:$0xff]
    %1649 = vmatprep.subr.mxu0 0.0
    %1650 = vmatpush1.msra.mxu0 0.0
    %1651 = vmatprep.subr.mxu0 0.0
    %1652 = vmatpush1.msra.mxu0 0.0
    %1653 = vmatprep.subr.mxu0 0.0
    %1654 = vmatpush1.msra.mxu0 0.0
    %1655 = vmatprep.subr.mxu0 0.0
    %1656 = vmatpush1.msra.mxu0 0.0
    %1657 = vmatprep.subr.mxu0 0.0
    %1658 = vmatpush1.msra.mxu0 0.0
    %1659 = vmatprep.subr.mxu0 0.0
    %1660 = vmatpush1.msra.mxu0 0.0
    %1661 = vmatprep.subr.mxu0 0.0
    %1662 = vmatpush1.msra.mxu0 0.0
    %1663 = vmatprep.subr.mxu0 0.0
    %1664 = vmatpush1.msra.mxu0 0.0
    %1665 = vmatprep.subr.mxu0 0.0
    %1666 = vmatpush1.msra.mxu0 0.0
    %1667 = vmatprep.subr.mxu0 0.0
    %1668 = vmatpush1.msra.mxu0 0.0
    %1669 = vmatprep.subr.mxu0 0.0
    %1670 = vmatpush1.msra.mxu0 0.0
    %1671 = vmatprep.subr.mxu0 0.0
    %1672 = vmatpush1.msra.mxu0 0.0
    %1673 = vmatprep.subr.mxu0 0.0
    %1674 = vmatpush1.msra.mxu0 %v1648
    %1675 = vmatprep.subr.mxu0 0.0
    %1676 = vmatpush1.msra.mxu0 %v1647
    %1677 = vmatprep.subr.mxu0 0.0
    %1678 = vmatpush1.msra.mxu0 %v1646
    %1679 = vmatprep.subr.mxu0 0.0
    %1680 = vmatpush1.msra.mxu0 %v1645
    %1681 = vmatprep.subr.mxu0 0.0
    %1682 = vmatpush2.msra.mxu0 0.0
    %1683 = vmatprep.subr.mxu0 0.0
    %1684 = vmatpush2.msra.mxu0 0.0
    %1685 = vmatprep.subr.mxu0 0.0
    %1686 = vmatpush2.msra.mxu0 0.0
    %1687 = vmatprep.subr.mxu0 0.0
    %1688 = vmatpush2.msra.mxu0 0.0
    %1689 = vmatprep.subr.mxu0 0.0
    %1690 = vmatpush2.msra.mxu0 0.0
    %1691 = vmatprep.subr.mxu0 0.0
    %1692 = vmatpush2.msra.mxu0 0.0
    %1693 = vmatprep.subr.mxu0 0.0
    %1694 = vmatpush2.msra.mxu0 0.0
    %1695 = vmatprep.subr.mxu0 0.0
    %1696 = vmatpush2.msra.mxu0 0.0
    %1697 = vmatprep.subr.mxu0 0.0
    %1698 = vmatpush2.msra.mxu0 0.0
    %1699 = vmatprep.subr.mxu0 0.0
    %1700 = vmatpush2.msra.mxu0 0.0
    %1701 = vmatprep.subr.mxu0 0.0
    %1702 = vmatpush2.msra.mxu0 0.0
    %1703 = vmatprep.subr.mxu0 0.0
    %1704 = vmatpush2.msra.mxu0 0.0
    %1705 = vmatprep.subr.mxu0 0.0
    %1706 = vmatpush2.msra.mxu0 0.0
    %1707 = vmatprep.subr.mxu0 0.0
    %1708 = vmatpush2.msra.mxu0 0.0
    %1709 = vmatprep.subr.mxu0 0.0
    %1710 = vmatpush2.msra.mxu0 0.0
    %1711 = vmatprep.subr.mxu0 0.0
    %1712 = vmatpush2.msra.mxu0 0.0
    %1713 = vmatprep.mubr.f32.mxu0 0.0
    %1714 = vmatmul.mubr.f32.gmra.mxu0 %v196
    %v1715 = vpop.f32.mrf.mxu0
    %v1716 = vadd.f32 0.0, %v1715
    %v1717 = vpop.f32.mrf.mxu0
    %1718 = vmatprep.mubr.f32.mxu0 0.0
    %1719 = vmatmul.mubr.f32.gmra.mxu0 %v199
    %v1720 = vpop.f32.mrf.mxu0
    %v1721 = vadd.f32 0.0, %v1720
    %v1722 = vpop.f32.mrf.mxu0
    %1723 = vdwg.mxu0
    %v1725 = vsel %vm434, %v1556, 0
    %v1728 = vsel %vm434, %v1636, 0
    %1730 = vmatprep.subr.mxu0 0.0
    %1731 = vmatpush1.xpose.msra.mxu0 0.0
    %1732 = vmatprep.subr.mxu0 0.0
    %1733 = vmatpush1.xpose.msra.mxu0 0.0
    %1734 = vmatprep.subr.mxu0 0.0
    %1735 = vmatpush1.xpose.msra.mxu0 0.0
    %1736 = vmatprep.subr.mxu0 0.0
    %1737 = vmatpush1.xpose.msra.mxu0 0.0
    %1738 = vmatprep.subr.mxu0 0.0
    %1739 = vmatpush1.xpose.msra.mxu0 0.0
    %1740 = vmatprep.subr.mxu0 0.0
    %1741 = vmatpush1.xpose.msra.mxu0 0.0
    %1742 = vmatprep.subr.mxu0 0.0
    %1743 = vmatpush1.xpose.msra.mxu0 0.0
    %1744 = vmatprep.subr.mxu0 0.0
    %1745 = vmatpush1.xpose.msra.mxu0 0.0
    %1746 = vmatprep.subr.mxu0 0.0
    %1747 = vmatpush1.xpose.msra.mxu0 0.0
    %1748 = vmatprep.subr.mxu0 0.0
    %1749 = vmatpush1.xpose.msra.mxu0 0.0
    %1750 = vmatprep.subr.mxu0 0.0
    %1751 = vmatpush1.xpose.msra.mxu0 0.0
    %1752 = vmatprep.subr.mxu0 0.0
    %1753 = vmatpush1.xpose.msra.mxu0 0.0
    %1754 = vmatprep.subr.mxu0 0.0
    %1755 = vmatpush1.xpose.msra.mxu0 0.0
    %1756 = vmatprep.subr.mxu0 0.0
    %1757 = vmatpush1.xpose.msra.mxu0 0.0
    %1758 = vmatprep.subr.mxu0 0.0
    %1759 = vmatpush1.xpose.msra.mxu0 0.0
    %1760 = vmatprep.subr.mxu0 0.0
    %1761 = vmatpush1.xpose.msra.mxu0 %v1728
    %1762 = vmatprep.subr.mxu0 0.0
    %1763 = vmatpush2.xpose.msra.mxu0 0.0
    %1764 = vmatprep.subr.mxu0 0.0
    %1765 = vmatpush2.xpose.msra.mxu0 0.0
    %1766 = vmatprep.subr.mxu0 0.0
    %1767 = vmatpush2.xpose.msra.mxu0 0.0
    %1768 = vmatprep.subr.mxu0 0.0
    %1769 = vmatpush2.xpose.msra.mxu0 0.0
    %1770 = vmatprep.subr.mxu0 0.0
    %1771 = vmatpush2.xpose.msra.mxu0 0.0
    %1772 = vmatprep.subr.mxu0 0.0
    %1773 = vmatpush2.xpose.msra.mxu0 0.0
    %1774 = vmatprep.subr.mxu0 0.0
    %1775 = vmatpush2.xpose.msra.mxu0 0.0
    %1776 = vmatprep.subr.mxu0 0.0
    %1777 = vmatpush2.xpose.msra.mxu0 0.0
    %1778 = vmatprep.subr.mxu0 0.0
    %1779 = vmatpush2.xpose.msra.mxu0 0.0
    %1780 = vmatprep.subr.mxu0 0.0
    %1781 = vmatpush2.xpose.msra.mxu0 0.0
    %1782 = vmatprep.subr.mxu0 0.0
    %1783 = vmatpush2.xpose.msra.mxu0 0.0
    %1784 = vmatprep.subr.mxu0 0.0
    %1785 = vmatpush2.xpose.msra.mxu0 0.0
    %1786 = vmatprep.subr.mxu0 0.0
    %1787 = vmatpush2.xpose.msra.mxu0 0.0
    %1788 = vmatprep.subr.mxu0 0.0
    %1789 = vmatpush2.xpose.msra.mxu0 0.0
    %1790 = vmatprep.subr.mxu0 0.0
    %1791 = vmatpush2.xpose.msra.mxu0 0.0
    %1792 = vmatprep.subr.mxu0 0.0
    %1793 = vmatpush2.xpose.msra.mxu0 0.0
    %1794 = vmatprep.mubr.f32.mxu0 0.0
    %1795 = vmatmul.mubr.f32.gmra.mxu0 %v1725
    %v1796 = vpop.f32.mrf.mxu0
    %v1797 = vadd.f32 %v159, %v1796
    %v1798 = vpop.f32.mrf.mxu0
    %1799 = vdwg.mxu0
    %v1801 = vsel %vm434, %v1561, 0
    %v1804 = vsel %vm434, %v1641, 0
    %1806 = vmatprep.subr.mxu0 0.0
    %1807 = vmatpush1.xpose.msra.mxu0 0.0
    %1808 = vmatprep.subr.mxu0 0.0
    %1809 = vmatpush1.xpose.msra.mxu0 0.0
    %1810 = vmatprep.subr.mxu0 0.0
    %1811 = vmatpush1.xpose.msra.mxu0 0.0
    %1812 = vmatprep.subr.mxu0 0.0
    %1813 = vmatpush1.xpose.msra.mxu0 0.0
    %1814 = vmatprep.subr.mxu0 0.0
    %1815 = vmatpush1.xpose.msra.mxu0 0.0
    %1816 = vmatprep.subr.mxu0 0.0
    %1817 = vmatpush1.xpose.msra.mxu0 0.0
    %1818 = vmatprep.subr.mxu0 0.0
    %1819 = vmatpush1.xpose.msra.mxu0 0.0
    %1820 = vmatprep.subr.mxu0 0.0
    %1821 = vmatpush1.xpose.msra.mxu0 0.0
    %1822 = vmatprep.subr.mxu0 0.0
    %1823 = vmatpush1.xpose.msra.mxu0 0.0
    %1824 = vmatprep.subr.mxu0 0.0
    %1825 = vmatpush1.xpose.msra.mxu0 0.0
    %1826 = vmatprep.subr.mxu0 0.0
    %1827 = vmatpush1.xpose.msra.mxu0 0.0
    %1828 = vmatprep.subr.mxu0 0.0
    %1829 = vmatpush1.xpose.msra.mxu0 0.0
    %1830 = vmatprep.subr.mxu0 0.0
    %1831 = vmatpush1.xpose.msra.mxu0 0.0
    %1832 = vmatprep.subr.mxu0 0.0
    %1833 = vmatpush1.xpose.msra.mxu0 0.0
    %1834 = vmatprep.subr.mxu0 0.0
    %1835 = vmatpush1.xpose.msra.mxu0 0.0
    %1836 = vmatprep.subr.mxu0 0.0
    %1837 = vmatpush1.xpose.msra.mxu0 %v1804
    %1838 = vmatprep.subr.mxu0 0.0
    %1839 = vmatpush2.xpose.msra.mxu0 0.0
    %1840 = vmatprep.subr.mxu0 0.0
    %1841 = vmatpush2.xpose.msra.mxu0 0.0
    %1842 = vmatprep.subr.mxu0 0.0
    %1843 = vmatpush2.xpose.msra.mxu0 0.0
    %1844 = vmatprep.subr.mxu0 0.0
    %1845 = vmatpush2.xpose.msra.mxu0 0.0
    %1846 = vmatprep.subr.mxu0 0.0
    %1847 = vmatpush2.xpose.msra.mxu0 0.0
    %1848 = vmatprep.subr.mxu0 0.0
    %1849 = vmatpush2.xpose.msra.mxu0 0.0
    %1850 = vmatprep.subr.mxu0 0.0
    %1851 = vmatpush2.xpose.msra.mxu0 0.0
    %1852 = vmatprep.subr.mxu0 0.0
    %1853 = vmatpush2.xpose.msra.mxu0 0.0
    %1854 = vmatprep.subr.mxu0 0.0
    %1855 = vmatpush2.xpose.msra.mxu0 0.0
    %1856 = vmatprep.subr.mxu0 0.0
    %1857 = vmatpush2.xpose.msra.mxu0 0.0
    %1858 = vmatprep.subr.mxu0 0.0
    %1859 = vmatpush2.xpose.msra.mxu0 0.0
    %1860 = vmatprep.subr.mxu0 0.0
    %1861 = vmatpush2.xpose.msra.mxu0 0.0
    %1862 = vmatprep.subr.mxu0 0.0
    %1863 = vmatpush2.xpose.msra.mxu0 0.0
    %1864 = vmatprep.subr.mxu0 0.0
    %1865 = vmatpush2.xpose.msra.mxu0 0.0
    %1866 = vmatprep.subr.mxu0 0.0
    %1867 = vmatpush2.xpose.msra.mxu0 0.0
    %1868 = vmatprep.subr.mxu0 0.0
    %1869 = vmatpush2.xpose.msra.mxu0 0.0
    %1870 = vmatprep.mubr.f32.mxu0 0.0
    %1871 = vmatmul.mubr.f32.gmra.mxu0 %v1801
    %v1872 = vpop.f32.mrf.mxu0
    %v1873 = vadd.f32 %v163, %v1872
    %v1874 = vpop.f32.mrf.mxu0
    %1875 = vdwg.mxu0
    %v1876 = vsel %vm434, %v1797, -inf
    %1877 = vmax.xlane.f32.xlu0 %v1876
    %v1878 = vpop.xlane.xlu0 %1877
    %v1879 = vsel %vm434, %v1873, -inf
    %1880 = vmax.xlane.f32.xlu0 %v1879
    %v1881 = vpop.xlane.xlu0 %1880
    %v1882 = vsub.f32 %v1797, %v1878
    %v1883 = vsub.f32 %v1873, %v1881
    %v1884 = vmul.f32 %v1882, 1.442695
    %v1885 = vpow.pop %v1884
    %v1886 = vmul.f32 %v1883, 1.442695
    %v1887 = vpow.pop %v1886
    %v1888 = vsel %vm434, %v1885, 0.0
    %1889 = vadd.xlane.f32.xlu0 %v1888
    %v1890 = vpop.xlane.xlu0 %1889
    %v1891 = vsel %vm434, %v1887, 0.0
    %1892 = vadd.xlane.f32.xlu0 %v1891
    %v1893 = vpop.xlane.xlu0 %1892
    %v1894 = vrcp.pop %v1890
    %v1895 = vmul.f32 %v1885, %v1894
    %v1896 = vrcp.pop %v1893
    %v1897 = vmul.f32 %v1887, %v1896
    %v1899 = vsel %vm434, %v1895, 0
    %1901 = vmatprep.subr.mxu0 0.0
    %1902 = vmatpush1.msra.mxu0 0.0
    %1903 = vmatprep.subr.mxu0 0.0
    %1904 = vmatpush1.msra.mxu0 0.0
    %1905 = vmatprep.subr.mxu0 0.0
    %1906 = vmatpush1.msra.mxu0 0.0
    %1907 = vmatprep.subr.mxu0 0.0
    %1908 = vmatpush1.msra.mxu0 0.0
    %1909 = vmatprep.subr.mxu0 0.0
    %1910 = vmatpush1.msra.mxu0 0.0
    %1911 = vmatprep.subr.mxu0 0.0
    %1912 = vmatpush1.msra.mxu0 0.0
    %1913 = vmatprep.subr.mxu0 0.0
    %1914 = vmatpush1.msra.mxu0 0.0
    %1915 = vmatprep.subr.mxu0 0.0
    %1916 = vmatpush1.msra.mxu0 0.0
    %1917 = vmatprep.subr.mxu0 0.0
    %1918 = vmatpush1.msra.mxu0 0.0
    %1919 = vmatprep.subr.mxu0 0.0
    %1920 = vmatpush1.msra.mxu0 0.0
    %1921 = vmatprep.subr.mxu0 0.0
    %1922 = vmatpush1.msra.mxu0 0.0
    %1923 = vmatprep.subr.mxu0 0.0
    %1924 = vmatpush1.msra.mxu0 0.0
    %1925 = vmatprep.subr.mxu0 0.0
    %1926 = vmatpush1.msra.mxu0 0.0
    %1927 = vmatprep.subr.mxu0 0.0
    %1928 = vmatpush1.msra.mxu0 0.0
    %1929 = vmatprep.subr.mxu0 0.0
    %1930 = vmatpush1.msra.mxu0 0.0
    %1931 = vmatprep.subr.mxu0 0.0
    %1932 = vmatpush1.msra.mxu0 %v1716
    %1933 = vmatprep.subr.mxu0 0.0
    %1934 = vmatpush2.msra.mxu0 0.0
    %1935 = vmatprep.subr.mxu0 0.0
    %1936 = vmatpush2.msra.mxu0 0.0
    %1937 = vmatprep.subr.mxu0 0.0
    %1938 = vmatpush2.msra.mxu0 0.0
    %1939 = vmatprep.subr.mxu0 0.0
    %1940 = vmatpush2.msra.mxu0 0.0
    %1941 = vmatprep.subr.mxu0 0.0
    %1942 = vmatpush2.msra.mxu0 0.0
    %1943 = vmatprep.subr.mxu0 0.0
    %1944 = vmatpush2.msra.mxu0 0.0
    %1945 = vmatprep.subr.mxu0 0.0
    %1946 = vmatpush2.msra.mxu0 0.0
    %1947 = vmatprep.subr.mxu0 0.0
    %1948 = vmatpush2.msra.mxu0 0.0
    %1949 = vmatprep.subr.mxu0 0.0
    %1950 = vmatpush2.msra.mxu0 0.0
    %1951 = vmatprep.subr.mxu0 0.0
    %1952 = vmatpush2.msra.mxu0 0.0
    %1953 = vmatprep.subr.mxu0 0.0
    %1954 = vmatpush2.msra.mxu0 0.0
    %1955 = vmatprep.subr.mxu0 0.0
    %1956 = vmatpush2.msra.mxu0 0.0
    %1957 = vmatprep.subr.mxu0 0.0
    %1958 = vmatpush2.msra.mxu0 0.0
    %1959 = vmatprep.subr.mxu0 0.0
    %1960 = vmatpush2.msra.mxu0 0.0
    %1961 = vmatprep.subr.mxu0 0.0
    %1962 = vmatpush2.msra.mxu0 0.0
    %1963 = vmatprep.subr.mxu0 0.0
    %1964 = vmatpush2.msra.mxu0 0.0
    %1965 = vmatprep.mubr.f32.mxu0 0.0
    %1966 = vmatmul.mubr.f32.gmra.mxu0 %v1899
    %v1967 = vpop.f32.mrf.mxu0
    %v1968 = vadd.f32 0.0, %v1967
    %v1969 = vpop.f32.mrf.mxu0
    %1970 = vdwg.mxu0
    %v1972 = vsel %vm434, %v1897, 0
    %1974 = vmatprep.subr.mxu0 0.0
    %1975 = vmatpush1.msra.mxu0 0.0
    %1976 = vmatprep.subr.mxu0 0.0
    %1977 = vmatpush1.msra.mxu0 0.0
    %1978 = vmatprep.subr.mxu0 0.0
    %1979 = vmatpush1.msra.mxu0 0.0
    %1980 = vmatprep.subr.mxu0 0.0
    %1981 = vmatpush1.msra.mxu0 0.0
    %1982 = vmatprep.subr.mxu0 0.0
    %1983 = vmatpush1.msra.mxu0 0.0
    %1984 = vmatprep.subr.mxu0 0.0
    %1985 = vmatpush1.msra.mxu0 0.0
    %1986 = vmatprep.subr.mxu0 0.0
    %1987 = vmatpush1.msra.mxu0 0.0
    %1988 = vmatprep.subr.mxu0 0.0
    %1989 = vmatpush1.msra.mxu0 0.0
    %1990 = vmatprep.subr.mxu0 0.0
    %1991 = vmatpush1.msra.mxu0 0.0
    %1992 = vmatprep.subr.mxu0 0.0
    %1993 = vmatpush1.msra.mxu0 0.0
    %1994 = vmatprep.subr.mxu0 0.0
    %1995 = vmatpush1.msra.mxu0 0.0
    %1996 = vmatprep.subr.mxu0 0.0
    %1997 = vmatpush1.msra.mxu0 0.0
    %1998 = vmatprep.subr.mxu0 0.0
    %1999 = vmatpush1.msra.mxu0 0.0
    %2000 = vmatprep.subr.mxu0 0.0
    %2001 = vmatpush1.msra.mxu0 0.0
    %2002 = vmatprep.subr.mxu0 0.0
    %2003 = vmatpush1.msra.mxu0 0.0
    %2004 = vmatprep.subr.mxu0 0.0
    %2005 = vmatpush1.msra.mxu0 %v1721
    %2006 = vmatprep.subr.mxu0 0.0
    %2007 = vmatpush2.msra.mxu0 0.0
    %2008 = vmatprep.subr.mxu0 0.0
    %2009 = vmatpush2.msra.mxu0 0.0
    %2010 = vmatprep.subr.mxu0 0.0
    %2011 = vmatpush2.msra.mxu0 0.0
    %2012 = vmatprep.subr.mxu0 0.0
    %2013 = vmatpush2.msra.mxu0 0.0
    %2014 = vmatprep.subr.mxu0 0.0
    %2015 = vmatpush2.msra.mxu0 0.0
    %2016 = vmatprep.subr.mxu0 0.0
    %2017 = vmatpush2.msra.mxu0 0.0
    %2018 = vmatprep.subr.mxu0 0.0
    %2019 = vmatpush2.msra.mxu0 0.0
    %2020 = vmatprep.subr.mxu0 0.0
    %2021 = vmatpush2.msra.mxu0 0.0
    %2022 = vmatprep.subr.mxu0 0.0
    %2023 = vmatpush2.msra.mxu0 0.0
    %2024 = vmatprep.subr.mxu0 0.0
    %2025 = vmatpush2.msra.mxu0 0.0
    %2026 = vmatprep.subr.mxu0 0.0
    %2027 = vmatpush2.msra.mxu0 0.0
    %2028 = vmatprep.subr.mxu0 0.0
    %2029 = vmatpush2.msra.mxu0 0.0
    %2030 = vmatprep.subr.mxu0 0.0
    %2031 = vmatpush2.msra.mxu0 0.0
    %2032 = vmatprep.subr.mxu0 0.0
    %2033 = vmatpush2.msra.mxu0 0.0
    %2034 = vmatprep.subr.mxu0 0.0
    %2035 = vmatpush2.msra.mxu0 0.0
    %2036 = vmatprep.subr.mxu0 0.0
    %2037 = vmatpush2.msra.mxu0 0.0
    %2038 = vmatprep.mubr.f32.mxu0 0.0
    %2039 = vmatmul.mubr.f32.gmra.mxu0 %v1972
    %v2040 = vpop.f32.mrf.mxu0
    %v2041 = vadd.f32 0.0, %v2040
    %v2042 = vpop.f32.mrf.mxu0
    %2043 = vdwg.mxu0
    %s2044 = scalar_lea.vmem %s7, 16
    %v2045 = vld [vmem:[%s2044] sm:$0xff]
    %v2047 = vsel %vm434, %v1968, 0
    %v2050 = vsel %vm434, %v2041, 0
    %2052 = vmatprep.subr.mxu0 0.0
    %2053 = vmatpush1.msra.mxu0 0.0
    %2054 = vmatprep.subr.mxu0 0.0
    %2055 = vmatpush1.msra.mxu0 0.0
    %2056 = vmatprep.subr.mxu0 0.0
    %2057 = vmatpush1.msra.mxu0 0.0
    %2058 = vmatprep.subr.mxu0 0.0
    %2059 = vmatpush1.msra.mxu0 0.0
    %2060 = vmatprep.subr.mxu0 0.0
    %2061 = vmatpush1.msra.mxu0 0.0
    %2062 = vmatprep.subr.mxu0 0.0
    %2063 = vmatpush1.msra.mxu0 0.0
    %2064 = vmatprep.subr.mxu0 0.0
    %2065 = vmatpush1.msra.mxu0 0.0
    %2066 = vmatprep.subr.mxu0 0.0
    %2067 = vmatpush1.msra.mxu0 0.0
    %2068 = vmatprep.subr.mxu0 0.0
    %2069 = vmatpush1.msra.mxu0 0.0
    %2070 = vmatprep.subr.mxu0 0.0
    %2071 = vmatpush1.msra.mxu0 0.0
    %2072 = vmatprep.subr.mxu0 0.0
    %2073 = vmatpush1.msra.mxu0 0.0
    %2074 = vmatprep.subr.mxu0 0.0
    %2075 = vmatpush1.msra.mxu0 0.0
    %2076 = vmatprep.subr.mxu0 0.0
    %2077 = vmatpush1.msra.mxu0 0.0
    %2078 = vmatprep.subr.mxu0 0.0
    %2079 = vmatpush1.msra.mxu0 0.0
    %2080 = vmatprep.subr.mxu0 0.0
    %2081 = vmatpush1.msra.mxu0 0.0
    %2082 = vmatprep.subr.mxu0 0.0
    %2083 = vmatpush1.msra.mxu0 %v2045
    %2084 = vmatprep.subr.mxu0 0.0
    %2085 = vmatpush2.msra.mxu0 0.0
    %2086 = vmatprep.subr.mxu0 0.0
    %2087 = vmatpush2.msra.mxu0 0.0
    %2088 = vmatprep.subr.mxu0 0.0
    %2089 = vmatpush2.msra.mxu0 0.0
    %2090 = vmatprep.subr.mxu0 0.0
    %2091 = vmatpush2.msra.mxu0 0.0
    %2092 = vmatprep.subr.mxu0 0.0
    %2093 = vmatpush2.msra.mxu0 0.0
    %2094 = vmatprep.subr.mxu0 0.0
    %2095 = vmatpush2.msra.mxu0 0.0
    %2096 = vmatprep.subr.mxu0 0.0
    %2097 = vmatpush2.msra.mxu0 0.0
    %2098 = vmatprep.subr.mxu0 0.0
    %2099 = vmatpush2.msra.mxu0 0.0
    %2100 = vmatprep.subr.mxu0 0.0
    %2101 = vmatpush2.msra.mxu0 0.0
    %2102 = vmatprep.subr.mxu0 0.0
    %2103 = vmatpush2.msra.mxu0 0.0
    %2104 = vmatprep.subr.mxu0 0.0
    %2105 = vmatpush2.msra.mxu0 0.0
    %2106 = vmatprep.subr.mxu0 0.0
    %2107 = vmatpush2.msra.mxu0 0.0
    %2108 = vmatprep.subr.mxu0 0.0
    %2109 = vmatpush2.msra.mxu0 0.0
    %2110 = vmatprep.subr.mxu0 0.0
    %2111 = vmatpush2.msra.mxu0 0.0
    %2112 = vmatprep.subr.mxu0 0.0
    %2113 = vmatpush2.msra.mxu0 0.0
    %2114 = vmatprep.subr.mxu0 0.0
    %2115 = vmatpush2.msra.mxu0 0.0
    %2116 = vmatprep.mubr.f32.mxu0 0.0
    %2117 = vmatmul.mubr.f32.gmra.mxu0 %v2047
    %v2118 = vpop.f32.mrf.mxu0
    %v2119 = vadd.f32 0.0, %v2118
    %v2120 = vpop.f32.mrf.mxu0
    %2121 = vmatprep.mubr.f32.mxu0 0.0
    %2122 = vmatmul.mubr.f32.gmra.mxu0 %v2050
    %v2123 = vpop.f32.mrf.mxu0
    %v2124 = vadd.f32 0.0, %v2123
    %v2125 = vpop.f32.mrf.mxu0
    %2126 = vdwg.mxu0
    %v2127 = vadd.f32 %v1482, %v2119
    %v2128 = vadd.f32 %v1483, %v2124
    %s2129 = scalar_lea.vmem %s4, 96
    %v2130 = vld [vmem:[%s2129] sm:$0xff]
    %v2131 = vld [vmem:[%s2129 + $0x8] sm:$0xff]
    %v2132 = vld [vmem:[%s2129 + $0x10] sm:$0xff]
    %v2133 = vld [vmem:[%s2129 + $0x18] sm:$0xff]
    %2134 = vmatprep.subr.mxu0 0.0
    %2135 = vmatpush1.msra.mxu0 0.0
    %2136 = vmatprep.subr.mxu0 0.0
    %2137 = vmatpush1.msra.mxu0 0.0
    %2138 = vmatprep.subr.mxu0 0.0
    %2139 = vmatpush1.msra.mxu0 0.0
    %2140 = vmatprep.subr.mxu0 0.0
    %2141 = vmatpush1.msra.mxu0 0.0
    %2142 = vmatprep.subr.mxu0 0.0
    %2143 = vmatpush1.msra.mxu0 0.0
    %2144 = vmatprep.subr.mxu0 0.0
    %2145 = vmatpush1.msra.mxu0 0.0
    %2146 = vmatprep.subr.mxu0 0.0
    %2147 = vmatpush1.msra.mxu0 0.0
    %2148 = vmatprep.subr.mxu0 0.0
    %2149 = vmatpush1.msra.mxu0 0.0
    %2150 = vmatprep.subr.mxu0 0.0
    %2151 = vmatpush1.msra.mxu0 0.0
    %2152 = vmatprep.subr.mxu0 0.0
    %2153 = vmatpush1.msra.mxu0 0.0
    %2154 = vmatprep.subr.mxu0 0.0
    %2155 = vmatpush1.msra.mxu0 0.0
    %2156 = vmatprep.subr.mxu0 0.0
    %2157 = vmatpush1.msra.mxu0 0.0
    %2158 = vmatprep.subr.mxu0 0.0
    %2159 = vmatpush1.msra.mxu0 %v2133
    %2160 = vmatprep.subr.mxu0 0.0
    %2161 = vmatpush1.msra.mxu0 %v2132
    %2162 = vmatprep.subr.mxu0 0.0
    %2163 = vmatpush1.msra.mxu0 %v2131
    %2164 = vmatprep.subr.mxu0 0.0
    %2165 = vmatpush1.msra.mxu0 %v2130
    %2166 = vmatprep.subr.mxu0 0.0
    %2167 = vmatpush2.msra.mxu0 0.0
    %2168 = vmatprep.subr.mxu0 0.0
    %2169 = vmatpush2.msra.mxu0 0.0
    %2170 = vmatprep.subr.mxu0 0.0
    %2171 = vmatpush2.msra.mxu0 0.0
    %2172 = vmatprep.subr.mxu0 0.0
    %2173 = vmatpush2.msra.mxu0 0.0
    %2174 = vmatprep.subr.mxu0 0.0
    %2175 = vmatpush2.msra.mxu0 0.0
    %2176 = vmatprep.subr.mxu0 0.0
    %2177 = vmatpush2.msra.mxu0 0.0
    %2178 = vmatprep.subr.mxu0 0.0
    %2179 = vmatpush2.msra.mxu0 0.0
    %2180 = vmatprep.subr.mxu0 0.0
    %2181 = vmatpush2.msra.mxu0 0.0
    %2182 = vmatprep.subr.mxu0 0.0
    %2183 = vmatpush2.msra.mxu0 0.0
    %2184 = vmatprep.subr.mxu0 0.0
    %2185 = vmatpush2.msra.mxu0 0.0
    %2186 = vmatprep.subr.mxu0 0.0
    %2187 = vmatpush2.msra.mxu0 0.0
    %2188 = vmatprep.subr.mxu0 0.0
    %2189 = vmatpush2.msra.mxu0 0.0
    %2190 = vmatprep.subr.mxu0 0.0
    %2191 = vmatpush2.msra.mxu0 0.0
    %2192 = vmatprep.subr.mxu0 0.0
    %2193 = vmatpush2.msra.mxu0 0.0
    %2194 = vmatprep.subr.mxu0 0.0
    %2195 = vmatpush2.msra.mxu0 0.0
    %2196 = vmatprep.subr.mxu0 0.0
    %2197 = vmatpush2.msra.mxu0 0.0
    %2198 = vmatprep.mubr.f32.mxu0 0.0
    %2199 = vmatmul.mubr.f32.gmra.mxu0 %v196
    %v2200 = vpop.f32.mrf.mxu0
    %v2201 = vadd.f32 0.0, %v2200
    %v2202 = vpop.f32.mrf.mxu0
    %2203 = vmatprep.mubr.f32.mxu0 0.0
    %2204 = vmatmul.mubr.f32.gmra.mxu0 %v199
    %v2205 = vpop.f32.mrf.mxu0
    %v2206 = vadd.f32 0.0, %v2205
    %v2207 = vpop.f32.mrf.mxu0
    %2208 = vdwg.mxu0
    %s2209 = scalar_lea.vmem %s5, 96
    %v2210 = vld [vmem:[%s2209] sm:$0xff]
    %v2211 = vld [vmem:[%s2209 + $0x8] sm:$0xff]
    %v2212 = vld [vmem:[%s2209 + $0x10] sm:$0xff]
    %v2213 = vld [vmem:[%s2209 + $0x18] sm:$0xff]
    %2214 = vmatprep.subr.mxu0 0.0
    %2215 = vmatpush1.msra.mxu0 0.0
    %2216 = vmatprep.subr.mxu0 0.0
    %2217 = vmatpush1.msra.mxu0 0.0
    %2218 = vmatprep.subr.mxu0 0.0
    %2219 = vmatpush1.msra.mxu0 0.0
    %2220 = vmatprep.subr.mxu0 0.0
    %2221 = vmatpush1.msra.mxu0 0.0
    %2222 = vmatprep.subr.mxu0 0.0
    %2223 = vmatpush1.msra.mxu0 0.0
    %2224 = vmatprep.subr.mxu0 0.0
    %2225 = vmatpush1.msra.mxu0 0.0
    %2226 = vmatprep.subr.mxu0 0.0
    %2227 = vmatpush1.msra.mxu0 0.0
    %2228 = vmatprep.subr.mxu0 0.0
    %2229 = vmatpush1.msra.mxu0 0.0
    %2230 = vmatprep.subr.mxu0 0.0
    %2231 = vmatpush1.msra.mxu0 0.0
    %2232 = vmatprep.subr.mxu0 0.0
    %2233 = vmatpush1.msra.mxu0 0.0
    %2234 = vmatprep.subr.mxu0 0.0
    %2235 = vmatpush1.msra.mxu0 0.0
    %2236 = vmatprep.subr.mxu0 0.0
    %2237 = vmatpush1.msra.mxu0 0.0
    %2238 = vmatprep.subr.mxu0 0.0
    %2239 = vmatpush1.msra.mxu0 %v2213
    %2240 = vmatprep.subr.mxu0 0.0
    %2241 = vmatpush1.msra.mxu0 %v2212
    %2242 = vmatprep.subr.mxu0 0.0
    %2243 = vmatpush1.msra.mxu0 %v2211
    %2244 = vmatprep.subr.mxu0 0.0
    %2245 = vmatpush1.msra.mxu0 %v2210
    %2246 = vmatprep.subr.mxu0 0.0
    %2247 = vmatpush2.msra.mxu0 0.0
    %2248 = vmatprep.subr.mxu0 0.0
    %2249 = vmatpush2.msra.mxu0 0.0
    %2250 = vmatprep.subr.mxu0 0.0
    %2251 = vmatpush2.msra.mxu0 0.0
    %2252 = vmatprep.subr.mxu0 0.0
    %2253 = vmatpush2.msra.mxu0 0.0
    %2254 = vmatprep.subr.mxu0 0.0
    %2255 = vmatpush2.msra.mxu0 0.0
    %2256 = vmatprep.subr.mxu0 0.0
    %2257 = vmatpush2.msra.mxu0 0.0
    %2258 = vmatprep.subr.mxu0 0.0
    %2259 = vmatpush2.msra.mxu0 0.0
    %2260 = vmatprep.subr.mxu0 0.0
    %2261 = vmatpush2.msra.mxu0 0.0
    %2262 = vmatprep.subr.mxu0 0.0
    %2263 = vmatpush2.msra.mxu0 0.0
    %2264 = vmatprep.subr.mxu0 0.0
    %2265 = vmatpush2.msra.mxu0 0.0
    %2266 = vmatprep.subr.mxu0 0.0
    %2267 = vmatpush2.msra.mxu0 0.0
    %2268 = vmatprep.subr.mxu0 0.0
    %2269 = vmatpush2.msra.mxu0 0.0
    %2270 = vmatprep.subr.mxu0 0.0
    %2271 = vmatpush2.msra.mxu0 0.0
    %2272 = vmatprep.subr.mxu0 0.0
    %2273 = vmatpush2.msra.mxu0 0.0
    %2274 = vmatprep.subr.mxu0 0.0
    %2275 = vmatpush2.msra.mxu0 0.0
    %2276 = vmatprep.subr.mxu0 0.0
    %2277 = vmatpush2.msra.mxu0 0.0
    %2278 = vmatprep.mubr.f32.mxu0 0.0
    %2279 = vmatmul.mubr.f32.gmra.mxu0 %v196
    %v2280 = vpop.f32.mrf.mxu0
    %v2281 = vadd.f32 0.0, %v2280
    %v2282 = vpop.f32.mrf.mxu0
    %2283 = vmatprep.mubr.f32.mxu0 0.0
    %2284 = vmatmul.mubr.f32.gmra.mxu0 %v199
    %v2285 = vpop.f32.mrf.mxu0
    %v2286 = vadd.f32 0.0, %v2285
    %v2287 = vpop.f32.mrf.mxu0
    %2288 = vdwg.mxu0
    %s2289 = scalar_lea.vmem %s6, 96
    %v2290 = vld [vmem:[%s2289] sm:$0xff]
    %v2291 = vld [vmem:[%s2289 + $0x8] sm:$0xff]
    %v2292 = vld [vmem:[%s2289 + $0x10] sm:$0xff]
    %v2293 = vld [vmem:[%s2289 + $0x18] sm:$0xff]
    %2294 = vmatprep.subr.mxu0 0.0
    %2295 = vmatpush1.msra.mxu0 0.0
    %2296 = vmatprep.subr.mxu0 0.0
    %2297 = vmatpush1.msra.mxu0 0.0
    %2298 = vmatprep.subr.mxu0 0.0
    %2299 = vmatpush1.msra.mxu0 0.0
    %2300 = vmatprep.subr.mxu0 0.0
    %2301 = vmatpush1.msra.mxu0 0.0
    %2302 = vmatprep.subr.mxu0 0.0
    %2303 = vmatpush1.msra.mxu0 0.0
    %2304 = vmatprep.subr.mxu0 0.0
    %2305 = vmatpush1.msra.mxu0 0.0
    %2306 = vmatprep.subr.mxu0 0.0
    %2307 = vmatpush1.msra.mxu0 0.0
    %2308 = vmatprep.subr.mxu0 0.0
    %2309 = vmatpush1.msra.mxu0 0.0
    %2310 = vmatprep.subr.mxu0 0.0
    %2311 = vmatpush1.msra.mxu0 0.0
    %2312 = vmatprep.subr.mxu0 0.0
    %2313 = vmatpush1.msra.mxu0 0.0
    %2314 = vmatprep.subr.mxu0 0.0
    %2315 = vmatpush1.msra.mxu0 0.0
    %2316 = vmatprep.subr.mxu0 0.0
    %2317 = vmatpush1.msra.mxu0 0.0
    %2318 = vmatprep.subr.mxu0 0.0
    %2319 = vmatpush1.msra.mxu0 %v2293
    %2320 = vmatprep.subr.mxu0 0.0
    %2321 = vmatpush1.msra.mxu0 %v2292
    %2322 = vmatprep.subr.mxu0 0.0
    %2323 = vmatpush1.msra.mxu0 %v2291
    %2324 = vmatprep.subr.mxu0 0.0
    %2325 = vmatpush1.msra.mxu0 %v2290
    %2326 = vmatprep.subr.mxu0 0.0
    %2327 = vmatpush2.msra.mxu0 0.0
    %2328 = vmatprep.subr.mxu0 0.0
    %2329 = vmatpush2.msra.mxu0 0.0
    %2330 = vmatprep.subr.mxu0 0.0
    %2331 = vmatpush2.msra.mxu0 0.0
    %2332 = vmatprep.subr.mxu0 0.0
    %2333 = vmatpush2.msra.mxu0 0.0
    %2334 = vmatprep.subr.mxu0 0.0
    %2335 = vmatpush2.msra.mxu0 0.0
    %2336 = vmatprep.subr.mxu0 0.0
    %2337 = vmatpush2.msra.mxu0 0.0
    %2338 = vmatprep.subr.mxu0 0.0
    %2339 = vmatpush2.msra.mxu0 0.0
    %2340 = vmatprep.subr.mxu0 0.0
    %2341 = vmatpush2.msra.mxu0 0.0
    %2342 = vmatprep.subr.mxu0 0.0
    %2343 = vmatpush2.msra.mxu0 0.0
    %2344 = vmatprep.subr.mxu0 0.0
    %2345 = vmatpush2.msra.mxu0 0.0
    %2346 = vmatprep.subr.mxu0 0.0
    %2347 = vmatpush2.msra.mxu0 0.0
    %2348 = vmatprep.subr.mxu0 0.0
    %2349 = vmatpush2.msra.mxu0 0.0
    %2350 = vmatprep.subr.mxu0 0.0
    %2351 = vmatpush2.msra.mxu0 0.0
    %2352 = vmatprep.subr.mxu0 0.0
    %2353 = vmatpush2.msra.mxu0 0.0
    %2354 = vmatprep.subr.mxu0 0.0
    %2355 = vmatpush2.msra.mxu0 0.0
    %2356 = vmatprep.subr.mxu0 0.0
    %2357 = vmatpush2.msra.mxu0 0.0
    %2358 = vmatprep.mubr.f32.mxu0 0.0
    %2359 = vmatmul.mubr.f32.gmra.mxu0 %v196
    %v2360 = vpop.f32.mrf.mxu0
    %v2361 = vadd.f32 0.0, %v2360
    %v2362 = vpop.f32.mrf.mxu0
    %2363 = vmatprep.mubr.f32.mxu0 0.0
    %2364 = vmatmul.mubr.f32.gmra.mxu0 %v199
    %v2365 = vpop.f32.mrf.mxu0
    %v2366 = vadd.f32 0.0, %v2365
    %v2367 = vpop.f32.mrf.mxu0
    %2368 = vdwg.mxu0
    %v2370 = vsel %vm434, %v2201, 0
    %v2373 = vsel %vm434, %v2281, 0
    %2375 = vmatprep.subr.mxu0 0.0
    %2376 = vmatpush1.xpose.msra.mxu0 0.0
    %2377 = vmatprep.subr.mxu0 0.0
    %2378 = vmatpush1.xpose.msra.mxu0 0.0
    %2379 = vmatprep.subr.mxu0 0.0
    %2380 = vmatpush1.xpose.msra.mxu0 0.0
    %2381 = vmatprep.subr.mxu0 0.0
    %2382 = vmatpush1.xpose.msra.mxu0 0.0
    %2383 = vmatprep.subr.mxu0 0.0
    %2384 = vmatpush1.xpose.msra.mxu0 0.0
    %2385 = vmatprep.subr.mxu0 0.0
    %2386 = vmatpush1.xpose.msra.mxu0 0.0
    %2387 = vmatprep.subr.mxu0 0.0
    %2388 = vmatpush1.xpose.msra.mxu0 0.0
    %2389 = vmatprep.subr.mxu0 0.0
    %2390 = vmatpush1.xpose.msra.mxu0 0.0
    %2391 = vmatprep.subr.mxu0 0.0
    %2392 = vmatpush1.xpose.msra.mxu0 0.0
    %2393 = vmatprep.subr.mxu0 0.0
    %2394 = vmatpush1.xpose.msra.mxu0 0.0
    %2395 = vmatprep.subr.mxu0 0.0
    %2396 = vmatpush1.xpose.msra.mxu0 0.0
    %2397 = vmatprep.subr.mxu0 0.0
    %2398 = vmatpush1.xpose.msra.mxu0 0.0
    %2399 = vmatprep.subr.mxu0 0.0
    %2400 = vmatpush1.xpose.msra.mxu0 0.0
    %2401 = vmatprep.subr.mxu0 0.0
    %2402 = vmatpush1.xpose.msra.mxu0 0.0
    %2403 = vmatprep.subr.mxu0 0.0
    %2404 = vmatpush1.xpose.msra.mxu0 0.0
    %2405 = vmatprep.subr.mxu0 0.0
    %2406 = vmatpush1.xpose.msra.mxu0 %v2373
    %2407 = vmatprep.subr.mxu0 0.0
    %2408 = vmatpush2.xpose.msra.mxu0 0.0
    %2409 = vmatprep.subr.mxu0 0.0
    %2410 = vmatpush2.xpose.msra.mxu0 0.0
    %2411 = vmatprep.subr.mxu0 0.0
    %2412 = vmatpush2.xpose.msra.mxu0 0.0
    %2413 = vmatprep.subr.mxu0 0.0
    %2414 = vmatpush2.xpose.msra.mxu0 0.0
    %2415 = vmatprep.subr.mxu0 0.0
    %2416 = vmatpush2.xpose.msra.mxu0 0.0
    %2417 = vmatprep.subr.mxu0 0.0
    %2418 = vmatpush2.xpose.msra.mxu0 0.0
    %2419 = vmatprep.subr.mxu0 0.0
    %2420 = vmatpush2.xpose.msra.mxu0 0.0
    %2421 = vmatprep.subr.mxu0 0.0
    %2422 = vmatpush2.xpose.msra.mxu0 0.0
    %2423 = vmatprep.subr.mxu0 0.0
    %2424 = vmatpush2.xpose.msra.mxu0 0.0
    %2425 = vmatprep.subr.mxu0 0.0
    %2426 = vmatpush2.xpose.msra.mxu0 0.0
    %2427 = vmatprep.subr.mxu0 0.0
    %2428 = vmatpush2.xpose.msra.mxu0 0.0
    %2429 = vmatprep.subr.mxu0 0.0
    %2430 = vmatpush2.xpose.msra.mxu0 0.0
    %2431 = vmatprep.subr.mxu0 0.0
    %2432 = vmatpush2.xpose.msra.mxu0 0.0
    %2433 = vmatprep.subr.mxu0 0.0
    %2434 = vmatpush2.xpose.msra.mxu0 0.0
    %2435 = vmatprep.subr.mxu0 0.0
    %2436 = vmatpush2.xpose.msra.mxu0 0.0
    %2437 = vmatprep.subr.mxu0 0.0
    %2438 = vmatpush2.xpose.msra.mxu0 0.0
    %2439 = vmatprep.mubr.f32.mxu0 0.0
    %2440 = vmatmul.mubr.f32.gmra.mxu0 %v2370
    %v2441 = vpop.f32.mrf.mxu0
    %v2442 = vadd.f32 %v159, %v2441
    %v2443 = vpop.f32.mrf.mxu0
    %2444 = vdwg.mxu0
    %v2446 = vsel %vm434, %v2206, 0
    %v2449 = vsel %vm434, %v2286, 0
    %2451 = vmatprep.subr.mxu0 0.0
    %2452 = vmatpush1.xpose.msra.mxu0 0.0
    %2453 = vmatprep.subr.mxu0 0.0
    %2454 = vmatpush1.xpose.msra.mxu0 0.0
    %2455 = vmatprep.subr.mxu0 0.0
    %2456 = vmatpush1.xpose.msra.mxu0 0.0
    %2457 = vmatprep.subr.mxu0 0.0
    %2458 = vmatpush1.xpose.msra.mxu0 0.0
    %2459 = vmatprep.subr.mxu0 0.0
    %2460 = vmatpush1.xpose.msra.mxu0 0.0
    %2461 = vmatprep.subr.mxu0 0.0
    %2462 = vmatpush1.xpose.msra.mxu0 0.0
    %2463 = vmatprep.subr.mxu0 0.0
    %2464 = vmatpush1.xpose.msra.mxu0 0.0
    %2465 = vmatprep.subr.mxu0 0.0
    %2466 = vmatpush1.xpose.msra.mxu0 0.0
    %2467 = vmatprep.subr.mxu0 0.0
    %2468 = vmatpush1.xpose.msra.mxu0 0.0
    %2469 = vmatprep.subr.mxu0 0.0
    %2470 = vmatpush1.xpose.msra.mxu0 0.0
    %2471 = vmatprep.subr.mxu0 0.0
    %2472 = vmatpush1.xpose.msra.mxu0 0.0
    %2473 = vmatprep.subr.mxu0 0.0
    %2474 = vmatpush1.xpose.msra.mxu0 0.0
    %2475 = vmatprep.subr.mxu0 0.0
    %2476 = vmatpush1.xpose.msra.mxu0 0.0
    %2477 = vmatprep.subr.mxu0 0.0
    %2478 = vmatpush1.xpose.msra.mxu0 0.0
    %2479 = vmatprep.subr.mxu0 0.0
    %2480 = vmatpush1.xpose.msra.mxu0 0.0
    %2481 = vmatprep.subr.mxu0 0.0
    %2482 = vmatpush1.xpose.msra.mxu0 %v2449
    %2483 = vmatprep.subr.mxu0 0.0
    %2484 = vmatpush2.xpose.msra.mxu0 0.0
    %2485 = vmatprep.subr.mxu0 0.0
    %2486 = vmatpush2.xpose.msra.mxu0 0.0
    %2487 = vmatprep.subr.mxu0 0.0
    %2488 = vmatpush2.xpose.msra.mxu0 0.0
    %2489 = vmatprep.subr.mxu0 0.0
    %2490 = vmatpush2.xpose.msra.mxu0 0.0
    %2491 = vmatprep.subr.mxu0 0.0
    %2492 = vmatpush2.xpose.msra.mxu0 0.0
    %2493 = vmatprep.subr.mxu0 0.0
    %2494 = vmatpush2.xpose.msra.mxu0 0.0
    %2495 = vmatprep.subr.mxu0 0.0
    %2496 = vmatpush2.xpose.msra.mxu0 0.0
    %2497 = vmatprep.subr.mxu0 0.0
    %2498 = vmatpush2.xpose.msra.mxu0 0.0
    %2499 = vmatprep.subr.mxu0 0.0
    %2500 = vmatpush2.xpose.msra.mxu0 0.0
    %2501 = vmatprep.subr.mxu0 0.0
    %2502 = vmatpush2.xpose.msra.mxu0 0.0
    %2503 = vmatprep.subr.mxu0 0.0
    %2504 = vmatpush2.xpose.msra.mxu0 0.0
    %2505 = vmatprep.subr.mxu0 0.0
    %2506 = vmatpush2.xpose.msra.mxu0 0.0
    %2507 = vmatprep.subr.mxu0 0.0
    %2508 = vmatpush2.xpose.msra.mxu0 0.0
    %2509 = vmatprep.subr.mxu0 0.0
    %2510 = vmatpush2.xpose.msra.mxu0 0.0
    %2511 = vmatprep.subr.mxu0 0.0
    %2512 = vmatpush2.xpose.msra.mxu0 0.0
    %2513 = vmatprep.subr.mxu0 0.0
    %2514 = vmatpush2.xpose.msra.mxu0 0.0
    %2515 = vmatprep.mubr.f32.mxu0 0.0
    %2516 = vmatmul.mubr.f32.gmra.mxu0 %v2446
    %v2517 = vpop.f32.mrf.mxu0
    %v2518 = vadd.f32 %v163, %v2517
    %v2519 = vpop.f32.mrf.mxu0
    %2520 = vdwg.mxu0
    %v2521 = vsel %vm434, %v2442, -inf
    %2522 = vmax.xlane.f32.xlu0 %v2521
    %v2523 = vpop.xlane.xlu0 %2522
    %v2524 = vsel %vm434, %v2518, -inf
    %2525 = vmax.xlane.f32.xlu0 %v2524
    %v2526 = vpop.xlane.xlu0 %2525
    %v2527 = vsub.f32 %v2442, %v2523
    %v2528 = vsub.f32 %v2518, %v2526
    %v2529 = vmul.f32 %v2527, 1.442695
    %v2530 = vpow.pop %v2529
    %v2531 = vmul.f32 %v2528, 1.442695
    %v2532 = vpow.pop %v2531
    %v2533 = vsel %vm434, %v2530, 0.0
    %2534 = vadd.xlane.f32.xlu0 %v2533
    %v2535 = vpop.xlane.xlu0 %2534
    %v2536 = vsel %vm434, %v2532, 0.0
    %2537 = vadd.xlane.f32.xlu0 %v2536
    %v2538 = vpop.xlane.xlu0 %2537
    %v2539 = vrcp.pop %v2535
    %v2540 = vmul.f32 %v2530, %v2539
    %v2541 = vrcp.pop %v2538
    %v2542 = vmul.f32 %v2532, %v2541
    %v2544 = vsel %vm434, %v2540, 0
    %2546 = vmatprep.subr.mxu0 0.0
    %2547 = vmatpush1.msra.mxu0 0.0
    %2548 = vmatprep.subr.mxu0 0.0
    %2549 = vmatpush1.msra.mxu0 0.0
    %2550 = vmatprep.subr.mxu0 0.0
    %2551 = vmatpush1.msra.mxu0 0.0
    %2552 = vmatprep.subr.mxu0 0.0
    %2553 = vmatpush1.msra.mxu0 0.0
    %2554 = vmatprep.subr.mxu0 0.0
    %2555 = vmatpush1.msra.mxu0 0.0
    %2556 = vmatprep.subr.mxu0 0.0
    %2557 = vmatpush1.msra.mxu0 0.0
    %2558 = vmatprep.subr.mxu0 0.0
    %2559 = vmatpush1.msra.mxu0 0.0
    %2560 = vmatprep.subr.mxu0 0.0
    %2561 = vmatpush1.msra.mxu0 0.0
    %2562 = vmatprep.subr.mxu0 0.0
    %2563 = vmatpush1.msra.mxu0 0.0
    %2564 = vmatprep.subr.mxu0 0.0
    %2565 = vmatpush1.msra.mxu0 0.0
    %2566 = vmatprep.subr.mxu0 0.0
    %2567 = vmatpush1.msra.mxu0 0.0
    %2568 = vmatprep.subr.mxu0 0.0
    %2569 = vmatpush1.msra.mxu0 0.0
    %2570 = vmatprep.subr.mxu0 0.0
    %2571 = vmatpush1.msra.mxu0 0.0
    %2572 = vmatprep.subr.mxu0 0.0
    %2573 = vmatpush1.msra.mxu0 0.0
    %2574 = vmatprep.subr.mxu0 0.0
    %2575 = vmatpush1.msra.mxu0 0.0
    %2576 = vmatprep.subr.mxu0 0.0
    %2577 = vmatpush1.msra.mxu0 %v2361
    %2578 = vmatprep.subr.mxu0 0.0
    %2579 = vmatpush2.msra.mxu0 0.0
    %2580 = vmatprep.subr.mxu0 0.0
    %2581 = vmatpush2.msra.mxu0 0.0
    %2582 = vmatprep.subr.mxu0 0.0
    %2583 = vmatpush2.msra.mxu0 0.0
    %2584 = vmatprep.subr.mxu0 0.0
    %2585 = vmatpush2.msra.mxu0 0.0
    %2586 = vmatprep.subr.mxu0 0.0
    %2587 = vmatpush2.msra.mxu0 0.0
    %2588 = vmatprep.subr.mxu0 0.0
    %2589 = vmatpush2.msra.mxu0 0.0
    %2590 = vmatprep.subr.mxu0 0.0
    %2591 = vmatpush2.msra.mxu0 0.0
    %2592 = vmatprep.subr.mxu0 0.0
    %2593 = vmatpush2.msra.mxu0 0.0
    %2594 = vmatprep.subr.mxu0 0.0
    %2595 = vmatpush2.msra.mxu0 0.0
    %2596 = vmatprep.subr.mxu0 0.0
    %2597 = vmatpush2.msra.mxu0 0.0
    %2598 = vmatprep.subr.mxu0 0.0
    %2599 = vmatpush2.msra.mxu0 0.0
    %2600 = vmatprep.subr.mxu0 0.0
    %2601 = vmatpush2.msra.mxu0 0.0
    %2602 = vmatprep.subr.mxu0 0.0
    %2603 = vmatpush2.msra.mxu0 0.0
    %2604 = vmatprep.subr.mxu0 0.0
    %2605 = vmatpush2.msra.mxu0 0.0
    %2606 = vmatprep.subr.mxu0 0.0
    %2607 = vmatpush2.msra.mxu0 0.0
    %2608 = vmatprep.subr.mxu0 0.0
    %2609 = vmatpush2.msra.mxu0 0.0
    %2610 = vmatprep.mubr.f32.mxu0 0.0
    %2611 = vmatmul.mubr.f32.gmra.mxu0 %v2544
    %v2612 = vpop.f32.mrf.mxu0
    %v2613 = vadd.f32 0.0, %v2612
    %v2614 = vpop.f32.mrf.mxu0
    %2615 = vdwg.mxu0
    %v2617 = vsel %vm434, %v2542, 0
    %2619 = vmatprep.subr.mxu0 0.0
    %2620 = vmatpush1.msra.mxu0 0.0
    %2621 = vmatprep.subr.mxu0 0.0
    %2622 = vmatpush1.msra.mxu0 0.0
    %2623 = vmatprep.subr.mxu0 0.0
    %2624 = vmatpush1.msra.mxu0 0.0
    %2625 = vmatprep.subr.mxu0 0.0
    %2626 = vmatpush1.msra.mxu0 0.0
    %2627 = vmatprep.subr.mxu0 0.0
    %2628 = vmatpush1.msra.mxu0 0.0
    %2629 = vmatprep.subr.mxu0 0.0
    %2630 = vmatpush1.msra.mxu0 0.0
    %2631 = vmatprep.subr.mxu0 0.0
    %2632 = vmatpush1.msra.mxu0 0.0
    %2633 = vmatprep.subr.mxu0 0.0
    %2634 = vmatpush1.msra.mxu0 0.0
    %2635 = vmatprep.subr.mxu0 0.0
    %2636 = vmatpush1.msra.mxu0 0.0
    %2637 = vmatprep.subr.mxu0 0.0
    %2638 = vmatpush1.msra.mxu0 0.0
    %2639 = vmatprep.subr.mxu0 0.0
    %2640 = vmatpush1.msra.mxu0 0.0
    %2641 = vmatprep.subr.mxu0 0.0
    %2642 = vmatpush1.msra.mxu0 0.0
    %2643 = vmatprep.subr.mxu0 0.0
    %2644 = vmatpush1.msra.mxu0 0.0
    %2645 = vmatprep.subr.mxu0 0.0
    %2646 = vmatpush1.msra.mxu0 0.0
    %2647 = vmatprep.subr.mxu0 0.0
    %2648 = vmatpush1.msra.mxu0 0.0
    %2649 = vmatprep.subr.mxu0 0.0
    %2650 = vmatpush1.msra.mxu0 %v2366
    %2651 = vmatprep.subr.mxu0 0.0
    %2652 = vmatpush2.msra.mxu0 0.0
    %2653 = vmatprep.subr.mxu0 0.0
    %2654 = vmatpush2.msra.mxu0 0.0
    %2655 = vmatprep.subr.mxu0 0.0
    %2656 = vmatpush2.msra.mxu0 0.0
    %2657 = vmatprep.subr.mxu0 0.0
    %2658 = vmatpush2.msra.mxu0 0.0
    %2659 = vmatprep.subr.mxu0 0.0
    %2660 = vmatpush2.msra.mxu0 0.0
    %2661 = vmatprep.subr.mxu0 0.0
    %2662 = vmatpush2.msra.mxu0 0.0
    %2663 = vmatprep.subr.mxu0 0.0
    %2664 = vmatpush2.msra.mxu0 0.0
    %2665 = vmatprep.subr.mxu0 0.0
    %2666 = vmatpush2.msra.mxu0 0.0
    %2667 = vmatprep.subr.mxu0 0.0
    %2668 = vmatpush2.msra.mxu0 0.0
    %2669 = vmatprep.subr.mxu0 0.0
    %2670 = vmatpush2.msra.mxu0 0.0
    %2671 = vmatprep.subr.mxu0 0.0
    %2672 = vmatpush2.msra.mxu0 0.0
    %2673 = vmatprep.subr.mxu0 0.0
    %2674 = vmatpush2.msra.mxu0 0.0
    %2675 = vmatprep.subr.mxu0 0.0
    %2676 = vmatpush2.msra.mxu0 0.0
    %2677 = vmatprep.subr.mxu0 0.0
    %2678 = vmatpush2.msra.mxu0 0.0
    %2679 = vmatprep.subr.mxu0 0.0
    %2680 = vmatpush2.msra.mxu0 0.0
    %2681 = vmatprep.subr.mxu0 0.0
    %2682 = vmatpush2.msra.mxu0 0.0
    %2683 = vmatprep.mubr.f32.mxu0 0.0
    %2684 = vmatmul.mubr.f32.gmra.mxu0 %v2617
    %v2685 = vpop.f32.mrf.mxu0
    %v2686 = vadd.f32 0.0, %v2685
    %v2687 = vpop.f32.mrf.mxu0
    %2688 = vdwg.mxu0
    %s2689 = scalar_lea.vmem %s7, 24
    %v2690 = vld [vmem:[%s2689] sm:$0xff]
    %v2692 = vsel %vm434, %v2613, 0
    %v2695 = vsel %vm434, %v2686, 0
    %2697 = vmatprep.subr.mxu0 0.0
    %2698 = vmatpush1.msra.mxu0 0.0
    %2699 = vmatprep.subr.mxu0 0.0
    %2700 = vmatpush1.msra.mxu0 0.0
    %2701 = vmatprep.subr.mxu0 0.0
    %2702 = vmatpush1.msra.mxu0 0.0
    %2703 = vmatprep.subr.mxu0 0.0
    %2704 = vmatpush1.msra.mxu0 0.0
    %2705 = vmatprep.subr.mxu0 0.0
    %2706 = vmatpush1.msra.mxu0 0.0
    %2707 = vmatprep.subr.mxu0 0.0
    %2708 = vmatpush1.msra.mxu0 0.0
    %2709 = vmatprep.subr.mxu0 0.0
    %2710 = vmatpush1.msra.mxu0 0.0
    %2711 = vmatprep.subr.mxu0 0.0
    %2712 = vmatpush1.msra.mxu0 0.0
    %2713 = vmatprep.subr.mxu0 0.0
    %2714 = vmatpush1.msra.mxu0 0.0
    %2715 = vmatprep.subr.mxu0 0.0
    %2716 = vmatpush1.msra.mxu0 0.0
    %2717 = vmatprep.subr.mxu0 0.0
    %2718 = vmatpush1.msra.mxu0 0.0
    %2719 = vmatprep.subr.mxu0 0.0
    %2720 = vmatpush1.msra.mxu0 0.0
    %2721 = vmatprep.subr.mxu0 0.0
    %2722 = vmatpush1.msra.mxu0 0.0
    %2723 = vmatprep.subr.mxu0 0.0
    %2724 = vmatpush1.msra.mxu0 0.0
    %2725 = vmatprep.subr.mxu0 0.0
    %2726 = vmatpush1.msra.mxu0 0.0
    %2727 = vmatprep.subr.mxu0 0.0
    %2728 = vmatpush1.msra.mxu0 %v2690
    %2729 = vmatprep.subr.mxu0 0.0
    %2730 = vmatpush2.msra.mxu0 0.0
    %2731 = vmatprep.subr.mxu0 0.0
    %2732 = vmatpush2.msra.mxu0 0.0
    %2733 = vmatprep.subr.mxu0 0.0
    %2734 = vmatpush2.msra.mxu0 0.0
    %2735 = vmatprep.subr.mxu0 0.0
    %2736 = vmatpush2.msra.mxu0 0.0
    %2737 = vmatprep.subr.mxu0 0.0
    %2738 = vmatpush2.msra.mxu0 0.0
    %2739 = vmatprep.subr.mxu0 0.0
    %2740 = vmatpush2.msra.mxu0 0.0
    %2741 = vmatprep.subr.mxu0 0.0
    %2742 = vmatpush2.msra.mxu0 0.0
    %2743 = vmatprep.subr.mxu0 0.0
    %2744 = vmatpush2.msra.mxu0 0.0
    %2745 = vmatprep.subr.mxu0 0.0
    %2746 = vmatpush2.msra.mxu0 0.0
    %2747 = vmatprep.subr.mxu0 0.0
    %2748 = vmatpush2.msra.mxu0 0.0
    %2749 = vmatprep.subr.mxu0 0.0
    %2750 = vmatpush2.msra.mxu0 0.0
    %2751 = vmatprep.subr.mxu0 0.0
    %2752 = vmatpush2.msra.mxu0 0.0
    %2753 = vmatprep.subr.mxu0 0.0
    %2754 = vmatpush2.msra.mxu0 0.0
    %2755 = vmatprep.subr.mxu0 0.0
    %2756 = vmatpush2.msra.mxu0 0.0
    %2757 = vmatprep.subr.mxu0 0.0
    %2758 = vmatpush2.msra.mxu0 0.0
    %2759 = vmatprep.subr.mxu0 0.0
    %2760 = vmatpush2.msra.mxu0 0.0
    %2761 = vmatprep.mubr.f32.mxu0 0.0
    %2762 = vmatmul.mubr.f32.gmra.mxu0 %v2692
    %v2763 = vpop.f32.mrf.mxu0
    %v2764 = vadd.f32 0.0, %v2763
    %v2765 = vpop.f32.mrf.mxu0
    %2766 = vmatprep.mubr.f32.mxu0 0.0
    %2767 = vmatmul.mubr.f32.gmra.mxu0 %v2695
    %v2768 = vpop.f32.mrf.mxu0
    %v2769 = vadd.f32 0.0, %v2768
    %v2770 = vpop.f32.mrf.mxu0
    %2771 = vdwg.mxu0
    %v2772 = vadd.f32 %v2127, %v2764
    %v2773 = vadd.f32 %v2128, %v2769
    %v2774 = vmul.f32 %v2772, %v2772
    %v2775 = vmul.f32 %v2773, %v2773
    %v2776 = vsel %vm168, %v2774, 0.0
    %2777 = vadd.xlane.f32.xlu0 %v2776
    %v2778 = vpop.xlane.xlu0 %2777
    %v2779 = vsel %vm168, %v2775, 0.0
    %2780 = vadd.xlane.f32.xlu0 %v2779
    %v2781 = vpop.xlane.xlu0 %2780
    %v2782 = vmul.f32 %v2778, %v175
    %v2783 = vmul.f32 %v2781, %v175
    %v2784 = vadd.f32 %v2782, 1e-06
    %v2785 = vadd.f32 %v2783, 1e-06
    %v2786 = vrsqrt.pop %v2784
    %v2787 = vrsqrt.pop %v2785
    %v2788 = vmul.f32 %v2772, %v2786
    %v2789 = vmul.f32 %v2773, %v2787
    %v2790 = vld [vmem:[%s8] sm:$0x1]
    %v2791 = vlaneseq
    %v2792 = vshrl.u32 %v2791, 7
    %v2793 = vsub.s32 0, %v2792
    %v2794 = vrot.slane %v2790, %v2793
    %v2795 = vmul.f32 %v2788, %v2794
    %v2796 = vmul.f32 %v2789, %v2794
    %v2797 = vld [vmem:[%s9] sm:$0xff]
    %v2798 = vld [vmem:[%s9 + $0x8] sm:$0xff]
    %v2799 = vld [vmem:[%s9 + $0x10] sm:$0xff]
    %v2800 = vld [vmem:[%s9 + $0x18] sm:$0xff]
    %v2802 = vsel %vm168, %v2795, 0
    %v2805 = vsel %vm168, %v2796, 0
    %2807 = vmatprep.subr.mxu0 0.0
    %2808 = vmatpush1.msra.mxu0 0.0
    %2809 = vmatprep.subr.mxu0 0.0
    %2810 = vmatpush1.msra.mxu0 0.0
    %2811 = vmatprep.subr.mxu0 0.0
    %2812 = vmatpush1.msra.mxu0 0.0
    %2813 = vmatprep.subr.mxu0 0.0
    %2814 = vmatpush1.msra.mxu0 0.0
    %2815 = vmatprep.subr.mxu0 0.0
    %2816 = vmatpush1.msra.mxu0 0.0
    %2817 = vmatprep.subr.mxu0 0.0
    %2818 = vmatpush1.msra.mxu0 0.0
    %2819 = vmatprep.subr.mxu0 0.0
    %2820 = vmatpush1.msra.mxu0 0.0
    %2821 = vmatprep.subr.mxu0 0.0
    %2822 = vmatpush1.msra.mxu0 0.0
    %2823 = vmatprep.subr.mxu0 0.0
    %2824 = vmatpush1.msra.mxu0 0.0
    %2825 = vmatprep.subr.mxu0 0.0
    %2826 = vmatpush1.msra.mxu0 0.0
    %2827 = vmatprep.subr.mxu0 0.0
    %2828 = vmatpush1.msra.mxu0 0.0
    %2829 = vmatprep.subr.mxu0 0.0
    %2830 = vmatpush1.msra.mxu0 0.0
    %2831 = vmatprep.subr.mxu0 0.0
    %2832 = vmatpush1.msra.mxu0 %v2800
    %2833 = vmatprep.subr.mxu0 0.0
    %2834 = vmatpush1.msra.mxu0 %v2799
    %2835 = vmatprep.subr.mxu0 0.0
    %2836 = vmatpush1.msra.mxu0 %v2798
    %2837 = vmatprep.subr.mxu0 0.0
    %2838 = vmatpush1.msra.mxu0 %v2797
    %2839 = vmatprep.subr.mxu0 0.0
    %2840 = vmatpush2.msra.mxu0 0.0
    %2841 = vmatprep.subr.mxu0 0.0
    %2842 = vmatpush2.msra.mxu0 0.0
    %2843 = vmatprep.subr.mxu0 0.0
    %2844 = vmatpush2.msra.mxu0 0.0
    %2845 = vmatprep.subr.mxu0 0.0
    %2846 = vmatpush2.msra.mxu0 0.0
    %2847 = vmatprep.subr.mxu0 0.0
    %2848 = vmatpush2.msra.mxu0 0.0
    %2849 = vmatprep.subr.mxu0 0.0
    %2850 = vmatpush2.msra.mxu0 0.0
    %2851 = vmatprep.subr.mxu0 0.0
    %2852 = vmatpush2.msra.mxu0 0.0
    %2853 = vmatprep.subr.mxu0 0.0
    %2854 = vmatpush2.msra.mxu0 0.0
    %2855 = vmatprep.subr.mxu0 0.0
    %2856 = vmatpush2.msra.mxu0 0.0
    %2857 = vmatprep.subr.mxu0 0.0
    %2858 = vmatpush2.msra.mxu0 0.0
    %2859 = vmatprep.subr.mxu0 0.0
    %2860 = vmatpush2.msra.mxu0 0.0
    %2861 = vmatprep.subr.mxu0 0.0
    %2862 = vmatpush2.msra.mxu0 0.0
    %2863 = vmatprep.subr.mxu0 0.0
    %2864 = vmatpush2.msra.mxu0 0.0
    %2865 = vmatprep.subr.mxu0 0.0
    %2866 = vmatpush2.msra.mxu0 0.0
    %2867 = vmatprep.subr.mxu0 0.0
    %2868 = vmatpush2.msra.mxu0 0.0
    %2869 = vmatprep.subr.mxu0 0.0
    %2870 = vmatpush2.msra.mxu0 0.0
    %2871 = vmatprep.mubr.f32.mxu0 0.0
    %2872 = vmatmul.mubr.f32.gmra.mxu0 %v2802
    %v2873 = vpop.f32.mrf.mxu0
    %v2874 = vadd.f32 0.0, %v2873
    %v2875 = vpop.f32.mrf.mxu0
    %2876 = vmatprep.mubr.f32.mxu0 0.0
    %2877 = vmatmul.mubr.f32.gmra.mxu0 %v2805
    %v2878 = vpop.f32.mrf.mxu0
    %v2879 = vadd.f32 0.0, %v2878
    %v2880 = vpop.f32.mrf.mxu0
    %2881 = vdwg.mxu0
    %v2882 = vmax.f32 %v2874, 0.0
    %v2883 = vmax.f32 %v2879, 0.0
    %v2884 = vld [vmem:[%s10] sm:$0xff]
    %v2885 = vld [vmem:[%s10 + $0x8] sm:$0xff]
    %v2886 = vld [vmem:[%s10 + $0x10] sm:$0xff]
    %v2887 = vld [vmem:[%s10 + $0x18] sm:$0xff]
    %v2888 = vld [vmem:[%s10 + $0x20] sm:$0xff]
    %v2889 = vld [vmem:[%s10 + $0x28] sm:$0xff]
    %v2890 = vld [vmem:[%s10 + $0x30] sm:$0xff]
    %v2891 = vld [vmem:[%s10 + $0x38] sm:$0xff]
    %vm2892 = vcmask 523264
    %v2894 = vsel %vm2892, %v2882, 0
    %v2897 = vsel %vm2892, %v2883, 0
    %2899 = vmatprep.subr.mxu0 0.0
    %2900 = vmatpush1.msra.mxu0 0.0
    %2901 = vmatprep.subr.mxu0 0.0
    %2902 = vmatpush1.msra.mxu0 0.0
    %2903 = vmatprep.subr.mxu0 0.0
    %2904 = vmatpush1.msra.mxu0 0.0
    %2905 = vmatprep.subr.mxu0 0.0
    %2906 = vmatpush1.msra.mxu0 0.0
    %2907 = vmatprep.subr.mxu0 0.0
    %2908 = vmatpush1.msra.mxu0 0.0
    %2909 = vmatprep.subr.mxu0 0.0
    %2910 = vmatpush1.msra.mxu0 0.0
    %2911 = vmatprep.subr.mxu0 0.0
    %2912 = vmatpush1.msra.mxu0 0.0
    %2913 = vmatprep.subr.mxu0 0.0
    %2914 = vmatpush1.msra.mxu0 0.0
    %2915 = vmatprep.subr.mxu0 0.0
    %2916 = vmatpush1.msra.mxu0 %v2891
    %2917 = vmatprep.subr.mxu0 0.0
    %2918 = vmatpush1.msra.mxu0 %v2890
    %2919 = vmatprep.subr.mxu0 0.0
    %2920 = vmatpush1.msra.mxu0 %v2889
    %2921 = vmatprep.subr.mxu0 0.0
    %2922 = vmatpush1.msra.mxu0 %v2888
    %2923 = vmatprep.subr.mxu0 0.0
    %2924 = vmatpush1.msra.mxu0 %v2887
    %2925 = vmatprep.subr.mxu0 0.0
    %2926 = vmatpush1.msra.mxu0 %v2886
    %2927 = vmatprep.subr.mxu0 0.0
    %2928 = vmatpush1.msra.mxu0 %v2885
    %2929 = vmatprep.subr.mxu0 0.0
    %2930 = vmatpush1.msra.mxu0 %v2884
    %2931 = vmatprep.subr.mxu0 0.0
    %2932 = vmatpush2.msra.mxu0 0.0
    %2933 = vmatprep.subr.mxu0 0.0
    %2934 = vmatpush2.msra.mxu0 0.0
    %2935 = vmatprep.subr.mxu0 0.0
    %2936 = vmatpush2.msra.mxu0 0.0
    %2937 = vmatprep.subr.mxu0 0.0
    %2938 = vmatpush2.msra.mxu0 0.0
    %2939 = vmatprep.subr.mxu0 0.0
    %2940 = vmatpush2.msra.mxu0 0.0
    %2941 = vmatprep.subr.mxu0 0.0
    %2942 = vmatpush2.msra.mxu0 0.0
    %2943 = vmatprep.subr.mxu0 0.0
    %2944 = vmatpush2.msra.mxu0 0.0
    %2945 = vmatprep.subr.mxu0 0.0
    %2946 = vmatpush2.msra.mxu0 0.0
    %2947 = vmatprep.subr.mxu0 0.0
    %2948 = vmatpush2.msra.mxu0 0.0
    %2949 = vmatprep.subr.mxu0 0.0
    %2950 = vmatpush2.msra.mxu0 0.0
    %2951 = vmatprep.subr.mxu0 0.0
    %2952 = vmatpush2.msra.mxu0 0.0
    %2953 = vmatprep.subr.mxu0 0.0
    %2954 = vmatpush2.msra.mxu0 0.0
    %2955 = vmatprep.subr.mxu0 0.0
    %2956 = vmatpush2.msra.mxu0 0.0
    %2957 = vmatprep.subr.mxu0 0.0
    %2958 = vmatpush2.msra.mxu0 0.0
    %2959 = vmatprep.subr.mxu0 0.0
    %2960 = vmatpush2.msra.mxu0 0.0
    %2961 = vmatprep.subr.mxu0 0.0
    %2962 = vmatpush2.msra.mxu0 0.0
    %2963 = vmatprep.mubr.f32.mxu0 0.0
    %2964 = vmatmul.mubr.f32.gmra.mxu0 %v2894
    %v2965 = vpop.f32.mrf.mxu0
    %v2966 = vadd.f32 0.0, %v2965
    %v2967 = vpop.f32.mrf.mxu0
    %2968 = vmatprep.mubr.f32.mxu0 0.0
    %2969 = vmatmul.mubr.f32.gmra.mxu0 %v2897
    %v2970 = vpop.f32.mrf.mxu0
    %v2971 = vadd.f32 0.0, %v2970
    %v2972 = vpop.f32.mrf.mxu0
    %2973 = vdwg.mxu0
    %v2974 = vadd.f32 %v2772, %v2966
    %v2975 = vadd.f32 %v2773, %v2971
    %v2976 = vmul.f32 %v2974, %v2974
    %v2977 = vmul.f32 %v2975, %v2975
    %v2978 = vsel %vm168, %v2976, 0.0
    %2979 = vadd.xlane.f32.xlu0 %v2978
    %v2980 = vpop.xlane.xlu0 %2979
    %v2981 = vsel %vm168, %v2977, 0.0
    %2982 = vadd.xlane.f32.xlu0 %v2981
    %v2983 = vpop.xlane.xlu0 %2982
    %v2984 = vmul.f32 %v2980, %v175
    %v2985 = vmul.f32 %v2983, %v175
    %v2986 = vadd.f32 %v2984, 1e-06
    %v2987 = vadd.f32 %v2985, 1e-06
    %v2988 = vrsqrt.pop %v2986
    %v2989 = vrsqrt.pop %v2987
    %v2990 = vmul.f32 %v2974, %v2988
    %v2991 = vmul.f32 %v2975, %v2989
    %v2992 = vld [vmem:[%s3 + $0x1] sm:$0x1]
    %v2993 = vlaneseq
    %v2994 = vshrl.u32 %v2993, 7
    %v2995 = vsub.s32 0, %v2994
    %v2996 = vrot.slane %v2992, %v2995
    %v2997 = vmul.f32 %v2990, %v2996
    %v2998 = vmul.f32 %v2991, %v2996
    %s2999 = scalar_lea.vmem %s4, 128
    %v3000 = vld [vmem:[%s2999] sm:$0xff]
    %v3001 = vld [vmem:[%s2999 + $0x8] sm:$0xff]
    %v3002 = vld [vmem:[%s2999 + $0x10] sm:$0xff]
    %v3003 = vld [vmem:[%s2999 + $0x18] sm:$0xff]
    %v3005 = vsel %vm168, %v2997, 0
    %v3008 = vsel %vm168, %v2998, 0
    %3010 = vmatprep.subr.mxu0 0.0
    %3011 = vmatpush1.msra.mxu0 0.0
    %3012 = vmatprep.subr.mxu0 0.0
    %3013 = vmatpush1.msra.mxu0 0.0
    %3014 = vmatprep.subr.mxu0 0.0
    %3015 = vmatpush1.msra.mxu0 0.0
    %3016 = vmatprep.subr.mxu0 0.0
    %3017 = vmatpush1.msra.mxu0 0.0
    %3018 = vmatprep.subr.mxu0 0.0
    %3019 = vmatpush1.msra.mxu0 0.0
    %3020 = vmatprep.subr.mxu0 0.0
    %3021 = vmatpush1.msra.mxu0 0.0
    %3022 = vmatprep.subr.mxu0 0.0
    %3023 = vmatpush1.msra.mxu0 0.0
    %3024 = vmatprep.subr.mxu0 0.0
    %3025 = vmatpush1.msra.mxu0 0.0
    %3026 = vmatprep.subr.mxu0 0.0
    %3027 = vmatpush1.msra.mxu0 0.0
    %3028 = vmatprep.subr.mxu0 0.0
    %3029 = vmatpush1.msra.mxu0 0.0
    %3030 = vmatprep.subr.mxu0 0.0
    %3031 = vmatpush1.msra.mxu0 0.0
    %3032 = vmatprep.subr.mxu0 0.0
    %3033 = vmatpush1.msra.mxu0 0.0
    %3034 = vmatprep.subr.mxu0 0.0
    %3035 = vmatpush1.msra.mxu0 %v3003
    %3036 = vmatprep.subr.mxu0 0.0
    %3037 = vmatpush1.msra.mxu0 %v3002
    %3038 = vmatprep.subr.mxu0 0.0
    %3039 = vmatpush1.msra.mxu0 %v3001
    %3040 = vmatprep.subr.mxu0 0.0
    %3041 = vmatpush1.msra.mxu0 %v3000
    %3042 = vmatprep.subr.mxu0 0.0
    %3043 = vmatpush2.msra.mxu0 0.0
    %3044 = vmatprep.subr.mxu0 0.0
    %3045 = vmatpush2.msra.mxu0 0.0
    %3046 = vmatprep.subr.mxu0 0.0
    %3047 = vmatpush2.msra.mxu0 0.0
    %3048 = vmatprep.subr.mxu0 0.0
    %3049 = vmatpush2.msra.mxu0 0.0
    %3050 = vmatprep.subr.mxu0 0.0
    %3051 = vmatpush2.msra.mxu0 0.0
    %3052 = vmatprep.subr.mxu0 0.0
    %3053 = vmatpush2.msra.mxu0 0.0
    %3054 = vmatprep.subr.mxu0 0.0
    %3055 = vmatpush2.msra.mxu0 0.0
    %3056 = vmatprep.subr.mxu0 0.0
    %3057 = vmatpush2.msra.mxu0 0.0
    %3058 = vmatprep.subr.mxu0 0.0
    %3059 = vmatpush2.msra.mxu0 0.0
    %3060 = vmatprep.subr.mxu0 0.0
    %3061 = vmatpush2.msra.mxu0 0.0
    %3062 = vmatprep.subr.mxu0 0.0
    %3063 = vmatpush2.msra.mxu0 0.0
    %3064 = vmatprep.subr.mxu0 0.0
    %3065 = vmatpush2.msra.mxu0 0.0
    %3066 = vmatprep.subr.mxu0 0.0
    %3067 = vmatpush2.msra.mxu0 0.0
    %3068 = vmatprep.subr.mxu0 0.0
    %3069 = vmatpush2.msra.mxu0 0.0
    %3070 = vmatprep.subr.mxu0 0.0
    %3071 = vmatpush2.msra.mxu0 0.0
    %3072 = vmatprep.subr.mxu0 0.0
    %3073 = vmatpush2.msra.mxu0 0.0
    %3074 = vmatprep.mubr.f32.mxu0 0.0
    %3075 = vmatmul.mubr.f32.gmra.mxu0 %v3005
    %v3076 = vpop.f32.mrf.mxu0
    %v3077 = vadd.f32 0.0, %v3076
    %v3078 = vpop.f32.mrf.mxu0
    %3079 = vmatprep.mubr.f32.mxu0 0.0
    %3080 = vmatmul.mubr.f32.gmra.mxu0 %v3008
    %v3081 = vpop.f32.mrf.mxu0
    %v3082 = vadd.f32 0.0, %v3081
    %v3083 = vpop.f32.mrf.mxu0
    %3084 = vdwg.mxu0
    %s3085 = scalar_lea.vmem %s5, 128
    %v3086 = vld [vmem:[%s3085] sm:$0xff]
    %v3087 = vld [vmem:[%s3085 + $0x8] sm:$0xff]
    %v3088 = vld [vmem:[%s3085 + $0x10] sm:$0xff]
    %v3089 = vld [vmem:[%s3085 + $0x18] sm:$0xff]
    %3090 = vmatprep.subr.mxu0 0.0
    %3091 = vmatpush1.msra.mxu0 0.0
    %3092 = vmatprep.subr.mxu0 0.0
    %3093 = vmatpush1.msra.mxu0 0.0
    %3094 = vmatprep.subr.mxu0 0.0
    %3095 = vmatpush1.msra.mxu0 0.0
    %3096 = vmatprep.subr.mxu0 0.0
    %3097 = vmatpush1.msra.mxu0 0.0
    %3098 = vmatprep.subr.mxu0 0.0
    %3099 = vmatpush1.msra.mxu0 0.0
    %3100 = vmatprep.subr.mxu0 0.0
    %3101 = vmatpush1.msra.mxu0 0.0
    %3102 = vmatprep.subr.mxu0 0.0
    %3103 = vmatpush1.msra.mxu0 0.0
    %3104 = vmatprep.subr.mxu0 0.0
    %3105 = vmatpush1.msra.mxu0 0.0
    %3106 = vmatprep.subr.mxu0 0.0
    %3107 = vmatpush1.msra.mxu0 0.0
    %3108 = vmatprep.subr.mxu0 0.0
    %3109 = vmatpush1.msra.mxu0 0.0
    %3110 = vmatprep.subr.mxu0 0.0
    %3111 = vmatpush1.msra.mxu0 0.0
    %3112 = vmatprep.subr.mxu0 0.0
    %3113 = vmatpush1.msra.mxu0 0.0
    %3114 = vmatprep.subr.mxu0 0.0
    %3115 = vmatpush1.msra.mxu0 %v3089
    %3116 = vmatprep.subr.mxu0 0.0
    %3117 = vmatpush1.msra.mxu0 %v3088
    %3118 = vmatprep.subr.mxu0 0.0
    %3119 = vmatpush1.msra.mxu0 %v3087
    %3120 = vmatprep.subr.mxu0 0.0
    %3121 = vmatpush1.msra.mxu0 %v3086
    %3122 = vmatprep.subr.mxu0 0.0
    %3123 = vmatpush2.msra.mxu0 0.0
    %3124 = vmatprep.subr.mxu0 0.0
    %3125 = vmatpush2.msra.mxu0 0.0
    %3126 = vmatprep.subr.mxu0 0.0
    %3127 = vmatpush2.msra.mxu0 0.0
    %3128 = vmatprep.subr.mxu0 0.0
    %3129 = vmatpush2.msra.mxu0 0.0
    %3130 = vmatprep.subr.mxu0 0.0
    %3131 = vmatpush2.msra.mxu0 0.0
    %3132 = vmatprep.subr.mxu0 0.0
    %3133 = vmatpush2.msra.mxu0 0.0
    %3134 = vmatprep.subr.mxu0 0.0
    %3135 = vmatpush2.msra.mxu0 0.0
    %3136 = vmatprep.subr.mxu0 0.0
    %3137 = vmatpush2.msra.mxu0 0.0
    %3138 = vmatprep.subr.mxu0 0.0
    %3139 = vmatpush2.msra.mxu0 0.0
    %3140 = vmatprep.subr.mxu0 0.0
    %3141 = vmatpush2.msra.mxu0 0.0
    %3142 = vmatprep.subr.mxu0 0.0
    %3143 = vmatpush2.msra.mxu0 0.0
    %3144 = vmatprep.subr.mxu0 0.0
    %3145 = vmatpush2.msra.mxu0 0.0
    %3146 = vmatprep.subr.mxu0 0.0
    %3147 = vmatpush2.msra.mxu0 0.0
    %3148 = vmatprep.subr.mxu0 0.0
    %3149 = vmatpush2.msra.mxu0 0.0
    %3150 = vmatprep.subr.mxu0 0.0
    %3151 = vmatpush2.msra.mxu0 0.0
    %3152 = vmatprep.subr.mxu0 0.0
    %3153 = vmatpush2.msra.mxu0 0.0
    %3154 = vmatprep.mubr.f32.mxu0 0.0
    %3155 = vmatmul.mubr.f32.gmra.mxu0 %v3005
    %v3156 = vpop.f32.mrf.mxu0
    %v3157 = vadd.f32 0.0, %v3156
    %v3158 = vpop.f32.mrf.mxu0
    %3159 = vmatprep.mubr.f32.mxu0 0.0
    %3160 = vmatmul.mubr.f32.gmra.mxu0 %v3008
    %v3161 = vpop.f32.mrf.mxu0
    %v3162 = vadd.f32 0.0, %v3161
    %v3163 = vpop.f32.mrf.mxu0
    %3164 = vdwg.mxu0
    %s3165 = scalar_lea.vmem %s6, 128
    %v3166 = vld [vmem:[%s3165] sm:$0xff]
    %v3167 = vld [vmem:[%s3165 + $0x8] sm:$0xff]
    %v3168 = vld [vmem:[%s3165 + $0x10] sm:$0xff]
    %v3169 = vld [vmem:[%s3165 + $0x18] sm:$0xff]
    %3170 = vmatprep.subr.mxu0 0.0
    %3171 = vmatpush1.msra.mxu0 0.0
    %3172 = vmatprep.subr.mxu0 0.0
    %3173 = vmatpush1.msra.mxu0 0.0
    %3174 = vmatprep.subr.mxu0 0.0
    %3175 = vmatpush1.msra.mxu0 0.0
    %3176 = vmatprep.subr.mxu0 0.0
    %3177 = vmatpush1.msra.mxu0 0.0
    %3178 = vmatprep.subr.mxu0 0.0
    %3179 = vmatpush1.msra.mxu0 0.0
    %3180 = vmatprep.subr.mxu0 0.0
    %3181 = vmatpush1.msra.mxu0 0.0
    %3182 = vmatprep.subr.mxu0 0.0
    %3183 = vmatpush1.msra.mxu0 0.0
    %3184 = vmatprep.subr.mxu0 0.0
    %3185 = vmatpush1.msra.mxu0 0.0
    %3186 = vmatprep.subr.mxu0 0.0
    %3187 = vmatpush1.msra.mxu0 0.0
    %3188 = vmatprep.subr.mxu0 0.0
    %3189 = vmatpush1.msra.mxu0 0.0
    %3190 = vmatprep.subr.mxu0 0.0
    %3191 = vmatpush1.msra.mxu0 0.0
    %3192 = vmatprep.subr.mxu0 0.0
    %3193 = vmatpush1.msra.mxu0 0.0
    %3194 = vmatprep.subr.mxu0 0.0
    %3195 = vmatpush1.msra.mxu0 %v3169
    %3196 = vmatprep.subr.mxu0 0.0
    %3197 = vmatpush1.msra.mxu0 %v3168
    %3198 = vmatprep.subr.mxu0 0.0
    %3199 = vmatpush1.msra.mxu0 %v3167
    %3200 = vmatprep.subr.mxu0 0.0
    %3201 = vmatpush1.msra.mxu0 %v3166
    %3202 = vmatprep.subr.mxu0 0.0
    %3203 = vmatpush2.msra.mxu0 0.0
    %3204 = vmatprep.subr.mxu0 0.0
    %3205 = vmatpush2.msra.mxu0 0.0
    %3206 = vmatprep.subr.mxu0 0.0
    %3207 = vmatpush2.msra.mxu0 0.0
    %3208 = vmatprep.subr.mxu0 0.0
    %3209 = vmatpush2.msra.mxu0 0.0
    %3210 = vmatprep.subr.mxu0 0.0
    %3211 = vmatpush2.msra.mxu0 0.0
    %3212 = vmatprep.subr.mxu0 0.0
    %3213 = vmatpush2.msra.mxu0 0.0
    %3214 = vmatprep.subr.mxu0 0.0
    %3215 = vmatpush2.msra.mxu0 0.0
    %3216 = vmatprep.subr.mxu0 0.0
    %3217 = vmatpush2.msra.mxu0 0.0
    %3218 = vmatprep.subr.mxu0 0.0
    %3219 = vmatpush2.msra.mxu0 0.0
    %3220 = vmatprep.subr.mxu0 0.0
    %3221 = vmatpush2.msra.mxu0 0.0
    %3222 = vmatprep.subr.mxu0 0.0
    %3223 = vmatpush2.msra.mxu0 0.0
    %3224 = vmatprep.subr.mxu0 0.0
    %3225 = vmatpush2.msra.mxu0 0.0
    %3226 = vmatprep.subr.mxu0 0.0
    %3227 = vmatpush2.msra.mxu0 0.0
    %3228 = vmatprep.subr.mxu0 0.0
    %3229 = vmatpush2.msra.mxu0 0.0
    %3230 = vmatprep.subr.mxu0 0.0
    %3231 = vmatpush2.msra.mxu0 0.0
    %3232 = vmatprep.subr.mxu0 0.0
    %3233 = vmatpush2.msra.mxu0 0.0
    %3234 = vmatprep.mubr.f32.mxu0 0.0
    %3235 = vmatmul.mubr.f32.gmra.mxu0 %v3005
    %v3236 = vpop.f32.mrf.mxu0
    %v3237 = vadd.f32 0.0, %v3236
    %v3238 = vpop.f32.mrf.mxu0
    %3239 = vmatprep.mubr.f32.mxu0 0.0
    %3240 = vmatmul.mubr.f32.gmra.mxu0 %v3008
    %v3241 = vpop.f32.mrf.mxu0
    %v3242 = vadd.f32 0.0, %v3241
    %v3243 = vpop.f32.mrf.mxu0
    %3244 = vdwg.mxu0
    %v3246 = vsel %vm434, %v3077, 0
    %v3249 = vsel %vm434, %v3157, 0
    %3251 = vmatprep.subr.mxu0 0.0
    %3252 = vmatpush1.xpose.msra.mxu0 0.0
    %3253 = vmatprep.subr.mxu0 0.0
    %3254 = vmatpush1.xpose.msra.mxu0 0.0
    %3255 = vmatprep.subr.mxu0 0.0
    %3256 = vmatpush1.xpose.msra.mxu0 0.0
    %3257 = vmatprep.subr.mxu0 0.0
    %3258 = vmatpush1.xpose.msra.mxu0 0.0
    %3259 = vmatprep.subr.mxu0 0.0
    %3260 = vmatpush1.xpose.msra.mxu0 0.0
    %3261 = vmatprep.subr.mxu0 0.0
    %3262 = vmatpush1.xpose.msra.mxu0 0.0
    %3263 = vmatprep.subr.mxu0 0.0
    %3264 = vmatpush1.xpose.msra.mxu0 0.0
    %3265 = vmatprep.subr.mxu0 0.0
    %3266 = vmatpush1.xpose.msra.mxu0 0.0
    %3267 = vmatprep.subr.mxu0 0.0
    %3268 = vmatpush1.xpose.msra.mxu0 0.0
    %3269 = vmatprep.subr.mxu0 0.0
    %3270 = vmatpush1.xpose.msra.mxu0 0.0
    %3271 = vmatprep.subr.mxu0 0.0
    %3272 = vmatpush1.xpose.msra.mxu0 0.0
    %3273 = vmatprep.subr.mxu0 0.0
    %3274 = vmatpush1.xpose.msra.mxu0 0.0
    %3275 = vmatprep.subr.mxu0 0.0
    %3276 = vmatpush1.xpose.msra.mxu0 0.0
    %3277 = vmatprep.subr.mxu0 0.0
    %3278 = vmatpush1.xpose.msra.mxu0 0.0
    %3279 = vmatprep.subr.mxu0 0.0
    %3280 = vmatpush1.xpose.msra.mxu0 0.0
    %3281 = vmatprep.subr.mxu0 0.0
    %3282 = vmatpush1.xpose.msra.mxu0 %v3249
    %3283 = vmatprep.subr.mxu0 0.0
    %3284 = vmatpush2.xpose.msra.mxu0 0.0
    %3285 = vmatprep.subr.mxu0 0.0
    %3286 = vmatpush2.xpose.msra.mxu0 0.0
    %3287 = vmatprep.subr.mxu0 0.0
    %3288 = vmatpush2.xpose.msra.mxu0 0.0
    %3289 = vmatprep.subr.mxu0 0.0
    %3290 = vmatpush2.xpose.msra.mxu0 0.0
    %3291 = vmatprep.subr.mxu0 0.0
    %3292 = vmatpush2.xpose.msra.mxu0 0.0
    %3293 = vmatprep.subr.mxu0 0.0
    %3294 = vmatpush2.xpose.msra.mxu0 0.0
    %3295 = vmatprep.subr.mxu0 0.0
    %3296 = vmatpush2.xpose.msra.mxu0 0.0
    %3297 = vmatprep.subr.mxu0 0.0
    %3298 = vmatpush2.xpose.msra.mxu0 0.0
    %3299 = vmatprep.subr.mxu0 0.0
    %3300 = vmatpush2.xpose.msra.mxu0 0.0
    %3301 = vmatprep.subr.mxu0 0.0
    %3302 = vmatpush2.xpose.msra.mxu0 0.0
    %3303 = vmatprep.subr.mxu0 0.0
    %3304 = vmatpush2.xpose.msra.mxu0 0.0
    %3305 = vmatprep.subr.mxu0 0.0
    %3306 = vmatpush2.xpose.msra.mxu0 0.0
    %3307 = vmatprep.subr.mxu0 0.0
    %3308 = vmatpush2.xpose.msra.mxu0 0.0
    %3309 = vmatprep.subr.mxu0 0.0
    %3310 = vmatpush2.xpose.msra.mxu0 0.0
    %3311 = vmatprep.subr.mxu0 0.0
    %3312 = vmatpush2.xpose.msra.mxu0 0.0
    %3313 = vmatprep.subr.mxu0 0.0
    %3314 = vmatpush2.xpose.msra.mxu0 0.0
    %3315 = vmatprep.mubr.f32.mxu0 0.0
    %3316 = vmatmul.mubr.f32.gmra.mxu0 %v3246
    %v3317 = vpop.f32.mrf.mxu0
    %v3318 = vadd.f32 %v159, %v3317
    %v3319 = vpop.f32.mrf.mxu0
    %3320 = vdwg.mxu0
    %v3322 = vsel %vm434, %v3082, 0
    %v3325 = vsel %vm434, %v3162, 0
    %3327 = vmatprep.subr.mxu0 0.0
    %3328 = vmatpush1.xpose.msra.mxu0 0.0
    %3329 = vmatprep.subr.mxu0 0.0
    %3330 = vmatpush1.xpose.msra.mxu0 0.0
    %3331 = vmatprep.subr.mxu0 0.0
    %3332 = vmatpush1.xpose.msra.mxu0 0.0
    %3333 = vmatprep.subr.mxu0 0.0
    %3334 = vmatpush1.xpose.msra.mxu0 0.0
    %3335 = vmatprep.subr.mxu0 0.0
    %3336 = vmatpush1.xpose.msra.mxu0 0.0
    %3337 = vmatprep.subr.mxu0 0.0
    %3338 = vmatpush1.xpose.msra.mxu0 0.0
    %3339 = vmatprep.subr.mxu0 0.0
    %3340 = vmatpush1.xpose.msra.mxu0 0.0
    %3341 = vmatprep.subr.mxu0 0.0
    %3342 = vmatpush1.xpose.msra.mxu0 0.0
    %3343 = vmatprep.subr.mxu0 0.0
    %3344 = vmatpush1.xpose.msra.mxu0 0.0
    %3345 = vmatprep.subr.mxu0 0.0
    %3346 = vmatpush1.xpose.msra.mxu0 0.0
    %3347 = vmatprep.subr.mxu0 0.0
    %3348 = vmatpush1.xpose.msra.mxu0 0.0
    %3349 = vmatprep.subr.mxu0 0.0
    %3350 = vmatpush1.xpose.msra.mxu0 0.0
    %3351 = vmatprep.subr.mxu0 0.0
    %3352 = vmatpush1.xpose.msra.mxu0 0.0
    %3353 = vmatprep.subr.mxu0 0.0
    %3354 = vmatpush1.xpose.msra.mxu0 0.0
    %3355 = vmatprep.subr.mxu0 0.0
    %3356 = vmatpush1.xpose.msra.mxu0 0.0
    %3357 = vmatprep.subr.mxu0 0.0
    %3358 = vmatpush1.xpose.msra.mxu0 %v3325
    %3359 = vmatprep.subr.mxu0 0.0
    %3360 = vmatpush2.xpose.msra.mxu0 0.0
    %3361 = vmatprep.subr.mxu0 0.0
    %3362 = vmatpush2.xpose.msra.mxu0 0.0
    %3363 = vmatprep.subr.mxu0 0.0
    %3364 = vmatpush2.xpose.msra.mxu0 0.0
    %3365 = vmatprep.subr.mxu0 0.0
    %3366 = vmatpush2.xpose.msra.mxu0 0.0
    %3367 = vmatprep.subr.mxu0 0.0
    %3368 = vmatpush2.xpose.msra.mxu0 0.0
    %3369 = vmatprep.subr.mxu0 0.0
    %3370 = vmatpush2.xpose.msra.mxu0 0.0
    %3371 = vmatprep.subr.mxu0 0.0
    %3372 = vmatpush2.xpose.msra.mxu0 0.0
    %3373 = vmatprep.subr.mxu0 0.0
    %3374 = vmatpush2.xpose.msra.mxu0 0.0
    %3375 = vmatprep.subr.mxu0 0.0
    %3376 = vmatpush2.xpose.msra.mxu0 0.0
    %3377 = vmatprep.subr.mxu0 0.0
    %3378 = vmatpush2.xpose.msra.mxu0 0.0
    %3379 = vmatprep.subr.mxu0 0.0
    %3380 = vmatpush2.xpose.msra.mxu0 0.0
    %3381 = vmatprep.subr.mxu0 0.0
    %3382 = vmatpush2.xpose.msra.mxu0 0.0
    %3383 = vmatprep.subr.mxu0 0.0
    %3384 = vmatpush2.xpose.msra.mxu0 0.0
    %3385 = vmatprep.subr.mxu0 0.0
    %3386 = vmatpush2.xpose.msra.mxu0 0.0
    %3387 = vmatprep.subr.mxu0 0.0
    %3388 = vmatpush2.xpose.msra.mxu0 0.0
    %3389 = vmatprep.subr.mxu0 0.0
    %3390 = vmatpush2.xpose.msra.mxu0 0.0
    %3391 = vmatprep.mubr.f32.mxu0 0.0
    %3392 = vmatmul.mubr.f32.gmra.mxu0 %v3322
    %v3393 = vpop.f32.mrf.mxu0
    %v3394 = vadd.f32 %v163, %v3393
    %v3395 = vpop.f32.mrf.mxu0
    %3396 = vdwg.mxu0
    %v3397 = vsel %vm434, %v3318, -inf
    %3398 = vmax.xlane.f32.xlu0 %v3397
    %v3399 = vpop.xlane.xlu0 %3398
    %v3400 = vsel %vm434, %v3394, -inf
    %3401 = vmax.xlane.f32.xlu0 %v3400
    %v3402 = vpop.xlane.xlu0 %3401
    %v3403 = vsub.f32 %v3318, %v3399
    %v3404 = vsub.f32 %v3394, %v3402
    %v3405 = vmul.f32 %v3403, 1.442695
    %v3406 = vpow.pop %v3405
    %v3407 = vmul.f32 %v3404, 1.442695
    %v3408 = vpow.pop %v3407
    %v3409 = vsel %vm434, %v3406, 0.0
    %3410 = vadd.xlane.f32.xlu0 %v3409
    %v3411 = vpop.xlane.xlu0 %3410
    %v3412 = vsel %vm434, %v3408, 0.0
    %3413 = vadd.xlane.f32.xlu0 %v3412
    %v3414 = vpop.xlane.xlu0 %3413
    %v3415 = vrcp.pop %v3411
    %v3416 = vmul.f32 %v3406, %v3415
    %v3417 = vrcp.pop %v3414
    %v3418 = vmul.f32 %v3408, %v3417
    %v3420 = vsel %vm434, %v3416, 0
    %3422 = vmatprep.subr.mxu0 0.0
    %3423 = vmatpush1.msra.mxu0 0.0
    %3424 = vmatprep.subr.mxu0 0.0
    %3425 = vmatpush1.msra.mxu0 0.0
    %3426 = vmatprep.subr.mxu0 0.0
    %3427 = vmatpush1.msra.mxu0 0.0
    %3428 = vmatprep.subr.mxu0 0.0
    %3429 = vmatpush1.msra.mxu0 0.0
    %3430 = vmatprep.subr.mxu0 0.0
    %3431 = vmatpush1.msra.mxu0 0.0
    %3432 = vmatprep.subr.mxu0 0.0
    %3433 = vmatpush1.msra.mxu0 0.0
    %3434 = vmatprep.subr.mxu0 0.0
    %3435 = vmatpush1.msra.mxu0 0.0
    %3436 = vmatprep.subr.mxu0 0.0
    %3437 = vmatpush1.msra.mxu0 0.0
    %3438 = vmatprep.subr.mxu0 0.0
    %3439 = vmatpush1.msra.mxu0 0.0
    %3440 = vmatprep.subr.mxu0 0.0
    %3441 = vmatpush1.msra.mxu0 0.0
    %3442 = vmatprep.subr.mxu0 0.0
    %3443 = vmatpush1.msra.mxu0 0.0
    %3444 = vmatprep.subr.mxu0 0.0
    %3445 = vmatpush1.msra.mxu0 0.0
    %3446 = vmatprep.subr.mxu0 0.0
    %3447 = vmatpush1.msra.mxu0 0.0
    %3448 = vmatprep.subr.mxu0 0.0
    %3449 = vmatpush1.msra.mxu0 0.0
    %3450 = vmatprep.subr.mxu0 0.0
    %3451 = vmatpush1.msra.mxu0 0.0
    %3452 = vmatprep.subr.mxu0 0.0
    %3453 = vmatpush1.msra.mxu0 %v3237
    %3454 = vmatprep.subr.mxu0 0.0
    %3455 = vmatpush2.msra.mxu0 0.0
    %3456 = vmatprep.subr.mxu0 0.0
    %3457 = vmatpush2.msra.mxu0 0.0
    %3458 = vmatprep.subr.mxu0 0.0
    %3459 = vmatpush2.msra.mxu0 0.0
    %3460 = vmatprep.subr.mxu0 0.0
    %3461 = vmatpush2.msra.mxu0 0.0
    %3462 = vmatprep.subr.mxu0 0.0
    %3463 = vmatpush2.msra.mxu0 0.0
    %3464 = vmatprep.subr.mxu0 0.0
    %3465 = vmatpush2.msra.mxu0 0.0
    %3466 = vmatprep.subr.mxu0 0.0
    %3467 = vmatpush2.msra.mxu0 0.0
    %3468 = vmatprep.subr.mxu0 0.0
    %3469 = vmatpush2.msra.mxu0 0.0
    %3470 = vmatprep.subr.mxu0 0.0
    %3471 = vmatpush2.msra.mxu0 0.0
    %3472 = vmatprep.subr.mxu0 0.0
    %3473 = vmatpush2.msra.mxu0 0.0
    %3474 = vmatprep.subr.mxu0 0.0
    %3475 = vmatpush2.msra.mxu0 0.0
    %3476 = vmatprep.subr.mxu0 0.0
    %3477 = vmatpush2.msra.mxu0 0.0
    %3478 = vmatprep.subr.mxu0 0.0
    %3479 = vmatpush2.msra.mxu0 0.0
    %3480 = vmatprep.subr.mxu0 0.0
    %3481 = vmatpush2.msra.mxu0 0.0
    %3482 = vmatprep.subr.mxu0 0.0
    %3483 = vmatpush2.msra.mxu0 0.0
    %3484 = vmatprep.subr.mxu0 0.0
    %3485 = vmatpush2.msra.mxu0 0.0
    %3486 = vmatprep.mubr.f32.mxu0 0.0
    %3487 = vmatmul.mubr.f32.gmra.mxu0 %v3420
    %v3488 = vpop.f32.mrf.mxu0
    %v3489 = vadd.f32 0.0, %v3488
    %v3490 = vpop.f32.mrf.mxu0
    %3491 = vdwg.mxu0
    %v3493 = vsel %vm434, %v3418, 0
    %3495 = vmatprep.subr.mxu0 0.0
    %3496 = vmatpush1.msra.mxu0 0.0
    %3497 = vmatprep.subr.mxu0 0.0
    %3498 = vmatpush1.msra.mxu0 0.0
    %3499 = vmatprep.subr.mxu0 0.0
    %3500 = vmatpush1.msra.mxu0 0.0
    %3501 = vmatprep.subr.mxu0 0.0
    %3502 = vmatpush1.msra.mxu0 0.0
    %3503 = vmatprep.subr.mxu0 0.0
    %3504 = vmatpush1.msra.mxu0 0.0
    %3505 = vmatprep.subr.mxu0 0.0
    %3506 = vmatpush1.msra.mxu0 0.0
    %3507 = vmatprep.subr.mxu0 0.0
    %3508 = vmatpush1.msra.mxu0 0.0
    %3509 = vmatprep.subr.mxu0 0.0
    %3510 = vmatpush1.msra.mxu0 0.0
    %3511 = vmatprep.subr.mxu0 0.0
    %3512 = vmatpush1.msra.mxu0 0.0
    %3513 = vmatprep.subr.mxu0 0.0
    %3514 = vmatpush1.msra.mxu0 0.0
    %3515 = vmatprep.subr.mxu0 0.0
    %3516 = vmatpush1.msra.mxu0 0.0
    %3517 = vmatprep.subr.mxu0 0.0
    %3518 = vmatpush1.msra.mxu0 0.0
    %3519 = vmatprep.subr.mxu0 0.0
    %3520 = vmatpush1.msra.mxu0 0.0
    %3521 = vmatprep.subr.mxu0 0.0
    %3522 = vmatpush1.msra.mxu0 0.0
    %3523 = vmatprep.subr.mxu0 0.0
    %3524 = vmatpush1.msra.mxu0 0.0
    %3525 = vmatprep.subr.mxu0 0.0
    %3526 = vmatpush1.msra.mxu0 %v3242
    %3527 = vmatprep.subr.mxu0 0.0
    %3528 = vmatpush2.msra.mxu0 0.0
    %3529 = vmatprep.subr.mxu0 0.0
    %3530 = vmatpush2.msra.mxu0 0.0
    %3531 = vmatprep.subr.mxu0 0.0
    %3532 = vmatpush2.msra.mxu0 0.0
    %3533 = vmatprep.subr.mxu0 0.0
    %3534 = vmatpush2.msra.mxu0 0.0
    %3535 = vmatprep.subr.mxu0 0.0
    %3536 = vmatpush2.msra.mxu0 0.0
    %3537 = vmatprep.subr.mxu0 0.0
    %3538 = vmatpush2.msra.mxu0 0.0
    %3539 = vmatprep.subr.mxu0 0.0
    %3540 = vmatpush2.msra.mxu0 0.0
    %3541 = vmatprep.subr.mxu0 0.0
    %3542 = vmatpush2.msra.mxu0 0.0
    %3543 = vmatprep.subr.mxu0 0.0
    %3544 = vmatpush2.msra.mxu0 0.0
    %3545 = vmatprep.subr.mxu0 0.0
    %3546 = vmatpush2.msra.mxu0 0.0
    %3547 = vmatprep.subr.mxu0 0.0
    %3548 = vmatpush2.msra.mxu0 0.0
    %3549 = vmatprep.subr.mxu0 0.0
    %3550 = vmatpush2.msra.mxu0 0.0
    %3551 = vmatprep.subr.mxu0 0.0
    %3552 = vmatpush2.msra.mxu0 0.0
    %3553 = vmatprep.subr.mxu0 0.0
    %3554 = vmatpush2.msra.mxu0 0.0
    %3555 = vmatprep.subr.mxu0 0.0
    %3556 = vmatpush2.msra.mxu0 0.0
    %3557 = vmatprep.subr.mxu0 0.0
    %3558 = vmatpush2.msra.mxu0 0.0
    %3559 = vmatprep.mubr.f32.mxu0 0.0
    %3560 = vmatmul.mubr.f32.gmra.mxu0 %v3493
    %v3561 = vpop.f32.mrf.mxu0
    %v3562 = vadd.f32 0.0, %v3561
    %v3563 = vpop.f32.mrf.mxu0
    %3564 = vdwg.mxu0
    %s3565 = scalar_lea.vmem %s7, 32
    %v3566 = vld [vmem:[%s3565] sm:$0xff]
    %v3568 = vsel %vm434, %v3489, 0
    %v3571 = vsel %vm434, %v3562, 0
    %3573 = vmatprep.subr.mxu0 0.0
    %3574 = vmatpush1.msra.mxu0 0.0
    %3575 = vmatprep.subr.mxu0 0.0
    %3576 = vmatpush1.msra.mxu0 0.0
    %3577 = vmatprep.subr.mxu0 0.0
    %3578 = vmatpush1.msra.mxu0 0.0
    %3579 = vmatprep.subr.mxu0 0.0
    %3580 = vmatpush1.msra.mxu0 0.0
    %3581 = vmatprep.subr.mxu0 0.0
    %3582 = vmatpush1.msra.mxu0 0.0
    %3583 = vmatprep.subr.mxu0 0.0
    %3584 = vmatpush1.msra.mxu0 0.0
    %3585 = vmatprep.subr.mxu0 0.0
    %3586 = vmatpush1.msra.mxu0 0.0
    %3587 = vmatprep.subr.mxu0 0.0
    %3588 = vmatpush1.msra.mxu0 0.0
    %3589 = vmatprep.subr.mxu0 0.0
    %3590 = vmatpush1.msra.mxu0 0.0
    %3591 = vmatprep.subr.mxu0 0.0
    %3592 = vmatpush1.msra.mxu0 0.0
    %3593 = vmatprep.subr.mxu0 0.0
    %3594 = vmatpush1.msra.mxu0 0.0
    %3595 = vmatprep.subr.mxu0 0.0
    %3596 = vmatpush1.msra.mxu0 0.0
    %3597 = vmatprep.subr.mxu0 0.0
    %3598 = vmatpush1.msra.mxu0 0.0
    %3599 = vmatprep.subr.mxu0 0.0
    %3600 = vmatpush1.msra.mxu0 0.0
    %3601 = vmatprep.subr.mxu0 0.0
    %3602 = vmatpush1.msra.mxu0 0.0
    %3603 = vmatprep.subr.mxu0 0.0
    %3604 = vmatpush1.msra.mxu0 %v3566
    %3605 = vmatprep.subr.mxu0 0.0
    %3606 = vmatpush2.msra.mxu0 0.0
    %3607 = vmatprep.subr.mxu0 0.0
    %3608 = vmatpush2.msra.mxu0 0.0
    %3609 = vmatprep.subr.mxu0 0.0
    %3610 = vmatpush2.msra.mxu0 0.0
    %3611 = vmatprep.subr.mxu0 0.0
    %3612 = vmatpush2.msra.mxu0 0.0
    %3613 = vmatprep.subr.mxu0 0.0
    %3614 = vmatpush2.msra.mxu0 0.0
    %3615 = vmatprep.subr.mxu0 0.0
    %3616 = vmatpush2.msra.mxu0 0.0
    %3617 = vmatprep.subr.mxu0 0.0
    %3618 = vmatpush2.msra.mxu0 0.0
    %3619 = vmatprep.subr.mxu0 0.0
    %3620 = vmatpush2.msra.mxu0 0.0
    %3621 = vmatprep.subr.mxu0 0.0
    %3622 = vmatpush2.msra.mxu0 0.0
    %3623 = vmatprep.subr.mxu0 0.0
    %3624 = vmatpush2.msra.mxu0 0.0
    %3625 = vmatprep.subr.mxu0 0.0
    %3626 = vmatpush2.msra.mxu0 0.0
    %3627 = vmatprep.subr.mxu0 0.0
    %3628 = vmatpush2.msra.mxu0 0.0
    %3629 = vmatprep.subr.mxu0 0.0
    %3630 = vmatpush2.msra.mxu0 0.0
    %3631 = vmatprep.subr.mxu0 0.0
    %3632 = vmatpush2.msra.mxu0 0.0
    %3633 = vmatprep.subr.mxu0 0.0
    %3634 = vmatpush2.msra.mxu0 0.0
    %3635 = vmatprep.subr.mxu0 0.0
    %3636 = vmatpush2.msra.mxu0 0.0
    %3637 = vmatprep.mubr.f32.mxu0 0.0
    %3638 = vmatmul.mubr.f32.gmra.mxu0 %v3568
    %v3639 = vpop.f32.mrf.mxu0
    %v3640 = vadd.f32 0.0, %v3639
    %v3641 = vpop.f32.mrf.mxu0
    %3642 = vmatprep.mubr.f32.mxu0 0.0
    %3643 = vmatmul.mubr.f32.gmra.mxu0 %v3571
    %v3644 = vpop.f32.mrf.mxu0
    %v3645 = vadd.f32 0.0, %v3644
    %v3646 = vpop.f32.mrf.mxu0
    %3647 = vdwg.mxu0
    %v3648 = vadd.f32 %v2974, %v3640
    %v3649 = vadd.f32 %v2975, %v3645
    %s3650 = scalar_lea.vmem %s4, 160
    %v3651 = vld [vmem:[%s3650] sm:$0xff]
    %v3652 = vld [vmem:[%s3650 + $0x8] sm:$0xff]
    %v3653 = vld [vmem:[%s3650 + $0x10] sm:$0xff]
    %v3654 = vld [vmem:[%s3650 + $0x18] sm:$0xff]
    %3655 = vmatprep.subr.mxu0 0.0
    %3656 = vmatpush1.msra.mxu0 0.0
    %3657 = vmatprep.subr.mxu0 0.0
    %3658 = vmatpush1.msra.mxu0 0.0
    %3659 = vmatprep.subr.mxu0 0.0
    %3660 = vmatpush1.msra.mxu0 0.0
    %3661 = vmatprep.subr.mxu0 0.0
    %3662 = vmatpush1.msra.mxu0 0.0
    %3663 = vmatprep.subr.mxu0 0.0
    %3664 = vmatpush1.msra.mxu0 0.0
    %3665 = vmatprep.subr.mxu0 0.0
    %3666 = vmatpush1.msra.mxu0 0.0
    %3667 = vmatprep.subr.mxu0 0.0
    %3668 = vmatpush1.msra.mxu0 0.0
    %3669 = vmatprep.subr.mxu0 0.0
    %3670 = vmatpush1.msra.mxu0 0.0
    %3671 = vmatprep.subr.mxu0 0.0
    %3672 = vmatpush1.msra.mxu0 0.0
    %3673 = vmatprep.subr.mxu0 0.0
    %3674 = vmatpush1.msra.mxu0 0.0
    %3675 = vmatprep.subr.mxu0 0.0
    %3676 = vmatpush1.msra.mxu0 0.0
    %3677 = vmatprep.subr.mxu0 0.0
    %3678 = vmatpush1.msra.mxu0 0.0
    %3679 = vmatprep.subr.mxu0 0.0
    %3680 = vmatpush1.msra.mxu0 %v3654
    %3681 = vmatprep.subr.mxu0 0.0
    %3682 = vmatpush1.msra.mxu0 %v3653
    %3683 = vmatprep.subr.mxu0 0.0
    %3684 = vmatpush1.msra.mxu0 %v3652
    %3685 = vmatprep.subr.mxu0 0.0
    %3686 = vmatpush1.msra.mxu0 %v3651
    %3687 = vmatprep.subr.mxu0 0.0
    %3688 = vmatpush2.msra.mxu0 0.0
    %3689 = vmatprep.subr.mxu0 0.0
    %3690 = vmatpush2.msra.mxu0 0.0
    %3691 = vmatprep.subr.mxu0 0.0
    %3692 = vmatpush2.msra.mxu0 0.0
    %3693 = vmatprep.subr.mxu0 0.0
    %3694 = vmatpush2.msra.mxu0 0.0
    %3695 = vmatprep.subr.mxu0 0.0
    %3696 = vmatpush2.msra.mxu0 0.0
    %3697 = vmatprep.subr.mxu0 0.0
    %3698 = vmatpush2.msra.mxu0 0.0
    %3699 = vmatprep.subr.mxu0 0.0
    %3700 = vmatpush2.msra.mxu0 0.0
    %3701 = vmatprep.subr.mxu0 0.0
    %3702 = vmatpush2.msra.mxu0 0.0
    %3703 = vmatprep.subr.mxu0 0.0
    %3704 = vmatpush2.msra.mxu0 0.0
    %3705 = vmatprep.subr.mxu0 0.0
    %3706 = vmatpush2.msra.mxu0 0.0
    %3707 = vmatprep.subr.mxu0 0.0
    %3708 = vmatpush2.msra.mxu0 0.0
    %3709 = vmatprep.subr.mxu0 0.0
    %3710 = vmatpush2.msra.mxu0 0.0
    %3711 = vmatprep.subr.mxu0 0.0
    %3712 = vmatpush2.msra.mxu0 0.0
    %3713 = vmatprep.subr.mxu0 0.0
    %3714 = vmatpush2.msra.mxu0 0.0
    %3715 = vmatprep.subr.mxu0 0.0
    %3716 = vmatpush2.msra.mxu0 0.0
    %3717 = vmatprep.subr.mxu0 0.0
    %3718 = vmatpush2.msra.mxu0 0.0
    %3719 = vmatprep.mubr.f32.mxu0 0.0
    %3720 = vmatmul.mubr.f32.gmra.mxu0 %v3005
    %v3721 = vpop.f32.mrf.mxu0
    %v3722 = vadd.f32 0.0, %v3721
    %v3723 = vpop.f32.mrf.mxu0
    %3724 = vmatprep.mubr.f32.mxu0 0.0
    %3725 = vmatmul.mubr.f32.gmra.mxu0 %v3008
    %v3726 = vpop.f32.mrf.mxu0
    %v3727 = vadd.f32 0.0, %v3726
    %v3728 = vpop.f32.mrf.mxu0
    %3729 = vdwg.mxu0
    %s3730 = scalar_lea.vmem %s5, 160
    %v3731 = vld [vmem:[%s3730] sm:$0xff]
    %v3732 = vld [vmem:[%s3730 + $0x8] sm:$0xff]
    %v3733 = vld [vmem:[%s3730 + $0x10] sm:$0xff]
    %v3734 = vld [vmem:[%s3730 + $0x18] sm:$0xff]
    %3735 = vmatprep.subr.mxu0 0.0
    %3736 = vmatpush1.msra.mxu0 0.0
    %3737 = vmatprep.subr.mxu0 0.0
    %3738 = vmatpush1.msra.mxu0 0.0
    %3739 = vmatprep.subr.mxu0 0.0
    %3740 = vmatpush1.msra.mxu0 0.0
    %3741 = vmatprep.subr.mxu0 0.0
    %3742 = vmatpush1.msra.mxu0 0.0
    %3743 = vmatprep.subr.mxu0 0.0
    %3744 = vmatpush1.msra.mxu0 0.0
    %3745 = vmatprep.subr.mxu0 0.0
    %3746 = vmatpush1.msra.mxu0 0.0
    %3747 = vmatprep.subr.mxu0 0.0
    %3748 = vmatpush1.msra.mxu0 0.0
    %3749 = vmatprep.subr.mxu0 0.0
    %3750 = vmatpush1.msra.mxu0 0.0
    %3751 = vmatprep.subr.mxu0 0.0
    %3752 = vmatpush1.msra.mxu0 0.0
    %3753 = vmatprep.subr.mxu0 0.0
    %3754 = vmatpush1.msra.mxu0 0.0
    %3755 = vmatprep.subr.mxu0 0.0
    %3756 = vmatpush1.msra.mxu0 0.0
    %3757 = vmatprep.subr.mxu0 0.0
    %3758 = vmatpush1.msra.mxu0 0.0
    %3759 = vmatprep.subr.mxu0 0.0
    %3760 = vmatpush1.msra.mxu0 %v3734
    %3761 = vmatprep.subr.mxu0 0.0
    %3762 = vmatpush1.msra.mxu0 %v3733
    %3763 = vmatprep.subr.mxu0 0.0
    %3764 = vmatpush1.msra.mxu0 %v3732
    %3765 = vmatprep.subr.mxu0 0.0
    %3766 = vmatpush1.msra.mxu0 %v3731
    %3767 = vmatprep.subr.mxu0 0.0
    %3768 = vmatpush2.msra.mxu0 0.0
    %3769 = vmatprep.subr.mxu0 0.0
    %3770 = vmatpush2.msra.mxu0 0.0
    %3771 = vmatprep.subr.mxu0 0.0
    %3772 = vmatpush2.msra.mxu0 0.0
    %3773 = vmatprep.subr.mxu0 0.0
    %3774 = vmatpush2.msra.mxu0 0.0
    %3775 = vmatprep.subr.mxu0 0.0
    %3776 = vmatpush2.msra.mxu0 0.0
    %3777 = vmatprep.subr.mxu0 0.0
    %3778 = vmatpush2.msra.mxu0 0.0
    %3779 = vmatprep.subr.mxu0 0.0
    %3780 = vmatpush2.msra.mxu0 0.0
    %3781 = vmatprep.subr.mxu0 0.0
    %3782 = vmatpush2.msra.mxu0 0.0
    %3783 = vmatprep.subr.mxu0 0.0
    %3784 = vmatpush2.msra.mxu0 0.0
    %3785 = vmatprep.subr.mxu0 0.0
    %3786 = vmatpush2.msra.mxu0 0.0
    %3787 = vmatprep.subr.mxu0 0.0
    %3788 = vmatpush2.msra.mxu0 0.0
    %3789 = vmatprep.subr.mxu0 0.0
    %3790 = vmatpush2.msra.mxu0 0.0
    %3791 = vmatprep.subr.mxu0 0.0
    %3792 = vmatpush2.msra.mxu0 0.0
    %3793 = vmatprep.subr.mxu0 0.0
    %3794 = vmatpush2.msra.mxu0 0.0
    %3795 = vmatprep.subr.mxu0 0.0
    %3796 = vmatpush2.msra.mxu0 0.0
    %3797 = vmatprep.subr.mxu0 0.0
    %3798 = vmatpush2.msra.mxu0 0.0
    %3799 = vmatprep.mubr.f32.mxu0 0.0
    %3800 = vmatmul.mubr.f32.gmra.mxu0 %v3005
    %v3801 = vpop.f32.mrf.mxu0
    %v3802 = vadd.f32 0.0, %v3801
    %v3803 = vpop.f32.mrf.mxu0
    %3804 = vmatprep.mubr.f32.mxu0 0.0
    %3805 = vmatmul.mubr.f32.gmra.mxu0 %v3008
    %v3806 = vpop.f32.mrf.mxu0
    %v3807 = vadd.f32 0.0, %v3806
    %v3808 = vpop.f32.mrf.mxu0
    %3809 = vdwg.mxu0
    %s3810 = scalar_lea.vmem %s6, 160
    %v3811 = vld [vmem:[%s3810] sm:$0xff]
    %v3812 = vld [vmem:[%s3810 + $0x8] sm:$0xff]
    %v3813 = vld [vmem:[%s3810 + $0x10] sm:$0xff]
    %v3814 = vld [vmem:[%s3810 + $0x18] sm:$0xff]
    %3815 = vmatprep.subr.mxu0 0.0
    %3816 = vmatpush1.msra.mxu0 0.0
    %3817 = vmatprep.subr.mxu0 0.0
    %3818 = vmatpush1.msra.mxu0 0.0
    %3819 = vmatprep.subr.mxu0 0.0
    %3820 = vmatpush1.msra.mxu0 0.0
    %3821 = vmatprep.subr.mxu0 0.0
    %3822 = vmatpush1.msra.mxu0 0.0
    %3823 = vmatprep.subr.mxu0 0.0
    %3824 = vmatpush1.msra.mxu0 0.0
    %3825 = vmatprep.subr.mxu0 0.0
    %3826 = vmatpush1.msra.mxu0 0.0
    %3827 = vmatprep.subr.mxu0 0.0
    %3828 = vmatpush1.msra.mxu0 0.0
    %3829 = vmatprep.subr.mxu0 0.0
    %3830 = vmatpush1.msra.mxu0 0.0
    %3831 = vmatprep.subr.mxu0 0.0
    %3832 = vmatpush1.msra.mxu0 0.0
    %3833 = vmatprep.subr.mxu0 0.0
    %3834 = vmatpush1.msra.mxu0 0.0
    %3835 = vmatprep.subr.mxu0 0.0
    %3836 = vmatpush1.msra.mxu0 0.0
    %3837 = vmatprep.subr.mxu0 0.0
    %3838 = vmatpush1.msra.mxu0 0.0
    %3839 = vmatprep.subr.mxu0 0.0
    %3840 = vmatpush1.msra.mxu0 %v3814
    %3841 = vmatprep.subr.mxu0 0.0
    %3842 = vmatpush1.msra.mxu0 %v3813
    %3843 = vmatprep.subr.mxu0 0.0
    %3844 = vmatpush1.msra.mxu0 %v3812
    %3845 = vmatprep.subr.mxu0 0.0
    %3846 = vmatpush1.msra.mxu0 %v3811
    %3847 = vmatprep.subr.mxu0 0.0
    %3848 = vmatpush2.msra.mxu0 0.0
    %3849 = vmatprep.subr.mxu0 0.0
    %3850 = vmatpush2.msra.mxu0 0.0
    %3851 = vmatprep.subr.mxu0 0.0
    %3852 = vmatpush2.msra.mxu0 0.0
    %3853 = vmatprep.subr.mxu0 0.0
    %3854 = vmatpush2.msra.mxu0 0.0
    %3855 = vmatprep.subr.mxu0 0.0
    %3856 = vmatpush2.msra.mxu0 0.0
    %3857 = vmatprep.subr.mxu0 0.0
    %3858 = vmatpush2.msra.mxu0 0.0
    %3859 = vmatprep.subr.mxu0 0.0
    %3860 = vmatpush2.msra.mxu0 0.0
    %3861 = vmatprep.subr.mxu0 0.0
    %3862 = vmatpush2.msra.mxu0 0.0
    %3863 = vmatprep.subr.mxu0 0.0
    %3864 = vmatpush2.msra.mxu0 0.0
    %3865 = vmatprep.subr.mxu0 0.0
    %3866 = vmatpush2.msra.mxu0 0.0
    %3867 = vmatprep.subr.mxu0 0.0
    %3868 = vmatpush2.msra.mxu0 0.0
    %3869 = vmatprep.subr.mxu0 0.0
    %3870 = vmatpush2.msra.mxu0 0.0
    %3871 = vmatprep.subr.mxu0 0.0
    %3872 = vmatpush2.msra.mxu0 0.0
    %3873 = vmatprep.subr.mxu0 0.0
    %3874 = vmatpush2.msra.mxu0 0.0
    %3875 = vmatprep.subr.mxu0 0.0
    %3876 = vmatpush2.msra.mxu0 0.0
    %3877 = vmatprep.subr.mxu0 0.0
    %3878 = vmatpush2.msra.mxu0 0.0
    %3879 = vmatprep.mubr.f32.mxu0 0.0
    %3880 = vmatmul.mubr.f32.gmra.mxu0 %v3005
    %v3881 = vpop.f32.mrf.mxu0
    %v3882 = vadd.f32 0.0, %v3881
    %v3883 = vpop.f32.mrf.mxu0
    %3884 = vmatprep.mubr.f32.mxu0 0.0
    %3885 = vmatmul.mubr.f32.gmra.mxu0 %v3008
    %v3886 = vpop.f32.mrf.mxu0
    %v3887 = vadd.f32 0.0, %v3886
    %v3888 = vpop.f32.mrf.mxu0
    %3889 = vdwg.mxu0
    %v3891 = vsel %vm434, %v3722, 0
    %v3894 = vsel %vm434, %v3802, 0
    %3896 = vmatprep.subr.mxu0 0.0
    %3897 = vmatpush1.xpose.msra.mxu0 0.0
    %3898 = vmatprep.subr.mxu0 0.0
    %3899 = vmatpush1.xpose.msra.mxu0 0.0
    %3900 = vmatprep.subr.mxu0 0.0
    %3901 = vmatpush1.xpose.msra.mxu0 0.0
    %3902 = vmatprep.subr.mxu0 0.0
    %3903 = vmatpush1.xpose.msra.mxu0 0.0
    %3904 = vmatprep.subr.mxu0 0.0
    %3905 = vmatpush1.xpose.msra.mxu0 0.0
    %3906 = vmatprep.subr.mxu0 0.0
    %3907 = vmatpush1.xpose.msra.mxu0 0.0
    %3908 = vmatprep.subr.mxu0 0.0
    %3909 = vmatpush1.xpose.msra.mxu0 0.0
    %3910 = vmatprep.subr.mxu0 0.0
    %3911 = vmatpush1.xpose.msra.mxu0 0.0
    %3912 = vmatprep.subr.mxu0 0.0
    %3913 = vmatpush1.xpose.msra.mxu0 0.0
    %3914 = vmatprep.subr.mxu0 0.0
    %3915 = vmatpush1.xpose.msra.mxu0 0.0
    %3916 = vmatprep.subr.mxu0 0.0
    %3917 = vmatpush1.xpose.msra.mxu0 0.0
    %3918 = vmatprep.subr.mxu0 0.0
    %3919 = vmatpush1.xpose.msra.mxu0 0.0
    %3920 = vmatprep.subr.mxu0 0.0
    %3921 = vmatpush1.xpose.msra.mxu0 0.0
    %3922 = vmatprep.subr.mxu0 0.0
    %3923 = vmatpush1.xpose.msra.mxu0 0.0
    %3924 = vmatprep.subr.mxu0 0.0
    %3925 = vmatpush1.xpose.msra.mxu0 0.0
    %3926 = vmatprep.subr.mxu0 0.0
    %3927 = vmatpush1.xpose.msra.mxu0 %v3894
    %3928 = vmatprep.subr.mxu0 0.0
    %3929 = vmatpush2.xpose.msra.mxu0 0.0
    %3930 = vmatprep.subr.mxu0 0.0
    %3931 = vmatpush2.xpose.msra.mxu0 0.0
    %3932 = vmatprep.subr.mxu0 0.0
    %3933 = vmatpush2.xpose.msra.mxu0 0.0
    %3934 = vmatprep.subr.mxu0 0.0
    %3935 = vmatpush2.xpose.msra.mxu0 0.0
    %3936 = vmatprep.subr.mxu0 0.0
    %3937 = vmatpush2.xpose.msra.mxu0 0.0
    %3938 = vmatprep.subr.mxu0 0.0
    %3939 = vmatpush2.xpose.msra.mxu0 0.0
    %3940 = vmatprep.subr.mxu0 0.0
    %3941 = vmatpush2.xpose.msra.mxu0 0.0
    %3942 = vmatprep.subr.mxu0 0.0
    %3943 = vmatpush2.xpose.msra.mxu0 0.0
    %3944 = vmatprep.subr.mxu0 0.0
    %3945 = vmatpush2.xpose.msra.mxu0 0.0
    %3946 = vmatprep.subr.mxu0 0.0
    %3947 = vmatpush2.xpose.msra.mxu0 0.0
    %3948 = vmatprep.subr.mxu0 0.0
    %3949 = vmatpush2.xpose.msra.mxu0 0.0
    %3950 = vmatprep.subr.mxu0 0.0
    %3951 = vmatpush2.xpose.msra.mxu0 0.0
    %3952 = vmatprep.subr.mxu0 0.0
    %3953 = vmatpush2.xpose.msra.mxu0 0.0
    %3954 = vmatprep.subr.mxu0 0.0
    %3955 = vmatpush2.xpose.msra.mxu0 0.0
    %3956 = vmatprep.subr.mxu0 0.0
    %3957 = vmatpush2.xpose.msra.mxu0 0.0
    %3958 = vmatprep.subr.mxu0 0.0
    %3959 = vmatpush2.xpose.msra.mxu0 0.0
    %3960 = vmatprep.mubr.f32.mxu0 0.0
    %3961 = vmatmul.mubr.f32.gmra.mxu0 %v3891
    %v3962 = vpop.f32.mrf.mxu0
    %v3963 = vadd.f32 %v159, %v3962
    %v3964 = vpop.f32.mrf.mxu0
    %3965 = vdwg.mxu0
    %v3967 = vsel %vm434, %v3727, 0
    %v3970 = vsel %vm434, %v3807, 0
    %3972 = vmatprep.subr.mxu0 0.0
    %3973 = vmatpush1.xpose.msra.mxu0 0.0
    %3974 = vmatprep.subr.mxu0 0.0
    %3975 = vmatpush1.xpose.msra.mxu0 0.0
    %3976 = vmatprep.subr.mxu0 0.0
    %3977 = vmatpush1.xpose.msra.mxu0 0.0
    %3978 = vmatprep.subr.mxu0 0.0
    %3979 = vmatpush1.xpose.msra.mxu0 0.0
    %3980 = vmatprep.subr.mxu0 0.0
    %3981 = vmatpush1.xpose.msra.mxu0 0.0
    %3982 = vmatprep.subr.mxu0 0.0
    %3983 = vmatpush1.xpose.msra.mxu0 0.0
    %3984 = vmatprep.subr.mxu0 0.0
    %3985 = vmatpush1.xpose.msra.mxu0 0.0
    %3986 = vmatprep.subr.mxu0 0.0
    %3987 = vmatpush1.xpose.msra.mxu0 0.0
    %3988 = vmatprep.subr.mxu0 0.0
    %3989 = vmatpush1.xpose.msra.mxu0 0.0
    %3990 = vmatprep.subr.mxu0 0.0
    %3991 = vmatpush1.xpose.msra.mxu0 0.0
    %3992 = vmatprep.subr.mxu0 0.0
    %3993 = vmatpush1.xpose.msra.mxu0 0.0
    %3994 = vmatprep.subr.mxu0 0.0
    %3995 = vmatpush1.xpose.msra.mxu0 0.0
    %3996 = vmatprep.subr.mxu0 0.0
    %3997 = vmatpush1.xpose.msra.mxu0 0.0
    %3998 = vmatprep.subr.mxu0 0.0
    %3999 = vmatpush1.xpose.msra.mxu0 0.0
    %4000 = vmatprep.subr.mxu0 0.0
    %4001 = vmatpush1.xpose.msra.mxu0 0.0
    %4002 = vmatprep.subr.mxu0 0.0
    %4003 = vmatpush1.xpose.msra.mxu0 %v3970
    %4004 = vmatprep.subr.mxu0 0.0
    %4005 = vmatpush2.xpose.msra.mxu0 0.0
    %4006 = vmatprep.subr.mxu0 0.0
    %4007 = vmatpush2.xpose.msra.mxu0 0.0
    %4008 = vmatprep.subr.mxu0 0.0
    %4009 = vmatpush2.xpose.msra.mxu0 0.0
    %4010 = vmatprep.subr.mxu0 0.0
    %4011 = vmatpush2.xpose.msra.mxu0 0.0
    %4012 = vmatprep.subr.mxu0 0.0
    %4013 = vmatpush2.xpose.msra.mxu0 0.0
    %4014 = vmatprep.subr.mxu0 0.0
    %4015 = vmatpush2.xpose.msra.mxu0 0.0
    %4016 = vmatprep.subr.mxu0 0.0
    %4017 = vmatpush2.xpose.msra.mxu0 0.0
    %4018 = vmatprep.subr.mxu0 0.0
    %4019 = vmatpush2.xpose.msra.mxu0 0.0
    %4020 = vmatprep.subr.mxu0 0.0
    %4021 = vmatpush2.xpose.msra.mxu0 0.0
    %4022 = vmatprep.subr.mxu0 0.0
    %4023 = vmatpush2.xpose.msra.mxu0 0.0
    %4024 = vmatprep.subr.mxu0 0.0
    %4025 = vmatpush2.xpose.msra.mxu0 0.0
    %4026 = vmatprep.subr.mxu0 0.0
    %4027 = vmatpush2.xpose.msra.mxu0 0.0
    %4028 = vmatprep.subr.mxu0 0.0
    %4029 = vmatpush2.xpose.msra.mxu0 0.0
    %4030 = vmatprep.subr.mxu0 0.0
    %4031 = vmatpush2.xpose.msra.mxu0 0.0
    %4032 = vmatprep.subr.mxu0 0.0
    %4033 = vmatpush2.xpose.msra.mxu0 0.0
    %4034 = vmatprep.subr.mxu0 0.0
    %4035 = vmatpush2.xpose.msra.mxu0 0.0
    %4036 = vmatprep.mubr.f32.mxu0 0.0
    %4037 = vmatmul.mubr.f32.gmra.mxu0 %v3967
    %v4038 = vpop.f32.mrf.mxu0
    %v4039 = vadd.f32 %v163, %v4038
    %v4040 = vpop.f32.mrf.mxu0
    %4041 = vdwg.mxu0
    %v4042 = vsel %vm434, %v3963, -inf
    %4043 = vmax.xlane.f32.xlu0 %v4042
    %v4044 = vpop.xlane.xlu0 %4043
    %v4045 = vsel %vm434, %v4039, -inf
    %4046 = vmax.xlane.f32.xlu0 %v4045
    %v4047 = vpop.xlane.xlu0 %4046
    %v4048 = vsub.f32 %v3963, %v4044
    %v4049 = vsub.f32 %v4039, %v4047
    %v4050 = vmul.f32 %v4048, 1.442695
    %v4051 = vpow.pop %v4050
    %v4052 = vmul.f32 %v4049, 1.442695
    %v4053 = vpow.pop %v4052
    %v4054 = vsel %vm434, %v4051, 0.0
    %4055 = vadd.xlane.f32.xlu0 %v4054
    %v4056 = vpop.xlane.xlu0 %4055
    %v4057 = vsel %vm434, %v4053, 0.0
    %4058 = vadd.xlane.f32.xlu0 %v4057
    %v4059 = vpop.xlane.xlu0 %4058
    %v4060 = vrcp.pop %v4056
    %v4061 = vmul.f32 %v4051, %v4060
    %v4062 = vrcp.pop %v4059
    %v4063 = vmul.f32 %v4053, %v4062
    %v4065 = vsel %vm434, %v4061, 0
    %4067 = vmatprep.subr.mxu0 0.0
    %4068 = vmatpush1.msra.mxu0 0.0
    %4069 = vmatprep.subr.mxu0 0.0
    %4070 = vmatpush1.msra.mxu0 0.0
    %4071 = vmatprep.subr.mxu0 0.0
    %4072 = vmatpush1.msra.mxu0 0.0
    %4073 = vmatprep.subr.mxu0 0.0
    %4074 = vmatpush1.msra.mxu0 0.0
    %4075 = vmatprep.subr.mxu0 0.0
    %4076 = vmatpush1.msra.mxu0 0.0
    %4077 = vmatprep.subr.mxu0 0.0
    %4078 = vmatpush1.msra.mxu0 0.0
    %4079 = vmatprep.subr.mxu0 0.0
    %4080 = vmatpush1.msra.mxu0 0.0
    %4081 = vmatprep.subr.mxu0 0.0
    %4082 = vmatpush1.msra.mxu0 0.0
    %4083 = vmatprep.subr.mxu0 0.0
    %4084 = vmatpush1.msra.mxu0 0.0
    %4085 = vmatprep.subr.mxu0 0.0
    %4086 = vmatpush1.msra.mxu0 0.0
    %4087 = vmatprep.subr.mxu0 0.0
    %4088 = vmatpush1.msra.mxu0 0.0
    %4089 = vmatprep.subr.mxu0 0.0
    %4090 = vmatpush1.msra.mxu0 0.0
    %4091 = vmatprep.subr.mxu0 0.0
    %4092 = vmatpush1.msra.mxu0 0.0
    %4093 = vmatprep.subr.mxu0 0.0
    %4094 = vmatpush1.msra.mxu0 0.0
    %4095 = vmatprep.subr.mxu0 0.0
    %4096 = vmatpush1.msra.mxu0 0.0
    %4097 = vmatprep.subr.mxu0 0.0
    %4098 = vmatpush1.msra.mxu0 %v3882
    %4099 = vmatprep.subr.mxu0 0.0
    %4100 = vmatpush2.msra.mxu0 0.0
    %4101 = vmatprep.subr.mxu0 0.0
    %4102 = vmatpush2.msra.mxu0 0.0
    %4103 = vmatprep.subr.mxu0 0.0
    %4104 = vmatpush2.msra.mxu0 0.0
    %4105 = vmatprep.subr.mxu0 0.0
    %4106 = vmatpush2.msra.mxu0 0.0
    %4107 = vmatprep.subr.mxu0 0.0
    %4108 = vmatpush2.msra.mxu0 0.0
    %4109 = vmatprep.subr.mxu0 0.0
    %4110 = vmatpush2.msra.mxu0 0.0
    %4111 = vmatprep.subr.mxu0 0.0
    %4112 = vmatpush2.msra.mxu0 0.0
    %4113 = vmatprep.subr.mxu0 0.0
    %4114 = vmatpush2.msra.mxu0 0.0
    %4115 = vmatprep.subr.mxu0 0.0
    %4116 = vmatpush2.msra.mxu0 0.0
    %4117 = vmatprep.subr.mxu0 0.0
    %4118 = vmatpush2.msra.mxu0 0.0
    %4119 = vmatprep.subr.mxu0 0.0
    %4120 = vmatpush2.msra.mxu0 0.0
    %4121 = vmatprep.subr.mxu0 0.0
    %4122 = vmatpush2.msra.mxu0 0.0
    %4123 = vmatprep.subr.mxu0 0.0
    %4124 = vmatpush2.msra.mxu0 0.0
    %4125 = vmatprep.subr.mxu0 0.0
    %4126 = vmatpush2.msra.mxu0 0.0
    %4127 = vmatprep.subr.mxu0 0.0
    %4128 = vmatpush2.msra.mxu0 0.0
    %4129 = vmatprep.subr.mxu0 0.0
    %4130 = vmatpush2.msra.mxu0 0.0
    %4131 = vmatprep.mubr.f32.mxu0 0.0
    %4132 = vmatmul.mubr.f32.gmra.mxu0 %v4065
    %v4133 = vpop.f32.mrf.mxu0
    %v4134 = vadd.f32 0.0, %v4133
    %v4135 = vpop.f32.mrf.mxu0
    %4136 = vdwg.mxu0
    %v4138 = vsel %vm434, %v4063, 0
    %4140 = vmatprep.subr.mxu0 0.0
    %4141 = vmatpush1.msra.mxu0 0.0
    %4142 = vmatprep.subr.mxu0 0.0
    %4143 = vmatpush1.msra.mxu0 0.0
    %4144 = vmatprep.subr.mxu0 0.0
    %4145 = vmatpush1.msra.mxu0 0.0
    %4146 = vmatprep.subr.mxu0 0.0
    %4147 = vmatpush1.msra.mxu0 0.0
    %4148 = vmatprep.subr.mxu0 0.0
    %4149 = vmatpush1.msra.mxu0 0.0
    %4150 = vmatprep.subr.mxu0 0.0
    %4151 = vmatpush1.msra.mxu0 0.0
    %4152 = vmatprep.subr.mxu0 0.0
    %4153 = vmatpush1.msra.mxu0 0.0
    %4154 = vmatprep.subr.mxu0 0.0
    %4155 = vmatpush1.msra.mxu0 0.0
    %4156 = vmatprep.subr.mxu0 0.0
    %4157 = vmatpush1.msra.mxu0 0.0
    %4158 = vmatprep.subr.mxu0 0.0
    %4159 = vmatpush1.msra.mxu0 0.0
    %4160 = vmatprep.subr.mxu0 0.0
    %4161 = vmatpush1.msra.mxu0 0.0
    %4162 = vmatprep.subr.mxu0 0.0
    %4163 = vmatpush1.msra.mxu0 0.0
    %4164 = vmatprep.subr.mxu0 0.0
    %4165 = vmatpush1.msra.mxu0 0.0
    %4166 = vmatprep.subr.mxu0 0.0
    %4167 = vmatpush1.msra.mxu0 0.0
    %4168 = vmatprep.subr.mxu0 0.0
    %4169 = vmatpush1.msra.mxu0 0.0
    %4170 = vmatprep.subr.mxu0 0.0
    %4171 = vmatpush1.msra.mxu0 %v3887
    %4172 = vmatprep.subr.mxu0 0.0
    %4173 = vmatpush2.msra.mxu0 0.0
    %4174 = vmatprep.subr.mxu0 0.0
    %4175 = vmatpush2.msra.mxu0 0.0
    %4176 = vmatprep.subr.mxu0 0.0
    %4177 = vmatpush2.msra.mxu0 0.0
    %4178 = vmatprep.subr.mxu0 0.0
    %4179 = vmatpush2.msra.mxu0 0.0
    %4180 = vmatprep.subr.mxu0 0.0
    %4181 = vmatpush2.msra.mxu0 0.0
    %4182 = vmatprep.subr.mxu0 0.0
    %4183 = vmatpush2.msra.mxu0 0.0
    %4184 = vmatprep.subr.mxu0 0.0
    %4185 = vmatpush2.msra.mxu0 0.0
    %4186 = vmatprep.subr.mxu0 0.0
    %4187 = vmatpush2.msra.mxu0 0.0
    %4188 = vmatprep.subr.mxu0 0.0
    %4189 = vmatpush2.msra.mxu0 0.0
    %4190 = vmatprep.subr.mxu0 0.0
    %4191 = vmatpush2.msra.mxu0 0.0
    %4192 = vmatprep.subr.mxu0 0.0
    %4193 = vmatpush2.msra.mxu0 0.0
    %4194 = vmatprep.subr.mxu0 0.0
    %4195 = vmatpush2.msra.mxu0 0.0
    %4196 = vmatprep.subr.mxu0 0.0
    %4197 = vmatpush2.msra.mxu0 0.0
    %4198 = vmatprep.subr.mxu0 0.0
    %4199 = vmatpush2.msra.mxu0 0.0
    %4200 = vmatprep.subr.mxu0 0.0
    %4201 = vmatpush2.msra.mxu0 0.0
    %4202 = vmatprep.subr.mxu0 0.0
    %4203 = vmatpush2.msra.mxu0 0.0
    %4204 = vmatprep.mubr.f32.mxu0 0.0
    %4205 = vmatmul.mubr.f32.gmra.mxu0 %v4138
    %v4206 = vpop.f32.mrf.mxu0
    %v4207 = vadd.f32 0.0, %v4206
    %v4208 = vpop.f32.mrf.mxu0
    %4209 = vdwg.mxu0
    %s4210 = scalar_lea.vmem %s7, 40
    %v4211 = vld [vmem:[%s4210] sm:$0xff]
    %v4213 = vsel %vm434, %v4134, 0
    %v4216 = vsel %vm434, %v4207, 0
    %4218 = vmatprep.subr.mxu0 0.0
    %4219 = vmatpush1.msra.mxu0 0.0
    %4220 = vmatprep.subr.mxu0 0.0
    %4221 = vmatpush1.msra.mxu0 0.0
    %4222 = vmatprep.subr.mxu0 0.0
    %4223 = vmatpush1.msra.mxu0 0.0
    %4224 = vmatprep.subr.mxu0 0.0
    %4225 = vmatpush1.msra.mxu0 0.0
    %4226 = vmatprep.subr.mxu0 0.0
    %4227 = vmatpush1.msra.mxu0 0.0
    %4228 = vmatprep.subr.mxu0 0.0
    %4229 = vmatpush1.msra.mxu0 0.0
    %4230 = vmatprep.subr.mxu0 0.0
    %4231 = vmatpush1.msra.mxu0 0.0
    %4232 = vmatprep.subr.mxu0 0.0
    %4233 = vmatpush1.msra.mxu0 0.0
    %4234 = vmatprep.subr.mxu0 0.0
    %4235 = vmatpush1.msra.mxu0 0.0
    %4236 = vmatprep.subr.mxu0 0.0
    %4237 = vmatpush1.msra.mxu0 0.0
    %4238 = vmatprep.subr.mxu0 0.0
    %4239 = vmatpush1.msra.mxu0 0.0
    %4240 = vmatprep.subr.mxu0 0.0
    %4241 = vmatpush1.msra.mxu0 0.0
    %4242 = vmatprep.subr.mxu0 0.0
    %4243 = vmatpush1.msra.mxu0 0.0
    %4244 = vmatprep.subr.mxu0 0.0
    %4245 = vmatpush1.msra.mxu0 0.0
    %4246 = vmatprep.subr.mxu0 0.0
    %4247 = vmatpush1.msra.mxu0 0.0
    %4248 = vmatprep.subr.mxu0 0.0
    %4249 = vmatpush1.msra.mxu0 %v4211
    %4250 = vmatprep.subr.mxu0 0.0
    %4251 = vmatpush2.msra.mxu0 0.0
    %4252 = vmatprep.subr.mxu0 0.0
    %4253 = vmatpush2.msra.mxu0 0.0
    %4254 = vmatprep.subr.mxu0 0.0
    %4255 = vmatpush2.msra.mxu0 0.0
    %4256 = vmatprep.subr.mxu0 0.0
    %4257 = vmatpush2.msra.mxu0 0.0
    %4258 = vmatprep.subr.mxu0 0.0
    %4259 = vmatpush2.msra.mxu0 0.0
    %4260 = vmatprep.subr.mxu0 0.0
    %4261 = vmatpush2.msra.mxu0 0.0
    %4262 = vmatprep.subr.mxu0 0.0
    %4263 = vmatpush2.msra.mxu0 0.0
    %4264 = vmatprep.subr.mxu0 0.0
    %4265 = vmatpush2.msra.mxu0 0.0
    %4266 = vmatprep.subr.mxu0 0.0
    %4267 = vmatpush2.msra.mxu0 0.0
    %4268 = vmatprep.subr.mxu0 0.0
    %4269 = vmatpush2.msra.mxu0 0.0
    %4270 = vmatprep.subr.mxu0 0.0
    %4271 = vmatpush2.msra.mxu0 0.0
    %4272 = vmatprep.subr.mxu0 0.0
    %4273 = vmatpush2.msra.mxu0 0.0
    %4274 = vmatprep.subr.mxu0 0.0
    %4275 = vmatpush2.msra.mxu0 0.0
    %4276 = vmatprep.subr.mxu0 0.0
    %4277 = vmatpush2.msra.mxu0 0.0
    %4278 = vmatprep.subr.mxu0 0.0
    %4279 = vmatpush2.msra.mxu0 0.0
    %4280 = vmatprep.subr.mxu0 0.0
    %4281 = vmatpush2.msra.mxu0 0.0
    %4282 = vmatprep.mubr.f32.mxu0 0.0
    %4283 = vmatmul.mubr.f32.gmra.mxu0 %v4213
    %v4284 = vpop.f32.mrf.mxu0
    %v4285 = vadd.f32 0.0, %v4284
    %v4286 = vpop.f32.mrf.mxu0
    %4287 = vmatprep.mubr.f32.mxu0 0.0
    %4288 = vmatmul.mubr.f32.gmra.mxu0 %v4216
    %v4289 = vpop.f32.mrf.mxu0
    %v4290 = vadd.f32 0.0, %v4289
    %v4291 = vpop.f32.mrf.mxu0
    %4292 = vdwg.mxu0
    %v4293 = vadd.f32 %v3648, %v4285
    %v4294 = vadd.f32 %v3649, %v4290
    %s4295 = scalar_lea.vmem %s4, 192
    %v4296 = vld [vmem:[%s4295] sm:$0xff]
    %v4297 = vld [vmem:[%s4295 + $0x8] sm:$0xff]
    %v4298 = vld [vmem:[%s4295 + $0x10] sm:$0xff]
    %v4299 = vld [vmem:[%s4295 + $0x18] sm:$0xff]
    %4300 = vmatprep.subr.mxu0 0.0
    %4301 = vmatpush1.msra.mxu0 0.0
    %4302 = vmatprep.subr.mxu0 0.0
    %4303 = vmatpush1.msra.mxu0 0.0
    %4304 = vmatprep.subr.mxu0 0.0
    %4305 = vmatpush1.msra.mxu0 0.0
    %4306 = vmatprep.subr.mxu0 0.0
    %4307 = vmatpush1.msra.mxu0 0.0
    %4308 = vmatprep.subr.mxu0 0.0
    %4309 = vmatpush1.msra.mxu0 0.0
    %4310 = vmatprep.subr.mxu0 0.0
    %4311 = vmatpush1.msra.mxu0 0.0
    %4312 = vmatprep.subr.mxu0 0.0
    %4313 = vmatpush1.msra.mxu0 0.0
    %4314 = vmatprep.subr.mxu0 0.0
    %4315 = vmatpush1.msra.mxu0 0.0
    %4316 = vmatprep.subr.mxu0 0.0
    %4317 = vmatpush1.msra.mxu0 0.0
    %4318 = vmatprep.subr.mxu0 0.0
    %4319 = vmatpush1.msra.mxu0 0.0
    %4320 = vmatprep.subr.mxu0 0.0
    %4321 = vmatpush1.msra.mxu0 0.0
    %4322 = vmatprep.subr.mxu0 0.0
    %4323 = vmatpush1.msra.mxu0 0.0
    %4324 = vmatprep.subr.mxu0 0.0
    %4325 = vmatpush1.msra.mxu0 %v4299
    %4326 = vmatprep.subr.mxu0 0.0
    %4327 = vmatpush1.msra.mxu0 %v4298
    %4328 = vmatprep.subr.mxu0 0.0
    %4329 = vmatpush1.msra.mxu0 %v4297
    %4330 = vmatprep.subr.mxu0 0.0
    %4331 = vmatpush1.msra.mxu0 %v4296
    %4332 = vmatprep.subr.mxu0 0.0
    %4333 = vmatpush2.msra.mxu0 0.0
    %4334 = vmatprep.subr.mxu0 0.0
    %4335 = vmatpush2.msra.mxu0 0.0
    %4336 = vmatprep.subr.mxu0 0.0
    %4337 = vmatpush2.msra.mxu0 0.0
    %4338 = vmatprep.subr.mxu0 0.0
    %4339 = vmatpush2.msra.mxu0 0.0
    %4340 = vmatprep.subr.mxu0 0.0
    %4341 = vmatpush2.msra.mxu0 0.0
    %4342 = vmatprep.subr.mxu0 0.0
    %4343 = vmatpush2.msra.mxu0 0.0
    %4344 = vmatprep.subr.mxu0 0.0
    %4345 = vmatpush2.msra.mxu0 0.0
    %4346 = vmatprep.subr.mxu0 0.0
    %4347 = vmatpush2.msra.mxu0 0.0
    %4348 = vmatprep.subr.mxu0 0.0
    %4349 = vmatpush2.msra.mxu0 0.0
    %4350 = vmatprep.subr.mxu0 0.0
    %4351 = vmatpush2.msra.mxu0 0.0
    %4352 = vmatprep.subr.mxu0 0.0
    %4353 = vmatpush2.msra.mxu0 0.0
    %4354 = vmatprep.subr.mxu0 0.0
    %4355 = vmatpush2.msra.mxu0 0.0
    %4356 = vmatprep.subr.mxu0 0.0
    %4357 = vmatpush2.msra.mxu0 0.0
    %4358 = vmatprep.subr.mxu0 0.0
    %4359 = vmatpush2.msra.mxu0 0.0
    %4360 = vmatprep.subr.mxu0 0.0
    %4361 = vmatpush2.msra.mxu0 0.0
    %4362 = vmatprep.subr.mxu0 0.0
    %4363 = vmatpush2.msra.mxu0 0.0
    %4364 = vmatprep.mubr.f32.mxu0 0.0
    %4365 = vmatmul.mubr.f32.gmra.mxu0 %v3005
    %v4366 = vpop.f32.mrf.mxu0
    %v4367 = vadd.f32 0.0, %v4366
    %v4368 = vpop.f32.mrf.mxu0
    %4369 = vmatprep.mubr.f32.mxu0 0.0
    %4370 = vmatmul.mubr.f32.gmra.mxu0 %v3008
    %v4371 = vpop.f32.mrf.mxu0
    %v4372 = vadd.f32 0.0, %v4371
    %v4373 = vpop.f32.mrf.mxu0
    %4374 = vdwg.mxu0
    %s4375 = scalar_lea.vmem %s5, 192
    %v4376 = vld [vmem:[%s4375] sm:$0xff]
    %v4377 = vld [vmem:[%s4375 + $0x8] sm:$0xff]
    %v4378 = vld [vmem:[%s4375 + $0x10] sm:$0xff]
    %v4379 = vld [vmem:[%s4375 + $0x18] sm:$0xff]
    %4380 = vmatprep.subr.mxu0 0.0
    %4381 = vmatpush1.msra.mxu0 0.0
    %4382 = vmatprep.subr.mxu0 0.0
    %4383 = vmatpush1.msra.mxu0 0.0
    %4384 = vmatprep.subr.mxu0 0.0
    %4385 = vmatpush1.msra.mxu0 0.0
    %4386 = vmatprep.subr.mxu0 0.0
    %4387 = vmatpush1.msra.mxu0 0.0
    %4388 = vmatprep.subr.mxu0 0.0
    %4389 = vmatpush1.msra.mxu0 0.0
    %4390 = vmatprep.subr.mxu0 0.0
    %4391 = vmatpush1.msra.mxu0 0.0
    %4392 = vmatprep.subr.mxu0 0.0
    %4393 = vmatpush1.msra.mxu0 0.0
    %4394 = vmatprep.subr.mxu0 0.0
    %4395 = vmatpush1.msra.mxu0 0.0
    %4396 = vmatprep.subr.mxu0 0.0
    %4397 = vmatpush1.msra.mxu0 0.0
    %4398 = vmatprep.subr.mxu0 0.0
    %4399 = vmatpush1.msra.mxu0 0.0
    %4400 = vmatprep.subr.mxu0 0.0
    %4401 = vmatpush1.msra.mxu0 0.0
    %4402 = vmatprep.subr.mxu0 0.0
    %4403 = vmatpush1.msra.mxu0 0.0
    %4404 = vmatprep.subr.mxu0 0.0
    %4405 = vmatpush1.msra.mxu0 %v4379
    %4406 = vmatprep.subr.mxu0 0.0
    %4407 = vmatpush1.msra.mxu0 %v4378
    %4408 = vmatprep.subr.mxu0 0.0
    %4409 = vmatpush1.msra.mxu0 %v4377
    %4410 = vmatprep.subr.mxu0 0.0
    %4411 = vmatpush1.msra.mxu0 %v4376
    %4412 = vmatprep.subr.mxu0 0.0
    %4413 = vmatpush2.msra.mxu0 0.0
    %4414 = vmatprep.subr.mxu0 0.0
    %4415 = vmatpush2.msra.mxu0 0.0
    %4416 = vmatprep.subr.mxu0 0.0
    %4417 = vmatpush2.msra.mxu0 0.0
    %4418 = vmatprep.subr.mxu0 0.0
    %4419 = vmatpush2.msra.mxu0 0.0
    %4420 = vmatprep.subr.mxu0 0.0
    %4421 = vmatpush2.msra.mxu0 0.0
    %4422 = vmatprep.subr.mxu0 0.0
    %4423 = vmatpush2.msra.mxu0 0.0
    %4424 = vmatprep.subr.mxu0 0.0
    %4425 = vmatpush2.msra.mxu0 0.0
    %4426 = vmatprep.subr.mxu0 0.0
    %4427 = vmatpush2.msra.mxu0 0.0
    %4428 = vmatprep.subr.mxu0 0.0
    %4429 = vmatpush2.msra.mxu0 0.0
    %4430 = vmatprep.subr.mxu0 0.0
    %4431 = vmatpush2.msra.mxu0 0.0
    %4432 = vmatprep.subr.mxu0 0.0
    %4433 = vmatpush2.msra.mxu0 0.0
    %4434 = vmatprep.subr.mxu0 0.0
    %4435 = vmatpush2.msra.mxu0 0.0
    %4436 = vmatprep.subr.mxu0 0.0
    %4437 = vmatpush2.msra.mxu0 0.0
    %4438 = vmatprep.subr.mxu0 0.0
    %4439 = vmatpush2.msra.mxu0 0.0
    %4440 = vmatprep.subr.mxu0 0.0
    %4441 = vmatpush2.msra.mxu0 0.0
    %4442 = vmatprep.subr.mxu0 0.0
    %4443 = vmatpush2.msra.mxu0 0.0
    %4444 = vmatprep.mubr.f32.mxu0 0.0
    %4445 = vmatmul.mubr.f32.gmra.mxu0 %v3005
    %v4446 = vpop.f32.mrf.mxu0
    %v4447 = vadd.f32 0.0, %v4446
    %v4448 = vpop.f32.mrf.mxu0
    %4449 = vmatprep.mubr.f32.mxu0 0.0
    %4450 = vmatmul.mubr.f32.gmra.mxu0 %v3008
    %v4451 = vpop.f32.mrf.mxu0
    %v4452 = vadd.f32 0.0, %v4451
    %v4453 = vpop.f32.mrf.mxu0
    %4454 = vdwg.mxu0
    %s4455 = scalar_lea.vmem %s6, 192
    %v4456 = vld [vmem:[%s4455] sm:$0xff]
    %v4457 = vld [vmem:[%s4455 + $0x8] sm:$0xff]
    %v4458 = vld [vmem:[%s4455 + $0x10] sm:$0xff]
    %v4459 = vld [vmem:[%s4455 + $0x18] sm:$0xff]
    %4460 = vmatprep.subr.mxu0 0.0
    %4461 = vmatpush1.msra.mxu0 0.0
    %4462 = vmatprep.subr.mxu0 0.0
    %4463 = vmatpush1.msra.mxu0 0.0
    %4464 = vmatprep.subr.mxu0 0.0
    %4465 = vmatpush1.msra.mxu0 0.0
    %4466 = vmatprep.subr.mxu0 0.0
    %4467 = vmatpush1.msra.mxu0 0.0
    %4468 = vmatprep.subr.mxu0 0.0
    %4469 = vmatpush1.msra.mxu0 0.0
    %4470 = vmatprep.subr.mxu0 0.0
    %4471 = vmatpush1.msra.mxu0 0.0
    %4472 = vmatprep.subr.mxu0 0.0
    %4473 = vmatpush1.msra.mxu0 0.0
    %4474 = vmatprep.subr.mxu0 0.0
    %4475 = vmatpush1.msra.mxu0 0.0
    %4476 = vmatprep.subr.mxu0 0.0
    %4477 = vmatpush1.msra.mxu0 0.0
    %4478 = vmatprep.subr.mxu0 0.0
    %4479 = vmatpush1.msra.mxu0 0.0
    %4480 = vmatprep.subr.mxu0 0.0
    %4481 = vmatpush1.msra.mxu0 0.0
    %4482 = vmatprep.subr.mxu0 0.0
    %4483 = vmatpush1.msra.mxu0 0.0
    %4484 = vmatprep.subr.mxu0 0.0
    %4485 = vmatpush1.msra.mxu0 %v4459
    %4486 = vmatprep.subr.mxu0 0.0
    %4487 = vmatpush1.msra.mxu0 %v4458
    %4488 = vmatprep.subr.mxu0 0.0
    %4489 = vmatpush1.msra.mxu0 %v4457
    %4490 = vmatprep.subr.mxu0 0.0
    %4491 = vmatpush1.msra.mxu0 %v4456
    %4492 = vmatprep.subr.mxu0 0.0
    %4493 = vmatpush2.msra.mxu0 0.0
    %4494 = vmatprep.subr.mxu0 0.0
    %4495 = vmatpush2.msra.mxu0 0.0
    %4496 = vmatprep.subr.mxu0 0.0
    %4497 = vmatpush2.msra.mxu0 0.0
    %4498 = vmatprep.subr.mxu0 0.0
    %4499 = vmatpush2.msra.mxu0 0.0
    %4500 = vmatprep.subr.mxu0 0.0
    %4501 = vmatpush2.msra.mxu0 0.0
    %4502 = vmatprep.subr.mxu0 0.0
    %4503 = vmatpush2.msra.mxu0 0.0
    %4504 = vmatprep.subr.mxu0 0.0
    %4505 = vmatpush2.msra.mxu0 0.0
    %4506 = vmatprep.subr.mxu0 0.0
    %4507 = vmatpush2.msra.mxu0 0.0
    %4508 = vmatprep.subr.mxu0 0.0
    %4509 = vmatpush2.msra.mxu0 0.0
    %4510 = vmatprep.subr.mxu0 0.0
    %4511 = vmatpush2.msra.mxu0 0.0
    %4512 = vmatprep.subr.mxu0 0.0
    %4513 = vmatpush2.msra.mxu0 0.0
    %4514 = vmatprep.subr.mxu0 0.0
    %4515 = vmatpush2.msra.mxu0 0.0
    %4516 = vmatprep.subr.mxu0 0.0
    %4517 = vmatpush2.msra.mxu0 0.0
    %4518 = vmatprep.subr.mxu0 0.0
    %4519 = vmatpush2.msra.mxu0 0.0
    %4520 = vmatprep.subr.mxu0 0.0
    %4521 = vmatpush2.msra.mxu0 0.0
    %4522 = vmatprep.subr.mxu0 0.0
    %4523 = vmatpush2.msra.mxu0 0.0
    %4524 = vmatprep.mubr.f32.mxu0 0.0
    %4525 = vmatmul.mubr.f32.gmra.mxu0 %v3005
    %v4526 = vpop.f32.mrf.mxu0
    %v4527 = vadd.f32 0.0, %v4526
    %v4528 = vpop.f32.mrf.mxu0
    %4529 = vmatprep.mubr.f32.mxu0 0.0
    %4530 = vmatmul.mubr.f32.gmra.mxu0 %v3008
    %v4531 = vpop.f32.mrf.mxu0
    %v4532 = vadd.f32 0.0, %v4531
    %v4533 = vpop.f32.mrf.mxu0
    %4534 = vdwg.mxu0
    %v4536 = vsel %vm434, %v4367, 0
    %v4539 = vsel %vm434, %v4447, 0
    %4541 = vmatprep.subr.mxu0 0.0
    %4542 = vmatpush1.xpose.msra.mxu0 0.0
    %4543 = vmatprep.subr.mxu0 0.0
    %4544 = vmatpush1.xpose.msra.mxu0 0.0
    %4545 = vmatprep.subr.mxu0 0.0
    %4546 = vmatpush1.xpose.msra.mxu0 0.0
    %4547 = vmatprep.subr.mxu0 0.0
    %4548 = vmatpush1.xpose.msra.mxu0 0.0
    %4549 = vmatprep.subr.mxu0 0.0
    %4550 = vmatpush1.xpose.msra.mxu0 0.0
    %4551 = vmatprep.subr.mxu0 0.0
    %4552 = vmatpush1.xpose.msra.mxu0 0.0
    %4553 = vmatprep.subr.mxu0 0.0
    %4554 = vmatpush1.xpose.msra.mxu0 0.0
    %4555 = vmatprep.subr.mxu0 0.0
    %4556 = vmatpush1.xpose.msra.mxu0 0.0
    %4557 = vmatprep.subr.mxu0 0.0
    %4558 = vmatpush1.xpose.msra.mxu0 0.0
    %4559 = vmatprep.subr.mxu0 0.0
    %4560 = vmatpush1.xpose.msra.mxu0 0.0
    %4561 = vmatprep.subr.mxu0 0.0
    %4562 = vmatpush1.xpose.msra.mxu0 0.0
    %4563 = vmatprep.subr.mxu0 0.0
    %4564 = vmatpush1.xpose.msra.mxu0 0.0
    %4565 = vmatprep.subr.mxu0 0.0
    %4566 = vmatpush1.xpose.msra.mxu0 0.0
    %4567 = vmatprep.subr.mxu0 0.0
    %4568 = vmatpush1.xpose.msra.mxu0 0.0
    %4569 = vmatprep.subr.mxu0 0.0
    %4570 = vmatpush1.xpose.msra.mxu0 0.0
    %4571 = vmatprep.subr.mxu0 0.0
    %4572 = vmatpush1.xpose.msra.mxu0 %v4539
    %4573 = vmatprep.subr.mxu0 0.0
    %4574 = vmatpush2.xpose.msra.mxu0 0.0
    %4575 = vmatprep.subr.mxu0 0.0
    %4576 = vmatpush2.xpose.msra.mxu0 0.0
    %4577 = vmatprep.subr.mxu0 0.0
    %4578 = vmatpush2.xpose.msra.mxu0 0.0
    %4579 = vmatprep.subr.mxu0 0.0
    %4580 = vmatpush2.xpose.msra.mxu0 0.0
    %4581 = vmatprep.subr.mxu0 0.0
    %4582 = vmatpush2.xpose.msra.mxu0 0.0
    %4583 = vmatprep.subr.mxu0 0.0
    %4584 = vmatpush2.xpose.msra.mxu0 0.0
    %4585 = vmatprep.subr.mxu0 0.0
    %4586 = vmatpush2.xpose.msra.mxu0 0.0
    %4587 = vmatprep.subr.mxu0 0.0
    %4588 = vmatpush2.xpose.msra.mxu0 0.0
    %4589 = vmatprep.subr.mxu0 0.0
    %4590 = vmatpush2.xpose.msra.mxu0 0.0
    %4591 = vmatprep.subr.mxu0 0.0
    %4592 = vmatpush2.xpose.msra.mxu0 0.0
    %4593 = vmatprep.subr.mxu0 0.0
    %4594 = vmatpush2.xpose.msra.mxu0 0.0
    %4595 = vmatprep.subr.mxu0 0.0
    %4596 = vmatpush2.xpose.msra.mxu0 0.0
    %4597 = vmatprep.subr.mxu0 0.0
    %4598 = vmatpush2.xpose.msra.mxu0 0.0
    %4599 = vmatprep.subr.mxu0 0.0
    %4600 = vmatpush2.xpose.msra.mxu0 0.0
    %4601 = vmatprep.subr.mxu0 0.0
    %4602 = vmatpush2.xpose.msra.mxu0 0.0
    %4603 = vmatprep.subr.mxu0 0.0
    %4604 = vmatpush2.xpose.msra.mxu0 0.0
    %4605 = vmatprep.mubr.f32.mxu0 0.0
    %4606 = vmatmul.mubr.f32.gmra.mxu0 %v4536
    %v4607 = vpop.f32.mrf.mxu0
    %v4608 = vadd.f32 %v159, %v4607
    %v4609 = vpop.f32.mrf.mxu0
    %4610 = vdwg.mxu0
    %v4612 = vsel %vm434, %v4372, 0
    %v4615 = vsel %vm434, %v4452, 0
    %4617 = vmatprep.subr.mxu0 0.0
    %4618 = vmatpush1.xpose.msra.mxu0 0.0
    %4619 = vmatprep.subr.mxu0 0.0
    %4620 = vmatpush1.xpose.msra.mxu0 0.0
    %4621 = vmatprep.subr.mxu0 0.0
    %4622 = vmatpush1.xpose.msra.mxu0 0.0
    %4623 = vmatprep.subr.mxu0 0.0
    %4624 = vmatpush1.xpose.msra.mxu0 0.0
    %4625 = vmatprep.subr.mxu0 0.0
    %4626 = vmatpush1.xpose.msra.mxu0 0.0
    %4627 = vmatprep.subr.mxu0 0.0
    %4628 = vmatpush1.xpose.msra.mxu0 0.0
    %4629 = vmatprep.subr.mxu0 0.0
    %4630 = vmatpush1.xpose.msra.mxu0 0.0
    %4631 = vmatprep.subr.mxu0 0.0
    %4632 = vmatpush1.xpose.msra.mxu0 0.0
    %4633 = vmatprep.subr.mxu0 0.0
    %4634 = vmatpush1.xpose.msra.mxu0 0.0
    %4635 = vmatprep.subr.mxu0 0.0
    %4636 = vmatpush1.xpose.msra.mxu0 0.0
    %4637 = vmatprep.subr.mxu0 0.0
    %4638 = vmatpush1.xpose.msra.mxu0 0.0
    %4639 = vmatprep.subr.mxu0 0.0
    %4640 = vmatpush1.xpose.msra.mxu0 0.0
    %4641 = vmatprep.subr.mxu0 0.0
    %4642 = vmatpush1.xpose.msra.mxu0 0.0
    %4643 = vmatprep.subr.mxu0 0.0
    %4644 = vmatpush1.xpose.msra.mxu0 0.0
    %4645 = vmatprep.subr.mxu0 0.0
    %4646 = vmatpush1.xpose.msra.mxu0 0.0
    %4647 = vmatprep.subr.mxu0 0.0
    %4648 = vmatpush1.xpose.msra.mxu0 %v4615
    %4649 = vmatprep.subr.mxu0 0.0
    %4650 = vmatpush2.xpose.msra.mxu0 0.0
    %4651 = vmatprep.subr.mxu0 0.0
    %4652 = vmatpush2.xpose.msra.mxu0 0.0
    %4653 = vmatprep.subr.mxu0 0.0
    %4654 = vmatpush2.xpose.msra.mxu0 0.0
    %4655 = vmatprep.subr.mxu0 0.0
    %4656 = vmatpush2.xpose.msra.mxu0 0.0
    %4657 = vmatprep.subr.mxu0 0.0
    %4658 = vmatpush2.xpose.msra.mxu0 0.0
    %4659 = vmatprep.subr.mxu0 0.0
    %4660 = vmatpush2.xpose.msra.mxu0 0.0
    %4661 = vmatprep.subr.mxu0 0.0
    %4662 = vmatpush2.xpose.msra.mxu0 0.0
    %4663 = vmatprep.subr.mxu0 0.0
    %4664 = vmatpush2.xpose.msra.mxu0 0.0
    %4665 = vmatprep.subr.mxu0 0.0
    %4666 = vmatpush2.xpose.msra.mxu0 0.0
    %4667 = vmatprep.subr.mxu0 0.0
    %4668 = vmatpush2.xpose.msra.mxu0 0.0
    %4669 = vmatprep.subr.mxu0 0.0
    %4670 = vmatpush2.xpose.msra.mxu0 0.0
    %4671 = vmatprep.subr.mxu0 0.0
    %4672 = vmatpush2.xpose.msra.mxu0 0.0
    %4673 = vmatprep.subr.mxu0 0.0
    %4674 = vmatpush2.xpose.msra.mxu0 0.0
    %4675 = vmatprep.subr.mxu0 0.0
    %4676 = vmatpush2.xpose.msra.mxu0 0.0
    %4677 = vmatprep.subr.mxu0 0.0
    %4678 = vmatpush2.xpose.msra.mxu0 0.0
    %4679 = vmatprep.subr.mxu0 0.0
    %4680 = vmatpush2.xpose.msra.mxu0 0.0
    %4681 = vmatprep.mubr.f32.mxu0 0.0
    %4682 = vmatmul.mubr.f32.gmra.mxu0 %v4612
    %v4683 = vpop.f32.mrf.mxu0
    %v4684 = vadd.f32 %v163, %v4683
    %v4685 = vpop.f32.mrf.mxu0
    %4686 = vdwg.mxu0
    %v4687 = vsel %vm434, %v4608, -inf
    %4688 = vmax.xlane.f32.xlu0 %v4687
    %v4689 = vpop.xlane.xlu0 %4688
    %v4690 = vsel %vm434, %v4684, -inf
    %4691 = vmax.xlane.f32.xlu0 %v4690
    %v4692 = vpop.xlane.xlu0 %4691
    %v4693 = vsub.f32 %v4608, %v4689
    %v4694 = vsub.f32 %v4684, %v4692
    %v4695 = vmul.f32 %v4693, 1.442695
    %v4696 = vpow.pop %v4695
    %v4697 = vmul.f32 %v4694, 1.442695
    %v4698 = vpow.pop %v4697
    %v4699 = vsel %vm434, %v4696, 0.0
    %4700 = vadd.xlane.f32.xlu0 %v4699
    %v4701 = vpop.xlane.xlu0 %4700
    %v4702 = vsel %vm434, %v4698, 0.0
    %4703 = vadd.xlane.f32.xlu0 %v4702
    %v4704 = vpop.xlane.xlu0 %4703
    %v4705 = vrcp.pop %v4701
    %v4706 = vmul.f32 %v4696, %v4705
    %v4707 = vrcp.pop %v4704
    %v4708 = vmul.f32 %v4698, %v4707
    %v4710 = vsel %vm434, %v4706, 0
    %4712 = vmatprep.subr.mxu0 0.0
    %4713 = vmatpush1.msra.mxu0 0.0
    %4714 = vmatprep.subr.mxu0 0.0
    %4715 = vmatpush1.msra.mxu0 0.0
    %4716 = vmatprep.subr.mxu0 0.0
    %4717 = vmatpush1.msra.mxu0 0.0
    %4718 = vmatprep.subr.mxu0 0.0
    %4719 = vmatpush1.msra.mxu0 0.0
    %4720 = vmatprep.subr.mxu0 0.0
    %4721 = vmatpush1.msra.mxu0 0.0
    %4722 = vmatprep.subr.mxu0 0.0
    %4723 = vmatpush1.msra.mxu0 0.0
    %4724 = vmatprep.subr.mxu0 0.0
    %4725 = vmatpush1.msra.mxu0 0.0
    %4726 = vmatprep.subr.mxu0 0.0
    %4727 = vmatpush1.msra.mxu0 0.0
    %4728 = vmatprep.subr.mxu0 0.0
    %4729 = vmatpush1.msra.mxu0 0.0
    %4730 = vmatprep.subr.mxu0 0.0
    %4731 = vmatpush1.msra.mxu0 0.0
    %4732 = vmatprep.subr.mxu0 0.0
    %4733 = vmatpush1.msra.mxu0 0.0
    %4734 = vmatprep.subr.mxu0 0.0
    %4735 = vmatpush1.msra.mxu0 0.0
    %4736 = vmatprep.subr.mxu0 0.0
    %4737 = vmatpush1.msra.mxu0 0.0
    %4738 = vmatprep.subr.mxu0 0.0
    %4739 = vmatpush1.msra.mxu0 0.0
    %4740 = vmatprep.subr.mxu0 0.0
    %4741 = vmatpush1.msra.mxu0 0.0
    %4742 = vmatprep.subr.mxu0 0.0
    %4743 = vmatpush1.msra.mxu0 %v4527
    %4744 = vmatprep.subr.mxu0 0.0
    %4745 = vmatpush2.msra.mxu0 0.0
    %4746 = vmatprep.subr.mxu0 0.0
    %4747 = vmatpush2.msra.mxu0 0.0
    %4748 = vmatprep.subr.mxu0 0.0
    %4749 = vmatpush2.msra.mxu0 0.0
    %4750 = vmatprep.subr.mxu0 0.0
    %4751 = vmatpush2.msra.mxu0 0.0
    %4752 = vmatprep.subr.mxu0 0.0
    %4753 = vmatpush2.msra.mxu0 0.0
    %4754 = vmatprep.subr.mxu0 0.0
    %4755 = vmatpush2.msra.mxu0 0.0
    %4756 = vmatprep.subr.mxu0 0.0
    %4757 = vmatpush2.msra.mxu0 0.0
    %4758 = vmatprep.subr.mxu0 0.0
    %4759 = vmatpush2.msra.mxu0 0.0
    %4760 = vmatprep.subr.mxu0 0.0
    %4761 = vmatpush2.msra.mxu0 0.0
    %4762 = vmatprep.subr.mxu0 0.0
    %4763 = vmatpush2.msra.mxu0 0.0
    %4764 = vmatprep.subr.mxu0 0.0
    %4765 = vmatpush2.msra.mxu0 0.0
    %4766 = vmatprep.subr.mxu0 0.0
    %4767 = vmatpush2.msra.mxu0 0.0
    %4768 = vmatprep.subr.mxu0 0.0
    %4769 = vmatpush2.msra.mxu0 0.0
    %4770 = vmatprep.subr.mxu0 0.0
    %4771 = vmatpush2.msra.mxu0 0.0
    %4772 = vmatprep.subr.mxu0 0.0
    %4773 = vmatpush2.msra.mxu0 0.0
    %4774 = vmatprep.subr.mxu0 0.0
    %4775 = vmatpush2.msra.mxu0 0.0
    %4776 = vmatprep.mubr.f32.mxu0 0.0
    %4777 = vmatmul.mubr.f32.gmra.mxu0 %v4710
    %v4778 = vpop.f32.mrf.mxu0
    %v4779 = vadd.f32 0.0, %v4778
    %v4780 = vpop.f32.mrf.mxu0
    %4781 = vdwg.mxu0
    %v4783 = vsel %vm434, %v4708, 0
    %4785 = vmatprep.subr.mxu0 0.0
    %4786 = vmatpush1.msra.mxu0 0.0
    %4787 = vmatprep.subr.mxu0 0.0
    %4788 = vmatpush1.msra.mxu0 0.0
    %4789 = vmatprep.subr.mxu0 0.0
    %4790 = vmatpush1.msra.mxu0 0.0
    %4791 = vmatprep.subr.mxu0 0.0
    %4792 = vmatpush1.msra.mxu0 0.0
    %4793 = vmatprep.subr.mxu0 0.0
    %4794 = vmatpush1.msra.mxu0 0.0
    %4795 = vmatprep.subr.mxu0 0.0
    %4796 = vmatpush1.msra.mxu0 0.0
    %4797 = vmatprep.subr.mxu0 0.0
    %4798 = vmatpush1.msra.mxu0 0.0
    %4799 = vmatprep.subr.mxu0 0.0
    %4800 = vmatpush1.msra.mxu0 0.0
    %4801 = vmatprep.subr.mxu0 0.0
    %4802 = vmatpush1.msra.mxu0 0.0
    %4803 = vmatprep.subr.mxu0 0.0
    %4804 = vmatpush1.msra.mxu0 0.0
    %4805 = vmatprep.subr.mxu0 0.0
    %4806 = vmatpush1.msra.mxu0 0.0
    %4807 = vmatprep.subr.mxu0 0.0
    %4808 = vmatpush1.msra.mxu0 0.0
    %4809 = vmatprep.subr.mxu0 0.0
    %4810 = vmatpush1.msra.mxu0 0.0
    %4811 = vmatprep.subr.mxu0 0.0
    %4812 = vmatpush1.msra.mxu0 0.0
    %4813 = vmatprep.subr.mxu0 0.0
    %4814 = vmatpush1.msra.mxu0 0.0
    %4815 = vmatprep.subr.mxu0 0.0
    %4816 = vmatpush1.msra.mxu0 %v4532
    %4817 = vmatprep.subr.mxu0 0.0
    %4818 = vmatpush2.msra.mxu0 0.0
    %4819 = vmatprep.subr.mxu0 0.0
    %4820 = vmatpush2.msra.mxu0 0.0
    %4821 = vmatprep.subr.mxu0 0.0
    %4822 = vmatpush2.msra.mxu0 0.0
    %4823 = vmatprep.subr.mxu0 0.0
    %4824 = vmatpush2.msra.mxu0 0.0
    %4825 = vmatprep.subr.mxu0 0.0
    %4826 = vmatpush2.msra.mxu0 0.0
    %4827 = vmatprep.subr.mxu0 0.0
    %4828 = vmatpush2.msra.mxu0 0.0
    %4829 = vmatprep.subr.mxu0 0.0
    %4830 = vmatpush2.msra.mxu0 0.0
    %4831 = vmatprep.subr.mxu0 0.0
    %4832 = vmatpush2.msra.mxu0 0.0
    %4833 = vmatprep.subr.mxu0 0.0
    %4834 = vmatpush2.msra.mxu0 0.0
    %4835 = vmatprep.subr.mxu0 0.0
    %4836 = vmatpush2.msra.mxu0 0.0
    %4837 = vmatprep.subr.mxu0 0.0
    %4838 = vmatpush2.msra.mxu0 0.0
    %4839 = vmatprep.subr.mxu0 0.0
    %4840 = vmatpush2.msra.mxu0 0.0
    %4841 = vmatprep.subr.mxu0 0.0
    %4842 = vmatpush2.msra.mxu0 0.0
    %4843 = vmatprep.subr.mxu0 0.0
    %4844 = vmatpush2.msra.mxu0 0.0
    %4845 = vmatprep.subr.mxu0 0.0
    %4846 = vmatpush2.msra.mxu0 0.0
    %4847 = vmatprep.subr.mxu0 0.0
    %4848 = vmatpush2.msra.mxu0 0.0
    %4849 = vmatprep.mubr.f32.mxu0 0.0
    %4850 = vmatmul.mubr.f32.gmra.mxu0 %v4783
    %v4851 = vpop.f32.mrf.mxu0
    %v4852 = vadd.f32 0.0, %v4851
    %v4853 = vpop.f32.mrf.mxu0
    %4854 = vdwg.mxu0
    %s4855 = scalar_lea.vmem %s7, 48
    %v4856 = vld [vmem:[%s4855] sm:$0xff]
    %v4858 = vsel %vm434, %v4779, 0
    %v4861 = vsel %vm434, %v4852, 0
    %4863 = vmatprep.subr.mxu0 0.0
    %4864 = vmatpush1.msra.mxu0 0.0
    %4865 = vmatprep.subr.mxu0 0.0
    %4866 = vmatpush1.msra.mxu0 0.0
    %4867 = vmatprep.subr.mxu0 0.0
    %4868 = vmatpush1.msra.mxu0 0.0
    %4869 = vmatprep.subr.mxu0 0.0
    %4870 = vmatpush1.msra.mxu0 0.0
    %4871 = vmatprep.subr.mxu0 0.0
    %4872 = vmatpush1.msra.mxu0 0.0
    %4873 = vmatprep.subr.mxu0 0.0
    %4874 = vmatpush1.msra.mxu0 0.0
    %4875 = vmatprep.subr.mxu0 0.0
    %4876 = vmatpush1.msra.mxu0 0.0
    %4877 = vmatprep.subr.mxu0 0.0
    %4878 = vmatpush1.msra.mxu0 0.0
    %4879 = vmatprep.subr.mxu0 0.0
    %4880 = vmatpush1.msra.mxu0 0.0
    %4881 = vmatprep.subr.mxu0 0.0
    %4882 = vmatpush1.msra.mxu0 0.0
    %4883 = vmatprep.subr.mxu0 0.0
    %4884 = vmatpush1.msra.mxu0 0.0
    %4885 = vmatprep.subr.mxu0 0.0
    %4886 = vmatpush1.msra.mxu0 0.0
    %4887 = vmatprep.subr.mxu0 0.0
    %4888 = vmatpush1.msra.mxu0 0.0
    %4889 = vmatprep.subr.mxu0 0.0
    %4890 = vmatpush1.msra.mxu0 0.0
    %4891 = vmatprep.subr.mxu0 0.0
    %4892 = vmatpush1.msra.mxu0 0.0
    %4893 = vmatprep.subr.mxu0 0.0
    %4894 = vmatpush1.msra.mxu0 %v4856
    %4895 = vmatprep.subr.mxu0 0.0
    %4896 = vmatpush2.msra.mxu0 0.0
    %4897 = vmatprep.subr.mxu0 0.0
    %4898 = vmatpush2.msra.mxu0 0.0
    %4899 = vmatprep.subr.mxu0 0.0
    %4900 = vmatpush2.msra.mxu0 0.0
    %4901 = vmatprep.subr.mxu0 0.0
    %4902 = vmatpush2.msra.mxu0 0.0
    %4903 = vmatprep.subr.mxu0 0.0
    %4904 = vmatpush2.msra.mxu0 0.0
    %4905 = vmatprep.subr.mxu0 0.0
    %4906 = vmatpush2.msra.mxu0 0.0
    %4907 = vmatprep.subr.mxu0 0.0
    %4908 = vmatpush2.msra.mxu0 0.0
    %4909 = vmatprep.subr.mxu0 0.0
    %4910 = vmatpush2.msra.mxu0 0.0
    %4911 = vmatprep.subr.mxu0 0.0
    %4912 = vmatpush2.msra.mxu0 0.0
    %4913 = vmatprep.subr.mxu0 0.0
    %4914 = vmatpush2.msra.mxu0 0.0
    %4915 = vmatprep.subr.mxu0 0.0
    %4916 = vmatpush2.msra.mxu0 0.0
    %4917 = vmatprep.subr.mxu0 0.0
    %4918 = vmatpush2.msra.mxu0 0.0
    %4919 = vmatprep.subr.mxu0 0.0
    %4920 = vmatpush2.msra.mxu0 0.0
    %4921 = vmatprep.subr.mxu0 0.0
    %4922 = vmatpush2.msra.mxu0 0.0
    %4923 = vmatprep.subr.mxu0 0.0
    %4924 = vmatpush2.msra.mxu0 0.0
    %4925 = vmatprep.subr.mxu0 0.0
    %4926 = vmatpush2.msra.mxu0 0.0
    %4927 = vmatprep.mubr.f32.mxu0 0.0
    %4928 = vmatmul.mubr.f32.gmra.mxu0 %v4858
    %v4929 = vpop.f32.mrf.mxu0
    %v4930 = vadd.f32 0.0, %v4929
    %v4931 = vpop.f32.mrf.mxu0
    %4932 = vmatprep.mubr.f32.mxu0 0.0
    %4933 = vmatmul.mubr.f32.gmra.mxu0 %v4861
    %v4934 = vpop.f32.mrf.mxu0
    %v4935 = vadd.f32 0.0, %v4934
    %v4936 = vpop.f32.mrf.mxu0
    %4937 = vdwg.mxu0
    %v4938 = vadd.f32 %v4293, %v4930
    %v4939 = vadd.f32 %v4294, %v4935
    %s4940 = scalar_lea.vmem %s4, 224
    %v4941 = vld [vmem:[%s4940] sm:$0xff]
    %v4942 = vld [vmem:[%s4940 + $0x8] sm:$0xff]
    %v4943 = vld [vmem:[%s4940 + $0x10] sm:$0xff]
    %v4944 = vld [vmem:[%s4940 + $0x18] sm:$0xff]
    %4945 = vmatprep.subr.mxu0 0.0
    %4946 = vmatpush1.msra.mxu0 0.0
    %4947 = vmatprep.subr.mxu0 0.0
    %4948 = vmatpush1.msra.mxu0 0.0
    %4949 = vmatprep.subr.mxu0 0.0
    %4950 = vmatpush1.msra.mxu0 0.0
    %4951 = vmatprep.subr.mxu0 0.0
    %4952 = vmatpush1.msra.mxu0 0.0
    %4953 = vmatprep.subr.mxu0 0.0
    %4954 = vmatpush1.msra.mxu0 0.0
    %4955 = vmatprep.subr.mxu0 0.0
    %4956 = vmatpush1.msra.mxu0 0.0
    %4957 = vmatprep.subr.mxu0 0.0
    %4958 = vmatpush1.msra.mxu0 0.0
    %4959 = vmatprep.subr.mxu0 0.0
    %4960 = vmatpush1.msra.mxu0 0.0
    %4961 = vmatprep.subr.mxu0 0.0
    %4962 = vmatpush1.msra.mxu0 0.0
    %4963 = vmatprep.subr.mxu0 0.0
    %4964 = vmatpush1.msra.mxu0 0.0
    %4965 = vmatprep.subr.mxu0 0.0
    %4966 = vmatpush1.msra.mxu0 0.0
    %4967 = vmatprep.subr.mxu0 0.0
    %4968 = vmatpush1.msra.mxu0 0.0
    %4969 = vmatprep.subr.mxu0 0.0
    %4970 = vmatpush1.msra.mxu0 %v4944
    %4971 = vmatprep.subr.mxu0 0.0
    %4972 = vmatpush1.msra.mxu0 %v4943
    %4973 = vmatprep.subr.mxu0 0.0
    %4974 = vmatpush1.msra.mxu0 %v4942
    %4975 = vmatprep.subr.mxu0 0.0
    %4976 = vmatpush1.msra.mxu0 %v4941
    %4977 = vmatprep.subr.mxu0 0.0
    %4978 = vmatpush2.msra.mxu0 0.0
    %4979 = vmatprep.subr.mxu0 0.0
    %4980 = vmatpush2.msra.mxu0 0.0
    %4981 = vmatprep.subr.mxu0 0.0
    %4982 = vmatpush2.msra.mxu0 0.0
    %4983 = vmatprep.subr.mxu0 0.0
    %4984 = vmatpush2.msra.mxu0 0.0
    %4985 = vmatprep.subr.mxu0 0.0
    %4986 = vmatpush2.msra.mxu0 0.0
    %4987 = vmatprep.subr.mxu0 0.0
    %4988 = vmatpush2.msra.mxu0 0.0
    %4989 = vmatprep.subr.mxu0 0.0
    %4990 = vmatpush2.msra.mxu0 0.0
    %4991 = vmatprep.subr.mxu0 0.0
    %4992 = vmatpush2.msra.mxu0 0.0
    %4993 = vmatprep.subr.mxu0 0.0
    %4994 = vmatpush2.msra.mxu0 0.0
    %4995 = vmatprep.subr.mxu0 0.0
    %4996 = vmatpush2.msra.mxu0 0.0
    %4997 = vmatprep.subr.mxu0 0.0
    %4998 = vmatpush2.msra.mxu0 0.0
    %4999 = vmatprep.subr.mxu0 0.0
    %5000 = vmatpush2.msra.mxu0 0.0
    %5001 = vmatprep.subr.mxu0 0.0
    %5002 = vmatpush2.msra.mxu0 0.0
    %5003 = vmatprep.subr.mxu0 0.0
    %5004 = vmatpush2.msra.mxu0 0.0
    %5005 = vmatprep.subr.mxu0 0.0
    %5006 = vmatpush2.msra.mxu0 0.0
    %5007 = vmatprep.subr.mxu0 0.0
    %5008 = vmatpush2.msra.mxu0 0.0
    %5009 = vmatprep.mubr.f32.mxu0 0.0
    %5010 = vmatmul.mubr.f32.gmra.mxu0 %v3005
    %v5011 = vpop.f32.mrf.mxu0
    %v5012 = vadd.f32 0.0, %v5011
    %v5013 = vpop.f32.mrf.mxu0
    %5014 = vmatprep.mubr.f32.mxu0 0.0
    %5015 = vmatmul.mubr.f32.gmra.mxu0 %v3008
    %v5016 = vpop.f32.mrf.mxu0
    %v5017 = vadd.f32 0.0, %v5016
    %v5018 = vpop.f32.mrf.mxu0
    %5019 = vdwg.mxu0
    %s5020 = scalar_lea.vmem %s5, 224
    %v5021 = vld [vmem:[%s5020] sm:$0xff]
    %v5022 = vld [vmem:[%s5020 + $0x8] sm:$0xff]
    %v5023 = vld [vmem:[%s5020 + $0x10] sm:$0xff]
    %v5024 = vld [vmem:[%s5020 + $0x18] sm:$0xff]
    %5025 = vmatprep.subr.mxu0 0.0
    %5026 = vmatpush1.msra.mxu0 0.0
    %5027 = vmatprep.subr.mxu0 0.0
    %5028 = vmatpush1.msra.mxu0 0.0
    %5029 = vmatprep.subr.mxu0 0.0
    %5030 = vmatpush1.msra.mxu0 0.0
    %5031 = vmatprep.subr.mxu0 0.0
    %5032 = vmatpush1.msra.mxu0 0.0
    %5033 = vmatprep.subr.mxu0 0.0
    %5034 = vmatpush1.msra.mxu0 0.0
    %5035 = vmatprep.subr.mxu0 0.0
    %5036 = vmatpush1.msra.mxu0 0.0
    %5037 = vmatprep.subr.mxu0 0.0
    %5038 = vmatpush1.msra.mxu0 0.0
    %5039 = vmatprep.subr.mxu0 0.0
    %5040 = vmatpush1.msra.mxu0 0.0
    %5041 = vmatprep.subr.mxu0 0.0
    %5042 = vmatpush1.msra.mxu0 0.0
    %5043 = vmatprep.subr.mxu0 0.0
    %5044 = vmatpush1.msra.mxu0 0.0
    %5045 = vmatprep.subr.mxu0 0.0
    %5046 = vmatpush1.msra.mxu0 0.0
    %5047 = vmatprep.subr.mxu0 0.0
    %5048 = vmatpush1.msra.mxu0 0.0
    %5049 = vmatprep.subr.mxu0 0.0
    %5050 = vmatpush1.msra.mxu0 %v5024
    %5051 = vmatprep.subr.mxu0 0.0
    %5052 = vmatpush1.msra.mxu0 %v5023
    %5053 = vmatprep.subr.mxu0 0.0
    %5054 = vmatpush1.msra.mxu0 %v5022
    %5055 = vmatprep.subr.mxu0 0.0
    %5056 = vmatpush1.msra.mxu0 %v5021
    %5057 = vmatprep.subr.mxu0 0.0
    %5058 = vmatpush2.msra.mxu0 0.0
    %5059 = vmatprep.subr.mxu0 0.0
    %5060 = vmatpush2.msra.mxu0 0.0
    %5061 = vmatprep.subr.mxu0 0.0
    %5062 = vmatpush2.msra.mxu0 0.0
    %5063 = vmatprep.subr.mxu0 0.0
    %5064 = vmatpush2.msra.mxu0 0.0
    %5065 = vmatprep.subr.mxu0 0.0
    %5066 = vmatpush2.msra.mxu0 0.0
    %5067 = vmatprep.subr.mxu0 0.0
    %5068 = vmatpush2.msra.mxu0 0.0
    %5069 = vmatprep.subr.mxu0 0.0
    %5070 = vmatpush2.msra.mxu0 0.0
    %5071 = vmatprep.subr.mxu0 0.0
    %5072 = vmatpush2.msra.mxu0 0.0
    %5073 = vmatprep.subr.mxu0 0.0
    %5074 = vmatpush2.msra.mxu0 0.0
    %5075 = vmatprep.subr.mxu0 0.0
    %5076 = vmatpush2.msra.mxu0 0.0
    %5077 = vmatprep.subr.mxu0 0.0
    %5078 = vmatpush2.msra.mxu0 0.0
    %5079 = vmatprep.subr.mxu0 0.0
    %5080 = vmatpush2.msra.mxu0 0.0
    %5081 = vmatprep.subr.mxu0 0.0
    %5082 = vmatpush2.msra.mxu0 0.0
    %5083 = vmatprep.subr.mxu0 0.0
    %5084 = vmatpush2.msra.mxu0 0.0
    %5085 = vmatprep.subr.mxu0 0.0
    %5086 = vmatpush2.msra.mxu0 0.0
    %5087 = vmatprep.subr.mxu0 0.0
    %5088 = vmatpush2.msra.mxu0 0.0
    %5089 = vmatprep.mubr.f32.mxu0 0.0
    %5090 = vmatmul.mubr.f32.gmra.mxu0 %v3005
    %v5091 = vpop.f32.mrf.mxu0
    %v5092 = vadd.f32 0.0, %v5091
    %v5093 = vpop.f32.mrf.mxu0
    %5094 = vmatprep.mubr.f32.mxu0 0.0
    %5095 = vmatmul.mubr.f32.gmra.mxu0 %v3008
    %v5096 = vpop.f32.mrf.mxu0
    %v5097 = vadd.f32 0.0, %v5096
    %v5098 = vpop.f32.mrf.mxu0
    %5099 = vdwg.mxu0
    %s5100 = scalar_lea.vmem %s6, 224
    %v5101 = vld [vmem:[%s5100] sm:$0xff]
    %v5102 = vld [vmem:[%s5100 + $0x8] sm:$0xff]
    %v5103 = vld [vmem:[%s5100 + $0x10] sm:$0xff]
    %v5104 = vld [vmem:[%s5100 + $0x18] sm:$0xff]
    %5105 = vmatprep.subr.mxu0 0.0
    %5106 = vmatpush1.msra.mxu0 0.0
    %5107 = vmatprep.subr.mxu0 0.0
    %5108 = vmatpush1.msra.mxu0 0.0
    %5109 = vmatprep.subr.mxu0 0.0
    %5110 = vmatpush1.msra.mxu0 0.0
    %5111 = vmatprep.subr.mxu0 0.0
    %5112 = vmatpush1.msra.mxu0 0.0
    %5113 = vmatprep.subr.mxu0 0.0
    %5114 = vmatpush1.msra.mxu0 0.0
    %5115 = vmatprep.subr.mxu0 0.0
    %5116 = vmatpush1.msra.mxu0 0.0
    %5117 = vmatprep.subr.mxu0 0.0
    %5118 = vmatpush1.msra.mxu0 0.0
    %5119 = vmatprep.subr.mxu0 0.0
    %5120 = vmatpush1.msra.mxu0 0.0
    %5121 = vmatprep.subr.mxu0 0.0
    %5122 = vmatpush1.msra.mxu0 0.0
    %5123 = vmatprep.subr.mxu0 0.0
    %5124 = vmatpush1.msra.mxu0 0.0
    %5125 = vmatprep.subr.mxu0 0.0
    %5126 = vmatpush1.msra.mxu0 0.0
    %5127 = vmatprep.subr.mxu0 0.0
    %5128 = vmatpush1.msra.mxu0 0.0
    %5129 = vmatprep.subr.mxu0 0.0
    %5130 = vmatpush1.msra.mxu0 %v5104
    %5131 = vmatprep.subr.mxu0 0.0
    %5132 = vmatpush1.msra.mxu0 %v5103
    %5133 = vmatprep.subr.mxu0 0.0
    %5134 = vmatpush1.msra.mxu0 %v5102
    %5135 = vmatprep.subr.mxu0 0.0
    %5136 = vmatpush1.msra.mxu0 %v5101
    %5137 = vmatprep.subr.mxu0 0.0
    %5138 = vmatpush2.msra.mxu0 0.0
    %5139 = vmatprep.subr.mxu0 0.0
    %5140 = vmatpush2.msra.mxu0 0.0
    %5141 = vmatprep.subr.mxu0 0.0
    %5142 = vmatpush2.msra.mxu0 0.0
    %5143 = vmatprep.subr.mxu0 0.0
    %5144 = vmatpush2.msra.mxu0 0.0
    %5145 = vmatprep.subr.mxu0 0.0
    %5146 = vmatpush2.msra.mxu0 0.0
    %5147 = vmatprep.subr.mxu0 0.0
    %5148 = vmatpush2.msra.mxu0 0.0
    %5149 = vmatprep.subr.mxu0 0.0
    %5150 = vmatpush2.msra.mxu0 0.0
    %5151 = vmatprep.subr.mxu0 0.0
    %5152 = vmatpush2.msra.mxu0 0.0
    %5153 = vmatprep.subr.mxu0 0.0
    %5154 = vmatpush2.msra.mxu0 0.0
    %5155 = vmatprep.subr.mxu0 0.0
    %5156 = vmatpush2.msra.mxu0 0.0
    %5157 = vmatprep.subr.mxu0 0.0
    %5158 = vmatpush2.msra.mxu0 0.0
    %5159 = vmatprep.subr.mxu0 0.0
    %5160 = vmatpush2.msra.mxu0 0.0
    %5161 = vmatprep.subr.mxu0 0.0
    %5162 = vmatpush2.msra.mxu0 0.0
    %5163 = vmatprep.subr.mxu0 0.0
    %5164 = vmatpush2.msra.mxu0 0.0
    %5165 = vmatprep.subr.mxu0 0.0
    %5166 = vmatpush2.msra.mxu0 0.0
    %5167 = vmatprep.subr.mxu0 0.0
    %5168 = vmatpush2.msra.mxu0 0.0
    %5169 = vmatprep.mubr.f32.mxu0 0.0
    %5170 = vmatmul.mubr.f32.gmra.mxu0 %v3005
    %v5171 = vpop.f32.mrf.mxu0
    %v5172 = vadd.f32 0.0, %v5171
    %v5173 = vpop.f32.mrf.mxu0
    %5174 = vmatprep.mubr.f32.mxu0 0.0
    %5175 = vmatmul.mubr.f32.gmra.mxu0 %v3008
    %v5176 = vpop.f32.mrf.mxu0
    %v5177 = vadd.f32 0.0, %v5176
    %v5178 = vpop.f32.mrf.mxu0
    %5179 = vdwg.mxu0
    %v5181 = vsel %vm434, %v5012, 0
    %v5184 = vsel %vm434, %v5092, 0
    %5186 = vmatprep.subr.mxu0 0.0
    %5187 = vmatpush1.xpose.msra.mxu0 0.0
    %5188 = vmatprep.subr.mxu0 0.0
    %5189 = vmatpush1.xpose.msra.mxu0 0.0
    %5190 = vmatprep.subr.mxu0 0.0
    %5191 = vmatpush1.xpose.msra.mxu0 0.0
    %5192 = vmatprep.subr.mxu0 0.0
    %5193 = vmatpush1.xpose.msra.mxu0 0.0
    %5194 = vmatprep.subr.mxu0 0.0
    %5195 = vmatpush1.xpose.msra.mxu0 0.0
    %5196 = vmatprep.subr.mxu0 0.0
    %5197 = vmatpush1.xpose.msra.mxu0 0.0
    %5198 = vmatprep.subr.mxu0 0.0
    %5199 = vmatpush1.xpose.msra.mxu0 0.0
    %5200 = vmatprep.subr.mxu0 0.0
    %5201 = vmatpush1.xpose.msra.mxu0 0.0
    %5202 = vmatprep.subr.mxu0 0.0
    %5203 = vmatpush1.xpose.msra.mxu0 0.0
    %5204 = vmatprep.subr.mxu0 0.0
    %5205 = vmatpush1.xpose.msra.mxu0 0.0
    %5206 = vmatprep.subr.mxu0 0.0
    %5207 = vmatpush1.xpose.msra.mxu0 0.0
    %5208 = vmatprep.subr.mxu0 0.0
    %5209 = vmatpush1.xpose.msra.mxu0 0.0
    %5210 = vmatprep.subr.mxu0 0.0
    %5211 = vmatpush1.xpose.msra.mxu0 0.0
    %5212 = vmatprep.subr.mxu0 0.0
    %5213 = vmatpush1.xpose.msra.mxu0 0.0
    %5214 = vmatprep.subr.mxu0 0.0
    %5215 = vmatpush1.xpose.msra.mxu0 0.0
    %5216 = vmatprep.subr.mxu0 0.0
    %5217 = vmatpush1.xpose.msra.mxu0 %v5184
    %5218 = vmatprep.subr.mxu0 0.0
    %5219 = vmatpush2.xpose.msra.mxu0 0.0
    %5220 = vmatprep.subr.mxu0 0.0
    %5221 = vmatpush2.xpose.msra.mxu0 0.0
    %5222 = vmatprep.subr.mxu0 0.0
    %5223 = vmatpush2.xpose.msra.mxu0 0.0
    %5224 = vmatprep.subr.mxu0 0.0
    %5225 = vmatpush2.xpose.msra.mxu0 0.0
    %5226 = vmatprep.subr.mxu0 0.0
    %5227 = vmatpush2.xpose.msra.mxu0 0.0
    %5228 = vmatprep.subr.mxu0 0.0
    %5229 = vmatpush2.xpose.msra.mxu0 0.0
    %5230 = vmatprep.subr.mxu0 0.0
    %5231 = vmatpush2.xpose.msra.mxu0 0.0
    %5232 = vmatprep.subr.mxu0 0.0
    %5233 = vmatpush2.xpose.msra.mxu0 0.0
    %5234 = vmatprep.subr.mxu0 0.0
    %5235 = vmatpush2.xpose.msra.mxu0 0.0
    %5236 = vmatprep.subr.mxu0 0.0
    %5237 = vmatpush2.xpose.msra.mxu0 0.0
    %5238 = vmatprep.subr.mxu0 0.0
    %5239 = vmatpush2.xpose.msra.mxu0 0.0
    %5240 = vmatprep.subr.mxu0 0.0
    %5241 = vmatpush2.xpose.msra.mxu0 0.0
    %5242 = vmatprep.subr.mxu0 0.0
    %5243 = vmatpush2.xpose.msra.mxu0 0.0
    %5244 = vmatprep.subr.mxu0 0.0
    %5245 = vmatpush2.xpose.msra.mxu0 0.0
    %5246 = vmatprep.subr.mxu0 0.0
    %5247 = vmatpush2.xpose.msra.mxu0 0.0
    %5248 = vmatprep.subr.mxu0 0.0
    %5249 = vmatpush2.xpose.msra.mxu0 0.0
    %5250 = vmatprep.mubr.f32.mxu0 0.0
    %5251 = vmatmul.mubr.f32.gmra.mxu0 %v5181
    %v5252 = vpop.f32.mrf.mxu0
    %v5253 = vadd.f32 %v159, %v5252
    %v5254 = vpop.f32.mrf.mxu0
    %5255 = vdwg.mxu0
    %v5257 = vsel %vm434, %v5017, 0
    %v5260 = vsel %vm434, %v5097, 0
    %5262 = vmatprep.subr.mxu0 0.0
    %5263 = vmatpush1.xpose.msra.mxu0 0.0
    %5264 = vmatprep.subr.mxu0 0.0
    %5265 = vmatpush1.xpose.msra.mxu0 0.0
    %5266 = vmatprep.subr.mxu0 0.0
    %5267 = vmatpush1.xpose.msra.mxu0 0.0
    %5268 = vmatprep.subr.mxu0 0.0
    %5269 = vmatpush1.xpose.msra.mxu0 0.0
    %5270 = vmatprep.subr.mxu0 0.0
    %5271 = vmatpush1.xpose.msra.mxu0 0.0
    %5272 = vmatprep.subr.mxu0 0.0
    %5273 = vmatpush1.xpose.msra.mxu0 0.0
    %5274 = vmatprep.subr.mxu0 0.0
    %5275 = vmatpush1.xpose.msra.mxu0 0.0
    %5276 = vmatprep.subr.mxu0 0.0
    %5277 = vmatpush1.xpose.msra.mxu0 0.0
    %5278 = vmatprep.subr.mxu0 0.0
    %5279 = vmatpush1.xpose.msra.mxu0 0.0
    %5280 = vmatprep.subr.mxu0 0.0
    %5281 = vmatpush1.xpose.msra.mxu0 0.0
    %5282 = vmatprep.subr.mxu0 0.0
    %5283 = vmatpush1.xpose.msra.mxu0 0.0
    %5284 = vmatprep.subr.mxu0 0.0
    %5285 = vmatpush1.xpose.msra.mxu0 0.0
    %5286 = vmatprep.subr.mxu0 0.0
    %5287 = vmatpush1.xpose.msra.mxu0 0.0
    %5288 = vmatprep.subr.mxu0 0.0
    %5289 = vmatpush1.xpose.msra.mxu0 0.0
    %5290 = vmatprep.subr.mxu0 0.0
    %5291 = vmatpush1.xpose.msra.mxu0 0.0
    %5292 = vmatprep.subr.mxu0 0.0
    %5293 = vmatpush1.xpose.msra.mxu0 %v5260
    %5294 = vmatprep.subr.mxu0 0.0
    %5295 = vmatpush2.xpose.msra.mxu0 0.0
    %5296 = vmatprep.subr.mxu0 0.0
    %5297 = vmatpush2.xpose.msra.mxu0 0.0
    %5298 = vmatprep.subr.mxu0 0.0
    %5299 = vmatpush2.xpose.msra.mxu0 0.0
    %5300 = vmatprep.subr.mxu0 0.0
    %5301 = vmatpush2.xpose.msra.mxu0 0.0
    %5302 = vmatprep.subr.mxu0 0.0
    %5303 = vmatpush2.xpose.msra.mxu0 0.0
    %5304 = vmatprep.subr.mxu0 0.0
    %5305 = vmatpush2.xpose.msra.mxu0 0.0
    %5306 = vmatprep.subr.mxu0 0.0
    %5307 = vmatpush2.xpose.msra.mxu0 0.0
    %5308 = vmatprep.subr.mxu0 0.0
    %5309 = vmatpush2.xpose.msra.mxu0 0.0
    %5310 = vmatprep.subr.mxu0 0.0
    %5311 = vmatpush2.xpose.msra.mxu0 0.0
    %5312 = vmatprep.subr.mxu0 0.0
    %5313 = vmatpush2.xpose.msra.mxu0 0.0
    %5314 = vmatprep.subr.mxu0 0.0
    %5315 = vmatpush2.xpose.msra.mxu0 0.0
    %5316 = vmatprep.subr.mxu0 0.0
    %5317 = vmatpush2.xpose.msra.mxu0 0.0
    %5318 = vmatprep.subr.mxu0 0.0
    %5319 = vmatpush2.xpose.msra.mxu0 0.0
    %5320 = vmatprep.subr.mxu0 0.0
    %5321 = vmatpush2.xpose.msra.mxu0 0.0
    %5322 = vmatprep.subr.mxu0 0.0
    %5323 = vmatpush2.xpose.msra.mxu0 0.0
    %5324 = vmatprep.subr.mxu0 0.0
    %5325 = vmatpush2.xpose.msra.mxu0 0.0
    %5326 = vmatprep.mubr.f32.mxu0 0.0
    %5327 = vmatmul.mubr.f32.gmra.mxu0 %v5257
    %v5328 = vpop.f32.mrf.mxu0
    %v5329 = vadd.f32 %v163, %v5328
    %v5330 = vpop.f32.mrf.mxu0
    %5331 = vdwg.mxu0
    %v5332 = vsel %vm434, %v5253, -inf
    %5333 = vmax.xlane.f32.xlu0 %v5332
    %v5334 = vpop.xlane.xlu0 %5333
    %v5335 = vsel %vm434, %v5329, -inf
    %5336 = vmax.xlane.f32.xlu0 %v5335
    %v5337 = vpop.xlane.xlu0 %5336
    %v5338 = vsub.f32 %v5253, %v5334
    %v5339 = vsub.f32 %v5329, %v5337
    %v5340 = vmul.f32 %v5338, 1.442695
    %v5341 = vpow.pop %v5340
    %v5342 = vmul.f32 %v5339, 1.442695
    %v5343 = vpow.pop %v5342
    %v5344 = vsel %vm434, %v5341, 0.0
    %5345 = vadd.xlane.f32.xlu0 %v5344
    %v5346 = vpop.xlane.xlu0 %5345
    %v5347 = vsel %vm434, %v5343, 0.0
    %5348 = vadd.xlane.f32.xlu0 %v5347
    %v5349 = vpop.xlane.xlu0 %5348
    %v5350 = vrcp.pop %v5346
    %v5351 = vmul.f32 %v5341, %v5350
    %v5352 = vrcp.pop %v5349
    %v5353 = vmul.f32 %v5343, %v5352
    %v5355 = vsel %vm434, %v5351, 0
    %5357 = vmatprep.subr.mxu0 0.0
    %5358 = vmatpush1.msra.mxu0 0.0
    %5359 = vmatprep.subr.mxu0 0.0
    %5360 = vmatpush1.msra.mxu0 0.0
    %5361 = vmatprep.subr.mxu0 0.0
    %5362 = vmatpush1.msra.mxu0 0.0
    %5363 = vmatprep.subr.mxu0 0.0
    %5364 = vmatpush1.msra.mxu0 0.0
    %5365 = vmatprep.subr.mxu0 0.0
    %5366 = vmatpush1.msra.mxu0 0.0
    %5367 = vmatprep.subr.mxu0 0.0
    %5368 = vmatpush1.msra.mxu0 0.0
    %5369 = vmatprep.subr.mxu0 0.0
    %5370 = vmatpush1.msra.mxu0 0.0
    %5371 = vmatprep.subr.mxu0 0.0
    %5372 = vmatpush1.msra.mxu0 0.0
    %5373 = vmatprep.subr.mxu0 0.0
    %5374 = vmatpush1.msra.mxu0 0.0
    %5375 = vmatprep.subr.mxu0 0.0
    %5376 = vmatpush1.msra.mxu0 0.0
    %5377 = vmatprep.subr.mxu0 0.0
    %5378 = vmatpush1.msra.mxu0 0.0
    %5379 = vmatprep.subr.mxu0 0.0
    %5380 = vmatpush1.msra.mxu0 0.0
    %5381 = vmatprep.subr.mxu0 0.0
    %5382 = vmatpush1.msra.mxu0 0.0
    %5383 = vmatprep.subr.mxu0 0.0
    %5384 = vmatpush1.msra.mxu0 0.0
    %5385 = vmatprep.subr.mxu0 0.0
    %5386 = vmatpush1.msra.mxu0 0.0
    %5387 = vmatprep.subr.mxu0 0.0
    %5388 = vmatpush1.msra.mxu0 %v5172
    %5389 = vmatprep.subr.mxu0 0.0
    %5390 = vmatpush2.msra.mxu0 0.0
    %5391 = vmatprep.subr.mxu0 0.0
    %5392 = vmatpush2.msra.mxu0 0.0
    %5393 = vmatprep.subr.mxu0 0.0
    %5394 = vmatpush2.msra.mxu0 0.0
    %5395 = vmatprep.subr.mxu0 0.0
    %5396 = vmatpush2.msra.mxu0 0.0
    %5397 = vmatprep.subr.mxu0 0.0
    %5398 = vmatpush2.msra.mxu0 0.0
    %5399 = vmatprep.subr.mxu0 0.0
    %5400 = vmatpush2.msra.mxu0 0.0
    %5401 = vmatprep.subr.mxu0 0.0
    %5402 = vmatpush2.msra.mxu0 0.0
    %5403 = vmatprep.subr.mxu0 0.0
    %5404 = vmatpush2.msra.mxu0 0.0
    %5405 = vmatprep.subr.mxu0 0.0
    %5406 = vmatpush2.msra.mxu0 0.0
    %5407 = vmatprep.subr.mxu0 0.0
    %5408 = vmatpush2.msra.mxu0 0.0
    %5409 = vmatprep.subr.mxu0 0.0
    %5410 = vmatpush2.msra.mxu0 0.0
    %5411 = vmatprep.subr.mxu0 0.0
    %5412 = vmatpush2.msra.mxu0 0.0
    %5413 = vmatprep.subr.mxu0 0.0
    %5414 = vmatpush2.msra.mxu0 0.0
    %5415 = vmatprep.subr.mxu0 0.0
    %5416 = vmatpush2.msra.mxu0 0.0
    %5417 = vmatprep.subr.mxu0 0.0
    %5418 = vmatpush2.msra.mxu0 0.0
    %5419 = vmatprep.subr.mxu0 0.0
    %5420 = vmatpush2.msra.mxu0 0.0
    %5421 = vmatprep.mubr.f32.mxu0 0.0
    %5422 = vmatmul.mubr.f32.gmra.mxu0 %v5355
    %v5423 = vpop.f32.mrf.mxu0
    %v5424 = vadd.f32 0.0, %v5423
    %v5425 = vpop.f32.mrf.mxu0
    %5426 = vdwg.mxu0
    %v5428 = vsel %vm434, %v5353, 0
    %5430 = vmatprep.subr.mxu0 0.0
    %5431 = vmatpush1.msra.mxu0 0.0
    %5432 = vmatprep.subr.mxu0 0.0
    %5433 = vmatpush1.msra.mxu0 0.0
    %5434 = vmatprep.subr.mxu0 0.0
    %5435 = vmatpush1.msra.mxu0 0.0
    %5436 = vmatprep.subr.mxu0 0.0
    %5437 = vmatpush1.msra.mxu0 0.0
    %5438 = vmatprep.subr.mxu0 0.0
    %5439 = vmatpush1.msra.mxu0 0.0
    %5440 = vmatprep.subr.mxu0 0.0
    %5441 = vmatpush1.msra.mxu0 0.0
    %5442 = vmatprep.subr.mxu0 0.0
    %5443 = vmatpush1.msra.mxu0 0.0
    %5444 = vmatprep.subr.mxu0 0.0
    %5445 = vmatpush1.msra.mxu0 0.0
    %5446 = vmatprep.subr.mxu0 0.0
    %5447 = vmatpush1.msra.mxu0 0.0
    %5448 = vmatprep.subr.mxu0 0.0
    %5449 = vmatpush1.msra.mxu0 0.0
    %5450 = vmatprep.subr.mxu0 0.0
    %5451 = vmatpush1.msra.mxu0 0.0
    %5452 = vmatprep.subr.mxu0 0.0
    %5453 = vmatpush1.msra.mxu0 0.0
    %5454 = vmatprep.subr.mxu0 0.0
    %5455 = vmatpush1.msra.mxu0 0.0
    %5456 = vmatprep.subr.mxu0 0.0
    %5457 = vmatpush1.msra.mxu0 0.0
    %5458 = vmatprep.subr.mxu0 0.0
    %5459 = vmatpush1.msra.mxu0 0.0
    %5460 = vmatprep.subr.mxu0 0.0
    %5461 = vmatpush1.msra.mxu0 %v5177
    %5462 = vmatprep.subr.mxu0 0.0
    %5463 = vmatpush2.msra.mxu0 0.0
    %5464 = vmatprep.subr.mxu0 0.0
    %5465 = vmatpush2.msra.mxu0 0.0
    %5466 = vmatprep.subr.mxu0 0.0
    %5467 = vmatpush2.msra.mxu0 0.0
    %5468 = vmatprep.subr.mxu0 0.0
    %5469 = vmatpush2.msra.mxu0 0.0
    %5470 = vmatprep.subr.mxu0 0.0
    %5471 = vmatpush2.msra.mxu0 0.0
    %5472 = vmatprep.subr.mxu0 0.0
    %5473 = vmatpush2.msra.mxu0 0.0
    %5474 = vmatprep.subr.mxu0 0.0
    %5475 = vmatpush2.msra.mxu0 0.0
    %5476 = vmatprep.subr.mxu0 0.0
    %5477 = vmatpush2.msra.mxu0 0.0
    %5478 = vmatprep.subr.mxu0 0.0
    %5479 = vmatpush2.msra.mxu0 0.0
    %5480 = vmatprep.subr.mxu0 0.0
    %5481 = vmatpush2.msra.mxu0 0.0
    %5482 = vmatprep.subr.mxu0 0.0
    %5483 = vmatpush2.msra.mxu0 0.0
    %5484 = vmatprep.subr.mxu0 0.0
    %5485 = vmatpush2.msra.mxu0 0.0
    %5486 = vmatprep.subr.mxu0 0.0
    %5487 = vmatpush2.msra.mxu0 0.0
    %5488 = vmatprep.subr.mxu0 0.0
    %5489 = vmatpush2.msra.mxu0 0.0
    %5490 = vmatprep.subr.mxu0 0.0
    %5491 = vmatpush2.msra.mxu0 0.0
    %5492 = vmatprep.subr.mxu0 0.0
    %5493 = vmatpush2.msra.mxu0 0.0
    %5494 = vmatprep.mubr.f32.mxu0 0.0
    %5495 = vmatmul.mubr.f32.gmra.mxu0 %v5428
    %v5496 = vpop.f32.mrf.mxu0
    %v5497 = vadd.f32 0.0, %v5496
    %v5498 = vpop.f32.mrf.mxu0
    %5499 = vdwg.mxu0
    %s5500 = scalar_lea.vmem %s7, 56
    %v5501 = vld [vmem:[%s5500] sm:$0xff]
    %v5503 = vsel %vm434, %v5424, 0
    %v5506 = vsel %vm434, %v5497, 0
    %5508 = vmatprep.subr.mxu0 0.0
    %5509 = vmatpush1.msra.mxu0 0.0
    %5510 = vmatprep.subr.mxu0 0.0
    %5511 = vmatpush1.msra.mxu0 0.0
    %5512 = vmatprep.subr.mxu0 0.0
    %5513 = vmatpush1.msra.mxu0 0.0
    %5514 = vmatprep.subr.mxu0 0.0
    %5515 = vmatpush1.msra.mxu0 0.0
    %5516 = vmatprep.subr.mxu0 0.0
    %5517 = vmatpush1.msra.mxu0 0.0
    %5518 = vmatprep.subr.mxu0 0.0
    %5519 = vmatpush1.msra.mxu0 0.0
    %5520 = vmatprep.subr.mxu0 0.0
    %5521 = vmatpush1.msra.mxu0 0.0
    %5522 = vmatprep.subr.mxu0 0.0
    %5523 = vmatpush1.msra.mxu0 0.0
    %5524 = vmatprep.subr.mxu0 0.0
    %5525 = vmatpush1.msra.mxu0 0.0
    %5526 = vmatprep.subr.mxu0 0.0
    %5527 = vmatpush1.msra.mxu0 0.0
    %5528 = vmatprep.subr.mxu0 0.0
    %5529 = vmatpush1.msra.mxu0 0.0
    %5530 = vmatprep.subr.mxu0 0.0
    %5531 = vmatpush1.msra.mxu0 0.0
    %5532 = vmatprep.subr.mxu0 0.0
    %5533 = vmatpush1.msra.mxu0 0.0
    %5534 = vmatprep.subr.mxu0 0.0
    %5535 = vmatpush1.msra.mxu0 0.0
    %5536 = vmatprep.subr.mxu0 0.0
    %5537 = vmatpush1.msra.mxu0 0.0
    %5538 = vmatprep.subr.mxu0 0.0
    %5539 = vmatpush1.msra.mxu0 %v5501
    %5540 = vmatprep.subr.mxu0 0.0
    %5541 = vmatpush2.msra.mxu0 0.0
    %5542 = vmatprep.subr.mxu0 0.0
    %5543 = vmatpush2.msra.mxu0 0.0
    %5544 = vmatprep.subr.mxu0 0.0
    %5545 = vmatpush2.msra.mxu0 0.0
    %5546 = vmatprep.subr.mxu0 0.0
    %5547 = vmatpush2.msra.mxu0 0.0
    %5548 = vmatprep.subr.mxu0 0.0
    %5549 = vmatpush2.msra.mxu0 0.0
    %5550 = vmatprep.subr.mxu0 0.0
    %5551 = vmatpush2.msra.mxu0 0.0
    %5552 = vmatprep.subr.mxu0 0.0
    %5553 = vmatpush2.msra.mxu0 0.0
    %5554 = vmatprep.subr.mxu0 0.0
    %5555 = vmatpush2.msra.mxu0 0.0
    %5556 = vmatprep.subr.mxu0 0.0
    %5557 = vmatpush2.msra.mxu0 0.0
    %5558 = vmatprep.subr.mxu0 0.0
    %5559 = vmatpush2.msra.mxu0 0.0
    %5560 = vmatprep.subr.mxu0 0.0
    %5561 = vmatpush2.msra.mxu0 0.0
    %5562 = vmatprep.subr.mxu0 0.0
    %5563 = vmatpush2.msra.mxu0 0.0
    %5564 = vmatprep.subr.mxu0 0.0
    %5565 = vmatpush2.msra.mxu0 0.0
    %5566 = vmatprep.subr.mxu0 0.0
    %5567 = vmatpush2.msra.mxu0 0.0
    %5568 = vmatprep.subr.mxu0 0.0
    %5569 = vmatpush2.msra.mxu0 0.0
    %5570 = vmatprep.subr.mxu0 0.0
    %5571 = vmatpush2.msra.mxu0 0.0
    %5572 = vmatprep.mubr.f32.mxu0 0.0
    %5573 = vmatmul.mubr.f32.gmra.mxu0 %v5503
    %v5574 = vpop.f32.mrf.mxu0
    %v5575 = vadd.f32 0.0, %v5574
    %v5576 = vpop.f32.mrf.mxu0
    %5577 = vmatprep.mubr.f32.mxu0 0.0
    %5578 = vmatmul.mubr.f32.gmra.mxu0 %v5506
    %v5579 = vpop.f32.mrf.mxu0
    %v5580 = vadd.f32 0.0, %v5579
    %v5581 = vpop.f32.mrf.mxu0
    %5582 = vdwg.mxu0
    %v5583 = vadd.f32 %v4938, %v5575
    %v5584 = vadd.f32 %v4939, %v5580
    %v5585 = vmul.f32 %v5583, %v5583
    %v5586 = vmul.f32 %v5584, %v5584
    %v5587 = vsel %vm168, %v5585, 0.0
    %5588 = vadd.xlane.f32.xlu0 %v5587
    %v5589 = vpop.xlane.xlu0 %5588
    %v5590 = vsel %vm168, %v5586, 0.0
    %5591 = vadd.xlane.f32.xlu0 %v5590
    %v5592 = vpop.xlane.xlu0 %5591
    %v5593 = vmul.f32 %v5589, %v175
    %v5594 = vmul.f32 %v5592, %v175
    %v5595 = vadd.f32 %v5593, 1e-06
    %v5596 = vadd.f32 %v5594, 1e-06
    %v5597 = vrsqrt.pop %v5595
    %v5598 = vrsqrt.pop %v5596
    %v5599 = vmul.f32 %v5583, %v5597
    %v5600 = vmul.f32 %v5584, %v5598
    %v5601 = vld [vmem:[%s8 + $0x1] sm:$0x1]
    %v5602 = vlaneseq
    %v5603 = vshrl.u32 %v5602, 7
    %v5604 = vsub.s32 0, %v5603
    %v5605 = vrot.slane %v5601, %v5604
    %v5606 = vmul.f32 %v5599, %v5605
    %v5607 = vmul.f32 %v5600, %v5605
    %s5608 = scalar_lea.vmem %s9, 32
    %v5609 = vld [vmem:[%s5608] sm:$0xff]
    %v5610 = vld [vmem:[%s5608 + $0x8] sm:$0xff]
    %v5611 = vld [vmem:[%s5608 + $0x10] sm:$0xff]
    %v5612 = vld [vmem:[%s5608 + $0x18] sm:$0xff]
    %v5614 = vsel %vm168, %v5606, 0
    %v5617 = vsel %vm168, %v5607, 0
    %5619 = vmatprep.subr.mxu0 0.0
    %5620 = vmatpush1.msra.mxu0 0.0
    %5621 = vmatprep.subr.mxu0 0.0
    %5622 = vmatpush1.msra.mxu0 0.0
    %5623 = vmatprep.subr.mxu0 0.0
    %5624 = vmatpush1.msra.mxu0 0.0
    %5625 = vmatprep.subr.mxu0 0.0
    %5626 = vmatpush1.msra.mxu0 0.0
    %5627 = vmatprep.subr.mxu0 0.0
    %5628 = vmatpush1.msra.mxu0 0.0
    %5629 = vmatprep.subr.mxu0 0.0
    %5630 = vmatpush1.msra.mxu0 0.0
    %5631 = vmatprep.subr.mxu0 0.0
    %5632 = vmatpush1.msra.mxu0 0.0
    %5633 = vmatprep.subr.mxu0 0.0
    %5634 = vmatpush1.msra.mxu0 0.0
    %5635 = vmatprep.subr.mxu0 0.0
    %5636 = vmatpush1.msra.mxu0 0.0
    %5637 = vmatprep.subr.mxu0 0.0
    %5638 = vmatpush1.msra.mxu0 0.0
    %5639 = vmatprep.subr.mxu0 0.0
    %5640 = vmatpush1.msra.mxu0 0.0
    %5641 = vmatprep.subr.mxu0 0.0
    %5642 = vmatpush1.msra.mxu0 0.0
    %5643 = vmatprep.subr.mxu0 0.0
    %5644 = vmatpush1.msra.mxu0 %v5612
    %5645 = vmatprep.subr.mxu0 0.0
    %5646 = vmatpush1.msra.mxu0 %v5611
    %5647 = vmatprep.subr.mxu0 0.0
    %5648 = vmatpush1.msra.mxu0 %v5610
    %5649 = vmatprep.subr.mxu0 0.0
    %5650 = vmatpush1.msra.mxu0 %v5609
    %5651 = vmatprep.subr.mxu0 0.0
    %5652 = vmatpush2.msra.mxu0 0.0
    %5653 = vmatprep.subr.mxu0 0.0
    %5654 = vmatpush2.msra.mxu0 0.0
    %5655 = vmatprep.subr.mxu0 0.0
    %5656 = vmatpush2.msra.mxu0 0.0
    %5657 = vmatprep.subr.mxu0 0.0
    %5658 = vmatpush2.msra.mxu0 0.0
    %5659 = vmatprep.subr.mxu0 0.0
    %5660 = vmatpush2.msra.mxu0 0.0
    %5661 = vmatprep.subr.mxu0 0.0
    %5662 = vmatpush2.msra.mxu0 0.0
    %5663 = vmatprep.subr.mxu0 0.0
    %5664 = vmatpush2.msra.mxu0 0.0
    %5665 = vmatprep.subr.mxu0 0.0
    %5666 = vmatpush2.msra.mxu0 0.0
    %5667 = vmatprep.subr.mxu0 0.0
    %5668 = vmatpush2.msra.mxu0 0.0
    %5669 = vmatprep.subr.mxu0 0.0
    %5670 = vmatpush2.msra.mxu0 0.0
    %5671 = vmatprep.subr.mxu0 0.0
    %5672 = vmatpush2.msra.mxu0 0.0
    %5673 = vmatprep.subr.mxu0 0.0
    %5674 = vmatpush2.msra.mxu0 0.0
    %5675 = vmatprep.subr.mxu0 0.0
    %5676 = vmatpush2.msra.mxu0 0.0
    %5677 = vmatprep.subr.mxu0 0.0
    %5678 = vmatpush2.msra.mxu0 0.0
    %5679 = vmatprep.subr.mxu0 0.0
    %5680 = vmatpush2.msra.mxu0 0.0
    %5681 = vmatprep.subr.mxu0 0.0
    %5682 = vmatpush2.msra.mxu0 0.0
    %5683 = vmatprep.mubr.f32.mxu0 0.0
    %5684 = vmatmul.mubr.f32.gmra.mxu0 %v5614
    %v5685 = vpop.f32.mrf.mxu0
    %v5686 = vadd.f32 0.0, %v5685
    %v5687 = vpop.f32.mrf.mxu0
    %5688 = vmatprep.mubr.f32.mxu0 0.0
    %5689 = vmatmul.mubr.f32.gmra.mxu0 %v5617
    %v5690 = vpop.f32.mrf.mxu0
    %v5691 = vadd.f32 0.0, %v5690
    %v5692 = vpop.f32.mrf.mxu0
    %5693 = vdwg.mxu0
    %v5694 = vmax.f32 %v5686, 0.0
    %v5695 = vmax.f32 %v5691, 0.0
    %s5696 = scalar_lea.vmem %s10, 64
    %v5697 = vld [vmem:[%s5696] sm:$0xff]
    %v5698 = vld [vmem:[%s5696 + $0x8] sm:$0xff]
    %v5699 = vld [vmem:[%s5696 + $0x10] sm:$0xff]
    %v5700 = vld [vmem:[%s5696 + $0x18] sm:$0xff]
    %v5701 = vld [vmem:[%s5696 + $0x20] sm:$0xff]
    %v5702 = vld [vmem:[%s5696 + $0x28] sm:$0xff]
    %v5703 = vld [vmem:[%s5696 + $0x30] sm:$0xff]
    %v5704 = vld [vmem:[%s5696 + $0x38] sm:$0xff]
    %v5706 = vsel %vm2892, %v5694, 0
    %v5709 = vsel %vm2892, %v5695, 0
    %5711 = vmatprep.subr.mxu0 0.0
    %5712 = vmatpush1.msra.mxu0 0.0
    %5713 = vmatprep.subr.mxu0 0.0
    %5714 = vmatpush1.msra.mxu0 0.0
    %5715 = vmatprep.subr.mxu0 0.0
    %5716 = vmatpush1.msra.mxu0 0.0
    %5717 = vmatprep.subr.mxu0 0.0
    %5718 = vmatpush1.msra.mxu0 0.0
    %5719 = vmatprep.subr.mxu0 0.0
    %5720 = vmatpush1.msra.mxu0 0.0
    %5721 = vmatprep.subr.mxu0 0.0
    %5722 = vmatpush1.msra.mxu0 0.0
    %5723 = vmatprep.subr.mxu0 0.0
    %5724 = vmatpush1.msra.mxu0 0.0
    %5725 = vmatprep.subr.mxu0 0.0
    %5726 = vmatpush1.msra.mxu0 0.0
    %5727 = vmatprep.subr.mxu0 0.0
    %5728 = vmatpush1.msra.mxu0 %v5704
    %5729 = vmatprep.subr.mxu0 0.0
    %5730 = vmatpush1.msra.mxu0 %v5703
    %5731 = vmatprep.subr.mxu0 0.0
    %5732 = vmatpush1.msra.mxu0 %v5702
    %5733 = vmatprep.subr.mxu0 0.0
    %5734 = vmatpush1.msra.mxu0 %v5701
    %5735 = vmatprep.subr.mxu0 0.0
    %5736 = vmatpush1.msra.mxu0 %v5700
    %5737 = vmatprep.subr.mxu0 0.0
    %5738 = vmatpush1.msra.mxu0 %v5699
    %5739 = vmatprep.subr.mxu0 0.0
    %5740 = vmatpush1.msra.mxu0 %v5698
    %5741 = vmatprep.subr.mxu0 0.0
    %5742 = vmatpush1.msra.mxu0 %v5697
    %5743 = vmatprep.subr.mxu0 0.0
    %5744 = vmatpush2.msra.mxu0 0.0
    %5745 = vmatprep.subr.mxu0 0.0
    %5746 = vmatpush2.msra.mxu0 0.0
    %5747 = vmatprep.subr.mxu0 0.0
    %5748 = vmatpush2.msra.mxu0 0.0
    %5749 = vmatprep.subr.mxu0 0.0
    %5750 = vmatpush2.msra.mxu0 0.0
    %5751 = vmatprep.subr.mxu0 0.0
    %5752 = vmatpush2.msra.mxu0 0.0
    %5753 = vmatprep.subr.mxu0 0.0
    %5754 = vmatpush2.msra.mxu0 0.0
    %5755 = vmatprep.subr.mxu0 0.0
    %5756 = vmatpush2.msra.mxu0 0.0
    %5757 = vmatprep.subr.mxu0 0.0
    %5758 = vmatpush2.msra.mxu0 0.0
    %5759 = vmatprep.subr.mxu0 0.0
    %5760 = vmatpush2.msra.mxu0 0.0
    %5761 = vmatprep.subr.mxu0 0.0
    %5762 = vmatpush2.msra.mxu0 0.0
    %5763 = vmatprep.subr.mxu0 0.0
    %5764 = vmatpush2.msra.mxu0 0.0
    %5765 = vmatprep.subr.mxu0 0.0
    %5766 = vmatpush2.msra.mxu0 0.0
    %5767 = vmatprep.subr.mxu0 0.0
    %5768 = vmatpush2.msra.mxu0 0.0
    %5769 = vmatprep.subr.mxu0 0.0
    %5770 = vmatpush2.msra.mxu0 0.0
    %5771 = vmatprep.subr.mxu0 0.0
    %5772 = vmatpush2.msra.mxu0 0.0
    %5773 = vmatprep.subr.mxu0 0.0
    %5774 = vmatpush2.msra.mxu0 0.0
    %5775 = vmatprep.mubr.f32.mxu0 0.0
    %5776 = vmatmul.mubr.f32.gmra.mxu0 %v5706
    %v5777 = vpop.f32.mrf.mxu0
    %v5778 = vadd.f32 0.0, %v5777
    %v5779 = vpop.f32.mrf.mxu0
    %5780 = vmatprep.mubr.f32.mxu0 0.0
    %5781 = vmatmul.mubr.f32.gmra.mxu0 %v5709
    %v5782 = vpop.f32.mrf.mxu0
    %v5783 = vadd.f32 0.0, %v5782
    %v5784 = vpop.f32.mrf.mxu0
    %5785 = vdwg.mxu0
    %v5786 = vadd.f32 %v5583, %v5778
    %v5787 = vadd.f32 %v5584, %v5783
    %v5788 = vmul.f32 %v5786, %v5786
    %v5789 = vmul.f32 %v5787, %v5787
    %v5790 = vsel %vm168, %v5788, 0.0
    %5791 = vadd.xlane.f32.xlu0 %v5790
    %v5792 = vpop.xlane.xlu0 %5791
    %v5793 = vsel %vm168, %v5789, 0.0
    %5794 = vadd.xlane.f32.xlu0 %v5793
    %v5795 = vpop.xlane.xlu0 %5794
    %v5796 = vmul.f32 %v5792, %v175
    %v5797 = vmul.f32 %v5795, %v175
    %v5798 = vadd.f32 %v5796, 1e-06
    %v5799 = vadd.f32 %v5797, 1e-06
    %v5800 = vrsqrt.pop %v5798
    %v5801 = vrsqrt.pop %v5799
    %v5802 = vmul.f32 %v5786, %v5800
    %v5803 = vmul.f32 %v5787, %v5801
    %v5804 = vld [vmem:[%s11] sm:$0x1]
    %v5806 = vlaneseq
    %v5807 = vshrl.u32 %v5806, 7
    %v5808 = vsub.s32 0, %v5807
    %v5809 = vrot.slane %v5804, %v5808
    %v5811 = vmul.f32 %v5802, %v5809
    %v5812 = vmul.f32 %v5803, %v5809
    %v5813 = vsel %vm168, %v5811, 0.0
    %v5814 = vrot.slane %v5813, 4
    %v5815 = vadd.f32 %v5813, %v5814
    %v5816 = vrot.slane %v5815, 2
    %v5817 = vadd.f32 %v5815, %v5816
    %v5818 = vrot.slane %v5817, 1
    %v5819 = vadd.f32 %v5817, %v5818
    %v5820 = vsel %vm168, %v5812, 0.0
    %v5821 = vrot.slane %v5820, 4
    %v5822 = vadd.f32 %v5820, %v5821
    %v5823 = vrot.slane %v5822, 2
    %v5824 = vadd.f32 %v5822, %v5823
    %v5825 = vrot.slane %v5824, 1
    %v5826 = vadd.f32 %v5824, %v5825
    %v5827 = vrcp.pop 8.0
    %v5828 = vmul.f32 %v5819, %v5827
    %v5829 = vmul.f32 %v5826, %v5827
    %v5830 = vld [vmem:[%s12] sm:$0x1]
    %v5832 = vlaneseq
    %v5833 = vshrl.u32 %v5832, 7
    %v5834 = vsub.s32 0, %v5833
    %v5835 = vrot.slane %v5830, %v5834
    %v5837 = vmul.f32 %v5828, %v5835
    %v5838 = vmul.f32 %v5829, %v5835
    %v5841 = vrot.slane %v5838, 7
    %vm5842 = vcmask 1041409
    %v5843 = vsel %vm5842, %v5841, %v5837
    %vm5845 = vcmask 254976
    %v5846 = vsel %vm5845, %v5843, 0.0
    %5847 = vadd.xlane.f32.xlu0 %v5846
    %v5848 = vpop.xlane.xlu0 %5847
    %v5849 = vld [vmem:[#allocation3] sm:$0x1]
    %v5851 = vlaneseq
    %v5852 = vshrl.u32 %v5851, 7
    %v5853 = vsub.s32 0, %v5852
    %v5854 = vrot.slane %v5849, %v5853
    %v5856 = vadd.f32 %v5848, %v5854
    %v5857 = vsub.f32 0.0, %v5856
    %v5858 = vmul.f32 %v5857, 1.442695
    %v5859 = vpow.pop %v5858
    %v5860 = vadd.f32 %v5859, 1.0
    %v5861 = vrcp.pop %v5860
    %v5862 = vmul.f32 1.0, %v5861
    %vm5863 = vcmask 1024
    %5864 = vst.msk [vmem:[%s14] sm:$0x3] %vm5863, %v5862
    // Predicated region
    $region62: #{forward.1} parent=1 // pred_check
      _
    $region63: #{forward.1} parent=1 // pred_check_branch
      %5866 = sbr.rel (0) target = $region65
    $region64: #{forward.1} parent=1 // pred_region
      _
    $region65: #{forward.1} parent=1 // pred_fallthru
      _
    // Predicated region
    $region66: #{forward.1} parent=1 // pred_check
      _
    $region67: #{forward.1} parent=1 // pred_check_branch
      %5868 = sbr.rel (0) target = $region69
    $region68: #{forward.1} parent=1 // pred_region
      _
    $region69: #{forward.1} parent=1 // pred_fallthru
      _
    %5869 = vsyncpa [#allocation5], 1

</llo_original>
